<compile_context>
chip_gen: v7x
topology: tpu7x:2x2x1
jax: 0.10.0
libtpu: 0.0.40
codegen_flags: <defaults>
</compile_context>

<pallas_src>
import functools

import jax
import jax.numpy as jnp
import numpy as np
from jax.experimental import pallas as pl

INPUT_SIZE = 64
HIDDEN_SIZE = 128
OUTPUT_SIZE = 3
NUM_LAYERS = 2
BIDIRECTIONAL = True
FC_PAD = 128  # pad the FC output to a full 128-lane width inside the kernel


# ----------------------------------------------------------------------------
# Fused Pallas kernel: GRU(2 layers, bidir) + Linear, fully VMEM-resident.
# ----------------------------------------------------------------------------
def _fused_gru_fc_kernel(
    x_ref,
    w0f_ih, w0f_hh, b0f_ih, b0f_hh,
    w0b_ih, w0b_hh, b0b_ih, b0b_hh,
    w1f_ih, w1f_hh, b1f_ih, b1f_hh,
    w1b_ih, w1b_hh, b1b_ih, b1b_hh,
    fcw_ref, fcb_ref,
    out_ref,
    *, seq_len, batch):
    H = HIDDEN_SIZE
    T, Bp = seq_len, batch

    def run_dir(gx, whh, bhh, reverse):
        """One GRU direction. gx: (T*Bp, 3H) precomputed input gates (b_ih folded in).
        Only the (Bp,H)@(H,3H) hidden matmul remains inside the serial loop."""
        h = jnp.zeros((Bp, H), jnp.float32)
        hs = [None] * T
        steps = range(T - 1, -1, -1) if reverse else range(T)
        for t in steps:  # T is small & static -> fully unrolled, static slices
            g = gx[t * Bp:(t + 1) * Bp, :]                       # (Bp, 3H)
            gh = jnp.dot(h, whh, preferred_element_type=jnp.float32) + bhh
            r = jax.nn.sigmoid(g[:, 0 * H:1 * H] + gh[:, 0 * H:1 * H])
            z = jax.nn.sigmoid(g[:, 1 * H:2 * H] + gh[:, 1 * H:2 * H])
            n = jnp.tanh(g[:, 2 * H:3 * H] + r * gh[:, 2 * H:3 * H])
            h = (1.0 - z) * n + z * h
            hs[t] = h
        return jnp.concatenate(hs, axis=0)                       # (T*Bp, H)

    x = x_ref[...]                                               # (T*Bp, D_in)

    # ---- layer 0 ------------------------------------------------------------
    gx0f = jnp.dot(x, w0f_ih[...], preferred_element_type=jnp.float32) + b0f_ih[...]
    h0f = run_dir(gx0f, w0f_hh[...], b0f_hh[...], reverse=False)
    gx0b = jnp.dot(x, w0b_ih[...], preferred_element_type=jnp.float32) + b0b_ih[...]
    h0b = run_dir(gx0b, w0b_hh[...], b0b_hh[...], reverse=True)
    l0 = jnp.concatenate([h0f, h0b], axis=1)                     # (T*Bp, 2H)

    # ---- layer 1 ------------------------------------------------------------
    gx1f = jnp.dot(l0, w1f_ih[...], preferred_element_type=jnp.float32) + b1f_ih[...]
    h1f = run_dir(gx1f, w1f_hh[...], b1f_hh[...], reverse=False)
    gx1b = jnp.dot(l0, w1b_ih[...], preferred_element_type=jnp.float32) + b1b_ih[...]
    h1b = run_dir(gx1b, w1b_hh[...], b1b_hh[...], reverse=True)
    l1 = jnp.concatenate([h1f, h1b], axis=1)                     # (T*Bp, 2H)

    # ---- FC head (output padded to 128 lanes -> lane-dense store) -----------
    out_ref[...] = (
        jnp.dot(l1, fcw_ref[...], preferred_element_type=jnp.float32) + fcb_ref[...]
    )


def _zero_index_map(ndim):
    return lambda: (0,) * ndim


# ----------------------------------------------------------------------------
# Parameter init (PyTorch-style U(-1/sqrt(H), 1/sqrt(H))), weights pre-transposed.
# ----------------------------------------------------------------------------
def init_params(key):
    H = HIDDEN_SIZE
    bound = 1.0 / np.sqrt(H)
    params = {"layers": []}
    for layer in range(NUM_LAYERS):
        d_in = INPUT_SIZE if layer == 0 else 2 * H
        dirs = []
        for _d in range(2 if BIDIRECTIONAL else 1):
            key, k1, k2, k3, k4 = jax.random.split(key, 5)
            dirs.append({
                # stored pre-transposed: (D_in, 3H), (H, 3H); gate order r|z|n
                "wih_t": jax.random.uniform(k1, (d_in, 3 * H), jnp.float32, -bound, bound),
                "whh_t": jax.random.uniform(k2, (H, 3 * H), jnp.float32, -bound, bound),
                "b_ih": jax.random.uniform(k3, (1, 3 * H), jnp.float32, -bound, bound),
                "b_hh": jax.random.uniform(k4, (1, 3 * H), jnp.float32, -bound, bound),
            })
        params["layers"].append(dirs)
    fc_in = 2 * H if BIDIRECTIONAL else H
    fc_bound = 1.0 / np.sqrt(fc_in)
    key, k1, k2 = jax.random.split(key, 3)
    params["fc_w_t"] = jax.random.uniform(k1, (fc_in, OUTPUT_SIZE), jnp.float32,
                                          -fc_bound, fc_bound)
    params["fc_b"] = jax.random.uniform(k2, (1, OUTPUT_SIZE), jnp.float32,
                                        -fc_bound, fc_bound)
    return params


# ----------------------------------------------------------------------------
# Model forward: pad batch, one fused pallas_call, slice padding back off.
# ----------------------------------------------------------------------------
@jax.jit
def model_forward(params, x):
    """x: (T, B, INPUT_SIZE) float32 -> (T, B, OUTPUT_SIZE) float32."""
    T, B, D = x.shape
    Bp = max(8, ((B + 7) // 8) * 8)           # fill sublanes of every vreg
    if Bp != B:
        x = jnp.pad(x, ((0, 0), (0, Bp - B), (0, 0)))
    x2d = x.reshape(T * Bp, D)                # free row-major reshape in HBM

    weights = []
    for layer in range(NUM_LAYERS):
        for d in range(2):
            p = params["layers"][layer][d]
            weights += [p["wih_t"], p["whh_t"], p["b_ih"], p["b_hh"]]

    fc_w_pad = jnp.pad(params["fc_w_t"], ((0, 0), (0, FC_PAD - OUTPUT_SIZE)))
    fc_b_pad = jnp.pad(params["fc_b"], ((0, 0), (0, FC_PAD - OUTPUT_SIZE)))

    args = [x2d] + weights + [fc_w_pad, fc_b_pad]
    kernel = functools.partial(_fused_gru_fc_kernel, seq_len=T, batch=Bp)

    out2d = pl.pallas_call(
        kernel,
        out_shape=jax.ShapeDtypeStruct((T * Bp, FC_PAD), jnp.float32),
        in_specs=[pl.BlockSpec(a.shape, _zero_index_map(a.ndim)) for a in args],
        out_specs=pl.BlockSpec((T * Bp, FC_PAD), lambda: (0, 0)),
    )(*args)

    out = out2d.reshape(T, Bp, FC_PAD)[:, :B, :OUTPUT_SIZE]
    return out


# ----------------------------------------------------------------------------
# Pure-JAX reference (lax.scan) for correctness check
# ----------------------------------------------------------------------------
def _gru_ref_onedir(x, p):
    H = HIDDEN_SIZE

    def step(h, x_t):
        gx = x_t @ p["wih_t"] + p["b_ih"]
        gh = h @ p["whh_t"] + p["b_hh"]
        r = jax.nn.sigmoid(gx[:, :H] + gh[:, :H])
        z = jax.nn.sigmoid(gx[:, H:2 * H] + gh[:, H:2 * H])
        n = jnp.tanh(gx[:, 2 * H:] + r * gh[:, 2 * H:])
        h_new = (1.0 - z) * n + z * h
        return h_new, h_new

    h0 = jnp.zeros((x.shape[1], H), jnp.float32)
    _, ys = jax.lax.scan(step, h0, x)
    return ys


def model_forward_ref(params, x):
    cur = x
    for layer_params in params["layers"]:
        fwd = _gru_ref_onedir(cur, layer_params[0])
        bwd = jnp.flip(_gru_ref_onedir(jnp.flip(cur, axis=0), layer_params[1]), axis=0)
        cur = jnp.concatenate([fwd, bwd], axis=-1)
    return cur @ params["fc_w_t"] + params["fc_b"]


# ----------------------------------------------------------------------------
if __name__ == "__main__":
    key = jax.random.PRNGKey(0)
    kp, kx = jax.random.split(key)
    params = init_params(kp)

    T, B = 8, 4  # small seq length and batch
    x = jax.random.normal(kx, (T, B, INPUT_SIZE), jnp.float32)

    out = jax.block_until_ready(model_forward(params, x))
    assert out.shape == (T, B, OUTPUT_SIZE), out.shape

    ref = jax.block_until_ready(model_forward_ref(params, x))
    np.testing.assert_allclose(np.asarray(out), np.asarray(ref), rtol=1e-4, atol=1e-4)

    print("KERNEL_OK")
</pallas_src>

<mosaic_0001>
module attributes {stable_mosaic.version = 11 : i64} {
  func.func @_fused_gru_fc_kernel(%arg0: memref<64x64xf32, #tpu.memory_space<vmem>>, %arg1: memref<64x384xf32, #tpu.memory_space<vmem>>, %arg2: memref<128x384xf32, #tpu.memory_space<vmem>>, %arg3: memref<1x384xf32, #tpu.memory_space<vmem>>, %arg4: memref<1x384xf32, #tpu.memory_space<vmem>>, %arg5: memref<64x384xf32, #tpu.memory_space<vmem>>, %arg6: memref<128x384xf32, #tpu.memory_space<vmem>>, %arg7: memref<1x384xf32, #tpu.memory_space<vmem>>, %arg8: memref<1x384xf32, #tpu.memory_space<vmem>>, %arg9: memref<256x384xf32, #tpu.memory_space<vmem>>, %arg10: memref<128x384xf32, #tpu.memory_space<vmem>>, %arg11: memref<1x384xf32, #tpu.memory_space<vmem>>, %arg12: memref<1x384xf32, #tpu.memory_space<vmem>>, %arg13: memref<256x384xf32, #tpu.memory_space<vmem>>, %arg14: memref<128x384xf32, #tpu.memory_space<vmem>>, %arg15: memref<1x384xf32, #tpu.memory_space<vmem>>, %arg16: memref<1x384xf32, #tpu.memory_space<vmem>>, %arg17: memref<256x128xf32, #tpu.memory_space<vmem>>, %arg18: memref<1x128xf32, #tpu.memory_space<vmem>>, %arg19: memref<64x128xf32, #tpu.memory_space<vmem>>) attributes {dimension_semantics = [], scalar_prefetch = 0 : i64, scratch_operands = 0 : i64, tpu.core_type = #tpu.core_type<tc>} {
    %c0 = arith.constant 0 : index
    %c0_0 = arith.constant 0 : index
    %0 = vector.load %arg0[%c0, %c0_0] : memref<64x64xf32, #tpu.memory_space<vmem>>, vector<64x64xf32>
    %c0_1 = arith.constant 0 : index
    %c0_2 = arith.constant 0 : index
    %1 = vector.load %arg1[%c0_1, %c0_2] : memref<64x384xf32, #tpu.memory_space<vmem>>, vector<64x384xf32>
    %cst = arith.constant dense<0.000000e+00> : vector<64x384xf32>
    %2 = tpu.matmul %0, %1, %cst {dimension_numbers = #tpu.dot_dimension_numbers<[1], [0], [0], [1], [0, 0, 1, 1], [], []>} : vector<64x64xf32>, vector<64x384xf32>, vector<64x384xf32> -> vector<64x384xf32>
    %c0_3 = arith.constant 0 : index
    %c0_4 = arith.constant 0 : index
    %3 = vector.load %arg3[%c0_3, %c0_4] : memref<1x384xf32, #tpu.memory_space<vmem>>, vector<1x384xf32>
    %4 = vector.broadcast %3 : vector<1x384xf32> to vector<64x384xf32>
    %5 = arith.addf %2, %4 : vector<64x384xf32>
    %c0_5 = arith.constant 0 : index
    %c0_6 = arith.constant 0 : index
    %6 = vector.load %arg2[%c0_5, %c0_6] : memref<128x384xf32, #tpu.memory_space<vmem>>, vector<128x384xf32>
    %c0_7 = arith.constant 0 : index
    %c0_8 = arith.constant 0 : index
    %7 = vector.load %arg4[%c0_7, %c0_8] : memref<1x384xf32, #tpu.memory_space<vmem>>, vector<1x384xf32>
    %cst_9 = arith.constant 0.000000e+00 : f32
    %8 = vector.broadcast %cst_9 : f32 to vector<8x128xf32>
    %9 = vector.extract_strided_slice %5 {offsets = [0, 0], sizes = [8, 384], strides = [1, 1]} : vector<64x384xf32> to vector<8x384xf32>
    %cst_10 = arith.constant dense<0.000000e+00> : vector<8x384xf32>
    %10 = tpu.matmul %8, %6, %cst_10 {dimension_numbers = #tpu.dot_dimension_numbers<[1], [0], [0], [1], [0, 0, 1, 1], [], []>} : vector<8x128xf32>, vector<128x384xf32>, vector<8x384xf32> -> vector<8x384xf32>
    %11 = vector.broadcast %7 : vector<1x384xf32> to vector<8x384xf32>
    %12 = arith.addf %10, %11 : vector<8x384xf32>
    %13 = vector.extract_strided_slice %9 {offsets = [0, 0], sizes = [8, 128], strides = [1, 1]} : vector<8x384xf32> to vector<8x128xf32>
    %14 = vector.extract_strided_slice %12 {offsets = [0, 0], sizes = [8, 128], strides = [1, 1]} : vector<8x384xf32> to vector<8x128xf32>
    %15 = arith.addf %13, %14 : vector<8x128xf32>
    %16 = arith.negf %15 : vector<8x128xf32>
    %17 = math.exp %16 : vector<8x128xf32>
    %cst_11 = arith.constant 1.000000e+00 : f32
    %18 = vector.broadcast %cst_11 : f32 to vector<8x128xf32>
    %19 = arith.addf %18, %17 : vector<8x128xf32>
    %20 = arith.divf %18, %19 : vector<8x128xf32>
    %21 = vector.extract_strided_slice %9 {offsets = [0, 128], sizes = [8, 128], strides = [1, 1]} : vector<8x384xf32> to vector<8x128xf32>
    %22 = vector.extract_strided_slice %12 {offsets = [0, 128], sizes = [8, 128], strides = [1, 1]} : vector<8x384xf32> to vector<8x128xf32>
    %23 = arith.addf %21, %22 : vector<8x128xf32>
    %24 = arith.negf %23 : vector<8x128xf32>
    %25 = math.exp %24 : vector<8x128xf32>
    %cst_12 = arith.constant 1.000000e+00 : f32
    %26 = vector.broadcast %cst_12 : f32 to vector<8x128xf32>
    %27 = arith.addf %26, %25 : vector<8x128xf32>
    %28 = arith.divf %26, %27 : vector<8x128xf32>
    %29 = vector.extract_strided_slice %9 {offsets = [0, 256], sizes = [8, 128], strides = [1, 1]} : vector<8x384xf32> to vector<8x128xf32>
    %30 = vector.extract_strided_slice %12 {offsets = [0, 256], sizes = [8, 128], strides = [1, 1]} : vector<8x384xf32> to vector<8x128xf32>
    %31 = arith.mulf %20, %30 : vector<8x128xf32>
    %32 = arith.addf %29, %31 : vector<8x128xf32>
    %33 = math.tanh %32 : vector<8x128xf32>
    %cst_13 = arith.constant 1.000000e+00 : f32
    %34 = vector.broadcast %cst_13 : f32 to vector<8x128xf32>
    %35 = arith.subf %34, %28 : vector<8x128xf32>
    %36 = arith.mulf %35, %33 : vector<8x128xf32>
    %37 = arith.mulf %28, %8 : vector<8x128xf32>
    %38 = arith.addf %36, %37 : vector<8x128xf32>
    %39 = vector.extract_strided_slice %5 {offsets = [8, 0], sizes = [8, 384], strides = [1, 1]} : vector<64x384xf32> to vector<8x384xf32>
    %cst_14 = arith.constant dense<0.000000e+00> : vector<8x384xf32>
    %40 = tpu.matmul %38, %6, %cst_14 {dimension_numbers = #tpu.dot_dimension_numbers<[1], [0], [0], [1], [0, 0, 1, 1], [], []>} : vector<8x128xf32>, vector<128x384xf32>, vector<8x384xf32> -> vector<8x384xf32>
    %41 = vector.broadcast %7 : vector<1x384xf32> to vector<8x384xf32>
    %42 = arith.addf %40, %41 : vector<8x384xf32>
    %43 = vector.extract_strided_slice %39 {offsets = [0, 0], sizes = [8, 128], strides = [1, 1]} : vector<8x384xf32> to vector<8x128xf32>
    %44 = vector.extract_strided_slice %42 {offsets = [0, 0], sizes = [8, 128], strides = [1, 1]} : vector<8x384xf32> to vector<8x128xf32>
    %45 = arith.addf %43, %44 : vector<8x128xf32>
    %46 = arith.negf %45 : vector<8x128xf32>
    %47 = math.exp %46 : vector<8x128xf32>
    %cst_15 = arith.constant 1.000000e+00 : f32
    %48 = vector.broadcast %cst_15 : f32 to vector<8x128xf32>
    %49 = arith.addf %48, %47 : vector<8x128xf32>
    %50 = arith.divf %48, %49 : vector<8x128xf32>
    %51 = vector.extract_strided_slice %39 {offsets = [0, 128], sizes = [8, 128], strides = [1, 1]} : vector<8x384xf32> to vector<8x128xf32>
    %52 = vector.extract_strided_slice %42 {offsets = [0, 128], sizes = [8, 128], strides = [1, 1]} : vector<8x384xf32> to vector<8x128xf32>
    %53 = arith.addf %51, %52 : vector<8x128xf32>
    %54 = arith.negf %53 : vector<8x128xf32>
    %55 = math.exp %54 : vector<8x128xf32>
    %cst_16 = arith.constant 1.000000e+00 : f32
    %56 = vector.broadcast %cst_16 : f32 to vector<8x128xf32>
    %57 = arith.addf %56, %55 : vector<8x128xf32>
    %58 = arith.divf %56, %57 : vector<8x128xf32>
    %59 = vector.extract_strided_slice %39 {offsets = [0, 256], sizes = [8, 128], strides = [1, 1]} : vector<8x384xf32> to vector<8x128xf32>
    %60 = vector.extract_strided_slice %42 {offsets = [0, 256], sizes = [8, 128], strides = [1, 1]} : vector<8x384xf32> to vector<8x128xf32>
    %61 = arith.mulf %50, %60 : vector<8x128xf32>
    %62 = arith.addf %59, %61 : vector<8x128xf32>
    %63 = math.tanh %62 : vector<8x128xf32>
    %cst_17 = arith.constant 1.000000e+00 : f32
    %64 = vector.broadcast %cst_17 : f32 to vector<8x128xf32>
    %65 = arith.subf %64, %58 : vector<8x128xf32>
    %66 = arith.mulf %65, %63 : vector<8x128xf32>
    %67 = arith.mulf %58, %38 : vector<8x128xf32>
    %68 = arith.addf %66, %67 : vector<8x128xf32>
    %69 = vector.extract_strided_slice %5 {offsets = [16, 0], sizes = [8, 384], strides = [1, 1]} : vector<64x384xf32> to vector<8x384xf32>
    %cst_18 = arith.constant dense<0.000000e+00> : vector<8x384xf32>
    %70 = tpu.matmul %68, %6, %cst_18 {dimension_numbers = #tpu.dot_dimension_numbers<[1], [0], [0], [1], [0, 0, 1, 1], [], []>} : vector<8x128xf32>, vector<128x384xf32>, vector<8x384xf32> -> vector<8x384xf32>
    %71 = vector.broadcast %7 : vector<1x384xf32> to vector<8x384xf32>
    %72 = arith.addf %70, %71 : vector<8x384xf32>
    %73 = vector.extract_strided_slice %69 {offsets = [0, 0], sizes = [8, 128], strides = [1, 1]} : vector<8x384xf32> to vector<8x128xf32>
    %74 = vector.extract_strided_slice %72 {offsets = [0, 0], sizes = [8, 128], strides = [1, 1]} : vector<8x384xf32> to vector<8x128xf32>
    %75 = arith.addf %73, %74 : vector<8x128xf32>
    %76 = arith.negf %75 : vector<8x128xf32>
    %77 = math.exp %76 : vector<8x128xf32>
    %cst_19 = arith.constant 1.000000e+00 : f32
    %78 = vector.broadcast %cst_19 : f32 to vector<8x128xf32>
    %79 = arith.addf %78, %77 : vector<8x128xf32>
    %80 = arith.divf %78, %79 : vector<8x128xf32>
    %81 = vector.extract_strided_slice %69 {offsets = [0, 128], sizes = [8, 128], strides = [1, 1]} : vector<8x384xf32> to vector<8x128xf32>
    %82 = vector.extract_strided_slice %72 {offsets = [0, 128], sizes = [8, 128], strides = [1, 1]} : vector<8x384xf32> to vector<8x128xf32>
    %83 = arith.addf %81, %82 : vector<8x128xf32>
    %84 = arith.negf %83 : vector<8x128xf32>
    %85 = math.exp %84 : vector<8x128xf32>
    %cst_20 = arith.constant 1.000000e+00 : f32
    %86 = vector.broadcast %cst_20 : f32 to vector<8x128xf32>
    %87 = arith.addf %86, %85 : vector<8x128xf32>
    %88 = arith.divf %86, %87 : vector<8x128xf32>
    %89 = vector.extract_strided_slice %69 {offsets = [0, 256], sizes = [8, 128], strides = [1, 1]} : vector<8x384xf32> to vector<8x128xf32>
    %90 = vector.extract_strided_slice %72 {offsets = [0, 256], sizes = [8, 128], strides = [1, 1]} : vector<8x384xf32> to vector<8x128xf32>
    %91 = arith.mulf %80, %90 : vector<8x128xf32>
    %92 = arith.addf %89, %91 : vector<8x128xf32>
    %93 = math.tanh %92 : vector<8x128xf32>
    %cst_21 = arith.constant 1.000000e+00 : f32
    %94 = vector.broadcast %cst_21 : f32 to vector<8x128xf32>
    %95 = arith.subf %94, %88 : vector<8x128xf32>
    %96 = arith.mulf %95, %93 : vector<8x128xf32>
    %97 = arith.mulf %88, %68 : vector<8x128xf32>
    %98 = arith.addf %96, %97 : vector<8x128xf32>
    %99 = vector.extract_strided_slice %5 {offsets = [24, 0], sizes = [8, 384], strides = [1, 1]} : vector<64x384xf32> to vector<8x384xf32>
    %cst_22 = arith.constant dense<0.000000e+00> : vector<8x384xf32>
    %100 = tpu.matmul %98, %6, %cst_22 {dimension_numbers = #tpu.dot_dimension_numbers<[1], [0], [0], [1], [0, 0, 1, 1], [], []>} : vector<8x128xf32>, vector<128x384xf32>, vector<8x384xf32> -> vector<8x384xf32>
    %101 = vector.broadcast %7 : vector<1x384xf32> to vector<8x384xf32>
    %102 = arith.addf %100, %101 : vector<8x384xf32>
    %103 = vector.extract_strided_slice %99 {offsets = [0, 0], sizes = [8, 128], strides = [1, 1]} : vector<8x384xf32> to vector<8x128xf32>
    %104 = vector.extract_strided_slice %102 {offsets = [0, 0], sizes = [8, 128], strides = [1, 1]} : vector<8x384xf32> to vector<8x128xf32>
    %105 = arith.addf %103, %104 : vector<8x128xf32>
    %106 = arith.negf %105 : vector<8x128xf32>
    %107 = math.exp %106 : vector<8x128xf32>
    %cst_23 = arith.constant 1.000000e+00 : f32
    %108 = vector.broadcast %cst_23 : f32 to vector<8x128xf32>
    %109 = arith.addf %108, %107 : vector<8x128xf32>
    %110 = arith.divf %108, %109 : vector<8x128xf32>
    %111 = vector.extract_strided_slice %99 {offsets = [0, 128], sizes = [8, 128], strides = [1, 1]} : vector<8x384xf32> to vector<8x128xf32>
    %112 = vector.extract_strided_slice %102 {offsets = [0, 128], sizes = [8, 128], strides = [1, 1]} : vector<8x384xf32> to vector<8x128xf32>
    %113 = arith.addf %111, %112 : vector<8x128xf32>
    %114 = arith.negf %113 : vector<8x128xf32>
    %115 = math.exp %114 : vector<8x128xf32>
    %cst_24 = arith.constant 1.000000e+00 : f32
    %116 = vector.broadcast %cst_24 : f32 to vector<8x128xf32>
    %117 = arith.addf %116, %115 : vector<8x128xf32>
    %118 = arith.divf %116, %117 : vector<8x128xf32>
    %119 = vector.extract_strided_slice %99 {offsets = [0, 256], sizes = [8, 128], strides = [1, 1]} : vector<8x384xf32> to vector<8x128xf32>
    %120 = vector.extract_strided_slice %102 {offsets = [0, 256], sizes = [8, 128], strides = [1, 1]} : vector<8x384xf32> to vector<8x128xf32>
    %121 = arith.mulf %110, %120 : vector<8x128xf32>
    %122 = arith.addf %119, %121 : vector<8x128xf32>
    %123 = math.tanh %122 : vector<8x128xf32>
    %cst_25 = arith.constant 1.000000e+00 : f32
    %124 = vector.broadcast %cst_25 : f32 to vector<8x128xf32>
    %125 = arith.subf %124, %118 : vector<8x128xf32>
    %126 = arith.mulf %125, %123 : vector<8x128xf32>
    %127 = arith.mulf %118, %98 : vector<8x128xf32>
    %128 = arith.addf %126, %127 : vector<8x128xf32>
    %129 = vector.extract_strided_slice %5 {offsets = [32, 0], sizes = [8, 384], strides = [1, 1]} : vector<64x384xf32> to vector<8x384xf32>
    %cst_26 = arith.constant dense<0.000000e+00> : vector<8x384xf32>
    %130 = tpu.matmul %128, %6, %cst_26 {dimension_numbers = #tpu.dot_dimension_numbers<[1], [0], [0], [1], [0, 0, 1, 1], [], []>} : vector<8x128xf32>, vector<128x384xf32>, vector<8x384xf32> -> vector<8x384xf32>
    %131 = vector.broadcast %7 : vector<1x384xf32> to vector<8x384xf32>
    %132 = arith.addf %130, %131 : vector<8x384xf32>
    %133 = vector.extract_strided_slice %129 {offsets = [0, 0], sizes = [8, 128], strides = [1, 1]} : vector<8x384xf32> to vector<8x128xf32>
    %134 = vector.extract_strided_slice %132 {offsets = [0, 0], sizes = [8, 128], strides = [1, 1]} : vector<8x384xf32> to vector<8x128xf32>
    %135 = arith.addf %133, %134 : vector<8x128xf32>
    %136 = arith.negf %135 : vector<8x128xf32>
    %137 = math.exp %136 : vector<8x128xf32>
    %cst_27 = arith.constant 1.000000e+00 : f32
    %138 = vector.broadcast %cst_27 : f32 to vector<8x128xf32>
    %139 = arith.addf %138, %137 : vector<8x128xf32>
    %140 = arith.divf %138, %139 : vector<8x128xf32>
    %141 = vector.extract_strided_slice %129 {offsets = [0, 128], sizes = [8, 128], strides = [1, 1]} : vector<8x384xf32> to vector<8x128xf32>
    %142 = vector.extract_strided_slice %132 {offsets = [0, 128], sizes = [8, 128], strides = [1, 1]} : vector<8x384xf32> to vector<8x128xf32>
    %143 = arith.addf %141, %142 : vector<8x128xf32>
    %144 = arith.negf %143 : vector<8x128xf32>
    %145 = math.exp %144 : vector<8x128xf32>
    %cst_28 = arith.constant 1.000000e+00 : f32
    %146 = vector.broadcast %cst_28 : f32 to vector<8x128xf32>
    %147 = arith.addf %146, %145 : vector<8x128xf32>
    %148 = arith.divf %146, %147 : vector<8x128xf32>
    %149 = vector.extract_strided_slice %129 {offsets = [0, 256], sizes = [8, 128], strides = [1, 1]} : vector<8x384xf32> to vector<8x128xf32>
    %150 = vector.extract_strided_slice %132 {offsets = [0, 256], sizes = [8, 128], strides = [1, 1]} : vector<8x384xf32> to vector<8x128xf32>
    %151 = arith.mulf %140, %150 : vector<8x128xf32>
    %152 = arith.addf %149, %151 : vector<8x128xf32>
    %153 = math.tanh %152 : vector<8x128xf32>
    %cst_29 = arith.constant 1.000000e+00 : f32
    %154 = vector.broadcast %cst_29 : f32 to vector<8x128xf32>
    %155 = arith.subf %154, %148 : vector<8x128xf32>
    %156 = arith.mulf %155, %153 : vector<8x128xf32>
    %157 = arith.mulf %148, %128 : vector<8x128xf32>
    %158 = arith.addf %156, %157 : vector<8x128xf32>
    %159 = vector.extract_strided_slice %5 {offsets = [40, 0], sizes = [8, 384], strides = [1, 1]} : vector<64x384xf32> to vector<8x384xf32>
    %cst_30 = arith.constant dense<0.000000e+00> : vector<8x384xf32>
    %160 = tpu.matmul %158, %6, %cst_30 {dimension_numbers = #tpu.dot_dimension_numbers<[1], [0], [0], [1], [0, 0, 1, 1], [], []>} : vector<8x128xf32>, vector<128x384xf32>, vector<8x384xf32> -> vector<8x384xf32>
    %161 = vector.broadcast %7 : vector<1x384xf32> to vector<8x384xf32>
    %162 = arith.addf %160, %161 : vector<8x384xf32>
    %163 = vector.extract_strided_slice %159 {offsets = [0, 0], sizes = [8, 128], strides = [1, 1]} : vector<8x384xf32> to vector<8x128xf32>
    %164 = vector.extract_strided_slice %162 {offsets = [0, 0], sizes = [8, 128], strides = [1, 1]} : vector<8x384xf32> to vector<8x128xf32>
    %165 = arith.addf %163, %164 : vector<8x128xf32>
    %166 = arith.negf %165 : vector<8x128xf32>
    %167 = math.exp %166 : vector<8x128xf32>
    %cst_31 = arith.constant 1.000000e+00 : f32
    %168 = vector.broadcast %cst_31 : f32 to vector<8x128xf32>
    %169 = arith.addf %168, %167 : vector<8x128xf32>
    %170 = arith.divf %168, %169 : vector<8x128xf32>
    %171 = vector.extract_strided_slice %159 {offsets = [0, 128], sizes = [8, 128], strides = [1, 1]} : vector<8x384xf32> to vector<8x128xf32>
    %172 = vector.extract_strided_slice %162 {offsets = [0, 128], sizes = [8, 128], strides = [1, 1]} : vector<8x384xf32> to vector<8x128xf32>
    %173 = arith.addf %171, %172 : vector<8x128xf32>
    %174 = arith.negf %173 : vector<8x128xf32>
    %175 = math.exp %174 : vector<8x128xf32>
    %cst_32 = arith.constant 1.000000e+00 : f32
    %176 = vector.broadcast %cst_32 : f32 to vector<8x128xf32>
    %177 = arith.addf %176, %175 : vector<8x128xf32>
    %178 = arith.divf %176, %177 : vector<8x128xf32>
    %179 = vector.extract_strided_slice %159 {offsets = [0, 256], sizes = [8, 128], strides = [1, 1]} : vector<8x384xf32> to vector<8x128xf32>
    %180 = vector.extract_strided_slice %162 {offsets = [0, 256], sizes = [8, 128], strides = [1, 1]} : vector<8x384xf32> to vector<8x128xf32>
    %181 = arith.mulf %170, %180 : vector<8x128xf32>
    %182 = arith.addf %179, %181 : vector<8x128xf32>
    %183 = math.tanh %182 : vector<8x128xf32>
    %cst_33 = arith.constant 1.000000e+00 : f32
    %184 = vector.broadcast %cst_33 : f32 to vector<8x128xf32>
    %185 = arith.subf %184, %178 : vector<8x128xf32>
    %186 = arith.mulf %185, %183 : vector<8x128xf32>
    %187 = arith.mulf %178, %158 : vector<8x128xf32>
    %188 = arith.addf %186, %187 : vector<8x128xf32>
    %189 = vector.extract_strided_slice %5 {offsets = [48, 0], sizes = [8, 384], strides = [1, 1]} : vector<64x384xf32> to vector<8x384xf32>
    %cst_34 = arith.constant dense<0.000000e+00> : vector<8x384xf32>
    %190 = tpu.matmul %188, %6, %cst_34 {dimension_numbers = #tpu.dot_dimension_numbers<[1], [0], [0], [1], [0, 0, 1, 1], [], []>} : vector<8x128xf32>, vector<128x384xf32>, vector<8x384xf32> -> vector<8x384xf32>
    %191 = vector.broadcast %7 : vector<1x384xf32> to vector<8x384xf32>
    %192 = arith.addf %190, %191 : vector<8x384xf32>
    %193 = vector.extract_strided_slice %189 {offsets = [0, 0], sizes = [8, 128], strides = [1, 1]} : vector<8x384xf32> to vector<8x128xf32>
    %194 = vector.extract_strided_slice %192 {offsets = [0, 0], sizes = [8, 128], strides = [1, 1]} : vector<8x384xf32> to vector<8x128xf32>
    %195 = arith.addf %193, %194 : vector<8x128xf32>
    %196 = arith.negf %195 : vector<8x128xf32>
    %197 = math.exp %196 : vector<8x128xf32>
    %cst_35 = arith.constant 1.000000e+00 : f32
    %198 = vector.broadcast %cst_35 : f32 to vector<8x128xf32>
    %199 = arith.addf %198, %197 : vector<8x128xf32>
    %200 = arith.divf %198, %199 : vector<8x128xf32>
    %201 = vector.extract_strided_slice %189 {offsets = [0, 128], sizes = [8, 128], strides = [1, 1]} : vector<8x384xf32> to vector<8x128xf32>
    %202 = vector.extract_strided_slice %192 {offsets = [0, 128], sizes = [8, 128], strides = [1, 1]} : vector<8x384xf32> to vector<8x128xf32>
    %203 = arith.addf %201, %202 : vector<8x128xf32>
    %204 = arith.negf %203 : vector<8x128xf32>
    %205 = math.exp %204 : vector<8x128xf32>
    %cst_36 = arith.constant 1.000000e+00 : f32
    %206 = vector.broadcast %cst_36 : f32 to vector<8x128xf32>
    %207 = arith.addf %206, %205 : vector<8x128xf32>
    %208 = arith.divf %206, %207 : vector<8x128xf32>
    %209 = vector.extract_strided_slice %189 {offsets = [0, 256], sizes = [8, 128], strides = [1, 1]} : vector<8x384xf32> to vector<8x128xf32>
    %210 = vector.extract_strided_slice %192 {offsets = [0, 256], sizes = [8, 128], strides = [1, 1]} : vector<8x384xf32> to vector<8x128xf32>
    %211 = arith.mulf %200, %210 : vector<8x128xf32>
    %212 = arith.addf %209, %211 : vector<8x128xf32>
    %213 = math.tanh %212 : vector<8x128xf32>
    %cst_37 = arith.constant 1.000000e+00 : f32
    %214 = vector.broadcast %cst_37 : f32 to vector<8x128xf32>
    %215 = arith.subf %214, %208 : vector<8x128xf32>
    %216 = arith.mulf %215, %213 : vector<8x128xf32>
    %217 = arith.mulf %208, %188 : vector<8x128xf32>
    %218 = arith.addf %216, %217 : vector<8x128xf32>
    %219 = vector.extract_strided_slice %5 {offsets = [56, 0], sizes = [8, 384], strides = [1, 1]} : vector<64x384xf32> to vector<8x384xf32>
    %cst_38 = arith.constant dense<0.000000e+00> : vector<8x384xf32>
    %220 = tpu.matmul %218, %6, %cst_38 {dimension_numbers = #tpu.dot_dimension_numbers<[1], [0], [0], [1], [0, 0, 1, 1], [], []>} : vector<8x128xf32>, vector<128x384xf32>, vector<8x384xf32> -> vector<8x384xf32>
    %221 = vector.broadcast %7 : vector<1x384xf32> to vector<8x384xf32>
    %222 = arith.addf %220, %221 : vector<8x384xf32>
    %223 = vector.extract_strided_slice %219 {offsets = [0, 0], sizes = [8, 128], strides = [1, 1]} : vector<8x384xf32> to vector<8x128xf32>
    %224 = vector.extract_strided_slice %222 {offsets = [0, 0], sizes = [8, 128], strides = [1, 1]} : vector<8x384xf32> to vector<8x128xf32>
    %225 = arith.addf %223, %224 : vector<8x128xf32>
    %226 = arith.negf %225 : vector<8x128xf32>
    %227 = math.exp %226 : vector<8x128xf32>
    %cst_39 = arith.constant 1.000000e+00 : f32
    %228 = vector.broadcast %cst_39 : f32 to vector<8x128xf32>
    %229 = arith.addf %228, %227 : vector<8x128xf32>
    %230 = arith.divf %228, %229 : vector<8x128xf32>
    %231 = vector.extract_strided_slice %219 {offsets = [0, 128], sizes = [8, 128], strides = [1, 1]} : vector<8x384xf32> to vector<8x128xf32>
    %232 = vector.extract_strided_slice %222 {offsets = [0, 128], sizes = [8, 128], strides = [1, 1]} : vector<8x384xf32> to vector<8x128xf32>
    %233 = arith.addf %231, %232 : vector<8x128xf32>
    %234 = arith.negf %233 : vector<8x128xf32>
    %235 = math.exp %234 : vector<8x128xf32>
    %cst_40 = arith.constant 1.000000e+00 : f32
    %236 = vector.broadcast %cst_40 : f32 to vector<8x128xf32>
    %237 = arith.addf %236, %235 : vector<8x128xf32>
    %238 = arith.divf %236, %237 : vector<8x128xf32>
    %239 = vector.extract_strided_slice %219 {offsets = [0, 256], sizes = [8, 128], strides = [1, 1]} : vector<8x384xf32> to vector<8x128xf32>
    %240 = vector.extract_strided_slice %222 {offsets = [0, 256], sizes = [8, 128], strides = [1, 1]} : vector<8x384xf32> to vector<8x128xf32>
    %241 = arith.mulf %230, %240 : vector<8x128xf32>
    %242 = arith.addf %239, %241 : vector<8x128xf32>
    %243 = math.tanh %242 : vector<8x128xf32>
    %cst_41 = arith.constant 1.000000e+00 : f32
    %244 = vector.broadcast %cst_41 : f32 to vector<8x128xf32>
    %245 = arith.subf %244, %238 : vector<8x128xf32>
    %246 = arith.mulf %245, %243 : vector<8x128xf32>
    %247 = arith.mulf %238, %218 : vector<8x128xf32>
    %248 = arith.addf %246, %247 : vector<8x128xf32>
    %249 = tpu.concatenate %38, %68, %98, %128, %158, %188, %218, %248 in 0 : vector<8x128xf32>, vector<8x128xf32>, vector<8x128xf32>, vector<8x128xf32>, vector<8x128xf32>, vector<8x128xf32>, vector<8x128xf32>, vector<8x128xf32> -> vector<64x128xf32>
    %c0_42 = arith.constant 0 : index
    %c0_43 = arith.constant 0 : index
    %250 = vector.load %arg5[%c0_42, %c0_43] : memref<64x384xf32, #tpu.memory_space<vmem>>, vector<64x384xf32>
    %cst_44 = arith.constant dense<0.000000e+00> : vector<64x384xf32>
    %251 = tpu.matmul %0, %250, %cst_44 {dimension_numbers = #tpu.dot_dimension_numbers<[1], [0], [0], [1], [0, 0, 1, 1], [], []>} : vector<64x64xf32>, vector<64x384xf32>, vector<64x384xf32> -> vector<64x384xf32>
    %c0_45 = arith.constant 0 : index
    %c0_46 = arith.constant 0 : index
    %252 = vector.load %arg7[%c0_45, %c0_46] : memref<1x384xf32, #tpu.memory_space<vmem>>, vector<1x384xf32>
    %253 = vector.broadcast %252 : vector<1x384xf32> to vector<64x384xf32>
    %254 = arith.addf %251, %253 : vector<64x384xf32>
    %c0_47 = arith.constant 0 : index
    %c0_48 = arith.constant 0 : index
    %255 = vector.load %arg6[%c0_47, %c0_48] : memref<128x384xf32, #tpu.memory_space<vmem>>, vector<128x384xf32>
    %c0_49 = arith.constant 0 : index
    %c0_50 = arith.constant 0 : index
    %256 = vector.load %arg8[%c0_49, %c0_50] : memref<1x384xf32, #tpu.memory_space<vmem>>, vector<1x384xf32>
    %cst_51 = arith.constant 0.000000e+00 : f32
    %257 = vector.broadcast %cst_51 : f32 to vector<8x128xf32>
    %258 = vector.extract_strided_slice %254 {offsets = [56, 0], sizes = [8, 384], strides = [1, 1]} : vector<64x384xf32> to vector<8x384xf32>
    %cst_52 = arith.constant dense<0.000000e+00> : vector<8x384xf32>
    %259 = tpu.matmul %257, %255, %cst_52 {dimension_numbers = #tpu.dot_dimension_numbers<[1], [0], [0], [1], [0, 0, 1, 1], [], []>} : vector<8x128xf32>, vector<128x384xf32>, vector<8x384xf32> -> vector<8x384xf32>
    %260 = vector.broadcast %256 : vector<1x384xf32> to vector<8x384xf32>
    %261 = arith.addf %259, %260 : vector<8x384xf32>
    %262 = vector.extract_strided_slice %258 {offsets = [0, 0], sizes = [8, 128], strides = [1, 1]} : vector<8x384xf32> to vector<8x128xf32>
    %263 = vector.extract_strided_slice %261 {offsets = [0, 0], sizes = [8, 128], strides = [1, 1]} : vector<8x384xf32> to vector<8x128xf32>
    %264 = arith.addf %262, %263 : vector<8x128xf32>
    %265 = arith.negf %264 : vector<8x128xf32>
    %266 = math.exp %265 : vector<8x128xf32>
    %cst_53 = arith.constant 1.000000e+00 : f32
    %267 = vector.broadcast %cst_53 : f32 to vector<8x128xf32>
    %268 = arith.addf %267, %266 : vector<8x128xf32>
    %269 = arith.divf %267, %268 : vector<8x128xf32>
    %270 = vector.extract_strided_slice %258 {offsets = [0, 128], sizes = [8, 128], strides = [1, 1]} : vector<8x384xf32> to vector<8x128xf32>
    %271 = vector.extract_strided_slice %261 {offsets = [0, 128], sizes = [8, 128], strides = [1, 1]} : vector<8x384xf32> to vector<8x128xf32>
    %272 = arith.addf %270, %271 : vector<8x128xf32>
    %273 = arith.negf %272 : vector<8x128xf32>
    %274 = math.exp %273 : vector<8x128xf32>
    %cst_54 = arith.constant 1.000000e+00 : f32
    %275 = vector.broadcast %cst_54 : f32 to vector<8x128xf32>
    %276 = arith.addf %275, %274 : vector<8x128xf32>
    %277 = arith.divf %275, %276 : vector<8x128xf32>
    %278 = vector.extract_strided_slice %258 {offsets = [0, 256], sizes = [8, 128], strides = [1, 1]} : vector<8x384xf32> to vector<8x128xf32>
    %279 = vector.extract_strided_slice %261 {offsets = [0, 256], sizes = [8, 128], strides = [1, 1]} : vector<8x384xf32> to vector<8x128xf32>
    %280 = arith.mulf %269, %279 : vector<8x128xf32>
    %281 = arith.addf %278, %280 : vector<8x128xf32>
    %282 = math.tanh %281 : vector<8x128xf32>
    %cst_55 = arith.constant 1.000000e+00 : f32
    %283 = vector.broadcast %cst_55 : f32 to vector<8x128xf32>
    %284 = arith.subf %283, %277 : vector<8x128xf32>
    %285 = arith.mulf %284, %282 : vector<8x128xf32>
    %286 = arith.mulf %277, %257 : vector<8x128xf32>
    %287 = arith.addf %285, %286 : vector<8x128xf32>
    %288 = vector.extract_strided_slice %254 {offsets = [48, 0], sizes = [8, 384], strides = [1, 1]} : vector<64x384xf32> to vector<8x384xf32>
    %cst_56 = arith.constant dense<0.000000e+00> : vector<8x384xf32>
    %289 = tpu.matmul %287, %255, %cst_56 {dimension_numbers = #tpu.dot_dimension_numbers<[1], [0], [0], [1], [0, 0, 1, 1], [], []>} : vector<8x128xf32>, vector<128x384xf32>, vector<8x384xf32> -> vector<8x384xf32>
    %290 = vector.broadcast %256 : vector<1x384xf32> to vector<8x384xf32>
    %291 = arith.addf %289, %290 : vector<8x384xf32>
    %292 = vector.extract_strided_slice %288 {offsets = [0, 0], sizes = [8, 128], strides = [1, 1]} : vector<8x384xf32> to vector<8x128xf32>
    %293 = vector.extract_strided_slice %291 {offsets = [0, 0], sizes = [8, 128], strides = [1, 1]} : vector<8x384xf32> to vector<8x128xf32>
    %294 = arith.addf %292, %293 : vector<8x128xf32>
    %295 = arith.negf %294 : vector<8x128xf32>
    %296 = math.exp %295 : vector<8x128xf32>
    %cst_57 = arith.constant 1.000000e+00 : f32
    %297 = vector.broadcast %cst_57 : f32 to vector<8x128xf32>
    %298 = arith.addf %297, %296 : vector<8x128xf32>
    %299 = arith.divf %297, %298 : vector<8x128xf32>
    %300 = vector.extract_strided_slice %288 {offsets = [0, 128], sizes = [8, 128], strides = [1, 1]} : vector<8x384xf32> to vector<8x128xf32>
    %301 = vector.extract_strided_slice %291 {offsets = [0, 128], sizes = [8, 128], strides = [1, 1]} : vector<8x384xf32> to vector<8x128xf32>
    %302 = arith.addf %300, %301 : vector<8x128xf32>
    %303 = arith.negf %302 : vector<8x128xf32>
    %304 = math.exp %303 : vector<8x128xf32>
    %cst_58 = arith.constant 1.000000e+00 : f32
    %305 = vector.broadcast %cst_58 : f32 to vector<8x128xf32>
    %306 = arith.addf %305, %304 : vector<8x128xf32>
    %307 = arith.divf %305, %306 : vector<8x128xf32>
    %308 = vector.extract_strided_slice %288 {offsets = [0, 256], sizes = [8, 128], strides = [1, 1]} : vector<8x384xf32> to vector<8x128xf32>
    %309 = vector.extract_strided_slice %291 {offsets = [0, 256], sizes = [8, 128], strides = [1, 1]} : vector<8x384xf32> to vector<8x128xf32>
    %310 = arith.mulf %299, %309 : vector<8x128xf32>
    %311 = arith.addf %308, %310 : vector<8x128xf32>
    %312 = math.tanh %311 : vector<8x128xf32>
    %cst_59 = arith.constant 1.000000e+00 : f32
    %313 = vector.broadcast %cst_59 : f32 to vector<8x128xf32>
    %314 = arith.subf %313, %307 : vector<8x128xf32>
    %315 = arith.mulf %314, %312 : vector<8x128xf32>
    %316 = arith.mulf %307, %287 : vector<8x128xf32>
    %317 = arith.addf %315, %316 : vector<8x128xf32>
    %318 = vector.extract_strided_slice %254 {offsets = [40, 0], sizes = [8, 384], strides = [1, 1]} : vector<64x384xf32> to vector<8x384xf32>
    %cst_60 = arith.constant dense<0.000000e+00> : vector<8x384xf32>
    %319 = tpu.matmul %317, %255, %cst_60 {dimension_numbers = #tpu.dot_dimension_numbers<[1], [0], [0], [1], [0, 0, 1, 1], [], []>} : vector<8x128xf32>, vector<128x384xf32>, vector<8x384xf32> -> vector<8x384xf32>
    %320 = vector.broadcast %256 : vector<1x384xf32> to vector<8x384xf32>
    %321 = arith.addf %319, %320 : vector<8x384xf32>
    %322 = vector.extract_strided_slice %318 {offsets = [0, 0], sizes = [8, 128], strides = [1, 1]} : vector<8x384xf32> to vector<8x128xf32>
    %323 = vector.extract_strided_slice %321 {offsets = [0, 0], sizes = [8, 128], strides = [1, 1]} : vector<8x384xf32> to vector<8x128xf32>
    %324 = arith.addf %322, %323 : vector<8x128xf32>
    %325 = arith.negf %324 : vector<8x128xf32>
    %326 = math.exp %325 : vector<8x128xf32>
    %cst_61 = arith.constant 1.000000e+00 : f32
    %327 = vector.broadcast %cst_61 : f32 to vector<8x128xf32>
    %328 = arith.addf %327, %326 : vector<8x128xf32>
    %329 = arith.divf %327, %328 : vector<8x128xf32>
    %330 = vector.extract_strided_slice %318 {offsets = [0, 128], sizes = [8, 128], strides = [1, 1]} : vector<8x384xf32> to vector<8x128xf32>
    %331 = vector.extract_strided_slice %321 {offsets = [0, 128], sizes = [8, 128], strides = [1, 1]} : vector<8x384xf32> to vector<8x128xf32>
    %332 = arith.addf %330, %331 : vector<8x128xf32>
    %333 = arith.negf %332 : vector<8x128xf32>
    %334 = math.exp %333 : vector<8x128xf32>
    %cst_62 = arith.constant 1.000000e+00 : f32
    %335 = vector.broadcast %cst_62 : f32 to vector<8x128xf32>
    %336 = arith.addf %335, %334 : vector<8x128xf32>
    %337 = arith.divf %335, %336 : vector<8x128xf32>
    %338 = vector.extract_strided_slice %318 {offsets = [0, 256], sizes = [8, 128], strides = [1, 1]} : vector<8x384xf32> to vector<8x128xf32>
    %339 = vector.extract_strided_slice %321 {offsets = [0, 256], sizes = [8, 128], strides = [1, 1]} : vector<8x384xf32> to vector<8x128xf32>
    %340 = arith.mulf %329, %339 : vector<8x128xf32>
    %341 = arith.addf %338, %340 : vector<8x128xf32>
    %342 = math.tanh %341 : vector<8x128xf32>
    %cst_63 = arith.constant 1.000000e+00 : f32
    %343 = vector.broadcast %cst_63 : f32 to vector<8x128xf32>
    %344 = arith.subf %343, %337 : vector<8x128xf32>
    %345 = arith.mulf %344, %342 : vector<8x128xf32>
    %346 = arith.mulf %337, %317 : vector<8x128xf32>
    %347 = arith.addf %345, %346 : vector<8x128xf32>
    %348 = vector.extract_strided_slice %254 {offsets = [32, 0], sizes = [8, 384], strides = [1, 1]} : vector<64x384xf32> to vector<8x384xf32>
    %cst_64 = arith.constant dense<0.000000e+00> : vector<8x384xf32>
    %349 = tpu.matmul %347, %255, %cst_64 {dimension_numbers = #tpu.dot_dimension_numbers<[1], [0], [0], [1], [0, 0, 1, 1], [], []>} : vector<8x128xf32>, vector<128x384xf32>, vector<8x384xf32> -> vector<8x384xf32>
    %350 = vector.broadcast %256 : vector<1x384xf32> to vector<8x384xf32>
    %351 = arith.addf %349, %350 : vector<8x384xf32>
    %352 = vector.extract_strided_slice %348 {offsets = [0, 0], sizes = [8, 128], strides = [1, 1]} : vector<8x384xf32> to vector<8x128xf32>
    %353 = vector.extract_strided_slice %351 {offsets = [0, 0], sizes = [8, 128], strides = [1, 1]} : vector<8x384xf32> to vector<8x128xf32>
    %354 = arith.addf %352, %353 : vector<8x128xf32>
    %355 = arith.negf %354 : vector<8x128xf32>
    %356 = math.exp %355 : vector<8x128xf32>
    %cst_65 = arith.constant 1.000000e+00 : f32
    %357 = vector.broadcast %cst_65 : f32 to vector<8x128xf32>
    %358 = arith.addf %357, %356 : vector<8x128xf32>
    %359 = arith.divf %357, %358 : vector<8x128xf32>
    %360 = vector.extract_strided_slice %348 {offsets = [0, 128], sizes = [8, 128], strides = [1, 1]} : vector<8x384xf32> to vector<8x128xf32>
    %361 = vector.extract_strided_slice %351 {offsets = [0, 128], sizes = [8, 128], strides = [1, 1]} : vector<8x384xf32> to vector<8x128xf32>
    %362 = arith.addf %360, %361 : vector<8x128xf32>
    %363 = arith.negf %362 : vector<8x128xf32>
    %364 = math.exp %363 : vector<8x128xf32>
    %cst_66 = arith.constant 1.000000e+00 : f32
    %365 = vector.broadcast %cst_66 : f32 to vector<8x128xf32>
    %366 = arith.addf %365, %364 : vector<8x128xf32>
    %367 = arith.divf %365, %366 : vector<8x128xf32>
    %368 = vector.extract_strided_slice %348 {offsets = [0, 256], sizes = [8, 128], strides = [1, 1]} : vector<8x384xf32> to vector<8x128xf32>
    %369 = vector.extract_strided_slice %351 {offsets = [0, 256], sizes = [8, 128], strides = [1, 1]} : vector<8x384xf32> to vector<8x128xf32>
    %370 = arith.mulf %359, %369 : vector<8x128xf32>
    %371 = arith.addf %368, %370 : vector<8x128xf32>
    %372 = math.tanh %371 : vector<8x128xf32>
    %cst_67 = arith.constant 1.000000e+00 : f32
    %373 = vector.broadcast %cst_67 : f32 to vector<8x128xf32>
    %374 = arith.subf %373, %367 : vector<8x128xf32>
    %375 = arith.mulf %374, %372 : vector<8x128xf32>
    %376 = arith.mulf %367, %347 : vector<8x128xf32>
    %377 = arith.addf %375, %376 : vector<8x128xf32>
    %378 = vector.extract_strided_slice %254 {offsets = [24, 0], sizes = [8, 384], strides = [1, 1]} : vector<64x384xf32> to vector<8x384xf32>
    %cst_68 = arith.constant dense<0.000000e+00> : vector<8x384xf32>
    %379 = tpu.matmul %377, %255, %cst_68 {dimension_numbers = #tpu.dot_dimension_numbers<[1], [0], [0], [1], [0, 0, 1, 1], [], []>} : vector<8x128xf32>, vector<128x384xf32>, vector<8x384xf32> -> vector<8x384xf32>
    %380 = vector.broadcast %256 : vector<1x384xf32> to vector<8x384xf32>
    %381 = arith.addf %379, %380 : vector<8x384xf32>
    %382 = vector.extract_strided_slice %378 {offsets = [0, 0], sizes = [8, 128], strides = [1, 1]} : vector<8x384xf32> to vector<8x128xf32>
    %383 = vector.extract_strided_slice %381 {offsets = [0, 0], sizes = [8, 128], strides = [1, 1]} : vector<8x384xf32> to vector<8x128xf32>
    %384 = arith.addf %382, %383 : vector<8x128xf32>
    %385 = arith.negf %384 : vector<8x128xf32>
    %386 = math.exp %385 : vector<8x128xf32>
    %cst_69 = arith.constant 1.000000e+00 : f32
    %387 = vector.broadcast %cst_69 : f32 to vector<8x128xf32>
    %388 = arith.addf %387, %386 : vector<8x128xf32>
    %389 = arith.divf %387, %388 : vector<8x128xf32>
    %390 = vector.extract_strided_slice %378 {offsets = [0, 128], sizes = [8, 128], strides = [1, 1]} : vector<8x384xf32> to vector<8x128xf32>
    %391 = vector.extract_strided_slice %381 {offsets = [0, 128], sizes = [8, 128], strides = [1, 1]} : vector<8x384xf32> to vector<8x128xf32>
    %392 = arith.addf %390, %391 : vector<8x128xf32>
    %393 = arith.negf %392 : vector<8x128xf32>
    %394 = math.exp %393 : vector<8x128xf32>
    %cst_70 = arith.constant 1.000000e+00 : f32
    %395 = vector.broadcast %cst_70 : f32 to vector<8x128xf32>
    %396 = arith.addf %395, %394 : vector<8x128xf32>
    %397 = arith.divf %395, %396 : vector<8x128xf32>
    %398 = vector.extract_strided_slice %378 {offsets = [0, 256], sizes = [8, 128], strides = [1, 1]} : vector<8x384xf32> to vector<8x128xf32>
    %399 = vector.extract_strided_slice %381 {offsets = [0, 256], sizes = [8, 128], strides = [1, 1]} : vector<8x384xf32> to vector<8x128xf32>
    %400 = arith.mulf %389, %399 : vector<8x128xf32>
    %401 = arith.addf %398, %400 : vector<8x128xf32>
    %402 = math.tanh %401 : vector<8x128xf32>
    %cst_71 = arith.constant 1.000000e+00 : f32
    %403 = vector.broadcast %cst_71 : f32 to vector<8x128xf32>
    %404 = arith.subf %403, %397 : vector<8x128xf32>
    %405 = arith.mulf %404, %402 : vector<8x128xf32>
    %406 = arith.mulf %397, %377 : vector<8x128xf32>
    %407 = arith.addf %405, %406 : vector<8x128xf32>
    %408 = vector.extract_strided_slice %254 {offsets = [16, 0], sizes = [8, 384], strides = [1, 1]} : vector<64x384xf32> to vector<8x384xf32>
    %cst_72 = arith.constant dense<0.000000e+00> : vector<8x384xf32>
    %409 = tpu.matmul %407, %255, %cst_72 {dimension_numbers = #tpu.dot_dimension_numbers<[1], [0], [0], [1], [0, 0, 1, 1], [], []>} : vector<8x128xf32>, vector<128x384xf32>, vector<8x384xf32> -> vector<8x384xf32>
    %410 = vector.broadcast %256 : vector<1x384xf32> to vector<8x384xf32>
    %411 = arith.addf %409, %410 : vector<8x384xf32>
    %412 = vector.extract_strided_slice %408 {offsets = [0, 0], sizes = [8, 128], strides = [1, 1]} : vector<8x384xf32> to vector<8x128xf32>
    %413 = vector.extract_strided_slice %411 {offsets = [0, 0], sizes = [8, 128], strides = [1, 1]} : vector<8x384xf32> to vector<8x128xf32>
    %414 = arith.addf %412, %413 : vector<8x128xf32>
    %415 = arith.negf %414 : vector<8x128xf32>
    %416 = math.exp %415 : vector<8x128xf32>
    %cst_73 = arith.constant 1.000000e+00 : f32
    %417 = vector.broadcast %cst_73 : f32 to vector<8x128xf32>
    %418 = arith.addf %417, %416 : vector<8x128xf32>
    %419 = arith.divf %417, %418 : vector<8x128xf32>
    %420 = vector.extract_strided_slice %408 {offsets = [0, 128], sizes = [8, 128], strides = [1, 1]} : vector<8x384xf32> to vector<8x128xf32>
    %421 = vector.extract_strided_slice %411 {offsets = [0, 128], sizes = [8, 128], strides = [1, 1]} : vector<8x384xf32> to vector<8x128xf32>
    %422 = arith.addf %420, %421 : vector<8x128xf32>
    %423 = arith.negf %422 : vector<8x128xf32>
    %424 = math.exp %423 : vector<8x128xf32>
    %cst_74 = arith.constant 1.000000e+00 : f32
    %425 = vector.broadcast %cst_74 : f32 to vector<8x128xf32>
    %426 = arith.addf %425, %424 : vector<8x128xf32>
    %427 = arith.divf %425, %426 : vector<8x128xf32>
    %428 = vector.extract_strided_slice %408 {offsets = [0, 256], sizes = [8, 128], strides = [1, 1]} : vector<8x384xf32> to vector<8x128xf32>
    %429 = vector.extract_strided_slice %411 {offsets = [0, 256], sizes = [8, 128], strides = [1, 1]} : vector<8x384xf32> to vector<8x128xf32>
    %430 = arith.mulf %419, %429 : vector<8x128xf32>
    %431 = arith.addf %428, %430 : vector<8x128xf32>
    %432 = math.tanh %431 : vector<8x128xf32>
    %cst_75 = arith.constant 1.000000e+00 : f32
    %433 = vector.broadcast %cst_75 : f32 to vector<8x128xf32>
    %434 = arith.subf %433, %427 : vector<8x128xf32>
    %435 = arith.mulf %434, %432 : vector<8x128xf32>
    %436 = arith.mulf %427, %407 : vector<8x128xf32>
    %437 = arith.addf %435, %436 : vector<8x128xf32>
    %438 = vector.extract_strided_slice %254 {offsets = [8, 0], sizes = [8, 384], strides = [1, 1]} : vector<64x384xf32> to vector<8x384xf32>
    %cst_76 = arith.constant dense<0.000000e+00> : vector<8x384xf32>
    %439 = tpu.matmul %437, %255, %cst_76 {dimension_numbers = #tpu.dot_dimension_numbers<[1], [0], [0], [1], [0, 0, 1, 1], [], []>} : vector<8x128xf32>, vector<128x384xf32>, vector<8x384xf32> -> vector<8x384xf32>
    %440 = vector.broadcast %256 : vector<1x384xf32> to vector<8x384xf32>
    %441 = arith.addf %439, %440 : vector<8x384xf32>
    %442 = vector.extract_strided_slice %438 {offsets = [0, 0], sizes = [8, 128], strides = [1, 1]} : vector<8x384xf32> to vector<8x128xf32>
    %443 = vector.extract_strided_slice %441 {offsets = [0, 0], sizes = [8, 128], strides = [1, 1]} : vector<8x384xf32> to vector<8x128xf32>
    %444 = arith.addf %442, %443 : vector<8x128xf32>
    %445 = arith.negf %444 : vector<8x128xf32>
    %446 = math.exp %445 : vector<8x128xf32>
    %cst_77 = arith.constant 1.000000e+00 : f32
    %447 = vector.broadcast %cst_77 : f32 to vector<8x128xf32>
    %448 = arith.addf %447, %446 : vector<8x128xf32>
    %449 = arith.divf %447, %448 : vector<8x128xf32>
    %450 = vector.extract_strided_slice %438 {offsets = [0, 128], sizes = [8, 128], strides = [1, 1]} : vector<8x384xf32> to vector<8x128xf32>
    %451 = vector.extract_strided_slice %441 {offsets = [0, 128], sizes = [8, 128], strides = [1, 1]} : vector<8x384xf32> to vector<8x128xf32>
    %452 = arith.addf %450, %451 : vector<8x128xf32>
    %453 = arith.negf %452 : vector<8x128xf32>
    %454 = math.exp %453 : vector<8x128xf32>
    %cst_78 = arith.constant 1.000000e+00 : f32
    %455 = vector.broadcast %cst_78 : f32 to vector<8x128xf32>
    %456 = arith.addf %455, %454 : vector<8x128xf32>
    %457 = arith.divf %455, %456 : vector<8x128xf32>
    %458 = vector.extract_strided_slice %438 {offsets = [0, 256], sizes = [8, 128], strides = [1, 1]} : vector<8x384xf32> to vector<8x128xf32>
    %459 = vector.extract_strided_slice %441 {offsets = [0, 256], sizes = [8, 128], strides = [1, 1]} : vector<8x384xf32> to vector<8x128xf32>
    %460 = arith.mulf %449, %459 : vector<8x128xf32>
    %461 = arith.addf %458, %460 : vector<8x128xf32>
    %462 = math.tanh %461 : vector<8x128xf32>
    %cst_79 = arith.constant 1.000000e+00 : f32
    %463 = vector.broadcast %cst_79 : f32 to vector<8x128xf32>
    %464 = arith.subf %463, %457 : vector<8x128xf32>
    %465 = arith.mulf %464, %462 : vector<8x128xf32>
    %466 = arith.mulf %457, %437 : vector<8x128xf32>
    %467 = arith.addf %465, %466 : vector<8x128xf32>
    %468 = vector.extract_strided_slice %254 {offsets = [0, 0], sizes = [8, 384], strides = [1, 1]} : vector<64x384xf32> to vector<8x384xf32>
    %cst_80 = arith.constant dense<0.000000e+00> : vector<8x384xf32>
    %469 = tpu.matmul %467, %255, %cst_80 {dimension_numbers = #tpu.dot_dimension_numbers<[1], [0], [0], [1], [0, 0, 1, 1], [], []>} : vector<8x128xf32>, vector<128x384xf32>, vector<8x384xf32> -> vector<8x384xf32>
    %470 = vector.broadcast %256 : vector<1x384xf32> to vector<8x384xf32>
    %471 = arith.addf %469, %470 : vector<8x384xf32>
    %472 = vector.extract_strided_slice %468 {offsets = [0, 0], sizes = [8, 128], strides = [1, 1]} : vector<8x384xf32> to vector<8x128xf32>
    %473 = vector.extract_strided_slice %471 {offsets = [0, 0], sizes = [8, 128], strides = [1, 1]} : vector<8x384xf32> to vector<8x128xf32>
    %474 = arith.addf %472, %473 : vector<8x128xf32>
    %475 = arith.negf %474 : vector<8x128xf32>
    %476 = math.exp %475 : vector<8x128xf32>
    %cst_81 = arith.constant 1.000000e+00 : f32
    %477 = vector.broadcast %cst_81 : f32 to vector<8x128xf32>
    %478 = arith.addf %477, %476 : vector<8x128xf32>
    %479 = arith.divf %477, %478 : vector<8x128xf32>
    %480 = vector.extract_strided_slice %468 {offsets = [0, 128], sizes = [8, 128], strides = [1, 1]} : vector<8x384xf32> to vector<8x128xf32>
    %481 = vector.extract_strided_slice %471 {offsets = [0, 128], sizes = [8, 128], strides = [1, 1]} : vector<8x384xf32> to vector<8x128xf32>
    %482 = arith.addf %480, %481 : vector<8x128xf32>
    %483 = arith.negf %482 : vector<8x128xf32>
    %484 = math.exp %483 : vector<8x128xf32>
    %cst_82 = arith.constant 1.000000e+00 : f32
    %485 = vector.broadcast %cst_82 : f32 to vector<8x128xf32>
    %486 = arith.addf %485, %484 : vector<8x128xf32>
    %487 = arith.divf %485, %486 : vector<8x128xf32>
    %488 = vector.extract_strided_slice %468 {offsets = [0, 256], sizes = [8, 128], strides = [1, 1]} : vector<8x384xf32> to vector<8x128xf32>
    %489 = vector.extract_strided_slice %471 {offsets = [0, 256], sizes = [8, 128], strides = [1, 1]} : vector<8x384xf32> to vector<8x128xf32>
    %490 = arith.mulf %479, %489 : vector<8x128xf32>
    %491 = arith.addf %488, %490 : vector<8x128xf32>
    %492 = math.tanh %491 : vector<8x128xf32>
    %cst_83 = arith.constant 1.000000e+00 : f32
    %493 = vector.broadcast %cst_83 : f32 to vector<8x128xf32>
    %494 = arith.subf %493, %487 : vector<8x128xf32>
    %495 = arith.mulf %494, %492 : vector<8x128xf32>
    %496 = arith.mulf %487, %467 : vector<8x128xf32>
    %497 = arith.addf %495, %496 : vector<8x128xf32>
    %498 = tpu.concatenate %497, %467, %437, %407, %377, %347, %317, %287 in 0 : vector<8x128xf32>, vector<8x128xf32>, vector<8x128xf32>, vector<8x128xf32>, vector<8x128xf32>, vector<8x128xf32>, vector<8x128xf32>, vector<8x128xf32> -> vector<64x128xf32>
    %499 = tpu.concatenate %249, %498 in 1 : vector<64x128xf32>, vector<64x128xf32> -> vector<64x256xf32>
    %c0_84 = arith.constant 0 : index
    %c0_85 = arith.constant 0 : index
    %500 = vector.load %arg9[%c0_84, %c0_85] : memref<256x384xf32, #tpu.memory_space<vmem>>, vector<256x384xf32>
    %cst_86 = arith.constant dense<0.000000e+00> : vector<64x384xf32>
    %501 = tpu.matmul %499, %500, %cst_86 {dimension_numbers = #tpu.dot_dimension_numbers<[1], [0], [0], [1], [0, 0, 1, 1], [], []>} : vector<64x256xf32>, vector<256x384xf32>, vector<64x384xf32> -> vector<64x384xf32>
    %c0_87 = arith.constant 0 : index
    %c0_88 = arith.constant 0 : index
    %502 = vector.load %arg11[%c0_87, %c0_88] : memref<1x384xf32, #tpu.memory_space<vmem>>, vector<1x384xf32>
    %503 = vector.broadcast %502 : vector<1x384xf32> to vector<64x384xf32>
    %504 = arith.addf %501, %503 : vector<64x384xf32>
    %c0_89 = arith.constant 0 : index
    %c0_90 = arith.constant 0 : index
    %505 = vector.load %arg10[%c0_89, %c0_90] : memref<128x384xf32, #tpu.memory_space<vmem>>, vector<128x384xf32>
    %c0_91 = arith.constant 0 : index
    %c0_92 = arith.constant 0 : index
    %506 = vector.load %arg12[%c0_91, %c0_92] : memref<1x384xf32, #tpu.memory_space<vmem>>, vector<1x384xf32>
    %cst_93 = arith.constant 0.000000e+00 : f32
    %507 = vector.broadcast %cst_93 : f32 to vector<8x128xf32>
    %508 = vector.extract_strided_slice %504 {offsets = [0, 0], sizes = [8, 384], strides = [1, 1]} : vector<64x384xf32> to vector<8x384xf32>
    %cst_94 = arith.constant dense<0.000000e+00> : vector<8x384xf32>
    %509 = tpu.matmul %507, %505, %cst_94 {dimension_numbers = #tpu.dot_dimension_numbers<[1], [0], [0], [1], [0, 0, 1, 1], [], []>} : vector<8x128xf32>, vector<128x384xf32>, vector<8x384xf32> -> vector<8x384xf32>
    %510 = vector.broadcast %506 : vector<1x384xf32> to vector<8x384xf32>
    %511 = arith.addf %509, %510 : vector<8x384xf32>
    %512 = vector.extract_strided_slice %508 {offsets = [0, 0], sizes = [8, 128], strides = [1, 1]} : vector<8x384xf32> to vector<8x128xf32>
    %513 = vector.extract_strided_slice %511 {offsets = [0, 0], sizes = [8, 128], strides = [1, 1]} : vector<8x384xf32> to vector<8x128xf32>
    %514 = arith.addf %512, %513 : vector<8x128xf32>
    %515 = arith.negf %514 : vector<8x128xf32>
    %516 = math.exp %515 : vector<8x128xf32>
    %cst_95 = arith.constant 1.000000e+00 : f32
    %517 = vector.broadcast %cst_95 : f32 to vector<8x128xf32>
    %518 = arith.addf %517, %516 : vector<8x128xf32>
    %519 = arith.divf %517, %518 : vector<8x128xf32>
    %520 = vector.extract_strided_slice %508 {offsets = [0, 128], sizes = [8, 128], strides = [1, 1]} : vector<8x384xf32> to vector<8x128xf32>
    %521 = vector.extract_strided_slice %511 {offsets = [0, 128], sizes = [8, 128], strides = [1, 1]} : vector<8x384xf32> to vector<8x128xf32>
    %522 = arith.addf %520, %521 : vector<8x128xf32>
    %523 = arith.negf %522 : vector<8x128xf32>
    %524 = math.exp %523 : vector<8x128xf32>
    %cst_96 = arith.constant 1.000000e+00 : f32
    %525 = vector.broadcast %cst_96 : f32 to vector<8x128xf32>
    %526 = arith.addf %525, %524 : vector<8x128xf32>
    %527 = arith.divf %525, %526 : vector<8x128xf32>
    %528 = vector.extract_strided_slice %508 {offsets = [0, 256], sizes = [8, 128], strides = [1, 1]} : vector<8x384xf32> to vector<8x128xf32>
    %529 = vector.extract_strided_slice %511 {offsets = [0, 256], sizes = [8, 128], strides = [1, 1]} : vector<8x384xf32> to vector<8x128xf32>
    %530 = arith.mulf %519, %529 : vector<8x128xf32>
    %531 = arith.addf %528, %530 : vector<8x128xf32>
    %532 = math.tanh %531 : vector<8x128xf32>
    %cst_97 = arith.constant 1.000000e+00 : f32
    %533 = vector.broadcast %cst_97 : f32 to vector<8x128xf32>
    %534 = arith.subf %533, %527 : vector<8x128xf32>
    %535 = arith.mulf %534, %532 : vector<8x128xf32>
    %536 = arith.mulf %527, %507 : vector<8x128xf32>
    %537 = arith.addf %535, %536 : vector<8x128xf32>
    %538 = vector.extract_strided_slice %504 {offsets = [8, 0], sizes = [8, 384], strides = [1, 1]} : vector<64x384xf32> to vector<8x384xf32>
    %cst_98 = arith.constant dense<0.000000e+00> : vector<8x384xf32>
    %539 = tpu.matmul %537, %505, %cst_98 {dimension_numbers = #tpu.dot_dimension_numbers<[1], [0], [0], [1], [0, 0, 1, 1], [], []>} : vector<8x128xf32>, vector<128x384xf32>, vector<8x384xf32> -> vector<8x384xf32>
    %540 = vector.broadcast %506 : vector<1x384xf32> to vector<8x384xf32>
    %541 = arith.addf %539, %540 : vector<8x384xf32>
    %542 = vector.extract_strided_slice %538 {offsets = [0, 0], sizes = [8, 128], strides = [1, 1]} : vector<8x384xf32> to vector<8x128xf32>
    %543 = vector.extract_strided_slice %541 {offsets = [0, 0], sizes = [8, 128], strides = [1, 1]} : vector<8x384xf32> to vector<8x128xf32>
    %544 = arith.addf %542, %543 : vector<8x128xf32>
    %545 = arith.negf %544 : vector<8x128xf32>
    %546 = math.exp %545 : vector<8x128xf32>
    %cst_99 = arith.constant 1.000000e+00 : f32
    %547 = vector.broadcast %cst_99 : f32 to vector<8x128xf32>
    %548 = arith.addf %547, %546 : vector<8x128xf32>
    %549 = arith.divf %547, %548 : vector<8x128xf32>
    %550 = vector.extract_strided_slice %538 {offsets = [0, 128], sizes = [8, 128], strides = [1, 1]} : vector<8x384xf32> to vector<8x128xf32>
    %551 = vector.extract_strided_slice %541 {offsets = [0, 128], sizes = [8, 128], strides = [1, 1]} : vector<8x384xf32> to vector<8x128xf32>
    %552 = arith.addf %550, %551 : vector<8x128xf32>
    %553 = arith.negf %552 : vector<8x128xf32>
    %554 = math.exp %553 : vector<8x128xf32>
    %cst_100 = arith.constant 1.000000e+00 : f32
    %555 = vector.broadcast %cst_100 : f32 to vector<8x128xf32>
    %556 = arith.addf %555, %554 : vector<8x128xf32>
    %557 = arith.divf %555, %556 : vector<8x128xf32>
    %558 = vector.extract_strided_slice %538 {offsets = [0, 256], sizes = [8, 128], strides = [1, 1]} : vector<8x384xf32> to vector<8x128xf32>
    %559 = vector.extract_strided_slice %541 {offsets = [0, 256], sizes = [8, 128], strides = [1, 1]} : vector<8x384xf32> to vector<8x128xf32>
    %560 = arith.mulf %549, %559 : vector<8x128xf32>
    %561 = arith.addf %558, %560 : vector<8x128xf32>
    %562 = math.tanh %561 : vector<8x128xf32>
    %cst_101 = arith.constant 1.000000e+00 : f32
    %563 = vector.broadcast %cst_101 : f32 to vector<8x128xf32>
    %564 = arith.subf %563, %557 : vector<8x128xf32>
    %565 = arith.mulf %564, %562 : vector<8x128xf32>
    %566 = arith.mulf %557, %537 : vector<8x128xf32>
    %567 = arith.addf %565, %566 : vector<8x128xf32>
    %568 = vector.extract_strided_slice %504 {offsets = [16, 0], sizes = [8, 384], strides = [1, 1]} : vector<64x384xf32> to vector<8x384xf32>
    %cst_102 = arith.constant dense<0.000000e+00> : vector<8x384xf32>
    %569 = tpu.matmul %567, %505, %cst_102 {dimension_numbers = #tpu.dot_dimension_numbers<[1], [0], [0], [1], [0, 0, 1, 1], [], []>} : vector<8x128xf32>, vector<128x384xf32>, vector<8x384xf32> -> vector<8x384xf32>
    %570 = vector.broadcast %506 : vector<1x384xf32> to vector<8x384xf32>
    %571 = arith.addf %569, %570 : vector<8x384xf32>
    %572 = vector.extract_strided_slice %568 {offsets = [0, 0], sizes = [8, 128], strides = [1, 1]} : vector<8x384xf32> to vector<8x128xf32>
    %573 = vector.extract_strided_slice %571 {offsets = [0, 0], sizes = [8, 128], strides = [1, 1]} : vector<8x384xf32> to vector<8x128xf32>
    %574 = arith.addf %572, %573 : vector<8x128xf32>
    %575 = arith.negf %574 : vector<8x128xf32>
    %576 = math.exp %575 : vector<8x128xf32>
    %cst_103 = arith.constant 1.000000e+00 : f32
    %577 = vector.broadcast %cst_103 : f32 to vector<8x128xf32>
    %578 = arith.addf %577, %576 : vector<8x128xf32>
    %579 = arith.divf %577, %578 : vector<8x128xf32>
    %580 = vector.extract_strided_slice %568 {offsets = [0, 128], sizes = [8, 128], strides = [1, 1]} : vector<8x384xf32> to vector<8x128xf32>
    %581 = vector.extract_strided_slice %571 {offsets = [0, 128], sizes = [8, 128], strides = [1, 1]} : vector<8x384xf32> to vector<8x128xf32>
    %582 = arith.addf %580, %581 : vector<8x128xf32>
    %583 = arith.negf %582 : vector<8x128xf32>
    %584 = math.exp %583 : vector<8x128xf32>
    %cst_104 = arith.constant 1.000000e+00 : f32
    %585 = vector.broadcast %cst_104 : f32 to vector<8x128xf32>
    %586 = arith.addf %585, %584 : vector<8x128xf32>
    %587 = arith.divf %585, %586 : vector<8x128xf32>
    %588 = vector.extract_strided_slice %568 {offsets = [0, 256], sizes = [8, 128], strides = [1, 1]} : vector<8x384xf32> to vector<8x128xf32>
    %589 = vector.extract_strided_slice %571 {offsets = [0, 256], sizes = [8, 128], strides = [1, 1]} : vector<8x384xf32> to vector<8x128xf32>
    %590 = arith.mulf %579, %589 : vector<8x128xf32>
    %591 = arith.addf %588, %590 : vector<8x128xf32>
    %592 = math.tanh %591 : vector<8x128xf32>
    %cst_105 = arith.constant 1.000000e+00 : f32
    %593 = vector.broadcast %cst_105 : f32 to vector<8x128xf32>
    %594 = arith.subf %593, %587 : vector<8x128xf32>
    %595 = arith.mulf %594, %592 : vector<8x128xf32>
    %596 = arith.mulf %587, %567 : vector<8x128xf32>
    %597 = arith.addf %595, %596 : vector<8x128xf32>
    %598 = vector.extract_strided_slice %504 {offsets = [24, 0], sizes = [8, 384], strides = [1, 1]} : vector<64x384xf32> to vector<8x384xf32>
    %cst_106 = arith.constant dense<0.000000e+00> : vector<8x384xf32>
    %599 = tpu.matmul %597, %505, %cst_106 {dimension_numbers = #tpu.dot_dimension_numbers<[1], [0], [0], [1], [0, 0, 1, 1], [], []>} : vector<8x128xf32>, vector<128x384xf32>, vector<8x384xf32> -> vector<8x384xf32>
    %600 = vector.broadcast %506 : vector<1x384xf32> to vector<8x384xf32>
    %601 = arith.addf %599, %600 : vector<8x384xf32>
    %602 = vector.extract_strided_slice %598 {offsets = [0, 0], sizes = [8, 128], strides = [1, 1]} : vector<8x384xf32> to vector<8x128xf32>
    %603 = vector.extract_strided_slice %601 {offsets = [0, 0], sizes = [8, 128], strides = [1, 1]} : vector<8x384xf32> to vector<8x128xf32>
    %604 = arith.addf %602, %603 : vector<8x128xf32>
    %605 = arith.negf %604 : vector<8x128xf32>
    %606 = math.exp %605 : vector<8x128xf32>
    %cst_107 = arith.constant 1.000000e+00 : f32
    %607 = vector.broadcast %cst_107 : f32 to vector<8x128xf32>
    %608 = arith.addf %607, %606 : vector<8x128xf32>
    %609 = arith.divf %607, %608 : vector<8x128xf32>
    %610 = vector.extract_strided_slice %598 {offsets = [0, 128], sizes = [8, 128], strides = [1, 1]} : vector<8x384xf32> to vector<8x128xf32>
    %611 = vector.extract_strided_slice %601 {offsets = [0, 128], sizes = [8, 128], strides = [1, 1]} : vector<8x384xf32> to vector<8x128xf32>
    %612 = arith.addf %610, %611 : vector<8x128xf32>
    %613 = arith.negf %612 : vector<8x128xf32>
    %614 = math.exp %613 : vector<8x128xf32>
    %cst_108 = arith.constant 1.000000e+00 : f32
    %615 = vector.broadcast %cst_108 : f32 to vector<8x128xf32>
    %616 = arith.addf %615, %614 : vector<8x128xf32>
    %617 = arith.divf %615, %616 : vector<8x128xf32>
    %618 = vector.extract_strided_slice %598 {offsets = [0, 256], sizes = [8, 128], strides = [1, 1]} : vector<8x384xf32> to vector<8x128xf32>
    %619 = vector.extract_strided_slice %601 {offsets = [0, 256], sizes = [8, 128], strides = [1, 1]} : vector<8x384xf32> to vector<8x128xf32>
    %620 = arith.mulf %609, %619 : vector<8x128xf32>
    %621 = arith.addf %618, %620 : vector<8x128xf32>
    %622 = math.tanh %621 : vector<8x128xf32>
    %cst_109 = arith.constant 1.000000e+00 : f32
    %623 = vector.broadcast %cst_109 : f32 to vector<8x128xf32>
    %624 = arith.subf %623, %617 : vector<8x128xf32>
    %625 = arith.mulf %624, %622 : vector<8x128xf32>
    %626 = arith.mulf %617, %597 : vector<8x128xf32>
    %627 = arith.addf %625, %626 : vector<8x128xf32>
    %628 = vector.extract_strided_slice %504 {offsets = [32, 0], sizes = [8, 384], strides = [1, 1]} : vector<64x384xf32> to vector<8x384xf32>
    %cst_110 = arith.constant dense<0.000000e+00> : vector<8x384xf32>
    %629 = tpu.matmul %627, %505, %cst_110 {dimension_numbers = #tpu.dot_dimension_numbers<[1], [0], [0], [1], [0, 0, 1, 1], [], []>} : vector<8x128xf32>, vector<128x384xf32>, vector<8x384xf32> -> vector<8x384xf32>
    %630 = vector.broadcast %506 : vector<1x384xf32> to vector<8x384xf32>
    %631 = arith.addf %629, %630 : vector<8x384xf32>
    %632 = vector.extract_strided_slice %628 {offsets = [0, 0], sizes = [8, 128], strides = [1, 1]} : vector<8x384xf32> to vector<8x128xf32>
    %633 = vector.extract_strided_slice %631 {offsets = [0, 0], sizes = [8, 128], strides = [1, 1]} : vector<8x384xf32> to vector<8x128xf32>
    %634 = arith.addf %632, %633 : vector<8x128xf32>
    %635 = arith.negf %634 : vector<8x128xf32>
    %636 = math.exp %635 : vector<8x128xf32>
    %cst_111 = arith.constant 1.000000e+00 : f32
    %637 = vector.broadcast %cst_111 : f32 to vector<8x128xf32>
    %638 = arith.addf %637, %636 : vector<8x128xf32>
    %639 = arith.divf %637, %638 : vector<8x128xf32>
    %640 = vector.extract_strided_slice %628 {offsets = [0, 128], sizes = [8, 128], strides = [1, 1]} : vector<8x384xf32> to vector<8x128xf32>
    %641 = vector.extract_strided_slice %631 {offsets = [0, 128], sizes = [8, 128], strides = [1, 1]} : vector<8x384xf32> to vector<8x128xf32>
    %642 = arith.addf %640, %641 : vector<8x128xf32>
    %643 = arith.negf %642 : vector<8x128xf32>
    %644 = math.exp %643 : vector<8x128xf32>
    %cst_112 = arith.constant 1.000000e+00 : f32
    %645 = vector.broadcast %cst_112 : f32 to vector<8x128xf32>
    %646 = arith.addf %645, %644 : vector<8x128xf32>
    %647 = arith.divf %645, %646 : vector<8x128xf32>
    %648 = vector.extract_strided_slice %628 {offsets = [0, 256], sizes = [8, 128], strides = [1, 1]} : vector<8x384xf32> to vector<8x128xf32>
    %649 = vector.extract_strided_slice %631 {offsets = [0, 256], sizes = [8, 128], strides = [1, 1]} : vector<8x384xf32> to vector<8x128xf32>
    %650 = arith.mulf %639, %649 : vector<8x128xf32>
    %651 = arith.addf %648, %650 : vector<8x128xf32>
    %652 = math.tanh %651 : vector<8x128xf32>
    %cst_113 = arith.constant 1.000000e+00 : f32
    %653 = vector.broadcast %cst_113 : f32 to vector<8x128xf32>
    %654 = arith.subf %653, %647 : vector<8x128xf32>
    %655 = arith.mulf %654, %652 : vector<8x128xf32>
    %656 = arith.mulf %647, %627 : vector<8x128xf32>
    %657 = arith.addf %655, %656 : vector<8x128xf32>
    %658 = vector.extract_strided_slice %504 {offsets = [40, 0], sizes = [8, 384], strides = [1, 1]} : vector<64x384xf32> to vector<8x384xf32>
    %cst_114 = arith.constant dense<0.000000e+00> : vector<8x384xf32>
    %659 = tpu.matmul %657, %505, %cst_114 {dimension_numbers = #tpu.dot_dimension_numbers<[1], [0], [0], [1], [0, 0, 1, 1], [], []>} : vector<8x128xf32>, vector<128x384xf32>, vector<8x384xf32> -> vector<8x384xf32>
    %660 = vector.broadcast %506 : vector<1x384xf32> to vector<8x384xf32>
    %661 = arith.addf %659, %660 : vector<8x384xf32>
    %662 = vector.extract_strided_slice %658 {offsets = [0, 0], sizes = [8, 128], strides = [1, 1]} : vector<8x384xf32> to vector<8x128xf32>
    %663 = vector.extract_strided_slice %661 {offsets = [0, 0], sizes = [8, 128], strides = [1, 1]} : vector<8x384xf32> to vector<8x128xf32>
    %664 = arith.addf %662, %663 : vector<8x128xf32>
    %665 = arith.negf %664 : vector<8x128xf32>
    %666 = math.exp %665 : vector<8x128xf32>
    %cst_115 = arith.constant 1.000000e+00 : f32
    %667 = vector.broadcast %cst_115 : f32 to vector<8x128xf32>
    %668 = arith.addf %667, %666 : vector<8x128xf32>
    %669 = arith.divf %667, %668 : vector<8x128xf32>
    %670 = vector.extract_strided_slice %658 {offsets = [0, 128], sizes = [8, 128], strides = [1, 1]} : vector<8x384xf32> to vector<8x128xf32>
    %671 = vector.extract_strided_slice %661 {offsets = [0, 128], sizes = [8, 128], strides = [1, 1]} : vector<8x384xf32> to vector<8x128xf32>
    %672 = arith.addf %670, %671 : vector<8x128xf32>
    %673 = arith.negf %672 : vector<8x128xf32>
    %674 = math.exp %673 : vector<8x128xf32>
    %cst_116 = arith.constant 1.000000e+00 : f32
    %675 = vector.broadcast %cst_116 : f32 to vector<8x128xf32>
    %676 = arith.addf %675, %674 : vector<8x128xf32>
    %677 = arith.divf %675, %676 : vector<8x128xf32>
    %678 = vector.extract_strided_slice %658 {offsets = [0, 256], sizes = [8, 128], strides = [1, 1]} : vector<8x384xf32> to vector<8x128xf32>
    %679 = vector.extract_strided_slice %661 {offsets = [0, 256], sizes = [8, 128], strides = [1, 1]} : vector<8x384xf32> to vector<8x128xf32>
    %680 = arith.mulf %669, %679 : vector<8x128xf32>
    %681 = arith.addf %678, %680 : vector<8x128xf32>
    %682 = math.tanh %681 : vector<8x128xf32>
    %cst_117 = arith.constant 1.000000e+00 : f32
    %683 = vector.broadcast %cst_117 : f32 to vector<8x128xf32>
    %684 = arith.subf %683, %677 : vector<8x128xf32>
    %685 = arith.mulf %684, %682 : vector<8x128xf32>
    %686 = arith.mulf %677, %657 : vector<8x128xf32>
    %687 = arith.addf %685, %686 : vector<8x128xf32>
    %688 = vector.extract_strided_slice %504 {offsets = [48, 0], sizes = [8, 384], strides = [1, 1]} : vector<64x384xf32> to vector<8x384xf32>
    %cst_118 = arith.constant dense<0.000000e+00> : vector<8x384xf32>
    %689 = tpu.matmul %687, %505, %cst_118 {dimension_numbers = #tpu.dot_dimension_numbers<[1], [0], [0], [1], [0, 0, 1, 1], [], []>} : vector<8x128xf32>, vector<128x384xf32>, vector<8x384xf32> -> vector<8x384xf32>
    %690 = vector.broadcast %506 : vector<1x384xf32> to vector<8x384xf32>
    %691 = arith.addf %689, %690 : vector<8x384xf32>
    %692 = vector.extract_strided_slice %688 {offsets = [0, 0], sizes = [8, 128], strides = [1, 1]} : vector<8x384xf32> to vector<8x128xf32>
    %693 = vector.extract_strided_slice %691 {offsets = [0, 0], sizes = [8, 128], strides = [1, 1]} : vector<8x384xf32> to vector<8x128xf32>
    %694 = arith.addf %692, %693 : vector<8x128xf32>
    %695 = arith.negf %694 : vector<8x128xf32>
    %696 = math.exp %695 : vector<8x128xf32>
    %cst_119 = arith.constant 1.000000e+00 : f32
    %697 = vector.broadcast %cst_119 : f32 to vector<8x128xf32>
    %698 = arith.addf %697, %696 : vector<8x128xf32>
    %699 = arith.divf %697, %698 : vector<8x128xf32>
    %700 = vector.extract_strided_slice %688 {offsets = [0, 128], sizes = [8, 128], strides = [1, 1]} : vector<8x384xf32> to vector<8x128xf32>
    %701 = vector.extract_strided_slice %691 {offsets = [0, 128], sizes = [8, 128], strides = [1, 1]} : vector<8x384xf32> to vector<8x128xf32>
    %702 = arith.addf %700, %701 : vector<8x128xf32>
    %703 = arith.negf %702 : vector<8x128xf32>
    %704 = math.exp %703 : vector<8x128xf32>
    %cst_120 = arith.constant 1.000000e+00 : f32
    %705 = vector.broadcast %cst_120 : f32 to vector<8x128xf32>
    %706 = arith.addf %705, %704 : vector<8x128xf32>
    %707 = arith.divf %705, %706 : vector<8x128xf32>
    %708 = vector.extract_strided_slice %688 {offsets = [0, 256], sizes = [8, 128], strides = [1, 1]} : vector<8x384xf32> to vector<8x128xf32>
    %709 = vector.extract_strided_slice %691 {offsets = [0, 256], sizes = [8, 128], strides = [1, 1]} : vector<8x384xf32> to vector<8x128xf32>
    %710 = arith.mulf %699, %709 : vector<8x128xf32>
    %711 = arith.addf %708, %710 : vector<8x128xf32>
    %712 = math.tanh %711 : vector<8x128xf32>
    %cst_121 = arith.constant 1.000000e+00 : f32
    %713 = vector.broadcast %cst_121 : f32 to vector<8x128xf32>
    %714 = arith.subf %713, %707 : vector<8x128xf32>
    %715 = arith.mulf %714, %712 : vector<8x128xf32>
    %716 = arith.mulf %707, %687 : vector<8x128xf32>
    %717 = arith.addf %715, %716 : vector<8x128xf32>
    %718 = vector.extract_strided_slice %504 {offsets = [56, 0], sizes = [8, 384], strides = [1, 1]} : vector<64x384xf32> to vector<8x384xf32>
    %cst_122 = arith.constant dense<0.000000e+00> : vector<8x384xf32>
    %719 = tpu.matmul %717, %505, %cst_122 {dimension_numbers = #tpu.dot_dimension_numbers<[1], [0], [0], [1], [0, 0, 1, 1], [], []>} : vector<8x128xf32>, vector<128x384xf32>, vector<8x384xf32> -> vector<8x384xf32>
    %720 = vector.broadcast %506 : vector<1x384xf32> to vector<8x384xf32>
    %721 = arith.addf %719, %720 : vector<8x384xf32>
    %722 = vector.extract_strided_slice %718 {offsets = [0, 0], sizes = [8, 128], strides = [1, 1]} : vector<8x384xf32> to vector<8x128xf32>
    %723 = vector.extract_strided_slice %721 {offsets = [0, 0], sizes = [8, 128], strides = [1, 1]} : vector<8x384xf32> to vector<8x128xf32>
    %724 = arith.addf %722, %723 : vector<8x128xf32>
    %725 = arith.negf %724 : vector<8x128xf32>
    %726 = math.exp %725 : vector<8x128xf32>
    %cst_123 = arith.constant 1.000000e+00 : f32
    %727 = vector.broadcast %cst_123 : f32 to vector<8x128xf32>
    %728 = arith.addf %727, %726 : vector<8x128xf32>
    %729 = arith.divf %727, %728 : vector<8x128xf32>
    %730 = vector.extract_strided_slice %718 {offsets = [0, 128], sizes = [8, 128], strides = [1, 1]} : vector<8x384xf32> to vector<8x128xf32>
    %731 = vector.extract_strided_slice %721 {offsets = [0, 128], sizes = [8, 128], strides = [1, 1]} : vector<8x384xf32> to vector<8x128xf32>
    %732 = arith.addf %730, %731 : vector<8x128xf32>
    %733 = arith.negf %732 : vector<8x128xf32>
    %734 = math.exp %733 : vector<8x128xf32>
    %cst_124 = arith.constant 1.000000e+00 : f32
    %735 = vector.broadcast %cst_124 : f32 to vector<8x128xf32>
    %736 = arith.addf %735, %734 : vector<8x128xf32>
    %737 = arith.divf %735, %736 : vector<8x128xf32>
    %738 = vector.extract_strided_slice %718 {offsets = [0, 256], sizes = [8, 128], strides = [1, 1]} : vector<8x384xf32> to vector<8x128xf32>
    %739 = vector.extract_strided_slice %721 {offsets = [0, 256], sizes = [8, 128], strides = [1, 1]} : vector<8x384xf32> to vector<8x128xf32>
    %740 = arith.mulf %729, %739 : vector<8x128xf32>
    %741 = arith.addf %738, %740 : vector<8x128xf32>
    %742 = math.tanh %741 : vector<8x128xf32>
    %cst_125 = arith.constant 1.000000e+00 : f32
    %743 = vector.broadcast %cst_125 : f32 to vector<8x128xf32>
    %744 = arith.subf %743, %737 : vector<8x128xf32>
    %745 = arith.mulf %744, %742 : vector<8x128xf32>
    %746 = arith.mulf %737, %717 : vector<8x128xf32>
    %747 = arith.addf %745, %746 : vector<8x128xf32>
    %748 = tpu.concatenate %537, %567, %597, %627, %657, %687, %717, %747 in 0 : vector<8x128xf32>, vector<8x128xf32>, vector<8x128xf32>, vector<8x128xf32>, vector<8x128xf32>, vector<8x128xf32>, vector<8x128xf32>, vector<8x128xf32> -> vector<64x128xf32>
    %c0_126 = arith.constant 0 : index
    %c0_127 = arith.constant 0 : index
    %749 = vector.load %arg13[%c0_126, %c0_127] : memref<256x384xf32, #tpu.memory_space<vmem>>, vector<256x384xf32>
    %cst_128 = arith.constant dense<0.000000e+00> : vector<64x384xf32>
    %750 = tpu.matmul %499, %749, %cst_128 {dimension_numbers = #tpu.dot_dimension_numbers<[1], [0], [0], [1], [0, 0, 1, 1], [], []>} : vector<64x256xf32>, vector<256x384xf32>, vector<64x384xf32> -> vector<64x384xf32>
    %c0_129 = arith.constant 0 : index
    %c0_130 = arith.constant 0 : index
    %751 = vector.load %arg15[%c0_129, %c0_130] : memref<1x384xf32, #tpu.memory_space<vmem>>, vector<1x384xf32>
    %752 = vector.broadcast %751 : vector<1x384xf32> to vector<64x384xf32>
    %753 = arith.addf %750, %752 : vector<64x384xf32>
    %c0_131 = arith.constant 0 : index
    %c0_132 = arith.constant 0 : index
    %754 = vector.load %arg14[%c0_131, %c0_132] : memref<128x384xf32, #tpu.memory_space<vmem>>, vector<128x384xf32>
    %c0_133 = arith.constant 0 : index
    %c0_134 = arith.constant 0 : index
    %755 = vector.load %arg16[%c0_133, %c0_134] : memref<1x384xf32, #tpu.memory_space<vmem>>, vector<1x384xf32>
    %cst_135 = arith.constant 0.000000e+00 : f32
    %756 = vector.broadcast %cst_135 : f32 to vector<8x128xf32>
    %757 = vector.extract_strided_slice %753 {offsets = [56, 0], sizes = [8, 384], strides = [1, 1]} : vector<64x384xf32> to vector<8x384xf32>
    %cst_136 = arith.constant dense<0.000000e+00> : vector<8x384xf32>
    %758 = tpu.matmul %756, %754, %cst_136 {dimension_numbers = #tpu.dot_dimension_numbers<[1], [0], [0], [1], [0, 0, 1, 1], [], []>} : vector<8x128xf32>, vector<128x384xf32>, vector<8x384xf32> -> vector<8x384xf32>
    %759 = vector.broadcast %755 : vector<1x384xf32> to vector<8x384xf32>
    %760 = arith.addf %758, %759 : vector<8x384xf32>
    %761 = vector.extract_strided_slice %757 {offsets = [0, 0], sizes = [8, 128], strides = [1, 1]} : vector<8x384xf32> to vector<8x128xf32>
    %762 = vector.extract_strided_slice %760 {offsets = [0, 0], sizes = [8, 128], strides = [1, 1]} : vector<8x384xf32> to vector<8x128xf32>
    %763 = arith.addf %761, %762 : vector<8x128xf32>
    %764 = arith.negf %763 : vector<8x128xf32>
    %765 = math.exp %764 : vector<8x128xf32>
    %cst_137 = arith.constant 1.000000e+00 : f32
    %766 = vector.broadcast %cst_137 : f32 to vector<8x128xf32>
    %767 = arith.addf %766, %765 : vector<8x128xf32>
    %768 = arith.divf %766, %767 : vector<8x128xf32>
    %769 = vector.extract_strided_slice %757 {offsets = [0, 128], sizes = [8, 128], strides = [1, 1]} : vector<8x384xf32> to vector<8x128xf32>
    %770 = vector.extract_strided_slice %760 {offsets = [0, 128], sizes = [8, 128], strides = [1, 1]} : vector<8x384xf32> to vector<8x128xf32>
    %771 = arith.addf %769, %770 : vector<8x128xf32>
    %772 = arith.negf %771 : vector<8x128xf32>
    %773 = math.exp %772 : vector<8x128xf32>
    %cst_138 = arith.constant 1.000000e+00 : f32
    %774 = vector.broadcast %cst_138 : f32 to vector<8x128xf32>
    %775 = arith.addf %774, %773 : vector<8x128xf32>
    %776 = arith.divf %774, %775 : vector<8x128xf32>
    %777 = vector.extract_strided_slice %757 {offsets = [0, 256], sizes = [8, 128], strides = [1, 1]} : vector<8x384xf32> to vector<8x128xf32>
    %778 = vector.extract_strided_slice %760 {offsets = [0, 256], sizes = [8, 128], strides = [1, 1]} : vector<8x384xf32> to vector<8x128xf32>
    %779 = arith.mulf %768, %778 : vector<8x128xf32>
    %780 = arith.addf %777, %779 : vector<8x128xf32>
    %781 = math.tanh %780 : vector<8x128xf32>
    %cst_139 = arith.constant 1.000000e+00 : f32
    %782 = vector.broadcast %cst_139 : f32 to vector<8x128xf32>
    %783 = arith.subf %782, %776 : vector<8x128xf32>
    %784 = arith.mulf %783, %781 : vector<8x128xf32>
    %785 = arith.mulf %776, %756 : vector<8x128xf32>
    %786 = arith.addf %784, %785 : vector<8x128xf32>
    %787 = vector.extract_strided_slice %753 {offsets = [48, 0], sizes = [8, 384], strides = [1, 1]} : vector<64x384xf32> to vector<8x384xf32>
    %cst_140 = arith.constant dense<0.000000e+00> : vector<8x384xf32>
    %788 = tpu.matmul %786, %754, %cst_140 {dimension_numbers = #tpu.dot_dimension_numbers<[1], [0], [0], [1], [0, 0, 1, 1], [], []>} : vector<8x128xf32>, vector<128x384xf32>, vector<8x384xf32> -> vector<8x384xf32>
    %789 = vector.broadcast %755 : vector<1x384xf32> to vector<8x384xf32>
    %790 = arith.addf %788, %789 : vector<8x384xf32>
    %791 = vector.extract_strided_slice %787 {offsets = [0, 0], sizes = [8, 128], strides = [1, 1]} : vector<8x384xf32> to vector<8x128xf32>
    %792 = vector.extract_strided_slice %790 {offsets = [0, 0], sizes = [8, 128], strides = [1, 1]} : vector<8x384xf32> to vector<8x128xf32>
    %793 = arith.addf %791, %792 : vector<8x128xf32>
    %794 = arith.negf %793 : vector<8x128xf32>
    %795 = math.exp %794 : vector<8x128xf32>
    %cst_141 = arith.constant 1.000000e+00 : f32
    %796 = vector.broadcast %cst_141 : f32 to vector<8x128xf32>
    %797 = arith.addf %796, %795 : vector<8x128xf32>
    %798 = arith.divf %796, %797 : vector<8x128xf32>
    %799 = vector.extract_strided_slice %787 {offsets = [0, 128], sizes = [8, 128], strides = [1, 1]} : vector<8x384xf32> to vector<8x128xf32>
    %800 = vector.extract_strided_slice %790 {offsets = [0, 128], sizes = [8, 128], strides = [1, 1]} : vector<8x384xf32> to vector<8x128xf32>
    %801 = arith.addf %799, %800 : vector<8x128xf32>
    %802 = arith.negf %801 : vector<8x128xf32>
    %803 = math.exp %802 : vector<8x128xf32>
    %cst_142 = arith.constant 1.000000e+00 : f32
    %804 = vector.broadcast %cst_142 : f32 to vector<8x128xf32>
    %805 = arith.addf %804, %803 : vector<8x128xf32>
    %806 = arith.divf %804, %805 : vector<8x128xf32>
    %807 = vector.extract_strided_slice %787 {offsets = [0, 256], sizes = [8, 128], strides = [1, 1]} : vector<8x384xf32> to vector<8x128xf32>
    %808 = vector.extract_strided_slice %790 {offsets = [0, 256], sizes = [8, 128], strides = [1, 1]} : vector<8x384xf32> to vector<8x128xf32>
    %809 = arith.mulf %798, %808 : vector<8x128xf32>
    %810 = arith.addf %807, %809 : vector<8x128xf32>
    %811 = math.tanh %810 : vector<8x128xf32>
    %cst_143 = arith.constant 1.000000e+00 : f32
    %812 = vector.broadcast %cst_143 : f32 to vector<8x128xf32>
    %813 = arith.subf %812, %806 : vector<8x128xf32>
    %814 = arith.mulf %813, %811 : vector<8x128xf32>
    %815 = arith.mulf %806, %786 : vector<8x128xf32>
    %816 = arith.addf %814, %815 : vector<8x128xf32>
    %817 = vector.extract_strided_slice %753 {offsets = [40, 0], sizes = [8, 384], strides = [1, 1]} : vector<64x384xf32> to vector<8x384xf32>
    %cst_144 = arith.constant dense<0.000000e+00> : vector<8x384xf32>
    %818 = tpu.matmul %816, %754, %cst_144 {dimension_numbers = #tpu.dot_dimension_numbers<[1], [0], [0], [1], [0, 0, 1, 1], [], []>} : vector<8x128xf32>, vector<128x384xf32>, vector<8x384xf32> -> vector<8x384xf32>
    %819 = vector.broadcast %755 : vector<1x384xf32> to vector<8x384xf32>
    %820 = arith.addf %818, %819 : vector<8x384xf32>
    %821 = vector.extract_strided_slice %817 {offsets = [0, 0], sizes = [8, 128], strides = [1, 1]} : vector<8x384xf32> to vector<8x128xf32>
    %822 = vector.extract_strided_slice %820 {offsets = [0, 0], sizes = [8, 128], strides = [1, 1]} : vector<8x384xf32> to vector<8x128xf32>
    %823 = arith.addf %821, %822 : vector<8x128xf32>
    %824 = arith.negf %823 : vector<8x128xf32>
    %825 = math.exp %824 : vector<8x128xf32>
    %cst_145 = arith.constant 1.000000e+00 : f32
    %826 = vector.broadcast %cst_145 : f32 to vector<8x128xf32>
    %827 = arith.addf %826, %825 : vector<8x128xf32>
    %828 = arith.divf %826, %827 : vector<8x128xf32>
    %829 = vector.extract_strided_slice %817 {offsets = [0, 128], sizes = [8, 128], strides = [1, 1]} : vector<8x384xf32> to vector<8x128xf32>
    %830 = vector.extract_strided_slice %820 {offsets = [0, 128], sizes = [8, 128], strides = [1, 1]} : vector<8x384xf32> to vector<8x128xf32>
    %831 = arith.addf %829, %830 : vector<8x128xf32>
    %832 = arith.negf %831 : vector<8x128xf32>
    %833 = math.exp %832 : vector<8x128xf32>
    %cst_146 = arith.constant 1.000000e+00 : f32
    %834 = vector.broadcast %cst_146 : f32 to vector<8x128xf32>
    %835 = arith.addf %834, %833 : vector<8x128xf32>
    %836 = arith.divf %834, %835 : vector<8x128xf32>
    %837 = vector.extract_strided_slice %817 {offsets = [0, 256], sizes = [8, 128], strides = [1, 1]} : vector<8x384xf32> to vector<8x128xf32>
    %838 = vector.extract_strided_slice %820 {offsets = [0, 256], sizes = [8, 128], strides = [1, 1]} : vector<8x384xf32> to vector<8x128xf32>
    %839 = arith.mulf %828, %838 : vector<8x128xf32>
    %840 = arith.addf %837, %839 : vector<8x128xf32>
    %841 = math.tanh %840 : vector<8x128xf32>
    %cst_147 = arith.constant 1.000000e+00 : f32
    %842 = vector.broadcast %cst_147 : f32 to vector<8x128xf32>
    %843 = arith.subf %842, %836 : vector<8x128xf32>
    %844 = arith.mulf %843, %841 : vector<8x128xf32>
    %845 = arith.mulf %836, %816 : vector<8x128xf32>
    %846 = arith.addf %844, %845 : vector<8x128xf32>
    %847 = vector.extract_strided_slice %753 {offsets = [32, 0], sizes = [8, 384], strides = [1, 1]} : vector<64x384xf32> to vector<8x384xf32>
    %cst_148 = arith.constant dense<0.000000e+00> : vector<8x384xf32>
    %848 = tpu.matmul %846, %754, %cst_148 {dimension_numbers = #tpu.dot_dimension_numbers<[1], [0], [0], [1], [0, 0, 1, 1], [], []>} : vector<8x128xf32>, vector<128x384xf32>, vector<8x384xf32> -> vector<8x384xf32>
    %849 = vector.broadcast %755 : vector<1x384xf32> to vector<8x384xf32>
    %850 = arith.addf %848, %849 : vector<8x384xf32>
    %851 = vector.extract_strided_slice %847 {offsets = [0, 0], sizes = [8, 128], strides = [1, 1]} : vector<8x384xf32> to vector<8x128xf32>
    %852 = vector.extract_strided_slice %850 {offsets = [0, 0], sizes = [8, 128], strides = [1, 1]} : vector<8x384xf32> to vector<8x128xf32>
    %853 = arith.addf %851, %852 : vector<8x128xf32>
    %854 = arith.negf %853 : vector<8x128xf32>
    %855 = math.exp %854 : vector<8x128xf32>
    %cst_149 = arith.constant 1.000000e+00 : f32
    %856 = vector.broadcast %cst_149 : f32 to vector<8x128xf32>
    %857 = arith.addf %856, %855 : vector<8x128xf32>
    %858 = arith.divf %856, %857 : vector<8x128xf32>
    %859 = vector.extract_strided_slice %847 {offsets = [0, 128], sizes = [8, 128], strides = [1, 1]} : vector<8x384xf32> to vector<8x128xf32>
    %860 = vector.extract_strided_slice %850 {offsets = [0, 128], sizes = [8, 128], strides = [1, 1]} : vector<8x384xf32> to vector<8x128xf32>
    %861 = arith.addf %859, %860 : vector<8x128xf32>
    %862 = arith.negf %861 : vector<8x128xf32>
    %863 = math.exp %862 : vector<8x128xf32>
    %cst_150 = arith.constant 1.000000e+00 : f32
    %864 = vector.broadcast %cst_150 : f32 to vector<8x128xf32>
    %865 = arith.addf %864, %863 : vector<8x128xf32>
    %866 = arith.divf %864, %865 : vector<8x128xf32>
    %867 = vector.extract_strided_slice %847 {offsets = [0, 256], sizes = [8, 128], strides = [1, 1]} : vector<8x384xf32> to vector<8x128xf32>
    %868 = vector.extract_strided_slice %850 {offsets = [0, 256], sizes = [8, 128], strides = [1, 1]} : vector<8x384xf32> to vector<8x128xf32>
    %869 = arith.mulf %858, %868 : vector<8x128xf32>
    %870 = arith.addf %867, %869 : vector<8x128xf32>
    %871 = math.tanh %870 : vector<8x128xf32>
    %cst_151 = arith.constant 1.000000e+00 : f32
    %872 = vector.broadcast %cst_151 : f32 to vector<8x128xf32>
    %873 = arith.subf %872, %866 : vector<8x128xf32>
    %874 = arith.mulf %873, %871 : vector<8x128xf32>
    %875 = arith.mulf %866, %846 : vector<8x128xf32>
    %876 = arith.addf %874, %875 : vector<8x128xf32>
    %877 = vector.extract_strided_slice %753 {offsets = [24, 0], sizes = [8, 384], strides = [1, 1]} : vector<64x384xf32> to vector<8x384xf32>
    %cst_152 = arith.constant dense<0.000000e+00> : vector<8x384xf32>
    %878 = tpu.matmul %876, %754, %cst_152 {dimension_numbers = #tpu.dot_dimension_numbers<[1], [0], [0], [1], [0, 0, 1, 1], [], []>} : vector<8x128xf32>, vector<128x384xf32>, vector<8x384xf32> -> vector<8x384xf32>
    %879 = vector.broadcast %755 : vector<1x384xf32> to vector<8x384xf32>
    %880 = arith.addf %878, %879 : vector<8x384xf32>
    %881 = vector.extract_strided_slice %877 {offsets = [0, 0], sizes = [8, 128], strides = [1, 1]} : vector<8x384xf32> to vector<8x128xf32>
    %882 = vector.extract_strided_slice %880 {offsets = [0, 0], sizes = [8, 128], strides = [1, 1]} : vector<8x384xf32> to vector<8x128xf32>
    %883 = arith.addf %881, %882 : vector<8x128xf32>
    %884 = arith.negf %883 : vector<8x128xf32>
    %885 = math.exp %884 : vector<8x128xf32>
    %cst_153 = arith.constant 1.000000e+00 : f32
    %886 = vector.broadcast %cst_153 : f32 to vector<8x128xf32>
    %887 = arith.addf %886, %885 : vector<8x128xf32>
    %888 = arith.divf %886, %887 : vector<8x128xf32>
    %889 = vector.extract_strided_slice %877 {offsets = [0, 128], sizes = [8, 128], strides = [1, 1]} : vector<8x384xf32> to vector<8x128xf32>
    %890 = vector.extract_strided_slice %880 {offsets = [0, 128], sizes = [8, 128], strides = [1, 1]} : vector<8x384xf32> to vector<8x128xf32>
    %891 = arith.addf %889, %890 : vector<8x128xf32>
    %892 = arith.negf %891 : vector<8x128xf32>
    %893 = math.exp %892 : vector<8x128xf32>
    %cst_154 = arith.constant 1.000000e+00 : f32
    %894 = vector.broadcast %cst_154 : f32 to vector<8x128xf32>
    %895 = arith.addf %894, %893 : vector<8x128xf32>
    %896 = arith.divf %894, %895 : vector<8x128xf32>
    %897 = vector.extract_strided_slice %877 {offsets = [0, 256], sizes = [8, 128], strides = [1, 1]} : vector<8x384xf32> to vector<8x128xf32>
    %898 = vector.extract_strided_slice %880 {offsets = [0, 256], sizes = [8, 128], strides = [1, 1]} : vector<8x384xf32> to vector<8x128xf32>
    %899 = arith.mulf %888, %898 : vector<8x128xf32>
    %900 = arith.addf %897, %899 : vector<8x128xf32>
    %901 = math.tanh %900 : vector<8x128xf32>
    %cst_155 = arith.constant 1.000000e+00 : f32
    %902 = vector.broadcast %cst_155 : f32 to vector<8x128xf32>
    %903 = arith.subf %902, %896 : vector<8x128xf32>
    %904 = arith.mulf %903, %901 : vector<8x128xf32>
    %905 = arith.mulf %896, %876 : vector<8x128xf32>
    %906 = arith.addf %904, %905 : vector<8x128xf32>
    %907 = vector.extract_strided_slice %753 {offsets = [16, 0], sizes = [8, 384], strides = [1, 1]} : vector<64x384xf32> to vector<8x384xf32>
    %cst_156 = arith.constant dense<0.000000e+00> : vector<8x384xf32>
    %908 = tpu.matmul %906, %754, %cst_156 {dimension_numbers = #tpu.dot_dimension_numbers<[1], [0], [0], [1], [0, 0, 1, 1], [], []>} : vector<8x128xf32>, vector<128x384xf32>, vector<8x384xf32> -> vector<8x384xf32>
    %909 = vector.broadcast %755 : vector<1x384xf32> to vector<8x384xf32>
    %910 = arith.addf %908, %909 : vector<8x384xf32>
    %911 = vector.extract_strided_slice %907 {offsets = [0, 0], sizes = [8, 128], strides = [1, 1]} : vector<8x384xf32> to vector<8x128xf32>
    %912 = vector.extract_strided_slice %910 {offsets = [0, 0], sizes = [8, 128], strides = [1, 1]} : vector<8x384xf32> to vector<8x128xf32>
    %913 = arith.addf %911, %912 : vector<8x128xf32>
    %914 = arith.negf %913 : vector<8x128xf32>
    %915 = math.exp %914 : vector<8x128xf32>
    %cst_157 = arith.constant 1.000000e+00 : f32
    %916 = vector.broadcast %cst_157 : f32 to vector<8x128xf32>
    %917 = arith.addf %916, %915 : vector<8x128xf32>
    %918 = arith.divf %916, %917 : vector<8x128xf32>
    %919 = vector.extract_strided_slice %907 {offsets = [0, 128], sizes = [8, 128], strides = [1, 1]} : vector<8x384xf32> to vector<8x128xf32>
    %920 = vector.extract_strided_slice %910 {offsets = [0, 128], sizes = [8, 128], strides = [1, 1]} : vector<8x384xf32> to vector<8x128xf32>
    %921 = arith.addf %919, %920 : vector<8x128xf32>
    %922 = arith.negf %921 : vector<8x128xf32>
    %923 = math.exp %922 : vector<8x128xf32>
    %cst_158 = arith.constant 1.000000e+00 : f32
    %924 = vector.broadcast %cst_158 : f32 to vector<8x128xf32>
    %925 = arith.addf %924, %923 : vector<8x128xf32>
    %926 = arith.divf %924, %925 : vector<8x128xf32>
    %927 = vector.extract_strided_slice %907 {offsets = [0, 256], sizes = [8, 128], strides = [1, 1]} : vector<8x384xf32> to vector<8x128xf32>
    %928 = vector.extract_strided_slice %910 {offsets = [0, 256], sizes = [8, 128], strides = [1, 1]} : vector<8x384xf32> to vector<8x128xf32>
    %929 = arith.mulf %918, %928 : vector<8x128xf32>
    %930 = arith.addf %927, %929 : vector<8x128xf32>
    %931 = math.tanh %930 : vector<8x128xf32>
    %cst_159 = arith.constant 1.000000e+00 : f32
    %932 = vector.broadcast %cst_159 : f32 to vector<8x128xf32>
    %933 = arith.subf %932, %926 : vector<8x128xf32>
    %934 = arith.mulf %933, %931 : vector<8x128xf32>
    %935 = arith.mulf %926, %906 : vector<8x128xf32>
    %936 = arith.addf %934, %935 : vector<8x128xf32>
    %937 = vector.extract_strided_slice %753 {offsets = [8, 0], sizes = [8, 384], strides = [1, 1]} : vector<64x384xf32> to vector<8x384xf32>
    %cst_160 = arith.constant dense<0.000000e+00> : vector<8x384xf32>
    %938 = tpu.matmul %936, %754, %cst_160 {dimension_numbers = #tpu.dot_dimension_numbers<[1], [0], [0], [1], [0, 0, 1, 1], [], []>} : vector<8x128xf32>, vector<128x384xf32>, vector<8x384xf32> -> vector<8x384xf32>
    %939 = vector.broadcast %755 : vector<1x384xf32> to vector<8x384xf32>
    %940 = arith.addf %938, %939 : vector<8x384xf32>
    %941 = vector.extract_strided_slice %937 {offsets = [0, 0], sizes = [8, 128], strides = [1, 1]} : vector<8x384xf32> to vector<8x128xf32>
    %942 = vector.extract_strided_slice %940 {offsets = [0, 0], sizes = [8, 128], strides = [1, 1]} : vector<8x384xf32> to vector<8x128xf32>
    %943 = arith.addf %941, %942 : vector<8x128xf32>
    %944 = arith.negf %943 : vector<8x128xf32>
    %945 = math.exp %944 : vector<8x128xf32>
    %cst_161 = arith.constant 1.000000e+00 : f32
    %946 = vector.broadcast %cst_161 : f32 to vector<8x128xf32>
    %947 = arith.addf %946, %945 : vector<8x128xf32>
    %948 = arith.divf %946, %947 : vector<8x128xf32>
    %949 = vector.extract_strided_slice %937 {offsets = [0, 128], sizes = [8, 128], strides = [1, 1]} : vector<8x384xf32> to vector<8x128xf32>
    %950 = vector.extract_strided_slice %940 {offsets = [0, 128], sizes = [8, 128], strides = [1, 1]} : vector<8x384xf32> to vector<8x128xf32>
    %951 = arith.addf %949, %950 : vector<8x128xf32>
    %952 = arith.negf %951 : vector<8x128xf32>
    %953 = math.exp %952 : vector<8x128xf32>
    %cst_162 = arith.constant 1.000000e+00 : f32
    %954 = vector.broadcast %cst_162 : f32 to vector<8x128xf32>
    %955 = arith.addf %954, %953 : vector<8x128xf32>
    %956 = arith.divf %954, %955 : vector<8x128xf32>
    %957 = vector.extract_strided_slice %937 {offsets = [0, 256], sizes = [8, 128], strides = [1, 1]} : vector<8x384xf32> to vector<8x128xf32>
    %958 = vector.extract_strided_slice %940 {offsets = [0, 256], sizes = [8, 128], strides = [1, 1]} : vector<8x384xf32> to vector<8x128xf32>
    %959 = arith.mulf %948, %958 : vector<8x128xf32>
    %960 = arith.addf %957, %959 : vector<8x128xf32>
    %961 = math.tanh %960 : vector<8x128xf32>
    %cst_163 = arith.constant 1.000000e+00 : f32
    %962 = vector.broadcast %cst_163 : f32 to vector<8x128xf32>
    %963 = arith.subf %962, %956 : vector<8x128xf32>
    %964 = arith.mulf %963, %961 : vector<8x128xf32>
    %965 = arith.mulf %956, %936 : vector<8x128xf32>
    %966 = arith.addf %964, %965 : vector<8x128xf32>
    %967 = vector.extract_strided_slice %753 {offsets = [0, 0], sizes = [8, 384], strides = [1, 1]} : vector<64x384xf32> to vector<8x384xf32>
    %cst_164 = arith.constant dense<0.000000e+00> : vector<8x384xf32>
    %968 = tpu.matmul %966, %754, %cst_164 {dimension_numbers = #tpu.dot_dimension_numbers<[1], [0], [0], [1], [0, 0, 1, 1], [], []>} : vector<8x128xf32>, vector<128x384xf32>, vector<8x384xf32> -> vector<8x384xf32>
    %969 = vector.broadcast %755 : vector<1x384xf32> to vector<8x384xf32>
    %970 = arith.addf %968, %969 : vector<8x384xf32>
    %971 = vector.extract_strided_slice %967 {offsets = [0, 0], sizes = [8, 128], strides = [1, 1]} : vector<8x384xf32> to vector<8x128xf32>
    %972 = vector.extract_strided_slice %970 {offsets = [0, 0], sizes = [8, 128], strides = [1, 1]} : vector<8x384xf32> to vector<8x128xf32>
    %973 = arith.addf %971, %972 : vector<8x128xf32>
    %974 = arith.negf %973 : vector<8x128xf32>
    %975 = math.exp %974 : vector<8x128xf32>
    %cst_165 = arith.constant 1.000000e+00 : f32
    %976 = vector.broadcast %cst_165 : f32 to vector<8x128xf32>
    %977 = arith.addf %976, %975 : vector<8x128xf32>
    %978 = arith.divf %976, %977 : vector<8x128xf32>
    %979 = vector.extract_strided_slice %967 {offsets = [0, 128], sizes = [8, 128], strides = [1, 1]} : vector<8x384xf32> to vector<8x128xf32>
    %980 = vector.extract_strided_slice %970 {offsets = [0, 128], sizes = [8, 128], strides = [1, 1]} : vector<8x384xf32> to vector<8x128xf32>
    %981 = arith.addf %979, %980 : vector<8x128xf32>
    %982 = arith.negf %981 : vector<8x128xf32>
    %983 = math.exp %982 : vector<8x128xf32>
    %cst_166 = arith.constant 1.000000e+00 : f32
    %984 = vector.broadcast %cst_166 : f32 to vector<8x128xf32>
    %985 = arith.addf %984, %983 : vector<8x128xf32>
    %986 = arith.divf %984, %985 : vector<8x128xf32>
    %987 = vector.extract_strided_slice %967 {offsets = [0, 256], sizes = [8, 128], strides = [1, 1]} : vector<8x384xf32> to vector<8x128xf32>
    %988 = vector.extract_strided_slice %970 {offsets = [0, 256], sizes = [8, 128], strides = [1, 1]} : vector<8x384xf32> to vector<8x128xf32>
    %989 = arith.mulf %978, %988 : vector<8x128xf32>
    %990 = arith.addf %987, %989 : vector<8x128xf32>
    %991 = math.tanh %990 : vector<8x128xf32>
    %cst_167 = arith.constant 1.000000e+00 : f32
    %992 = vector.broadcast %cst_167 : f32 to vector<8x128xf32>
    %993 = arith.subf %992, %986 : vector<8x128xf32>
    %994 = arith.mulf %993, %991 : vector<8x128xf32>
    %995 = arith.mulf %986, %966 : vector<8x128xf32>
    %996 = arith.addf %994, %995 : vector<8x128xf32>
    %997 = tpu.concatenate %996, %966, %936, %906, %876, %846, %816, %786 in 0 : vector<8x128xf32>, vector<8x128xf32>, vector<8x128xf32>, vector<8x128xf32>, vector<8x128xf32>, vector<8x128xf32>, vector<8x128xf32>, vector<8x128xf32> -> vector<64x128xf32>
    %998 = tpu.concatenate %748, %997 in 1 : vector<64x128xf32>, vector<64x128xf32> -> vector<64x256xf32>
    %c0_168 = arith.constant 0 : index
    %c0_169 = arith.constant 0 : index
    %999 = vector.load %arg17[%c0_168, %c0_169] : memref<256x128xf32, #tpu.memory_space<vmem>>, vector<256x128xf32>
    %cst_170 = arith.constant dense<0.000000e+00> : vector<64x128xf32>
    %1000 = tpu.matmul %998, %999, %cst_170 {dimension_numbers = #tpu.dot_dimension_numbers<[1], [0], [0], [1], [0, 0, 1, 1], [], []>} : vector<64x256xf32>, vector<256x128xf32>, vector<64x128xf32> -> vector<64x128xf32>
    %c0_171 = arith.constant 0 : index
    %c0_172 = arith.constant 0 : index
    %1001 = vector.load %arg18[%c0_171, %c0_172] : memref<1x128xf32, #tpu.memory_space<vmem>>, vector<1x128xf32>
    %1002 = vector.broadcast %1001 : vector<1x128xf32> to vector<64x128xf32>
    %1003 = arith.addf %1000, %1002 : vector<64x128xf32>
    %c0_173 = arith.constant 0 : index
    %c0_174 = arith.constant 0 : index
    %1004 = vector.load %arg19[%c0_173, %c0_174] : memref<64x128xf32, #tpu.memory_space<vmem>>, vector<64x128xf32>
    tpu.vector_store %arg19[%c0_173, %c0_174], %1003 {strides = array<i32>} : memref<64x128xf32, #tpu.memory_space<vmem>>, vector<64x128xf32>,
    return
  }
}

</mosaic_0001>

<llo_original>
// kernel: model_forward.1
$region0: #{model_forward.1}
  #allocation0 [shape = 'u32[]', space=smem, size = 0x4, offset = 0x4, fixed_abs, tag = 'smem constant byte address 0x4 - core index']
  #allocation1 [shape = 'u32[144,128]{1,0:T(1,128)}', space=vmem, size = 0x12000, scoped, tag = 'internal scratch']
  %s0 = inlined_call_operand.vmem [shape: f32[64,64], index: 0, kind: input, shape index: {}]
  %s1 = inlined_call_operand.hbm [shape: f32[64,384], index: 1, kind: input, shape index: {}]
  %s2 = inlined_call_operand.hbm [shape: f32[128,384], index: 2, kind: input, shape index: {}]
  %s3 = inlined_call_operand.vmem [shape: f32[1,384], index: 3, kind: input, shape index: {}]
  %s4 = inlined_call_operand.vmem [shape: f32[1,384], index: 4, kind: input, shape index: {}]
  %s5 = inlined_call_operand.hbm [shape: f32[64,384], index: 5, kind: input, shape index: {}]
  %s6 = inlined_call_operand.hbm [shape: f32[128,384], index: 6, kind: input, shape index: {}]
  %s7 = inlined_call_operand.vmem [shape: f32[1,384], index: 7, kind: input, shape index: {}]
  %s8 = inlined_call_operand.vmem [shape: f32[1,384], index: 8, kind: input, shape index: {}]
  %s9 = inlined_call_operand.vmem [shape: f32[256,384], index: 9, kind: input, shape index: {}]
  %s10 = inlined_call_operand.hbm [shape: f32[128,384], index: 10, kind: input, shape index: {}]
  %s11 = inlined_call_operand.vmem [shape: f32[1,384], index: 11, kind: input, shape index: {}]
  %s12 = inlined_call_operand.vmem [shape: f32[1,384], index: 12, kind: input, shape index: {}]
  %s13 = inlined_call_operand.hbm [shape: f32[256,384], index: 13, kind: input, shape index: {}]
  %s14 = inlined_call_operand.hbm [shape: f32[128,384], index: 14, kind: input, shape index: {}]
  %s15 = inlined_call_operand.vmem [shape: f32[1,384], index: 15, kind: input, shape index: {}]
  %s16 = inlined_call_operand.vmem [shape: f32[1,384], index: 16, kind: input, shape index: {}]
  %s17 = inlined_call_operand.vmem [shape: f32[256,128], index: 17, kind: input, shape index: {}]
  %s18 = inlined_call_operand.vmem [shape: f32[1,128], index: 18, kind: input, shape index: {}]
  %s19 = inlined_call_operand.vmem [shape: f32[64,128], index: 19, kind: output, shape index: {}]
  %s20 = sld [smem:[#allocation0]]
  $region114: #{model_forward.1} parent=0
    _
  %s22 = ssub.s32 1, %s20
  %s23 = scalar_select 0, %s22, %s20
  $region1: #{model_forward.1} parent=0
    #allocation2 [shape = 'u8[98304]{0}', space=vmem, size = 0x18000, scoped, tag = 'input window, operand 1, single buffered']
    #allocation3 [shape = 's32[1]{0}', space=sflag, size = 0x4, scoped, tag = 'scoped memory for model_forward.1']
    #allocation4 [shape = 'u8[196608]{0}', space=vmem, size = 0x30000, scoped, tag = 'input window, operand 2, single buffered']
    #allocation5 [shape = 's32[1]{0}', space=sflag, size = 0x4, scoped, tag = 'scoped memory for model_forward.1']
    #allocation6 [shape = 'u8[98304]{0}', space=vmem, size = 0x18000, scoped, tag = 'input window, operand 5, single buffered']
    #allocation7 [shape = 'u8[196608]{0}', space=vmem, size = 0x30000, scoped, tag = 'input window, operand 6, single buffered']
    #allocation8 [shape = 's32[1]{0}', space=sflag, size = 0x4, scoped, tag = 'scoped memory for model_forward.1']
    #allocation9 [shape = 'u8[196608]{0}', space=vmem, size = 0x30000, scoped, tag = 'input window, operand 10, single buffered']
    #allocation10 [shape = 'u8[393216]{0}', space=vmem, size = 0x60000, scoped, tag = 'input window, operand 13, single buffered']
    #allocation11 [shape = 's32[1]{0}', space=sflag, size = 0x4, scoped, tag = 'scoped memory for model_forward.1']
    #allocation12 [shape = 'u8[196608]{0}', space=vmem, size = 0x30000, scoped, tag = 'input window, operand 14, single buffered']
    %24 = vsyncpa [#allocation3], 0
    %25 = vsyncpa [#allocation5], 0
    %26 = vsyncpa [#allocation8], 0
    %27 = vsyncpa [#allocation11], 0
    // Predicated region
    $region2: #{model_forward.1} parent=1 // pred_check
      _
    $region3: #{model_forward.1} parent=1 // pred_check_branch
      %29 = sbr.rel (0) target = $region5
    $region4: #{model_forward.1} parent=1 // pred_region
      _
    $region5: #{model_forward.1} parent=1 // pred_fallthru
      _
    // Predicated region
    $region6: #{model_forward.1} parent=1 // pred_check
      _
    $region7: #{model_forward.1} parent=1 // pred_check_branch
      %31 = sbr.rel (0) target = $region9
    $region8: #{model_forward.1} parent=1 // pred_region
      %s33 = ssub.s32 3072, 3072
      %34 = vsyncadd [#allocation3], %s33
      %s35 = sshll.u32 [#allocation2], 4
      %s36 = int_to_ptr.vmem [resolvable:$true] %s35
      %41 = dma.hbm_to_vmem [thread:$0]  %s1, 3072, %s36, [#allocation3], 384, 384, 24
    $region9: #{model_forward.1} parent=1 // pred_fallthru
      _
    // Predicated region
    $region10: #{model_forward.1} parent=1 // pred_check
      _
    $region11: #{model_forward.1} parent=1 // pred_check_branch
      %43 = sbr.rel (0) target = $region13
    $region12: #{model_forward.1} parent=1 // pred_region
      %s45 = ssub.s32 6144, 6144
      %46 = vsyncadd [#allocation5], %s45
      %s47 = sshll.u32 [#allocation4], 4
      %s48 = int_to_ptr.vmem [resolvable:$true] %s47
      %53 = dma.hbm_to_vmem [thread:$0]  %s2, 6144, %s48, [#allocation5], 384, 384, 24
    $region13: #{model_forward.1} parent=1 // pred_fallthru
      _
    // Predicated region
    $region14: #{model_forward.1} parent=1 // pred_check
      _
    $region15: #{model_forward.1} parent=1 // pred_check_branch
      %55 = sbr.rel (0) target = $region17
    $region16: #{model_forward.1} parent=1 // pred_region
      _
    $region17: #{model_forward.1} parent=1 // pred_fallthru
      _
    // Predicated region
    $region18: #{model_forward.1} parent=1 // pred_check
      _
    $region19: #{model_forward.1} parent=1 // pred_check_branch
      %57 = sbr.rel (0) target = $region21
    $region20: #{model_forward.1} parent=1 // pred_region
      _
    $region21: #{model_forward.1} parent=1 // pred_fallthru
      _
    // Predicated region
    $region22: #{model_forward.1} parent=1 // pred_check
      _
    $region23: #{model_forward.1} parent=1 // pred_check_branch
      %59 = sbr.rel (0) target = $region25
    $region24: #{model_forward.1} parent=1 // pred_region
      %s61 = ssub.s32 3072, 3072
      %62 = vsyncadd [#allocation5], %s61
      %s63 = sshll.u32 [#allocation6], 4
      %s64 = int_to_ptr.vmem [resolvable:$true] %s63
      %69 = dma.hbm_to_vmem [thread:$0]  %s5, 3072, %s64, [#allocation5], 384, 384, 24
    $region25: #{model_forward.1} parent=1 // pred_fallthru
      _
    // Predicated region
    $region26: #{model_forward.1} parent=1 // pred_check
      _
    $region27: #{model_forward.1} parent=1 // pred_check_branch
      %71 = sbr.rel (0) target = $region29
    $region28: #{model_forward.1} parent=1 // pred_region
      %s73 = ssub.s32 6144, 6144
      %74 = vsyncadd [#allocation8], %s73
      %s75 = sshll.u32 [#allocation7], 4
      %s76 = int_to_ptr.vmem [resolvable:$true] %s75
      %81 = dma.hbm_to_vmem [thread:$0]  %s6, 6144, %s76, [#allocation8], 384, 384, 24
    $region29: #{model_forward.1} parent=1 // pred_fallthru
      _
    // Predicated region
    $region30: #{model_forward.1} parent=1 // pred_check
      _
    $region31: #{model_forward.1} parent=1 // pred_check_branch
      %83 = sbr.rel (0) target = $region33
    $region32: #{model_forward.1} parent=1 // pred_region
      _
    $region33: #{model_forward.1} parent=1 // pred_fallthru
      _
    // Predicated region
    $region34: #{model_forward.1} parent=1 // pred_check
      _
    $region35: #{model_forward.1} parent=1 // pred_check_branch
      %85 = sbr.rel (0) target = $region37
    $region36: #{model_forward.1} parent=1 // pred_region
      _
    $region37: #{model_forward.1} parent=1 // pred_fallthru
      _
    // Predicated region
    $region38: #{model_forward.1} parent=1 // pred_check
      _
    $region39: #{model_forward.1} parent=1 // pred_check_branch
      %87 = sbr.rel (0) target = $region41
    $region40: #{model_forward.1} parent=1 // pred_region
      _
    $region41: #{model_forward.1} parent=1 // pred_fallthru
      _
    // Predicated region
    $region42: #{model_forward.1} parent=1 // pred_check
      _
    $region43: #{model_forward.1} parent=1 // pred_check_branch
      %89 = sbr.rel (0) target = $region45
    $region44: #{model_forward.1} parent=1 // pred_region
      %s91 = ssub.s32 6144, 6144
      %92 = vsyncadd [#allocation8], %s91
      %s93 = sshll.u32 [#allocation9], 4
      %s94 = int_to_ptr.vmem [resolvable:$true] %s93
      %99 = dma.hbm_to_vmem [thread:$0]  %s10, 6144, %s94, [#allocation8], 384, 384, 24
    $region45: #{model_forward.1} parent=1 // pred_fallthru
      _
    // Predicated region
    $region46: #{model_forward.1} parent=1 // pred_check
      _
    $region47: #{model_forward.1} parent=1 // pred_check_branch
      %101 = sbr.rel (0) target = $region49
    $region48: #{model_forward.1} parent=1 // pred_region
      _
    $region49: #{model_forward.1} parent=1 // pred_fallthru
      _
    // Predicated region
    $region50: #{model_forward.1} parent=1 // pred_check
      _
    $region51: #{model_forward.1} parent=1 // pred_check_branch
      %103 = sbr.rel (0) target = $region53
    $region52: #{model_forward.1} parent=1 // pred_region
      _
    $region53: #{model_forward.1} parent=1 // pred_fallthru
      _
    // Predicated region
    $region54: #{model_forward.1} parent=1 // pred_check
      _
    $region55: #{model_forward.1} parent=1 // pred_check_branch
      %105 = sbr.rel (0) target = $region57
    $region56: #{model_forward.1} parent=1 // pred_region
      %s107 = ssub.s32 12288, 12288
      %108 = vsyncadd [#allocation11], %s107
      %s109 = sshll.u32 [#allocation10], 4
      %s110 = int_to_ptr.vmem [resolvable:$true] %s109
      %115 = dma.hbm_to_vmem [thread:$0]  %s13, 12288, %s110, [#allocation11], 384, 384, 24
    $region57: #{model_forward.1} parent=1 // pred_fallthru
      _
    // Predicated region
    $region58: #{model_forward.1} parent=1 // pred_check
      _
    $region59: #{model_forward.1} parent=1 // pred_check_branch
      %117 = sbr.rel (0) target = $region61
    $region60: #{model_forward.1} parent=1 // pred_region
      %s119 = ssub.s32 6144, 6144
      %120 = vsyncadd [#allocation11], %s119
      %s121 = sshll.u32 [#allocation12], 4
      %s122 = int_to_ptr.vmem [resolvable:$true] %s121
      %127 = dma.hbm_to_vmem [thread:$0]  %s14, 6144, %s122, [#allocation11], 384, 384, 24
    $region61: #{model_forward.1} parent=1 // pred_fallthru
      _
    // Predicated region
    $region62: #{model_forward.1} parent=1 // pred_check
      _
    $region63: #{model_forward.1} parent=1 // pred_check_branch
      %129 = sbr.rel (0) target = $region65
    $region64: #{model_forward.1} parent=1 // pred_region
      _
    $region65: #{model_forward.1} parent=1 // pred_fallthru
      _
    // Predicated region
    $region66: #{model_forward.1} parent=1 // pred_check
      _
    $region67: #{model_forward.1} parent=1 // pred_check_branch
      %131 = sbr.rel (0) target = $region69
    $region68: #{model_forward.1} parent=1 // pred_region
      _
    $region69: #{model_forward.1} parent=1 // pred_fallthru
      _
    // Predicated region
    $region70: #{model_forward.1} parent=1 // pred_check
      _
    $region71: #{model_forward.1} parent=1 // pred_check_branch
      %133 = sbr.rel (0) target = $region73
    $region72: #{model_forward.1} parent=1 // pred_region
      _
    $region73: #{model_forward.1} parent=1 // pred_fallthru
      _
    // Predicated region
    $region74: #{model_forward.1} parent=1 // pred_check
      _
    $region75: #{model_forward.1} parent=1 // pred_check_branch
      %135 = sbr.rel (0) target = $region77
    $region76: #{model_forward.1} parent=1 // pred_region
      _
    $region77: #{model_forward.1} parent=1 // pred_fallthru
      _
    // Predicated region
    $region78: #{model_forward.1} parent=1 // pred_check
      _
    $region79: #{model_forward.1} parent=1 // pred_check_branch
      %137 = sbr.rel (0) target = $region81
    $region80: #{model_forward.1} parent=1 // pred_region
      %138 = dma.done [#allocation3], 3072
    $region81: #{model_forward.1} parent=1 // pred_fallthru
      _
    // Predicated region
    $region82: #{model_forward.1} parent=1 // pred_check
      _
    $region83: #{model_forward.1} parent=1 // pred_check_branch
      %140 = sbr.rel (0) target = $region85
    $region84: #{model_forward.1} parent=1 // pred_region
      %141 = dma.done [#allocation5], 6144
    $region85: #{model_forward.1} parent=1 // pred_fallthru
      _
    // Predicated region
    $region86: #{model_forward.1} parent=1 // pred_check
      _
    $region87: #{model_forward.1} parent=1 // pred_check_branch
      %143 = sbr.rel (0) target = $region89
    $region88: #{model_forward.1} parent=1 // pred_region
      %144 = dma.done [#allocation5], 3072
    $region89: #{model_forward.1} parent=1 // pred_fallthru
      _
    // Predicated region
    $region90: #{model_forward.1} parent=1 // pred_check
      _
    $region91: #{model_forward.1} parent=1 // pred_check_branch
      %146 = sbr.rel (0) target = $region93
    $region92: #{model_forward.1} parent=1 // pred_region
      %147 = dma.done [#allocation8], 6144
    $region93: #{model_forward.1} parent=1 // pred_fallthru
      _
    // Predicated region
    $region94: #{model_forward.1} parent=1 // pred_check
      _
    $region95: #{model_forward.1} parent=1 // pred_check_branch
      %149 = sbr.rel (0) target = $region97
    $region96: #{model_forward.1} parent=1 // pred_region
      %150 = dma.done [#allocation8], 6144
    $region97: #{model_forward.1} parent=1 // pred_fallthru
      _
    // Predicated region
    $region98: #{model_forward.1} parent=1 // pred_check
      _
    $region99: #{model_forward.1} parent=1 // pred_check_branch
      %152 = sbr.rel (0) target = $region101
    $region100: #{model_forward.1} parent=1 // pred_region
      %153 = dma.done [#allocation11], 12288
    $region101: #{model_forward.1} parent=1 // pred_fallthru
      _
    // Predicated region
    $region102: #{model_forward.1} parent=1 // pred_check
      _
    $region103: #{model_forward.1} parent=1 // pred_check_branch
      %155 = sbr.rel (0) target = $region105
    $region104: #{model_forward.1} parent=1 // pred_region
      %156 = dma.done [#allocation11], 6144
    $region105: #{model_forward.1} parent=1 // pred_fallthru
      _
    %v157 = vld [vmem:[%s0] sm:$0xff]
    %v158 = vld [vmem:[%s0 + $0x8] sm:$0xff]
    %v159 = vld [vmem:[%s0 + $0x10] sm:$0xff]
    %v160 = vld [vmem:[%s0 + $0x18] sm:$0xff]
    %v161 = vld [vmem:[%s0 + $0x20] sm:$0xff]
    %v162 = vld [vmem:[%s0 + $0x28] sm:$0xff]
    %v163 = vld [vmem:[%s0 + $0x30] sm:$0xff]
    %v164 = vld [vmem:[%s0 + $0x38] sm:$0xff]
    %v165 = vld [vmem:[#allocation2] sm:$0xff]
    %v166 = vld [vmem:[#allocation2 + $0x8] sm:$0xff]
    %v167 = vld [vmem:[#allocation2 + $0x10] sm:$0xff]
    %v168 = vld [vmem:[#allocation2 + $0x18] sm:$0xff]
    %v169 = vld [vmem:[#allocation2 + $0x20] sm:$0xff]
    %v170 = vld [vmem:[#allocation2 + $0x28] sm:$0xff]
    %v171 = vld [vmem:[#allocation2 + $0x30] sm:$0xff]
    %v172 = vld [vmem:[#allocation2 + $0x38] sm:$0xff]
    %v173 = vld [vmem:[#allocation2 + $0x40] sm:$0xff]
    %v174 = vld [vmem:[#allocation2 + $0x48] sm:$0xff]
    %v175 = vld [vmem:[#allocation2 + $0x50] sm:$0xff]
    %v176 = vld [vmem:[#allocation2 + $0x58] sm:$0xff]
    %v177 = vld [vmem:[#allocation2 + $0x60] sm:$0xff]
    %v178 = vld [vmem:[#allocation2 + $0x68] sm:$0xff]
    %v179 = vld [vmem:[#allocation2 + $0x70] sm:$0xff]
    %v180 = vld [vmem:[#allocation2 + $0x78] sm:$0xff]
    %v181 = vld [vmem:[#allocation2 + $0x80] sm:$0xff]
    %v182 = vld [vmem:[#allocation2 + $0x88] sm:$0xff]
    %v183 = vld [vmem:[#allocation2 + $0x90] sm:$0xff]
    %v184 = vld [vmem:[#allocation2 + $0x98] sm:$0xff]
    %v185 = vld [vmem:[#allocation2 + $0xa0] sm:$0xff]
    %v186 = vld [vmem:[#allocation2 + $0xa8] sm:$0xff]
    %v187 = vld [vmem:[#allocation2 + $0xb0] sm:$0xff]
    %v188 = vld [vmem:[#allocation2 + $0xb8] sm:$0xff]
    %v189 = vld [vmem:[%s3] sm:$0x7]
    %v191 = vlaneseq
    %v192 = vshrl.u32 %v191, 7
    %v193 = vsub.s32 0, %v192
    %v194 = vrot.slane %v189, %v193
    %v195 = vlaneseq
    %v196 = vshrl.u32 %v195, 7
    %v197 = vsub.s32 1, %v196
    %v198 = vrot.slane %v189, %v197
    %v199 = vlaneseq
    %v200 = vshrl.u32 %v199, 7
    %v201 = vsub.s32 2, %v200
    %v202 = vrot.slane %v189, %v201
    %vm206 = vcmask 523264
    %v208 = vsel %vm206, %v157, 0
    %v211 = vsel %vm206, %v158, 0
    %v214 = vsel %vm206, %v159, 0
    %v217 = vsel %vm206, %v160, 0
    %v220 = vsel %vm206, %v161, 0
    %v223 = vsel %vm206, %v162, 0
    %v226 = vsel %vm206, %v163, 0
    %v229 = vsel %vm206, %v164, 0
    %231 = vmatprep.subr.mxu0 %v166
    %232 = vmatpush1.msra.mxu0 %v165
    %233 = vmatprep.subr.mxu0 %v169
    %234 = vmatpush1.msra.mxu0 %v168
    %235 = vmatprep.subr.mxu0 %v172
    %236 = vmatpush1.msra.mxu0 %v171
    %237 = vmatprep.subr.mxu0 %v175
    %238 = vmatpush1.msra.mxu0 %v174
    %239 = vmatprep.subr.mxu0 %v178
    %240 = vmatpush1.msra.mxu0 %v177
    %241 = vmatprep.subr.mxu0 %v181
    %242 = vmatpush1.msra.mxu0 %v180
    %243 = vmatprep.subr.mxu0 %v184
    %244 = vmatpush1.msra.mxu0 %v183
    %245 = vmatprep.subr.mxu0 %v187
    %246 = vmatpush1.msra.mxu0 %v186
    %247 = vmatprep.subr.mxu0 0.0
    %248 = vmatpush1.msra.mxu0 0.0
    %249 = vmatprep.subr.mxu0 0.0
    %250 = vmatpush1.msra.mxu0 0.0
    %251 = vmatprep.subr.mxu0 0.0
    %252 = vmatpush1.msra.mxu0 0.0
    %253 = vmatprep.subr.mxu0 0.0
    %254 = vmatpush1.msra.mxu0 0.0
    %255 = vmatprep.subr.mxu0 0.0
    %256 = vmatpush1.msra.mxu0 0.0
    %257 = vmatprep.subr.mxu0 0.0
    %258 = vmatpush1.msra.mxu0 0.0
    %259 = vmatprep.subr.mxu0 0.0
    %260 = vmatpush1.msra.mxu0 0.0
    %261 = vmatprep.subr.mxu0 0.0
    %262 = vmatpush1.msra.mxu0 0.0
    %263 = vmatprep.subr.mxu0 0.0
    %264 = vmatpush1.msra.mxu0 0.0
    %265 = vmatprep.subr.mxu0 0.0
    %266 = vmatpush1.msra.mxu0 0.0
    %267 = vmatprep.subr.mxu0 0.0
    %268 = vmatpush1.msra.mxu0 0.0
    %269 = vmatprep.subr.mxu0 0.0
    %270 = vmatpush1.msra.mxu0 0.0
    %271 = vmatprep.subr.mxu0 0.0
    %272 = vmatpush1.msra.mxu0 0.0
    %273 = vmatprep.subr.mxu0 0.0
    %274 = vmatpush1.msra.mxu0 0.0
    %275 = vmatprep.subr.mxu0 0.0
    %276 = vmatpush1.msra.mxu0 0.0
    %277 = vmatprep.subr.mxu0 0.0
    %278 = vmatpush1.msra.mxu0 0.0
    %279 = vmatprep.subr.mxu0 0.0
    %280 = vmatpush1.msra.mxu0 0.0
    %281 = vmatprep.subr.mxu0 0.0
    %282 = vmatpush1.msra.mxu0 0.0
    %283 = vmatprep.subr.mxu0 0.0
    %284 = vmatpush1.msra.mxu0 0.0
    %285 = vmatprep.subr.mxu0 0.0
    %286 = vmatpush1.msra.mxu0 0.0
    %287 = vmatprep.subr.mxu0 0.0
    %288 = vmatpush1.msra.mxu0 0.0
    %289 = vmatprep.subr.mxu0 0.0
    %290 = vmatpush1.msra.mxu0 0.0
    %291 = vmatprep.subr.mxu0 0.0
    %292 = vmatpush1.msra.mxu0 0.0
    %293 = vmatprep.subr.mxu0 0.0
    %294 = vmatpush1.msra.mxu0 0.0
    %295 = vmatprep.mubr.f32.mxu0 0.0
    %296 = vmatmul.mubr.f32.gmra.mrb[0].mxu0 %v208
    %v297 = vpop.f32.mrb[0].mxu0
    %v298 = vadd.f32 %v194, %v297
    %v299 = vpop.f32.mrb[0].mxu0
    %v300 = vadd.f32 %v198, %v299
    %301 = vmatprep.mubr.f32.mxu0 0.0
    %302 = vmatmul.mubr.f32.gmra.mrb[0].mxu0 %v211
    %v303 = vpop.f32.mrb[0].mxu0
    %v304 = vadd.f32 %v194, %v303
    %v305 = vpop.f32.mrb[0].mxu0
    %v306 = vadd.f32 %v198, %v305
    %307 = vmatprep.mubr.f32.mxu0 0.0
    %308 = vmatmul.mubr.f32.gmra.mrb[0].mxu0 %v214
    %v309 = vpop.f32.mrb[0].mxu0
    %v310 = vadd.f32 %v194, %v309
    %v311 = vpop.f32.mrb[0].mxu0
    %v312 = vadd.f32 %v198, %v311
    %313 = vmatprep.mubr.f32.mxu0 0.0
    %314 = vmatmul.mubr.f32.gmra.mrb[0].mxu0 %v217
    %v315 = vpop.f32.mrb[0].mxu0
    %v316 = vadd.f32 %v194, %v315
    %v317 = vpop.f32.mrb[0].mxu0
    %v318 = vadd.f32 %v198, %v317
    %319 = vmatprep.mubr.f32.mxu0 0.0
    %320 = vmatmul.mubr.f32.gmra.mrb[0].mxu0 %v220
    %v321 = vpop.f32.mrb[0].mxu0
    %v322 = vadd.f32 %v194, %v321
    %v323 = vpop.f32.mrb[0].mxu0
    %v324 = vadd.f32 %v198, %v323
    %325 = vmatprep.mubr.f32.mxu0 0.0
    %326 = vmatmul.mubr.f32.gmra.mrb[0].mxu0 %v223
    %v327 = vpop.f32.mrb[0].mxu0
    %v328 = vadd.f32 %v194, %v327
    %v329 = vpop.f32.mrb[0].mxu0
    %v330 = vadd.f32 %v198, %v329
    %331 = vmatprep.mubr.f32.mxu0 0.0
    %332 = vmatmul.mubr.f32.gmra.mrb[0].mxu0 %v226
    %v333 = vpop.f32.mrb[0].mxu0
    %v334 = vadd.f32 %v194, %v333
    %v335 = vpop.f32.mrb[0].mxu0
    %v336 = vadd.f32 %v198, %v335
    %337 = vmatprep.mubr.f32.mxu0 0.0
    %338 = vmatmul.mubr.f32.gmra.mrb[0].mxu0 %v229
    %v339 = vpop.f32.mrb[0].mxu0
    %v340 = vadd.f32 %v194, %v339
    %v341 = vpop.f32.mrb[0].mxu0
    %v342 = vadd.f32 %v198, %v341
    %343 = vdwg.mxu0
    %344 = vmatprep.subr.mxu0 0.0
    %345 = vmatpush1.msra.mxu0 %v167
    %346 = vmatprep.subr.mxu0 0.0
    %347 = vmatpush1.msra.mxu0 %v170
    %348 = vmatprep.subr.mxu0 0.0
    %349 = vmatpush1.msra.mxu0 %v173
    %350 = vmatprep.subr.mxu0 0.0
    %351 = vmatpush1.msra.mxu0 %v176
    %352 = vmatprep.subr.mxu0 0.0
    %353 = vmatpush1.msra.mxu0 %v179
    %354 = vmatprep.subr.mxu0 0.0
    %355 = vmatpush1.msra.mxu0 %v182
    %356 = vmatprep.subr.mxu0 0.0
    %357 = vmatpush1.msra.mxu0 %v185
    %358 = vmatprep.subr.mxu0 0.0
    %359 = vmatpush1.msra.mxu0 %v188
    %360 = vmatprep.subr.mxu0 0.0
    %361 = vmatpush1.msra.mxu0 0.0
    %362 = vmatprep.subr.mxu0 0.0
    %363 = vmatpush1.msra.mxu0 0.0
    %364 = vmatprep.subr.mxu0 0.0
    %365 = vmatpush1.msra.mxu0 0.0
    %366 = vmatprep.subr.mxu0 0.0
    %367 = vmatpush1.msra.mxu0 0.0
    %368 = vmatprep.subr.mxu0 0.0
    %369 = vmatpush1.msra.mxu0 0.0
    %370 = vmatprep.subr.mxu0 0.0
    %371 = vmatpush1.msra.mxu0 0.0
    %372 = vmatprep.subr.mxu0 0.0
    %373 = vmatpush1.msra.mxu0 0.0
    %374 = vmatprep.subr.mxu0 0.0
    %375 = vmatpush1.msra.mxu0 0.0
    %376 = vmatprep.subr.mxu0 0.0
    %377 = vmatpush1.msra.mxu0 0.0
    %378 = vmatprep.subr.mxu0 0.0
    %379 = vmatpush1.msra.mxu0 0.0
    %380 = vmatprep.subr.mxu0 0.0
    %381 = vmatpush1.msra.mxu0 0.0
    %382 = vmatprep.subr.mxu0 0.0
    %383 = vmatpush1.msra.mxu0 0.0
    %384 = vmatprep.subr.mxu0 0.0
    %385 = vmatpush1.msra.mxu0 0.0
    %386 = vmatprep.subr.mxu0 0.0
    %387 = vmatpush1.msra.mxu0 0.0
    %388 = vmatprep.subr.mxu0 0.0
    %389 = vmatpush1.msra.mxu0 0.0
    %390 = vmatprep.subr.mxu0 0.0
    %391 = vmatpush1.msra.mxu0 0.0
    %392 = vmatprep.subr.mxu0 0.0
    %393 = vmatpush1.msra.mxu0 0.0
    %394 = vmatprep.subr.mxu0 0.0
    %395 = vmatpush1.msra.mxu0 0.0
    %396 = vmatprep.subr.mxu0 0.0
    %397 = vmatpush1.msra.mxu0 0.0
    %398 = vmatprep.subr.mxu0 0.0
    %399 = vmatpush1.msra.mxu0 0.0
    %400 = vmatprep.subr.mxu0 0.0
    %401 = vmatpush1.msra.mxu0 0.0
    %402 = vmatprep.subr.mxu0 0.0
    %403 = vmatpush1.msra.mxu0 0.0
    %404 = vmatprep.subr.mxu0 0.0
    %405 = vmatpush1.msra.mxu0 0.0
    %406 = vmatprep.subr.mxu0 0.0
    %407 = vmatpush1.msra.mxu0 0.0
    %408 = vmatprep.mubr.f32.mxu0 0.0
    %409 = vmatmul.mubr.f32.gmra.mrb[0].mxu0 %v208
    %v410 = vpop.f32.mrb[0].mxu0
    %v411 = vadd.f32 %v202, %v410
    %v412 = vpop.f32.mrb[0].mxu0
    %413 = vmatprep.mubr.f32.mxu0 0.0
    %414 = vmatmul.mubr.f32.gmra.mrb[0].mxu0 %v211
    %v415 = vpop.f32.mrb[0].mxu0
    %v416 = vadd.f32 %v202, %v415
    %v417 = vpop.f32.mrb[0].mxu0
    %418 = vmatprep.mubr.f32.mxu0 0.0
    %419 = vmatmul.mubr.f32.gmra.mrb[0].mxu0 %v214
    %v420 = vpop.f32.mrb[0].mxu0
    %v421 = vadd.f32 %v202, %v420
    %v422 = vpop.f32.mrb[0].mxu0
    %423 = vmatprep.mubr.f32.mxu0 0.0
    %424 = vmatmul.mubr.f32.gmra.mrb[0].mxu0 %v217
    %v425 = vpop.f32.mrb[0].mxu0
    %v426 = vadd.f32 %v202, %v425
    %v427 = vpop.f32.mrb[0].mxu0
    %428 = vmatprep.mubr.f32.mxu0 0.0
    %429 = vmatmul.mubr.f32.gmra.mrb[0].mxu0 %v220
    %v430 = vpop.f32.mrb[0].mxu0
    %v431 = vadd.f32 %v202, %v430
    %v432 = vpop.f32.mrb[0].mxu0
    %433 = vmatprep.mubr.f32.mxu0 0.0
    %434 = vmatmul.mubr.f32.gmra.mrb[0].mxu0 %v223
    %v435 = vpop.f32.mrb[0].mxu0
    %v436 = vadd.f32 %v202, %v435
    %v437 = vpop.f32.mrb[0].mxu0
    %438 = vmatprep.mubr.f32.mxu0 0.0
    %439 = vmatmul.mubr.f32.gmra.mrb[0].mxu0 %v226
    %v440 = vpop.f32.mrb[0].mxu0
    %v441 = vadd.f32 %v202, %v440
    %v442 = vpop.f32.mrb[0].mxu0
    %443 = vmatprep.mubr.f32.mxu0 0.0
    %444 = vmatmul.mubr.f32.gmra.mrb[0].mxu0 %v229
    %v445 = vpop.f32.mrb[0].mxu0
    %v446 = vadd.f32 %v202, %v445
    %v447 = vpop.f32.mrb[0].mxu0
    %448 = vdwg.mxu0
    %v449 = vld [vmem:[#allocation4] sm:$0xff]
    %v450 = vld [vmem:[#allocation4 + $0x8] sm:$0xff]
    %v451 = vld [vmem:[#allocation4 + $0x10] sm:$0xff]
    %v452 = vld [vmem:[#allocation4 + $0x18] sm:$0xff]
    %v453 = vld [vmem:[#allocation4 + $0x20] sm:$0xff]
    %v454 = vld [vmem:[#allocation4 + $0x28] sm:$0xff]
    %v455 = vld [vmem:[#allocation4 + $0x30] sm:$0xff]
    %v456 = vld [vmem:[#allocation4 + $0x38] sm:$0xff]
    %v457 = vld [vmem:[#allocation4 + $0x40] sm:$0xff]
    %v458 = vld [vmem:[#allocation4 + $0x48] sm:$0xff]
    %v459 = vld [vmem:[#allocation4 + $0x50] sm:$0xff]
    %v460 = vld [vmem:[#allocation4 + $0x58] sm:$0xff]
    %v461 = vld [vmem:[#allocation4 + $0x60] sm:$0xff]
    %v462 = vld [vmem:[#allocation4 + $0x68] sm:$0xff]
    %v463 = vld [vmem:[#allocation4 + $0x70] sm:$0xff]
    %v464 = vld [vmem:[#allocation4 + $0x78] sm:$0xff]
    %v465 = vld [vmem:[#allocation4 + $0x80] sm:$0xff]
    %v466 = vld [vmem:[#allocation4 + $0x88] sm:$0xff]
    %v467 = vld [vmem:[#allocation4 + $0x90] sm:$0xff]
    %v468 = vld [vmem:[#allocation4 + $0x98] sm:$0xff]
    %v469 = vld [vmem:[#allocation4 + $0xa0] sm:$0xff]
    %v470 = vld [vmem:[#allocation4 + $0xa8] sm:$0xff]
    %v471 = vld [vmem:[#allocation4 + $0xb0] sm:$0xff]
    %v472 = vld [vmem:[#allocation4 + $0xb8] sm:$0xff]
    %v473 = vld [vmem:[#allocation4 + $0xc0] sm:$0xff]
    %v474 = vld [vmem:[#allocation4 + $0xc8] sm:$0xff]
    %v475 = vld [vmem:[#allocation4 + $0xd0] sm:$0xff]
    %v476 = vld [vmem:[#allocation4 + $0xd8] sm:$0xff]
    %v477 = vld [vmem:[#allocation4 + $0xe0] sm:$0xff]
    %v478 = vld [vmem:[#allocation4 + $0xe8] sm:$0xff]
    %v479 = vld [vmem:[#allocation4 + $0xf0] sm:$0xff]
    %v480 = vld [vmem:[#allocation4 + $0xf8] sm:$0xff]
    %v481 = vld [vmem:[#allocation4 + $0x100] sm:$0xff]
    %v482 = vld [vmem:[#allocation4 + $0x108] sm:$0xff]
    %v483 = vld [vmem:[#allocation4 + $0x110] sm:$0xff]
    %v484 = vld [vmem:[#allocation4 + $0x118] sm:$0xff]
    %v485 = vld [vmem:[#allocation4 + $0x120] sm:$0xff]
    %v486 = vld [vmem:[#allocation4 + $0x128] sm:$0xff]
    %v487 = vld [vmem:[#allocation4 + $0x130] sm:$0xff]
    %v488 = vld [vmem:[#allocation4 + $0x138] sm:$0xff]
    %v489 = vld [vmem:[#allocation4 + $0x140] sm:$0xff]
    %v490 = vld [vmem:[#allocation4 + $0x148] sm:$0xff]
    %v491 = vld [vmem:[#allocation4 + $0x150] sm:$0xff]
    %v492 = vld [vmem:[#allocation4 + $0x158] sm:$0xff]
    %v493 = vld [vmem:[#allocation4 + $0x160] sm:$0xff]
    %v494 = vld [vmem:[#allocation4 + $0x168] sm:$0xff]
    %v495 = vld [vmem:[#allocation4 + $0x170] sm:$0xff]
    %v496 = vld [vmem:[#allocation4 + $0x178] sm:$0xff]
    %v497 = vld [vmem:[%s4] sm:$0x7]
    %v499 = vlaneseq
    %v500 = vshrl.u32 %v499, 7
    %v501 = vsub.s32 0, %v500
    %v502 = vrot.slane %v497, %v501
    %v503 = vlaneseq
    %v504 = vshrl.u32 %v503, 7
    %v505 = vsub.s32 1, %v504
    %v506 = vrot.slane %v497, %v505
    %v507 = vlaneseq
    %v508 = vshrl.u32 %v507, 7
    %v509 = vsub.s32 2, %v508
    %v510 = vrot.slane %v497, %v509
    %514 = vmatprep.subr.mxu0 %v450
    %515 = vmatpush1.msra.mxu0 %v449
    %516 = vmatprep.subr.mxu0 %v453
    %517 = vmatpush1.msra.mxu0 %v452
    %518 = vmatprep.subr.mxu0 %v456
    %519 = vmatpush1.msra.mxu0 %v455
    %520 = vmatprep.subr.mxu0 %v459
    %521 = vmatpush1.msra.mxu0 %v458
    %522 = vmatprep.subr.mxu0 %v462
    %523 = vmatpush1.msra.mxu0 %v461
    %524 = vmatprep.subr.mxu0 %v465
    %525 = vmatpush1.msra.mxu0 %v464
    %526 = vmatprep.subr.mxu0 %v468
    %527 = vmatpush1.msra.mxu0 %v467
    %528 = vmatprep.subr.mxu0 %v471
    %529 = vmatpush1.msra.mxu0 %v470
    %530 = vmatprep.subr.mxu0 %v474
    %531 = vmatpush1.msra.mxu0 %v473
    %532 = vmatprep.subr.mxu0 %v477
    %533 = vmatpush1.msra.mxu0 %v476
    %534 = vmatprep.subr.mxu0 %v480
    %535 = vmatpush1.msra.mxu0 %v479
    %536 = vmatprep.subr.mxu0 %v483
    %537 = vmatpush1.msra.mxu0 %v482
    %538 = vmatprep.subr.mxu0 %v486
    %539 = vmatpush1.msra.mxu0 %v485
    %540 = vmatprep.subr.mxu0 %v489
    %541 = vmatpush1.msra.mxu0 %v488
    %542 = vmatprep.subr.mxu0 %v492
    %543 = vmatpush1.msra.mxu0 %v491
    %544 = vmatprep.subr.mxu0 %v495
    %545 = vmatpush1.msra.mxu0 %v494
    %546 = vmatprep.subr.mxu0 0.0
    %547 = vmatpush1.msra.mxu0 0.0
    %548 = vmatprep.subr.mxu0 0.0
    %549 = vmatpush1.msra.mxu0 0.0
    %550 = vmatprep.subr.mxu0 0.0
    %551 = vmatpush1.msra.mxu0 0.0
    %552 = vmatprep.subr.mxu0 0.0
    %553 = vmatpush1.msra.mxu0 0.0
    %554 = vmatprep.subr.mxu0 0.0
    %555 = vmatpush1.msra.mxu0 0.0
    %556 = vmatprep.subr.mxu0 0.0
    %557 = vmatpush1.msra.mxu0 0.0
    %558 = vmatprep.subr.mxu0 0.0
    %559 = vmatpush1.msra.mxu0 0.0
    %560 = vmatprep.subr.mxu0 0.0
    %561 = vmatpush1.msra.mxu0 0.0
    %562 = vmatprep.subr.mxu0 0.0
    %563 = vmatpush1.msra.mxu0 0.0
    %564 = vmatprep.subr.mxu0 0.0
    %565 = vmatpush1.msra.mxu0 0.0
    %566 = vmatprep.subr.mxu0 0.0
    %567 = vmatpush1.msra.mxu0 0.0
    %568 = vmatprep.subr.mxu0 0.0
    %569 = vmatpush1.msra.mxu0 0.0
    %570 = vmatprep.subr.mxu0 0.0
    %571 = vmatpush1.msra.mxu0 0.0
    %572 = vmatprep.subr.mxu0 0.0
    %573 = vmatpush1.msra.mxu0 0.0
    %574 = vmatprep.subr.mxu0 0.0
    %575 = vmatpush1.msra.mxu0 0.0
    %576 = vmatprep.subr.mxu0 0.0
    %577 = vmatpush1.msra.mxu0 0.0
    %578 = vmatprep.mubr.f32.mxu0 0.0
    %579 = vmatmul.mubr.f32.gmra.mrb[0].mxu0 0.0
    %v580 = vpop.f32.mrb[0].mxu0
    %v581 = vadd.f32 %v502, %v580
    %v582 = vpop.f32.mrb[0].mxu0
    %v583 = vadd.f32 %v506, %v582
    %584 = vdwg.mxu0
    %585 = vmatprep.subr.mxu0 0.0
    %586 = vmatpush1.msra.mxu0 %v451
    %587 = vmatprep.subr.mxu0 0.0
    %588 = vmatpush1.msra.mxu0 %v454
    %589 = vmatprep.subr.mxu0 0.0
    %590 = vmatpush1.msra.mxu0 %v457
    %591 = vmatprep.subr.mxu0 0.0
    %592 = vmatpush1.msra.mxu0 %v460
    %593 = vmatprep.subr.mxu0 0.0
    %594 = vmatpush1.msra.mxu0 %v463
    %595 = vmatprep.subr.mxu0 0.0
    %596 = vmatpush1.msra.mxu0 %v466
    %597 = vmatprep.subr.mxu0 0.0
    %598 = vmatpush1.msra.mxu0 %v469
    %599 = vmatprep.subr.mxu0 0.0
    %600 = vmatpush1.msra.mxu0 %v472
    %601 = vmatprep.subr.mxu0 0.0
    %602 = vmatpush1.msra.mxu0 %v475
    %603 = vmatprep.subr.mxu0 0.0
    %604 = vmatpush1.msra.mxu0 %v478
    %605 = vmatprep.subr.mxu0 0.0
    %606 = vmatpush1.msra.mxu0 %v481
    %607 = vmatprep.subr.mxu0 0.0
    %608 = vmatpush1.msra.mxu0 %v484
    %609 = vmatprep.subr.mxu0 0.0
    %610 = vmatpush1.msra.mxu0 %v487
    %611 = vmatprep.subr.mxu0 0.0
    %612 = vmatpush1.msra.mxu0 %v490
    %613 = vmatprep.subr.mxu0 0.0
    %614 = vmatpush1.msra.mxu0 %v493
    %615 = vmatprep.subr.mxu0 0.0
    %616 = vmatpush1.msra.mxu0 %v496
    %617 = vmatprep.subr.mxu0 0.0
    %618 = vmatpush1.msra.mxu0 0.0
    %619 = vmatprep.subr.mxu0 0.0
    %620 = vmatpush1.msra.mxu0 0.0
    %621 = vmatprep.subr.mxu0 0.0
    %622 = vmatpush1.msra.mxu0 0.0
    %623 = vmatprep.subr.mxu0 0.0
    %624 = vmatpush1.msra.mxu0 0.0
    %625 = vmatprep.subr.mxu0 0.0
    %626 = vmatpush1.msra.mxu0 0.0
    %627 = vmatprep.subr.mxu0 0.0
    %628 = vmatpush1.msra.mxu0 0.0
    %629 = vmatprep.subr.mxu0 0.0
    %630 = vmatpush1.msra.mxu0 0.0
    %631 = vmatprep.subr.mxu0 0.0
    %632 = vmatpush1.msra.mxu0 0.0
    %633 = vmatprep.subr.mxu0 0.0
    %634 = vmatpush1.msra.mxu0 0.0
    %635 = vmatprep.subr.mxu0 0.0
    %636 = vmatpush1.msra.mxu0 0.0
    %637 = vmatprep.subr.mxu0 0.0
    %638 = vmatpush1.msra.mxu0 0.0
    %639 = vmatprep.subr.mxu0 0.0
    %640 = vmatpush1.msra.mxu0 0.0
    %641 = vmatprep.subr.mxu0 0.0
    %642 = vmatpush1.msra.mxu0 0.0
    %643 = vmatprep.subr.mxu0 0.0
    %644 = vmatpush1.msra.mxu0 0.0
    %645 = vmatprep.subr.mxu0 0.0
    %646 = vmatpush1.msra.mxu0 0.0
    %647 = vmatprep.subr.mxu0 0.0
    %648 = vmatpush1.msra.mxu0 0.0
    %649 = vmatprep.mubr.f32.mxu0 0.0
    %650 = vmatmul.mubr.f32.gmra.mrb[0].mxu0 0.0
    %v651 = vpop.f32.mrb[0].mxu0
    %v652 = vadd.f32 %v510, %v651
    %v653 = vpop.f32.mrb[0].mxu0
    %654 = vdwg.mxu0
    %v655 = vadd.f32 %v298, %v581
    %v656 = vxor.u32 %v655, 2147483648
    %v657 = vmul.f32 %v656, 1.442695
    %v658 = vpow.pop %v657
    %v659 = vadd.f32 %v658, 1.0
    %v660 = vrcp.pop %v659
    %v661 = vmul.f32 1.0, %v660
    %v662 = vadd.f32 %v300, %v583
    %v663 = vxor.u32 %v662, 2147483648
    %v664 = vmul.f32 %v663, 1.442695
    %v665 = vpow.pop %v664
    %v666 = vadd.f32 %v665, 1.0
    %v667 = vrcp.pop %v666
    %v668 = vmul.f32 1.0, %v667
    %v669 = vmul.f32 %v661, %v652
    %v670 = vadd.f32 %v411, %v669
    %v671 = vtanh.pop %v670
    %v672 = vsub.f32 1.0, %v668
    %v673 = vmul.f32 %v672, %v671
    %v674 = vmul.f32 %v668, 0.0
    %v675 = vadd.f32 %v673, %v674
    %676 = vmatprep.subr.mxu0 %v450
    %677 = vmatpush1.msra.mxu0 %v449
    %678 = vmatprep.subr.mxu0 %v453
    %679 = vmatpush1.msra.mxu0 %v452
    %680 = vmatprep.subr.mxu0 %v456
    %681 = vmatpush1.msra.mxu0 %v455
    %682 = vmatprep.subr.mxu0 %v459
    %683 = vmatpush1.msra.mxu0 %v458
    %684 = vmatprep.subr.mxu0 %v462
    %685 = vmatpush1.msra.mxu0 %v461
    %686 = vmatprep.subr.mxu0 %v465
    %687 = vmatpush1.msra.mxu0 %v464
    %688 = vmatprep.subr.mxu0 %v468
    %689 = vmatpush1.msra.mxu0 %v467
    %690 = vmatprep.subr.mxu0 %v471
    %691 = vmatpush1.msra.mxu0 %v470
    %692 = vmatprep.subr.mxu0 %v474
    %693 = vmatpush1.msra.mxu0 %v473
    %694 = vmatprep.subr.mxu0 %v477
    %695 = vmatpush1.msra.mxu0 %v476
    %696 = vmatprep.subr.mxu0 %v480
    %697 = vmatpush1.msra.mxu0 %v479
    %698 = vmatprep.subr.mxu0 %v483
    %699 = vmatpush1.msra.mxu0 %v482
    %700 = vmatprep.subr.mxu0 %v486
    %701 = vmatpush1.msra.mxu0 %v485
    %702 = vmatprep.subr.mxu0 %v489
    %703 = vmatpush1.msra.mxu0 %v488
    %704 = vmatprep.subr.mxu0 %v492
    %705 = vmatpush1.msra.mxu0 %v491
    %706 = vmatprep.subr.mxu0 %v495
    %707 = vmatpush1.msra.mxu0 %v494
    %708 = vmatprep.subr.mxu0 0.0
    %709 = vmatpush1.msra.mxu0 0.0
    %710 = vmatprep.subr.mxu0 0.0
    %711 = vmatpush1.msra.mxu0 0.0
    %712 = vmatprep.subr.mxu0 0.0
    %713 = vmatpush1.msra.mxu0 0.0
    %714 = vmatprep.subr.mxu0 0.0
    %715 = vmatpush1.msra.mxu0 0.0
    %716 = vmatprep.subr.mxu0 0.0
    %717 = vmatpush1.msra.mxu0 0.0
    %718 = vmatprep.subr.mxu0 0.0
    %719 = vmatpush1.msra.mxu0 0.0
    %720 = vmatprep.subr.mxu0 0.0
    %721 = vmatpush1.msra.mxu0 0.0
    %722 = vmatprep.subr.mxu0 0.0
    %723 = vmatpush1.msra.mxu0 0.0
    %724 = vmatprep.subr.mxu0 0.0
    %725 = vmatpush1.msra.mxu0 0.0
    %726 = vmatprep.subr.mxu0 0.0
    %727 = vmatpush1.msra.mxu0 0.0
    %728 = vmatprep.subr.mxu0 0.0
    %729 = vmatpush1.msra.mxu0 0.0
    %730 = vmatprep.subr.mxu0 0.0
    %731 = vmatpush1.msra.mxu0 0.0
    %732 = vmatprep.subr.mxu0 0.0
    %733 = vmatpush1.msra.mxu0 0.0
    %734 = vmatprep.subr.mxu0 0.0
    %735 = vmatpush1.msra.mxu0 0.0
    %736 = vmatprep.subr.mxu0 0.0
    %737 = vmatpush1.msra.mxu0 0.0
    %738 = vmatprep.subr.mxu0 0.0
    %739 = vmatpush1.msra.mxu0 0.0
    %740 = vmatprep.mubr.f32.mxu0 0.0
    %741 = vmatmul.mubr.f32.gmra.mrb[0].mxu0 %v675
    %v742 = vpop.f32.mrb[0].mxu0
    %v743 = vadd.f32 %v502, %v742
    %v744 = vpop.f32.mrb[0].mxu0
    %v745 = vadd.f32 %v506, %v744
    %746 = vdwg.mxu0
    %747 = vmatprep.subr.mxu0 0.0
    %748 = vmatpush1.msra.mxu0 %v451
    %749 = vmatprep.subr.mxu0 0.0
    %750 = vmatpush1.msra.mxu0 %v454
    %751 = vmatprep.subr.mxu0 0.0
    %752 = vmatpush1.msra.mxu0 %v457
    %753 = vmatprep.subr.mxu0 0.0
    %754 = vmatpush1.msra.mxu0 %v460
    %755 = vmatprep.subr.mxu0 0.0
    %756 = vmatpush1.msra.mxu0 %v463
    %757 = vmatprep.subr.mxu0 0.0
    %758 = vmatpush1.msra.mxu0 %v466
    %759 = vmatprep.subr.mxu0 0.0
    %760 = vmatpush1.msra.mxu0 %v469
    %761 = vmatprep.subr.mxu0 0.0
    %762 = vmatpush1.msra.mxu0 %v472
    %763 = vmatprep.subr.mxu0 0.0
    %764 = vmatpush1.msra.mxu0 %v475
    %765 = vmatprep.subr.mxu0 0.0
    %766 = vmatpush1.msra.mxu0 %v478
    %767 = vmatprep.subr.mxu0 0.0
    %768 = vmatpush1.msra.mxu0 %v481
    %769 = vmatprep.subr.mxu0 0.0
    %770 = vmatpush1.msra.mxu0 %v484
    %771 = vmatprep.subr.mxu0 0.0
    %772 = vmatpush1.msra.mxu0 %v487
    %773 = vmatprep.subr.mxu0 0.0
    %774 = vmatpush1.msra.mxu0 %v490
    %775 = vmatprep.subr.mxu0 0.0
    %776 = vmatpush1.msra.mxu0 %v493
    %777 = vmatprep.subr.mxu0 0.0
    %778 = vmatpush1.msra.mxu0 %v496
    %779 = vmatprep.subr.mxu0 0.0
    %780 = vmatpush1.msra.mxu0 0.0
    %781 = vmatprep.subr.mxu0 0.0
    %782 = vmatpush1.msra.mxu0 0.0
    %783 = vmatprep.subr.mxu0 0.0
    %784 = vmatpush1.msra.mxu0 0.0
    %785 = vmatprep.subr.mxu0 0.0
    %786 = vmatpush1.msra.mxu0 0.0
    %787 = vmatprep.subr.mxu0 0.0
    %788 = vmatpush1.msra.mxu0 0.0
    %789 = vmatprep.subr.mxu0 0.0
    %790 = vmatpush1.msra.mxu0 0.0
    %791 = vmatprep.subr.mxu0 0.0
    %792 = vmatpush1.msra.mxu0 0.0
    %793 = vmatprep.subr.mxu0 0.0
    %794 = vmatpush1.msra.mxu0 0.0
    %795 = vmatprep.subr.mxu0 0.0
    %796 = vmatpush1.msra.mxu0 0.0
    %797 = vmatprep.subr.mxu0 0.0
    %798 = vmatpush1.msra.mxu0 0.0
    %799 = vmatprep.subr.mxu0 0.0
    %800 = vmatpush1.msra.mxu0 0.0
    %801 = vmatprep.subr.mxu0 0.0
    %802 = vmatpush1.msra.mxu0 0.0
    %803 = vmatprep.subr.mxu0 0.0
    %804 = vmatpush1.msra.mxu0 0.0
    %805 = vmatprep.subr.mxu0 0.0
    %806 = vmatpush1.msra.mxu0 0.0
    %807 = vmatprep.subr.mxu0 0.0
    %808 = vmatpush1.msra.mxu0 0.0
    %809 = vmatprep.subr.mxu0 0.0
    %810 = vmatpush1.msra.mxu0 0.0
    %811 = vmatprep.mubr.f32.mxu0 0.0
    %812 = vmatmul.mubr.f32.gmra.mrb[0].mxu0 %v675
    %v813 = vpop.f32.mrb[0].mxu0
    %v814 = vadd.f32 %v510, %v813
    %v815 = vpop.f32.mrb[0].mxu0
    %816 = vdwg.mxu0
    %v817 = vadd.f32 %v304, %v743
    %v818 = vxor.u32 %v817, 2147483648
    %v819 = vmul.f32 %v818, 1.442695
    %v820 = vpow.pop %v819
    %v821 = vadd.f32 %v820, 1.0
    %v822 = vrcp.pop %v821
    %v823 = vmul.f32 1.0, %v822
    %v824 = vadd.f32 %v306, %v745
    %v825 = vxor.u32 %v824, 2147483648
    %v826 = vmul.f32 %v825, 1.442695
    %v827 = vpow.pop %v826
    %v828 = vadd.f32 %v827, 1.0
    %v829 = vrcp.pop %v828
    %v830 = vmul.f32 1.0, %v829
    %v831 = vmul.f32 %v823, %v814
    %v832 = vadd.f32 %v416, %v831
    %v833 = vtanh.pop %v832
    %v834 = vsub.f32 1.0, %v830
    %v835 = vmul.f32 %v834, %v833
    %v836 = vmul.f32 %v830, %v675
    %v837 = vadd.f32 %v835, %v836
    %838 = vmatprep.subr.mxu0 %v450
    %839 = vmatpush1.msra.mxu0 %v449
    %840 = vmatprep.subr.mxu0 %v453
    %841 = vmatpush1.msra.mxu0 %v452
    %842 = vmatprep.subr.mxu0 %v456
    %843 = vmatpush1.msra.mxu0 %v455
    %844 = vmatprep.subr.mxu0 %v459
    %845 = vmatpush1.msra.mxu0 %v458
    %846 = vmatprep.subr.mxu0 %v462
    %847 = vmatpush1.msra.mxu0 %v461
    %848 = vmatprep.subr.mxu0 %v465
    %849 = vmatpush1.msra.mxu0 %v464
    %850 = vmatprep.subr.mxu0 %v468
    %851 = vmatpush1.msra.mxu0 %v467
    %852 = vmatprep.subr.mxu0 %v471
    %853 = vmatpush1.msra.mxu0 %v470
    %854 = vmatprep.subr.mxu0 %v474
    %855 = vmatpush1.msra.mxu0 %v473
    %856 = vmatprep.subr.mxu0 %v477
    %857 = vmatpush1.msra.mxu0 %v476
    %858 = vmatprep.subr.mxu0 %v480
    %859 = vmatpush1.msra.mxu0 %v479
    %860 = vmatprep.subr.mxu0 %v483
    %861 = vmatpush1.msra.mxu0 %v482
    %862 = vmatprep.subr.mxu0 %v486
    %863 = vmatpush1.msra.mxu0 %v485
    %864 = vmatprep.subr.mxu0 %v489
    %865 = vmatpush1.msra.mxu0 %v488
    %866 = vmatprep.subr.mxu0 %v492
    %867 = vmatpush1.msra.mxu0 %v491
    %868 = vmatprep.subr.mxu0 %v495
    %869 = vmatpush1.msra.mxu0 %v494
    %870 = vmatprep.subr.mxu0 0.0
    %871 = vmatpush1.msra.mxu0 0.0
    %872 = vmatprep.subr.mxu0 0.0
    %873 = vmatpush1.msra.mxu0 0.0
    %874 = vmatprep.subr.mxu0 0.0
    %875 = vmatpush1.msra.mxu0 0.0
    %876 = vmatprep.subr.mxu0 0.0
    %877 = vmatpush1.msra.mxu0 0.0
    %878 = vmatprep.subr.mxu0 0.0
    %879 = vmatpush1.msra.mxu0 0.0
    %880 = vmatprep.subr.mxu0 0.0
    %881 = vmatpush1.msra.mxu0 0.0
    %882 = vmatprep.subr.mxu0 0.0
    %883 = vmatpush1.msra.mxu0 0.0
    %884 = vmatprep.subr.mxu0 0.0
    %885 = vmatpush1.msra.mxu0 0.0
    %886 = vmatprep.subr.mxu0 0.0
    %887 = vmatpush1.msra.mxu0 0.0
    %888 = vmatprep.subr.mxu0 0.0
    %889 = vmatpush1.msra.mxu0 0.0
    %890 = vmatprep.subr.mxu0 0.0
    %891 = vmatpush1.msra.mxu0 0.0
    %892 = vmatprep.subr.mxu0 0.0
    %893 = vmatpush1.msra.mxu0 0.0
    %894 = vmatprep.subr.mxu0 0.0
    %895 = vmatpush1.msra.mxu0 0.0
    %896 = vmatprep.subr.mxu0 0.0
    %897 = vmatpush1.msra.mxu0 0.0
    %898 = vmatprep.subr.mxu0 0.0
    %899 = vmatpush1.msra.mxu0 0.0
    %900 = vmatprep.subr.mxu0 0.0
    %901 = vmatpush1.msra.mxu0 0.0
    %902 = vmatprep.mubr.f32.mxu0 0.0
    %903 = vmatmul.mubr.f32.gmra.mrb[0].mxu0 %v837
    %v904 = vpop.f32.mrb[0].mxu0
    %v905 = vadd.f32 %v502, %v904
    %v906 = vpop.f32.mrb[0].mxu0
    %v907 = vadd.f32 %v506, %v906
    %908 = vdwg.mxu0
    %909 = vmatprep.subr.mxu0 0.0
    %910 = vmatpush1.msra.mxu0 %v451
    %911 = vmatprep.subr.mxu0 0.0
    %912 = vmatpush1.msra.mxu0 %v454
    %913 = vmatprep.subr.mxu0 0.0
    %914 = vmatpush1.msra.mxu0 %v457
    %915 = vmatprep.subr.mxu0 0.0
    %916 = vmatpush1.msra.mxu0 %v460
    %917 = vmatprep.subr.mxu0 0.0
    %918 = vmatpush1.msra.mxu0 %v463
    %919 = vmatprep.subr.mxu0 0.0
    %920 = vmatpush1.msra.mxu0 %v466
    %921 = vmatprep.subr.mxu0 0.0
    %922 = vmatpush1.msra.mxu0 %v469
    %923 = vmatprep.subr.mxu0 0.0
    %924 = vmatpush1.msra.mxu0 %v472
    %925 = vmatprep.subr.mxu0 0.0
    %926 = vmatpush1.msra.mxu0 %v475
    %927 = vmatprep.subr.mxu0 0.0
    %928 = vmatpush1.msra.mxu0 %v478
    %929 = vmatprep.subr.mxu0 0.0
    %930 = vmatpush1.msra.mxu0 %v481
    %931 = vmatprep.subr.mxu0 0.0
    %932 = vmatpush1.msra.mxu0 %v484
    %933 = vmatprep.subr.mxu0 0.0
    %934 = vmatpush1.msra.mxu0 %v487
    %935 = vmatprep.subr.mxu0 0.0
    %936 = vmatpush1.msra.mxu0 %v490
    %937 = vmatprep.subr.mxu0 0.0
    %938 = vmatpush1.msra.mxu0 %v493
    %939 = vmatprep.subr.mxu0 0.0
    %940 = vmatpush1.msra.mxu0 %v496
    %941 = vmatprep.subr.mxu0 0.0
    %942 = vmatpush1.msra.mxu0 0.0
    %943 = vmatprep.subr.mxu0 0.0
    %944 = vmatpush1.msra.mxu0 0.0
    %945 = vmatprep.subr.mxu0 0.0
    %946 = vmatpush1.msra.mxu0 0.0
    %947 = vmatprep.subr.mxu0 0.0
    %948 = vmatpush1.msra.mxu0 0.0
    %949 = vmatprep.subr.mxu0 0.0
    %950 = vmatpush1.msra.mxu0 0.0
    %951 = vmatprep.subr.mxu0 0.0
    %952 = vmatpush1.msra.mxu0 0.0
    %953 = vmatprep.subr.mxu0 0.0
    %954 = vmatpush1.msra.mxu0 0.0
    %955 = vmatprep.subr.mxu0 0.0
    %956 = vmatpush1.msra.mxu0 0.0
    %957 = vmatprep.subr.mxu0 0.0
    %958 = vmatpush1.msra.mxu0 0.0
    %959 = vmatprep.subr.mxu0 0.0
    %960 = vmatpush1.msra.mxu0 0.0
    %961 = vmatprep.subr.mxu0 0.0
    %962 = vmatpush1.msra.mxu0 0.0
    %963 = vmatprep.subr.mxu0 0.0
    %964 = vmatpush1.msra.mxu0 0.0
    %965 = vmatprep.subr.mxu0 0.0
    %966 = vmatpush1.msra.mxu0 0.0
    %967 = vmatprep.subr.mxu0 0.0
    %968 = vmatpush1.msra.mxu0 0.0
    %969 = vmatprep.subr.mxu0 0.0
    %970 = vmatpush1.msra.mxu0 0.0
    %971 = vmatprep.subr.mxu0 0.0
    %972 = vmatpush1.msra.mxu0 0.0
    %973 = vmatprep.mubr.f32.mxu0 0.0
    %974 = vmatmul.mubr.f32.gmra.mrb[0].mxu0 %v837
    %v975 = vpop.f32.mrb[0].mxu0
    %v976 = vadd.f32 %v510, %v975
    %v977 = vpop.f32.mrb[0].mxu0
    %978 = vdwg.mxu0
    %v979 = vadd.f32 %v310, %v905
    %v980 = vxor.u32 %v979, 2147483648
    %v981 = vmul.f32 %v980, 1.442695
    %v982 = vpow.pop %v981
    %v983 = vadd.f32 %v982, 1.0
    %v984 = vrcp.pop %v983
    %v985 = vmul.f32 1.0, %v984
    %v986 = vadd.f32 %v312, %v907
    %v987 = vxor.u32 %v986, 2147483648
    %v988 = vmul.f32 %v987, 1.442695
    %v989 = vpow.pop %v988
    %v990 = vadd.f32 %v989, 1.0
    %v991 = vrcp.pop %v990
    %v992 = vmul.f32 1.0, %v991
    %v993 = vmul.f32 %v985, %v976
    %v994 = vadd.f32 %v421, %v993
    %v995 = vtanh.pop %v994
    %v996 = vsub.f32 1.0, %v992
    %v997 = vmul.f32 %v996, %v995
    %v998 = vmul.f32 %v992, %v837
    %v999 = vadd.f32 %v997, %v998
    %1000 = vmatprep.subr.mxu0 %v450
    %1001 = vmatpush1.msra.mxu0 %v449
    %1002 = vmatprep.subr.mxu0 %v453
    %1003 = vmatpush1.msra.mxu0 %v452
    %1004 = vmatprep.subr.mxu0 %v456
    %1005 = vmatpush1.msra.mxu0 %v455
    %1006 = vmatprep.subr.mxu0 %v459
    %1007 = vmatpush1.msra.mxu0 %v458
    %1008 = vmatprep.subr.mxu0 %v462
    %1009 = vmatpush1.msra.mxu0 %v461
    %1010 = vmatprep.subr.mxu0 %v465
    %1011 = vmatpush1.msra.mxu0 %v464
    %1012 = vmatprep.subr.mxu0 %v468
    %1013 = vmatpush1.msra.mxu0 %v467
    %1014 = vmatprep.subr.mxu0 %v471
    %1015 = vmatpush1.msra.mxu0 %v470
    %1016 = vmatprep.subr.mxu0 %v474
    %1017 = vmatpush1.msra.mxu0 %v473
    %1018 = vmatprep.subr.mxu0 %v477
    %1019 = vmatpush1.msra.mxu0 %v476
    %1020 = vmatprep.subr.mxu0 %v480
    %1021 = vmatpush1.msra.mxu0 %v479
    %1022 = vmatprep.subr.mxu0 %v483
    %1023 = vmatpush1.msra.mxu0 %v482
    %1024 = vmatprep.subr.mxu0 %v486
    %1025 = vmatpush1.msra.mxu0 %v485
    %1026 = vmatprep.subr.mxu0 %v489
    %1027 = vmatpush1.msra.mxu0 %v488
    %1028 = vmatprep.subr.mxu0 %v492
    %1029 = vmatpush1.msra.mxu0 %v491
    %1030 = vmatprep.subr.mxu0 %v495
    %1031 = vmatpush1.msra.mxu0 %v494
    %1032 = vmatprep.subr.mxu0 0.0
    %1033 = vmatpush1.msra.mxu0 0.0
    %1034 = vmatprep.subr.mxu0 0.0
    %1035 = vmatpush1.msra.mxu0 0.0
    %1036 = vmatprep.subr.mxu0 0.0
    %1037 = vmatpush1.msra.mxu0 0.0
    %1038 = vmatprep.subr.mxu0 0.0
    %1039 = vmatpush1.msra.mxu0 0.0
    %1040 = vmatprep.subr.mxu0 0.0
    %1041 = vmatpush1.msra.mxu0 0.0
    %1042 = vmatprep.subr.mxu0 0.0
    %1043 = vmatpush1.msra.mxu0 0.0
    %1044 = vmatprep.subr.mxu0 0.0
    %1045 = vmatpush1.msra.mxu0 0.0
    %1046 = vmatprep.subr.mxu0 0.0
    %1047 = vmatpush1.msra.mxu0 0.0
    %1048 = vmatprep.subr.mxu0 0.0
    %1049 = vmatpush1.msra.mxu0 0.0
    %1050 = vmatprep.subr.mxu0 0.0
    %1051 = vmatpush1.msra.mxu0 0.0
    %1052 = vmatprep.subr.mxu0 0.0
    %1053 = vmatpush1.msra.mxu0 0.0
    %1054 = vmatprep.subr.mxu0 0.0
    %1055 = vmatpush1.msra.mxu0 0.0
    %1056 = vmatprep.subr.mxu0 0.0
    %1057 = vmatpush1.msra.mxu0 0.0
    %1058 = vmatprep.subr.mxu0 0.0
    %1059 = vmatpush1.msra.mxu0 0.0
    %1060 = vmatprep.subr.mxu0 0.0
    %1061 = vmatpush1.msra.mxu0 0.0
    %1062 = vmatprep.subr.mxu0 0.0
    %1063 = vmatpush1.msra.mxu0 0.0
    %1064 = vmatprep.mubr.f32.mxu0 0.0
    %1065 = vmatmul.mubr.f32.gmra.mrb[0].mxu0 %v999
    %v1066 = vpop.f32.mrb[0].mxu0
    %v1067 = vadd.f32 %v502, %v1066
    %v1068 = vpop.f32.mrb[0].mxu0
    %v1069 = vadd.f32 %v506, %v1068
    %1070 = vdwg.mxu0
    %1071 = vmatprep.subr.mxu0 0.0
    %1072 = vmatpush1.msra.mxu0 %v451
    %1073 = vmatprep.subr.mxu0 0.0
    %1074 = vmatpush1.msra.mxu0 %v454
    %1075 = vmatprep.subr.mxu0 0.0
    %1076 = vmatpush1.msra.mxu0 %v457
    %1077 = vmatprep.subr.mxu0 0.0
    %1078 = vmatpush1.msra.mxu0 %v460
    %1079 = vmatprep.subr.mxu0 0.0
    %1080 = vmatpush1.msra.mxu0 %v463
    %1081 = vmatprep.subr.mxu0 0.0
    %1082 = vmatpush1.msra.mxu0 %v466
    %1083 = vmatprep.subr.mxu0 0.0
    %1084 = vmatpush1.msra.mxu0 %v469
    %1085 = vmatprep.subr.mxu0 0.0
    %1086 = vmatpush1.msra.mxu0 %v472
    %1087 = vmatprep.subr.mxu0 0.0
    %1088 = vmatpush1.msra.mxu0 %v475
    %1089 = vmatprep.subr.mxu0 0.0
    %1090 = vmatpush1.msra.mxu0 %v478
    %1091 = vmatprep.subr.mxu0 0.0
    %1092 = vmatpush1.msra.mxu0 %v481
    %1093 = vmatprep.subr.mxu0 0.0
    %1094 = vmatpush1.msra.mxu0 %v484
    %1095 = vmatprep.subr.mxu0 0.0
    %1096 = vmatpush1.msra.mxu0 %v487
    %1097 = vmatprep.subr.mxu0 0.0
    %1098 = vmatpush1.msra.mxu0 %v490
    %1099 = vmatprep.subr.mxu0 0.0
    %1100 = vmatpush1.msra.mxu0 %v493
    %1101 = vmatprep.subr.mxu0 0.0
    %1102 = vmatpush1.msra.mxu0 %v496
    %1103 = vmatprep.subr.mxu0 0.0
    %1104 = vmatpush1.msra.mxu0 0.0
    %1105 = vmatprep.subr.mxu0 0.0
    %1106 = vmatpush1.msra.mxu0 0.0
    %1107 = vmatprep.subr.mxu0 0.0
    %1108 = vmatpush1.msra.mxu0 0.0
    %1109 = vmatprep.subr.mxu0 0.0
    %1110 = vmatpush1.msra.mxu0 0.0
    %1111 = vmatprep.subr.mxu0 0.0
    %1112 = vmatpush1.msra.mxu0 0.0
    %1113 = vmatprep.subr.mxu0 0.0
    %1114 = vmatpush1.msra.mxu0 0.0
    %1115 = vmatprep.subr.mxu0 0.0
    %1116 = vmatpush1.msra.mxu0 0.0
    %1117 = vmatprep.subr.mxu0 0.0
    %1118 = vmatpush1.msra.mxu0 0.0
    %1119 = vmatprep.subr.mxu0 0.0
    %1120 = vmatpush1.msra.mxu0 0.0
    %1121 = vmatprep.subr.mxu0 0.0
    %1122 = vmatpush1.msra.mxu0 0.0
    %1123 = vmatprep.subr.mxu0 0.0
    %1124 = vmatpush1.msra.mxu0 0.0
    %1125 = vmatprep.subr.mxu0 0.0
    %1126 = vmatpush1.msra.mxu0 0.0
    %1127 = vmatprep.subr.mxu0 0.0
    %1128 = vmatpush1.msra.mxu0 0.0
    %1129 = vmatprep.subr.mxu0 0.0
    %1130 = vmatpush1.msra.mxu0 0.0
    %1131 = vmatprep.subr.mxu0 0.0
    %1132 = vmatpush1.msra.mxu0 0.0
    %1133 = vmatprep.subr.mxu0 0.0
    %1134 = vmatpush1.msra.mxu0 0.0
    %1135 = vmatprep.mubr.f32.mxu0 0.0
    %1136 = vmatmul.mubr.f32.gmra.mrb[0].mxu0 %v999
    %v1137 = vpop.f32.mrb[0].mxu0
    %v1138 = vadd.f32 %v510, %v1137
    %v1139 = vpop.f32.mrb[0].mxu0
    %1140 = vdwg.mxu0
    %v1141 = vadd.f32 %v316, %v1067
    %v1142 = vxor.u32 %v1141, 2147483648
    %v1143 = vmul.f32 %v1142, 1.442695
    %v1144 = vpow.pop %v1143
    %v1145 = vadd.f32 %v1144, 1.0
    %v1146 = vrcp.pop %v1145
    %v1147 = vmul.f32 1.0, %v1146
    %v1148 = vadd.f32 %v318, %v1069
    %v1149 = vxor.u32 %v1148, 2147483648
    %v1150 = vmul.f32 %v1149, 1.442695
    %v1151 = vpow.pop %v1150
    %v1152 = vadd.f32 %v1151, 1.0
    %v1153 = vrcp.pop %v1152
    %v1154 = vmul.f32 1.0, %v1153
    %v1155 = vmul.f32 %v1147, %v1138
    %v1156 = vadd.f32 %v426, %v1155
    %v1157 = vtanh.pop %v1156
    %v1158 = vsub.f32 1.0, %v1154
    %v1159 = vmul.f32 %v1158, %v1157
    %v1160 = vmul.f32 %v1154, %v999
    %v1161 = vadd.f32 %v1159, %v1160
    %1162 = vmatprep.subr.mxu0 %v450
    %1163 = vmatpush1.msra.mxu0 %v449
    %1164 = vmatprep.subr.mxu0 %v453
    %1165 = vmatpush1.msra.mxu0 %v452
    %1166 = vmatprep.subr.mxu0 %v456
    %1167 = vmatpush1.msra.mxu0 %v455
    %1168 = vmatprep.subr.mxu0 %v459
    %1169 = vmatpush1.msra.mxu0 %v458
    %1170 = vmatprep.subr.mxu0 %v462
    %1171 = vmatpush1.msra.mxu0 %v461
    %1172 = vmatprep.subr.mxu0 %v465
    %1173 = vmatpush1.msra.mxu0 %v464
    %1174 = vmatprep.subr.mxu0 %v468
    %1175 = vmatpush1.msra.mxu0 %v467
    %1176 = vmatprep.subr.mxu0 %v471
    %1177 = vmatpush1.msra.mxu0 %v470
    %1178 = vmatprep.subr.mxu0 %v474
    %1179 = vmatpush1.msra.mxu0 %v473
    %1180 = vmatprep.subr.mxu0 %v477
    %1181 = vmatpush1.msra.mxu0 %v476
    %1182 = vmatprep.subr.mxu0 %v480
    %1183 = vmatpush1.msra.mxu0 %v479
    %1184 = vmatprep.subr.mxu0 %v483
    %1185 = vmatpush1.msra.mxu0 %v482
    %1186 = vmatprep.subr.mxu0 %v486
    %1187 = vmatpush1.msra.mxu0 %v485
    %1188 = vmatprep.subr.mxu0 %v489
    %1189 = vmatpush1.msra.mxu0 %v488
    %1190 = vmatprep.subr.mxu0 %v492
    %1191 = vmatpush1.msra.mxu0 %v491
    %1192 = vmatprep.subr.mxu0 %v495
    %1193 = vmatpush1.msra.mxu0 %v494
    %1194 = vmatprep.subr.mxu0 0.0
    %1195 = vmatpush1.msra.mxu0 0.0
    %1196 = vmatprep.subr.mxu0 0.0
    %1197 = vmatpush1.msra.mxu0 0.0
    %1198 = vmatprep.subr.mxu0 0.0
    %1199 = vmatpush1.msra.mxu0 0.0
    %1200 = vmatprep.subr.mxu0 0.0
    %1201 = vmatpush1.msra.mxu0 0.0
    %1202 = vmatprep.subr.mxu0 0.0
    %1203 = vmatpush1.msra.mxu0 0.0
    %1204 = vmatprep.subr.mxu0 0.0
    %1205 = vmatpush1.msra.mxu0 0.0
    %1206 = vmatprep.subr.mxu0 0.0
    %1207 = vmatpush1.msra.mxu0 0.0
    %1208 = vmatprep.subr.mxu0 0.0
    %1209 = vmatpush1.msra.mxu0 0.0
    %1210 = vmatprep.subr.mxu0 0.0
    %1211 = vmatpush1.msra.mxu0 0.0
    %1212 = vmatprep.subr.mxu0 0.0
    %1213 = vmatpush1.msra.mxu0 0.0
    %1214 = vmatprep.subr.mxu0 0.0
    %1215 = vmatpush1.msra.mxu0 0.0
    %1216 = vmatprep.subr.mxu0 0.0
    %1217 = vmatpush1.msra.mxu0 0.0
    %1218 = vmatprep.subr.mxu0 0.0
    %1219 = vmatpush1.msra.mxu0 0.0
    %1220 = vmatprep.subr.mxu0 0.0
    %1221 = vmatpush1.msra.mxu0 0.0
    %1222 = vmatprep.subr.mxu0 0.0
    %1223 = vmatpush1.msra.mxu0 0.0
    %1224 = vmatprep.subr.mxu0 0.0
    %1225 = vmatpush1.msra.mxu0 0.0
    %1226 = vmatprep.mubr.f32.mxu0 0.0
    %1227 = vmatmul.mubr.f32.gmra.mrb[0].mxu0 %v1161
    %v1228 = vpop.f32.mrb[0].mxu0
    %v1229 = vadd.f32 %v502, %v1228
    %v1230 = vpop.f32.mrb[0].mxu0
    %v1231 = vadd.f32 %v506, %v1230
    %1232 = vdwg.mxu0
    %1233 = vmatprep.subr.mxu0 0.0
    %1234 = vmatpush1.msra.mxu0 %v451
    %1235 = vmatprep.subr.mxu0 0.0
    %1236 = vmatpush1.msra.mxu0 %v454
    %1237 = vmatprep.subr.mxu0 0.0
    %1238 = vmatpush1.msra.mxu0 %v457
    %1239 = vmatprep.subr.mxu0 0.0
    %1240 = vmatpush1.msra.mxu0 %v460
    %1241 = vmatprep.subr.mxu0 0.0
    %1242 = vmatpush1.msra.mxu0 %v463
    %1243 = vmatprep.subr.mxu0 0.0
    %1244 = vmatpush1.msra.mxu0 %v466
    %1245 = vmatprep.subr.mxu0 0.0
    %1246 = vmatpush1.msra.mxu0 %v469
    %1247 = vmatprep.subr.mxu0 0.0
    %1248 = vmatpush1.msra.mxu0 %v472
    %1249 = vmatprep.subr.mxu0 0.0
    %1250 = vmatpush1.msra.mxu0 %v475
    %1251 = vmatprep.subr.mxu0 0.0
    %1252 = vmatpush1.msra.mxu0 %v478
    %1253 = vmatprep.subr.mxu0 0.0
    %1254 = vmatpush1.msra.mxu0 %v481
    %1255 = vmatprep.subr.mxu0 0.0
    %1256 = vmatpush1.msra.mxu0 %v484
    %1257 = vmatprep.subr.mxu0 0.0
    %1258 = vmatpush1.msra.mxu0 %v487
    %1259 = vmatprep.subr.mxu0 0.0
    %1260 = vmatpush1.msra.mxu0 %v490
    %1261 = vmatprep.subr.mxu0 0.0
    %1262 = vmatpush1.msra.mxu0 %v493
    %1263 = vmatprep.subr.mxu0 0.0
    %1264 = vmatpush1.msra.mxu0 %v496
    %1265 = vmatprep.subr.mxu0 0.0
    %1266 = vmatpush1.msra.mxu0 0.0
    %1267 = vmatprep.subr.mxu0 0.0
    %1268 = vmatpush1.msra.mxu0 0.0
    %1269 = vmatprep.subr.mxu0 0.0
    %1270 = vmatpush1.msra.mxu0 0.0
    %1271 = vmatprep.subr.mxu0 0.0
    %1272 = vmatpush1.msra.mxu0 0.0
    %1273 = vmatprep.subr.mxu0 0.0
    %1274 = vmatpush1.msra.mxu0 0.0
    %1275 = vmatprep.subr.mxu0 0.0
    %1276 = vmatpush1.msra.mxu0 0.0
    %1277 = vmatprep.subr.mxu0 0.0
    %1278 = vmatpush1.msra.mxu0 0.0
    %1279 = vmatprep.subr.mxu0 0.0
    %1280 = vmatpush1.msra.mxu0 0.0
    %1281 = vmatprep.subr.mxu0 0.0
    %1282 = vmatpush1.msra.mxu0 0.0
    %1283 = vmatprep.subr.mxu0 0.0
    %1284 = vmatpush1.msra.mxu0 0.0
    %1285 = vmatprep.subr.mxu0 0.0
    %1286 = vmatpush1.msra.mxu0 0.0
    %1287 = vmatprep.subr.mxu0 0.0
    %1288 = vmatpush1.msra.mxu0 0.0
    %1289 = vmatprep.subr.mxu0 0.0
    %1290 = vmatpush1.msra.mxu0 0.0
    %1291 = vmatprep.subr.mxu0 0.0
    %1292 = vmatpush1.msra.mxu0 0.0
    %1293 = vmatprep.subr.mxu0 0.0
    %1294 = vmatpush1.msra.mxu0 0.0
    %1295 = vmatprep.subr.mxu0 0.0
    %1296 = vmatpush1.msra.mxu0 0.0
    %1297 = vmatprep.mubr.f32.mxu0 0.0
    %1298 = vmatmul.mubr.f32.gmra.mrb[0].mxu0 %v1161
    %v1299 = vpop.f32.mrb[0].mxu0
    %v1300 = vadd.f32 %v510, %v1299
    %v1301 = vpop.f32.mrb[0].mxu0
    %1302 = vdwg.mxu0
    %v1303 = vadd.f32 %v322, %v1229
    %v1304 = vxor.u32 %v1303, 2147483648
    %v1305 = vmul.f32 %v1304, 1.442695
    %v1306 = vpow.pop %v1305
    %v1307 = vadd.f32 %v1306, 1.0
    %v1308 = vrcp.pop %v1307
    %v1309 = vmul.f32 1.0, %v1308
    %v1310 = vadd.f32 %v324, %v1231
    %v1311 = vxor.u32 %v1310, 2147483648
    %v1312 = vmul.f32 %v1311, 1.442695
    %v1313 = vpow.pop %v1312
    %v1314 = vadd.f32 %v1313, 1.0
    %v1315 = vrcp.pop %v1314
    %v1316 = vmul.f32 1.0, %v1315
    %v1317 = vmul.f32 %v1309, %v1300
    %v1318 = vadd.f32 %v431, %v1317
    %v1319 = vtanh.pop %v1318
    %v1320 = vsub.f32 1.0, %v1316
    %v1321 = vmul.f32 %v1320, %v1319
    %v1322 = vmul.f32 %v1316, %v1161
    %v1323 = vadd.f32 %v1321, %v1322
    %1324 = vmatprep.subr.mxu0 %v450
    %1325 = vmatpush1.msra.mxu0 %v449
    %1326 = vmatprep.subr.mxu0 %v453
    %1327 = vmatpush1.msra.mxu0 %v452
    %1328 = vmatprep.subr.mxu0 %v456
    %1329 = vmatpush1.msra.mxu0 %v455
    %1330 = vmatprep.subr.mxu0 %v459
    %1331 = vmatpush1.msra.mxu0 %v458
    %1332 = vmatprep.subr.mxu0 %v462
    %1333 = vmatpush1.msra.mxu0 %v461
    %1334 = vmatprep.subr.mxu0 %v465
    %1335 = vmatpush1.msra.mxu0 %v464
    %1336 = vmatprep.subr.mxu0 %v468
    %1337 = vmatpush1.msra.mxu0 %v467
    %1338 = vmatprep.subr.mxu0 %v471
    %1339 = vmatpush1.msra.mxu0 %v470
    %1340 = vmatprep.subr.mxu0 %v474
    %1341 = vmatpush1.msra.mxu0 %v473
    %1342 = vmatprep.subr.mxu0 %v477
    %1343 = vmatpush1.msra.mxu0 %v476
    %1344 = vmatprep.subr.mxu0 %v480
    %1345 = vmatpush1.msra.mxu0 %v479
    %1346 = vmatprep.subr.mxu0 %v483
    %1347 = vmatpush1.msra.mxu0 %v482
    %1348 = vmatprep.subr.mxu0 %v486
    %1349 = vmatpush1.msra.mxu0 %v485
    %1350 = vmatprep.subr.mxu0 %v489
    %1351 = vmatpush1.msra.mxu0 %v488
    %1352 = vmatprep.subr.mxu0 %v492
    %1353 = vmatpush1.msra.mxu0 %v491
    %1354 = vmatprep.subr.mxu0 %v495
    %1355 = vmatpush1.msra.mxu0 %v494
    %1356 = vmatprep.subr.mxu0 0.0
    %1357 = vmatpush1.msra.mxu0 0.0
    %1358 = vmatprep.subr.mxu0 0.0
    %1359 = vmatpush1.msra.mxu0 0.0
    %1360 = vmatprep.subr.mxu0 0.0
    %1361 = vmatpush1.msra.mxu0 0.0
    %1362 = vmatprep.subr.mxu0 0.0
    %1363 = vmatpush1.msra.mxu0 0.0
    %1364 = vmatprep.subr.mxu0 0.0
    %1365 = vmatpush1.msra.mxu0 0.0
    %1366 = vmatprep.subr.mxu0 0.0
    %1367 = vmatpush1.msra.mxu0 0.0
    %1368 = vmatprep.subr.mxu0 0.0
    %1369 = vmatpush1.msra.mxu0 0.0
    %1370 = vmatprep.subr.mxu0 0.0
    %1371 = vmatpush1.msra.mxu0 0.0
    %1372 = vmatprep.subr.mxu0 0.0
    %1373 = vmatpush1.msra.mxu0 0.0
    %1374 = vmatprep.subr.mxu0 0.0
    %1375 = vmatpush1.msra.mxu0 0.0
    %1376 = vmatprep.subr.mxu0 0.0
    %1377 = vmatpush1.msra.mxu0 0.0
    %1378 = vmatprep.subr.mxu0 0.0
    %1379 = vmatpush1.msra.mxu0 0.0
    %1380 = vmatprep.subr.mxu0 0.0
    %1381 = vmatpush1.msra.mxu0 0.0
    %1382 = vmatprep.subr.mxu0 0.0
    %1383 = vmatpush1.msra.mxu0 0.0
    %1384 = vmatprep.subr.mxu0 0.0
    %1385 = vmatpush1.msra.mxu0 0.0
    %1386 = vmatprep.subr.mxu0 0.0
    %1387 = vmatpush1.msra.mxu0 0.0
    %1388 = vmatprep.mubr.f32.mxu0 0.0
    %1389 = vmatmul.mubr.f32.gmra.mrb[0].mxu0 %v1323
    %v1390 = vpop.f32.mrb[0].mxu0
    %v1391 = vadd.f32 %v502, %v1390
    %v1392 = vpop.f32.mrb[0].mxu0
    %v1393 = vadd.f32 %v506, %v1392
    %1394 = vdwg.mxu0
    %1395 = vmatprep.subr.mxu0 0.0
    %1396 = vmatpush1.msra.mxu0 %v451
    %1397 = vmatprep.subr.mxu0 0.0
    %1398 = vmatpush1.msra.mxu0 %v454
    %1399 = vmatprep.subr.mxu0 0.0
    %1400 = vmatpush1.msra.mxu0 %v457
    %1401 = vmatprep.subr.mxu0 0.0
    %1402 = vmatpush1.msra.mxu0 %v460
    %1403 = vmatprep.subr.mxu0 0.0
    %1404 = vmatpush1.msra.mxu0 %v463
    %1405 = vmatprep.subr.mxu0 0.0
    %1406 = vmatpush1.msra.mxu0 %v466
    %1407 = vmatprep.subr.mxu0 0.0
    %1408 = vmatpush1.msra.mxu0 %v469
    %1409 = vmatprep.subr.mxu0 0.0
    %1410 = vmatpush1.msra.mxu0 %v472
    %1411 = vmatprep.subr.mxu0 0.0
    %1412 = vmatpush1.msra.mxu0 %v475
    %1413 = vmatprep.subr.mxu0 0.0
    %1414 = vmatpush1.msra.mxu0 %v478
    %1415 = vmatprep.subr.mxu0 0.0
    %1416 = vmatpush1.msra.mxu0 %v481
    %1417 = vmatprep.subr.mxu0 0.0
    %1418 = vmatpush1.msra.mxu0 %v484
    %1419 = vmatprep.subr.mxu0 0.0
    %1420 = vmatpush1.msra.mxu0 %v487
    %1421 = vmatprep.subr.mxu0 0.0
    %1422 = vmatpush1.msra.mxu0 %v490
    %1423 = vmatprep.subr.mxu0 0.0
    %1424 = vmatpush1.msra.mxu0 %v493
    %1425 = vmatprep.subr.mxu0 0.0
    %1426 = vmatpush1.msra.mxu0 %v496
    %1427 = vmatprep.subr.mxu0 0.0
    %1428 = vmatpush1.msra.mxu0 0.0
    %1429 = vmatprep.subr.mxu0 0.0
    %1430 = vmatpush1.msra.mxu0 0.0
    %1431 = vmatprep.subr.mxu0 0.0
    %1432 = vmatpush1.msra.mxu0 0.0
    %1433 = vmatprep.subr.mxu0 0.0
    %1434 = vmatpush1.msra.mxu0 0.0
    %1435 = vmatprep.subr.mxu0 0.0
    %1436 = vmatpush1.msra.mxu0 0.0
    %1437 = vmatprep.subr.mxu0 0.0
    %1438 = vmatpush1.msra.mxu0 0.0
    %1439 = vmatprep.subr.mxu0 0.0
    %1440 = vmatpush1.msra.mxu0 0.0
    %1441 = vmatprep.subr.mxu0 0.0
    %1442 = vmatpush1.msra.mxu0 0.0
    %1443 = vmatprep.subr.mxu0 0.0
    %1444 = vmatpush1.msra.mxu0 0.0
    %1445 = vmatprep.subr.mxu0 0.0
    %1446 = vmatpush1.msra.mxu0 0.0
    %1447 = vmatprep.subr.mxu0 0.0
    %1448 = vmatpush1.msra.mxu0 0.0
    %1449 = vmatprep.subr.mxu0 0.0
    %1450 = vmatpush1.msra.mxu0 0.0
    %1451 = vmatprep.subr.mxu0 0.0
    %1452 = vmatpush1.msra.mxu0 0.0
    %1453 = vmatprep.subr.mxu0 0.0
    %1454 = vmatpush1.msra.mxu0 0.0
    %1455 = vmatprep.subr.mxu0 0.0
    %1456 = vmatpush1.msra.mxu0 0.0
    %1457 = vmatprep.subr.mxu0 0.0
    %1458 = vmatpush1.msra.mxu0 0.0
    %1459 = vmatprep.mubr.f32.mxu0 0.0
    %1460 = vmatmul.mubr.f32.gmra.mrb[0].mxu0 %v1323
    %v1461 = vpop.f32.mrb[0].mxu0
    %v1462 = vadd.f32 %v510, %v1461
    %v1463 = vpop.f32.mrb[0].mxu0
    %1464 = vdwg.mxu0
    %v1465 = vadd.f32 %v328, %v1391
    %v1466 = vxor.u32 %v1465, 2147483648
    %v1467 = vmul.f32 %v1466, 1.442695
    %v1468 = vpow.pop %v1467
    %v1469 = vadd.f32 %v1468, 1.0
    %v1470 = vrcp.pop %v1469
    %v1471 = vmul.f32 1.0, %v1470
    %v1472 = vadd.f32 %v330, %v1393
    %v1473 = vxor.u32 %v1472, 2147483648
    %v1474 = vmul.f32 %v1473, 1.442695
    %v1475 = vpow.pop %v1474
    %v1476 = vadd.f32 %v1475, 1.0
    %v1477 = vrcp.pop %v1476
    %v1478 = vmul.f32 1.0, %v1477
    %v1479 = vmul.f32 %v1471, %v1462
    %v1480 = vadd.f32 %v436, %v1479
    %v1481 = vtanh.pop %v1480
    %v1482 = vsub.f32 1.0, %v1478
    %v1483 = vmul.f32 %v1482, %v1481
    %v1484 = vmul.f32 %v1478, %v1323
    %v1485 = vadd.f32 %v1483, %v1484
    %1486 = vmatprep.subr.mxu0 %v450
    %1487 = vmatpush1.msra.mxu0 %v449
    %1488 = vmatprep.subr.mxu0 %v453
    %1489 = vmatpush1.msra.mxu0 %v452
    %1490 = vmatprep.subr.mxu0 %v456
    %1491 = vmatpush1.msra.mxu0 %v455
    %1492 = vmatprep.subr.mxu0 %v459
    %1493 = vmatpush1.msra.mxu0 %v458
    %1494 = vmatprep.subr.mxu0 %v462
    %1495 = vmatpush1.msra.mxu0 %v461
    %1496 = vmatprep.subr.mxu0 %v465
    %1497 = vmatpush1.msra.mxu0 %v464
    %1498 = vmatprep.subr.mxu0 %v468
    %1499 = vmatpush1.msra.mxu0 %v467
    %1500 = vmatprep.subr.mxu0 %v471
    %1501 = vmatpush1.msra.mxu0 %v470
    %1502 = vmatprep.subr.mxu0 %v474
    %1503 = vmatpush1.msra.mxu0 %v473
    %1504 = vmatprep.subr.mxu0 %v477
    %1505 = vmatpush1.msra.mxu0 %v476
    %1506 = vmatprep.subr.mxu0 %v480
    %1507 = vmatpush1.msra.mxu0 %v479
    %1508 = vmatprep.subr.mxu0 %v483
    %1509 = vmatpush1.msra.mxu0 %v482
    %1510 = vmatprep.subr.mxu0 %v486
    %1511 = vmatpush1.msra.mxu0 %v485
    %1512 = vmatprep.subr.mxu0 %v489
    %1513 = vmatpush1.msra.mxu0 %v488
    %1514 = vmatprep.subr.mxu0 %v492
    %1515 = vmatpush1.msra.mxu0 %v491
    %1516 = vmatprep.subr.mxu0 %v495
    %1517 = vmatpush1.msra.mxu0 %v494
    %1518 = vmatprep.subr.mxu0 0.0
    %1519 = vmatpush1.msra.mxu0 0.0
    %1520 = vmatprep.subr.mxu0 0.0
    %1521 = vmatpush1.msra.mxu0 0.0
    %1522 = vmatprep.subr.mxu0 0.0
    %1523 = vmatpush1.msra.mxu0 0.0
    %1524 = vmatprep.subr.mxu0 0.0
    %1525 = vmatpush1.msra.mxu0 0.0
    %1526 = vmatprep.subr.mxu0 0.0
    %1527 = vmatpush1.msra.mxu0 0.0
    %1528 = vmatprep.subr.mxu0 0.0
    %1529 = vmatpush1.msra.mxu0 0.0
    %1530 = vmatprep.subr.mxu0 0.0
    %1531 = vmatpush1.msra.mxu0 0.0
    %1532 = vmatprep.subr.mxu0 0.0
    %1533 = vmatpush1.msra.mxu0 0.0
    %1534 = vmatprep.subr.mxu0 0.0
    %1535 = vmatpush1.msra.mxu0 0.0
    %1536 = vmatprep.subr.mxu0 0.0
    %1537 = vmatpush1.msra.mxu0 0.0
    %1538 = vmatprep.subr.mxu0 0.0
    %1539 = vmatpush1.msra.mxu0 0.0
    %1540 = vmatprep.subr.mxu0 0.0
    %1541 = vmatpush1.msra.mxu0 0.0
    %1542 = vmatprep.subr.mxu0 0.0
    %1543 = vmatpush1.msra.mxu0 0.0
    %1544 = vmatprep.subr.mxu0 0.0
    %1545 = vmatpush1.msra.mxu0 0.0
    %1546 = vmatprep.subr.mxu0 0.0
    %1547 = vmatpush1.msra.mxu0 0.0
    %1548 = vmatprep.subr.mxu0 0.0
    %1549 = vmatpush1.msra.mxu0 0.0
    %1550 = vmatprep.mubr.f32.mxu0 0.0
    %1551 = vmatmul.mubr.f32.gmra.mrb[0].mxu0 %v1485
    %v1552 = vpop.f32.mrb[0].mxu0
    %v1553 = vadd.f32 %v502, %v1552
    %v1554 = vpop.f32.mrb[0].mxu0
    %v1555 = vadd.f32 %v506, %v1554
    %1556 = vdwg.mxu0
    %1557 = vmatprep.subr.mxu0 0.0
    %1558 = vmatpush1.msra.mxu0 %v451
    %1559 = vmatprep.subr.mxu0 0.0
    %1560 = vmatpush1.msra.mxu0 %v454
    %1561 = vmatprep.subr.mxu0 0.0
    %1562 = vmatpush1.msra.mxu0 %v457
    %1563 = vmatprep.subr.mxu0 0.0
    %1564 = vmatpush1.msra.mxu0 %v460
    %1565 = vmatprep.subr.mxu0 0.0
    %1566 = vmatpush1.msra.mxu0 %v463
    %1567 = vmatprep.subr.mxu0 0.0
    %1568 = vmatpush1.msra.mxu0 %v466
    %1569 = vmatprep.subr.mxu0 0.0
    %1570 = vmatpush1.msra.mxu0 %v469
    %1571 = vmatprep.subr.mxu0 0.0
    %1572 = vmatpush1.msra.mxu0 %v472
    %1573 = vmatprep.subr.mxu0 0.0
    %1574 = vmatpush1.msra.mxu0 %v475
    %1575 = vmatprep.subr.mxu0 0.0
    %1576 = vmatpush1.msra.mxu0 %v478
    %1577 = vmatprep.subr.mxu0 0.0
    %1578 = vmatpush1.msra.mxu0 %v481
    %1579 = vmatprep.subr.mxu0 0.0
    %1580 = vmatpush1.msra.mxu0 %v484
    %1581 = vmatprep.subr.mxu0 0.0
    %1582 = vmatpush1.msra.mxu0 %v487
    %1583 = vmatprep.subr.mxu0 0.0
    %1584 = vmatpush1.msra.mxu0 %v490
    %1585 = vmatprep.subr.mxu0 0.0
    %1586 = vmatpush1.msra.mxu0 %v493
    %1587 = vmatprep.subr.mxu0 0.0
    %1588 = vmatpush1.msra.mxu0 %v496
    %1589 = vmatprep.subr.mxu0 0.0
    %1590 = vmatpush1.msra.mxu0 0.0
    %1591 = vmatprep.subr.mxu0 0.0
    %1592 = vmatpush1.msra.mxu0 0.0
    %1593 = vmatprep.subr.mxu0 0.0
    %1594 = vmatpush1.msra.mxu0 0.0
    %1595 = vmatprep.subr.mxu0 0.0
    %1596 = vmatpush1.msra.mxu0 0.0
    %1597 = vmatprep.subr.mxu0 0.0
    %1598 = vmatpush1.msra.mxu0 0.0
    %1599 = vmatprep.subr.mxu0 0.0
    %1600 = vmatpush1.msra.mxu0 0.0
    %1601 = vmatprep.subr.mxu0 0.0
    %1602 = vmatpush1.msra.mxu0 0.0
    %1603 = vmatprep.subr.mxu0 0.0
    %1604 = vmatpush1.msra.mxu0 0.0
    %1605 = vmatprep.subr.mxu0 0.0
    %1606 = vmatpush1.msra.mxu0 0.0
    %1607 = vmatprep.subr.mxu0 0.0
    %1608 = vmatpush1.msra.mxu0 0.0
    %1609 = vmatprep.subr.mxu0 0.0
    %1610 = vmatpush1.msra.mxu0 0.0
    %1611 = vmatprep.subr.mxu0 0.0
    %1612 = vmatpush1.msra.mxu0 0.0
    %1613 = vmatprep.subr.mxu0 0.0
    %1614 = vmatpush1.msra.mxu0 0.0
    %1615 = vmatprep.subr.mxu0 0.0
    %1616 = vmatpush1.msra.mxu0 0.0
    %1617 = vmatprep.subr.mxu0 0.0
    %1618 = vmatpush1.msra.mxu0 0.0
    %1619 = vmatprep.subr.mxu0 0.0
    %1620 = vmatpush1.msra.mxu0 0.0
    %1621 = vmatprep.mubr.f32.mxu0 0.0
    %1622 = vmatmul.mubr.f32.gmra.mrb[0].mxu0 %v1485
    %v1623 = vpop.f32.mrb[0].mxu0
    %v1624 = vadd.f32 %v510, %v1623
    %v1625 = vpop.f32.mrb[0].mxu0
    %1626 = vdwg.mxu0
    %v1627 = vadd.f32 %v334, %v1553
    %v1628 = vxor.u32 %v1627, 2147483648
    %v1629 = vmul.f32 %v1628, 1.442695
    %v1630 = vpow.pop %v1629
    %v1631 = vadd.f32 %v1630, 1.0
    %v1632 = vrcp.pop %v1631
    %v1633 = vmul.f32 1.0, %v1632
    %v1634 = vadd.f32 %v336, %v1555
    %v1635 = vxor.u32 %v1634, 2147483648
    %v1636 = vmul.f32 %v1635, 1.442695
    %v1637 = vpow.pop %v1636
    %v1638 = vadd.f32 %v1637, 1.0
    %v1639 = vrcp.pop %v1638
    %v1640 = vmul.f32 1.0, %v1639
    %v1641 = vmul.f32 %v1633, %v1624
    %v1642 = vadd.f32 %v441, %v1641
    %v1643 = vtanh.pop %v1642
    %v1644 = vsub.f32 1.0, %v1640
    %v1645 = vmul.f32 %v1644, %v1643
    %v1646 = vmul.f32 %v1640, %v1485
    %v1647 = vadd.f32 %v1645, %v1646
    %1648 = vmatprep.subr.mxu0 %v450
    %1649 = vmatpush1.msra.mxu0 %v449
    %1650 = vmatprep.subr.mxu0 %v453
    %1651 = vmatpush1.msra.mxu0 %v452
    %1652 = vmatprep.subr.mxu0 %v456
    %1653 = vmatpush1.msra.mxu0 %v455
    %1654 = vmatprep.subr.mxu0 %v459
    %1655 = vmatpush1.msra.mxu0 %v458
    %1656 = vmatprep.subr.mxu0 %v462
    %1657 = vmatpush1.msra.mxu0 %v461
    %1658 = vmatprep.subr.mxu0 %v465
    %1659 = vmatpush1.msra.mxu0 %v464
    %1660 = vmatprep.subr.mxu0 %v468
    %1661 = vmatpush1.msra.mxu0 %v467
    %1662 = vmatprep.subr.mxu0 %v471
    %1663 = vmatpush1.msra.mxu0 %v470
    %1664 = vmatprep.subr.mxu0 %v474
    %1665 = vmatpush1.msra.mxu0 %v473
    %1666 = vmatprep.subr.mxu0 %v477
    %1667 = vmatpush1.msra.mxu0 %v476
    %1668 = vmatprep.subr.mxu0 %v480
    %1669 = vmatpush1.msra.mxu0 %v479
    %1670 = vmatprep.subr.mxu0 %v483
    %1671 = vmatpush1.msra.mxu0 %v482
    %1672 = vmatprep.subr.mxu0 %v486
    %1673 = vmatpush1.msra.mxu0 %v485
    %1674 = vmatprep.subr.mxu0 %v489
    %1675 = vmatpush1.msra.mxu0 %v488
    %1676 = vmatprep.subr.mxu0 %v492
    %1677 = vmatpush1.msra.mxu0 %v491
    %1678 = vmatprep.subr.mxu0 %v495
    %1679 = vmatpush1.msra.mxu0 %v494
    %1680 = vmatprep.subr.mxu0 0.0
    %1681 = vmatpush1.msra.mxu0 0.0
    %1682 = vmatprep.subr.mxu0 0.0
    %1683 = vmatpush1.msra.mxu0 0.0
    %1684 = vmatprep.subr.mxu0 0.0
    %1685 = vmatpush1.msra.mxu0 0.0
    %1686 = vmatprep.subr.mxu0 0.0
    %1687 = vmatpush1.msra.mxu0 0.0
    %1688 = vmatprep.subr.mxu0 0.0
    %1689 = vmatpush1.msra.mxu0 0.0
    %1690 = vmatprep.subr.mxu0 0.0
    %1691 = vmatpush1.msra.mxu0 0.0
    %1692 = vmatprep.subr.mxu0 0.0
    %1693 = vmatpush1.msra.mxu0 0.0
    %1694 = vmatprep.subr.mxu0 0.0
    %1695 = vmatpush1.msra.mxu0 0.0
    %1696 = vmatprep.subr.mxu0 0.0
    %1697 = vmatpush1.msra.mxu0 0.0
    %1698 = vmatprep.subr.mxu0 0.0
    %1699 = vmatpush1.msra.mxu0 0.0
    %1700 = vmatprep.subr.mxu0 0.0
    %1701 = vmatpush1.msra.mxu0 0.0
    %1702 = vmatprep.subr.mxu0 0.0
    %1703 = vmatpush1.msra.mxu0 0.0
    %1704 = vmatprep.subr.mxu0 0.0
    %1705 = vmatpush1.msra.mxu0 0.0
    %1706 = vmatprep.subr.mxu0 0.0
    %1707 = vmatpush1.msra.mxu0 0.0
    %1708 = vmatprep.subr.mxu0 0.0
    %1709 = vmatpush1.msra.mxu0 0.0
    %1710 = vmatprep.subr.mxu0 0.0
    %1711 = vmatpush1.msra.mxu0 0.0
    %1712 = vmatprep.mubr.f32.mxu0 0.0
    %1713 = vmatmul.mubr.f32.gmra.mrb[0].mxu0 %v1647
    %v1714 = vpop.f32.mrb[0].mxu0
    %v1715 = vadd.f32 %v502, %v1714
    %v1716 = vpop.f32.mrb[0].mxu0
    %v1717 = vadd.f32 %v506, %v1716
    %1718 = vdwg.mxu0
    %1719 = vmatprep.subr.mxu0 0.0
    %1720 = vmatpush1.msra.mxu0 %v451
    %1721 = vmatprep.subr.mxu0 0.0
    %1722 = vmatpush1.msra.mxu0 %v454
    %1723 = vmatprep.subr.mxu0 0.0
    %1724 = vmatpush1.msra.mxu0 %v457
    %1725 = vmatprep.subr.mxu0 0.0
    %1726 = vmatpush1.msra.mxu0 %v460
    %1727 = vmatprep.subr.mxu0 0.0
    %1728 = vmatpush1.msra.mxu0 %v463
    %1729 = vmatprep.subr.mxu0 0.0
    %1730 = vmatpush1.msra.mxu0 %v466
    %1731 = vmatprep.subr.mxu0 0.0
    %1732 = vmatpush1.msra.mxu0 %v469
    %1733 = vmatprep.subr.mxu0 0.0
    %1734 = vmatpush1.msra.mxu0 %v472
    %1735 = vmatprep.subr.mxu0 0.0
    %1736 = vmatpush1.msra.mxu0 %v475
    %1737 = vmatprep.subr.mxu0 0.0
    %1738 = vmatpush1.msra.mxu0 %v478
    %1739 = vmatprep.subr.mxu0 0.0
    %1740 = vmatpush1.msra.mxu0 %v481
    %1741 = vmatprep.subr.mxu0 0.0
    %1742 = vmatpush1.msra.mxu0 %v484
    %1743 = vmatprep.subr.mxu0 0.0
    %1744 = vmatpush1.msra.mxu0 %v487
    %1745 = vmatprep.subr.mxu0 0.0
    %1746 = vmatpush1.msra.mxu0 %v490
    %1747 = vmatprep.subr.mxu0 0.0
    %1748 = vmatpush1.msra.mxu0 %v493
    %1749 = vmatprep.subr.mxu0 0.0
    %1750 = vmatpush1.msra.mxu0 %v496
    %1751 = vmatprep.subr.mxu0 0.0
    %1752 = vmatpush1.msra.mxu0 0.0
    %1753 = vmatprep.subr.mxu0 0.0
    %1754 = vmatpush1.msra.mxu0 0.0
    %1755 = vmatprep.subr.mxu0 0.0
    %1756 = vmatpush1.msra.mxu0 0.0
    %1757 = vmatprep.subr.mxu0 0.0
    %1758 = vmatpush1.msra.mxu0 0.0
    %1759 = vmatprep.subr.mxu0 0.0
    %1760 = vmatpush1.msra.mxu0 0.0
    %1761 = vmatprep.subr.mxu0 0.0
    %1762 = vmatpush1.msra.mxu0 0.0
    %1763 = vmatprep.subr.mxu0 0.0
    %1764 = vmatpush1.msra.mxu0 0.0
    %1765 = vmatprep.subr.mxu0 0.0
    %1766 = vmatpush1.msra.mxu0 0.0
    %1767 = vmatprep.subr.mxu0 0.0
    %1768 = vmatpush1.msra.mxu0 0.0
    %1769 = vmatprep.subr.mxu0 0.0
    %1770 = vmatpush1.msra.mxu0 0.0
    %1771 = vmatprep.subr.mxu0 0.0
    %1772 = vmatpush1.msra.mxu0 0.0
    %1773 = vmatprep.subr.mxu0 0.0
    %1774 = vmatpush1.msra.mxu0 0.0
    %1775 = vmatprep.subr.mxu0 0.0
    %1776 = vmatpush1.msra.mxu0 0.0
    %1777 = vmatprep.subr.mxu0 0.0
    %1778 = vmatpush1.msra.mxu0 0.0
    %1779 = vmatprep.subr.mxu0 0.0
    %1780 = vmatpush1.msra.mxu0 0.0
    %1781 = vmatprep.subr.mxu0 0.0
    %1782 = vmatpush1.msra.mxu0 0.0
    %1783 = vmatprep.mubr.f32.mxu0 0.0
    %1784 = vmatmul.mubr.f32.gmra.mrb[0].mxu0 %v1647
    %v1785 = vpop.f32.mrb[0].mxu0
    %v1786 = vadd.f32 %v510, %v1785
    %v1787 = vpop.f32.mrb[0].mxu0
    %1788 = vdwg.mxu0
    %v1789 = vadd.f32 %v340, %v1715
    %v1790 = vxor.u32 %v1789, 2147483648
    %v1791 = vmul.f32 %v1790, 1.442695
    %v1792 = vpow.pop %v1791
    %v1793 = vadd.f32 %v1792, 1.0
    %v1794 = vrcp.pop %v1793
    %v1795 = vmul.f32 1.0, %v1794
    %v1796 = vadd.f32 %v342, %v1717
    %v1797 = vxor.u32 %v1796, 2147483648
    %v1798 = vmul.f32 %v1797, 1.442695
    %v1799 = vpow.pop %v1798
    %v1800 = vadd.f32 %v1799, 1.0
    %v1801 = vrcp.pop %v1800
    %v1802 = vmul.f32 1.0, %v1801
    %v1803 = vmul.f32 %v1795, %v1786
    %v1804 = vadd.f32 %v446, %v1803
    %v1805 = vtanh.pop %v1804
    %v1806 = vsub.f32 1.0, %v1802
    %v1807 = vmul.f32 %v1806, %v1805
    %v1808 = vmul.f32 %v1802, %v1647
    %v1809 = vadd.f32 %v1807, %v1808
    %v1810 = vld [vmem:[#allocation6] sm:$0xff]
    %v1811 = vld [vmem:[#allocation6 + $0x8] sm:$0xff]
    %v1812 = vld [vmem:[#allocation6 + $0x10] sm:$0xff]
    %v1813 = vld [vmem:[#allocation6 + $0x18] sm:$0xff]
    %v1814 = vld [vmem:[#allocation6 + $0x20] sm:$0xff]
    %v1815 = vld [vmem:[#allocation6 + $0x28] sm:$0xff]
    %v1816 = vld [vmem:[#allocation6 + $0x30] sm:$0xff]
    %v1817 = vld [vmem:[#allocation6 + $0x38] sm:$0xff]
    %v1818 = vld [vmem:[#allocation6 + $0x40] sm:$0xff]
    %v1819 = vld [vmem:[#allocation6 + $0x48] sm:$0xff]
    %v1820 = vld [vmem:[#allocation6 + $0x50] sm:$0xff]
    %v1821 = vld [vmem:[#allocation6 + $0x58] sm:$0xff]
    %v1822 = vld [vmem:[#allocation6 + $0x60] sm:$0xff]
    %v1823 = vld [vmem:[#allocation6 + $0x68] sm:$0xff]
    %v1824 = vld [vmem:[#allocation6 + $0x70] sm:$0xff]
    %v1825 = vld [vmem:[#allocation6 + $0x78] sm:$0xff]
    %v1826 = vld [vmem:[#allocation6 + $0x80] sm:$0xff]
    %v1827 = vld [vmem:[#allocation6 + $0x88] sm:$0xff]
    %v1828 = vld [vmem:[#allocation6 + $0x90] sm:$0xff]
    %v1829 = vld [vmem:[#allocation6 + $0x98] sm:$0xff]
    %v1830 = vld [vmem:[#allocation6 + $0xa0] sm:$0xff]
    %v1831 = vld [vmem:[#allocation6 + $0xa8] sm:$0xff]
    %v1832 = vld [vmem:[#allocation6 + $0xb0] sm:$0xff]
    %v1833 = vld [vmem:[#allocation6 + $0xb8] sm:$0xff]
    %v1834 = vld [vmem:[%s7] sm:$0x7]
    %v1836 = vlaneseq
    %v1837 = vshrl.u32 %v1836, 7
    %v1838 = vsub.s32 0, %v1837
    %v1839 = vrot.slane %v1834, %v1838
    %v1840 = vlaneseq
    %v1841 = vshrl.u32 %v1840, 7
    %v1842 = vsub.s32 1, %v1841
    %v1843 = vrot.slane %v1834, %v1842
    %v1844 = vlaneseq
    %v1845 = vshrl.u32 %v1844, 7
    %v1846 = vsub.s32 2, %v1845
    %v1847 = vrot.slane %v1834, %v1846
    %1851 = vmatprep.subr.mxu0 %v1811
    %1852 = vmatpush1.msra.mxu0 %v1810
    %1853 = vmatprep.subr.mxu0 %v1814
    %1854 = vmatpush1.msra.mxu0 %v1813
    %1855 = vmatprep.subr.mxu0 %v1817
    %1856 = vmatpush1.msra.mxu0 %v1816
    %1857 = vmatprep.subr.mxu0 %v1820
    %1858 = vmatpush1.msra.mxu0 %v1819
    %1859 = vmatprep.subr.mxu0 %v1823
    %1860 = vmatpush1.msra.mxu0 %v1822
    %1861 = vmatprep.subr.mxu0 %v1826
    %1862 = vmatpush1.msra.mxu0 %v1825
    %1863 = vmatprep.subr.mxu0 %v1829
    %1864 = vmatpush1.msra.mxu0 %v1828
    %1865 = vmatprep.subr.mxu0 %v1832
    %1866 = vmatpush1.msra.mxu0 %v1831
    %1867 = vmatprep.subr.mxu0 0.0
    %1868 = vmatpush1.msra.mxu0 0.0
    %1869 = vmatprep.subr.mxu0 0.0
    %1870 = vmatpush1.msra.mxu0 0.0
    %1871 = vmatprep.subr.mxu0 0.0
    %1872 = vmatpush1.msra.mxu0 0.0
    %1873 = vmatprep.subr.mxu0 0.0
    %1874 = vmatpush1.msra.mxu0 0.0
    %1875 = vmatprep.subr.mxu0 0.0
    %1876 = vmatpush1.msra.mxu0 0.0
    %1877 = vmatprep.subr.mxu0 0.0
    %1878 = vmatpush1.msra.mxu0 0.0
    %1879 = vmatprep.subr.mxu0 0.0
    %1880 = vmatpush1.msra.mxu0 0.0
    %1881 = vmatprep.subr.mxu0 0.0
    %1882 = vmatpush1.msra.mxu0 0.0
    %1883 = vmatprep.subr.mxu0 0.0
    %1884 = vmatpush1.msra.mxu0 0.0
    %1885 = vmatprep.subr.mxu0 0.0
    %1886 = vmatpush1.msra.mxu0 0.0
    %1887 = vmatprep.subr.mxu0 0.0
    %1888 = vmatpush1.msra.mxu0 0.0
    %1889 = vmatprep.subr.mxu0 0.0
    %1890 = vmatpush1.msra.mxu0 0.0
    %1891 = vmatprep.subr.mxu0 0.0
    %1892 = vmatpush1.msra.mxu0 0.0
    %1893 = vmatprep.subr.mxu0 0.0
    %1894 = vmatpush1.msra.mxu0 0.0
    %1895 = vmatprep.subr.mxu0 0.0
    %1896 = vmatpush1.msra.mxu0 0.0
    %1897 = vmatprep.subr.mxu0 0.0
    %1898 = vmatpush1.msra.mxu0 0.0
    %1899 = vmatprep.subr.mxu0 0.0
    %1900 = vmatpush1.msra.mxu0 0.0
    %1901 = vmatprep.subr.mxu0 0.0
    %1902 = vmatpush1.msra.mxu0 0.0
    %1903 = vmatprep.subr.mxu0 0.0
    %1904 = vmatpush1.msra.mxu0 0.0
    %1905 = vmatprep.subr.mxu0 0.0
    %1906 = vmatpush1.msra.mxu0 0.0
    %1907 = vmatprep.subr.mxu0 0.0
    %1908 = vmatpush1.msra.mxu0 0.0
    %1909 = vmatprep.subr.mxu0 0.0
    %1910 = vmatpush1.msra.mxu0 0.0
    %1911 = vmatprep.subr.mxu0 0.0
    %1912 = vmatpush1.msra.mxu0 0.0
    %1913 = vmatprep.subr.mxu0 0.0
    %1914 = vmatpush1.msra.mxu0 0.0
    %1915 = vmatprep.mubr.f32.mxu0 0.0
    %1916 = vmatmul.mubr.f32.gmra.mrb[0].mxu0 %v208
    %v1917 = vpop.f32.mrb[0].mxu0
    %v1918 = vadd.f32 %v1839, %v1917
    %v1919 = vpop.f32.mrb[0].mxu0
    %v1920 = vadd.f32 %v1843, %v1919
    %1921 = vmatprep.mubr.f32.mxu0 0.0
    %1922 = vmatmul.mubr.f32.gmra.mrb[0].mxu0 %v211
    %v1923 = vpop.f32.mrb[0].mxu0
    %v1924 = vadd.f32 %v1839, %v1923
    %v1925 = vpop.f32.mrb[0].mxu0
    %v1926 = vadd.f32 %v1843, %v1925
    %1927 = vmatprep.mubr.f32.mxu0 0.0
    %1928 = vmatmul.mubr.f32.gmra.mrb[0].mxu0 %v214
    %v1929 = vpop.f32.mrb[0].mxu0
    %v1930 = vadd.f32 %v1839, %v1929
    %v1931 = vpop.f32.mrb[0].mxu0
    %v1932 = vadd.f32 %v1843, %v1931
    %1933 = vmatprep.mubr.f32.mxu0 0.0
    %1934 = vmatmul.mubr.f32.gmra.mrb[0].mxu0 %v217
    %v1935 = vpop.f32.mrb[0].mxu0
    %v1936 = vadd.f32 %v1839, %v1935
    %v1937 = vpop.f32.mrb[0].mxu0
    %v1938 = vadd.f32 %v1843, %v1937
    %1939 = vmatprep.mubr.f32.mxu0 0.0
    %1940 = vmatmul.mubr.f32.gmra.mrb[0].mxu0 %v220
    %v1941 = vpop.f32.mrb[0].mxu0
    %v1942 = vadd.f32 %v1839, %v1941
    %v1943 = vpop.f32.mrb[0].mxu0
    %v1944 = vadd.f32 %v1843, %v1943
    %1945 = vmatprep.mubr.f32.mxu0 0.0
    %1946 = vmatmul.mubr.f32.gmra.mrb[0].mxu0 %v223
    %v1947 = vpop.f32.mrb[0].mxu0
    %v1948 = vadd.f32 %v1839, %v1947
    %v1949 = vpop.f32.mrb[0].mxu0
    %v1950 = vadd.f32 %v1843, %v1949
    %1951 = vmatprep.mubr.f32.mxu0 0.0
    %1952 = vmatmul.mubr.f32.gmra.mrb[0].mxu0 %v226
    %v1953 = vpop.f32.mrb[0].mxu0
    %v1954 = vadd.f32 %v1839, %v1953
    %v1955 = vpop.f32.mrb[0].mxu0
    %v1956 = vadd.f32 %v1843, %v1955
    %1957 = vmatprep.mubr.f32.mxu0 0.0
    %1958 = vmatmul.mubr.f32.gmra.mrb[0].mxu0 %v229
    %v1959 = vpop.f32.mrb[0].mxu0
    %v1960 = vadd.f32 %v1839, %v1959
    %v1961 = vpop.f32.mrb[0].mxu0
    %v1962 = vadd.f32 %v1843, %v1961
    %1963 = vdwg.mxu0
    %1964 = vmatprep.subr.mxu0 0.0
    %1965 = vmatpush1.msra.mxu0 %v1812
    %1966 = vmatprep.subr.mxu0 0.0
    %1967 = vmatpush1.msra.mxu0 %v1815
    %1968 = vmatprep.subr.mxu0 0.0
    %1969 = vmatpush1.msra.mxu0 %v1818
    %1970 = vmatprep.subr.mxu0 0.0
    %1971 = vmatpush1.msra.mxu0 %v1821
    %1972 = vmatprep.subr.mxu0 0.0
    %1973 = vmatpush1.msra.mxu0 %v1824
    %1974 = vmatprep.subr.mxu0 0.0
    %1975 = vmatpush1.msra.mxu0 %v1827
    %1976 = vmatprep.subr.mxu0 0.0
    %1977 = vmatpush1.msra.mxu0 %v1830
    %1978 = vmatprep.subr.mxu0 0.0
    %1979 = vmatpush1.msra.mxu0 %v1833
    %1980 = vmatprep.subr.mxu0 0.0
    %1981 = vmatpush1.msra.mxu0 0.0
    %1982 = vmatprep.subr.mxu0 0.0
    %1983 = vmatpush1.msra.mxu0 0.0
    %1984 = vmatprep.subr.mxu0 0.0
    %1985 = vmatpush1.msra.mxu0 0.0
    %1986 = vmatprep.subr.mxu0 0.0
    %1987 = vmatpush1.msra.mxu0 0.0
    %1988 = vmatprep.subr.mxu0 0.0
    %1989 = vmatpush1.msra.mxu0 0.0
    %1990 = vmatprep.subr.mxu0 0.0
    %1991 = vmatpush1.msra.mxu0 0.0
    %1992 = vmatprep.subr.mxu0 0.0
    %1993 = vmatpush1.msra.mxu0 0.0
    %1994 = vmatprep.subr.mxu0 0.0
    %1995 = vmatpush1.msra.mxu0 0.0
    %1996 = vmatprep.subr.mxu0 0.0
    %1997 = vmatpush1.msra.mxu0 0.0
    %1998 = vmatprep.subr.mxu0 0.0
    %1999 = vmatpush1.msra.mxu0 0.0
    %2000 = vmatprep.subr.mxu0 0.0
    %2001 = vmatpush1.msra.mxu0 0.0
    %2002 = vmatprep.subr.mxu0 0.0
    %2003 = vmatpush1.msra.mxu0 0.0
    %2004 = vmatprep.subr.mxu0 0.0
    %2005 = vmatpush1.msra.mxu0 0.0
    %2006 = vmatprep.subr.mxu0 0.0
    %2007 = vmatpush1.msra.mxu0 0.0
    %2008 = vmatprep.subr.mxu0 0.0
    %2009 = vmatpush1.msra.mxu0 0.0
    %2010 = vmatprep.subr.mxu0 0.0
    %2011 = vmatpush1.msra.mxu0 0.0
    %2012 = vmatprep.subr.mxu0 0.0
    %2013 = vmatpush1.msra.mxu0 0.0
    %2014 = vmatprep.subr.mxu0 0.0
    %2015 = vmatpush1.msra.mxu0 0.0
    %2016 = vmatprep.subr.mxu0 0.0
    %2017 = vmatpush1.msra.mxu0 0.0
    %2018 = vmatprep.subr.mxu0 0.0
    %2019 = vmatpush1.msra.mxu0 0.0
    %2020 = vmatprep.subr.mxu0 0.0
    %2021 = vmatpush1.msra.mxu0 0.0
    %2022 = vmatprep.subr.mxu0 0.0
    %2023 = vmatpush1.msra.mxu0 0.0
    %2024 = vmatprep.subr.mxu0 0.0
    %2025 = vmatpush1.msra.mxu0 0.0
    %2026 = vmatprep.subr.mxu0 0.0
    %2027 = vmatpush1.msra.mxu0 0.0
    %2028 = vmatprep.mubr.f32.mxu0 0.0
    %2029 = vmatmul.mubr.f32.gmra.mrb[0].mxu0 %v208
    %v2030 = vpop.f32.mrb[0].mxu0
    %v2031 = vadd.f32 %v1847, %v2030
    %v2032 = vpop.f32.mrb[0].mxu0
    %2033 = vmatprep.mubr.f32.mxu0 0.0
    %2034 = vmatmul.mubr.f32.gmra.mrb[0].mxu0 %v211
    %v2035 = vpop.f32.mrb[0].mxu0
    %v2036 = vadd.f32 %v1847, %v2035
    %v2037 = vpop.f32.mrb[0].mxu0
    %2038 = vmatprep.mubr.f32.mxu0 0.0
    %2039 = vmatmul.mubr.f32.gmra.mrb[0].mxu0 %v214
    %v2040 = vpop.f32.mrb[0].mxu0
    %v2041 = vadd.f32 %v1847, %v2040
    %v2042 = vpop.f32.mrb[0].mxu0
    %2043 = vmatprep.mubr.f32.mxu0 0.0
    %2044 = vmatmul.mubr.f32.gmra.mrb[0].mxu0 %v217
    %v2045 = vpop.f32.mrb[0].mxu0
    %v2046 = vadd.f32 %v1847, %v2045
    %v2047 = vpop.f32.mrb[0].mxu0
    %2048 = vmatprep.mubr.f32.mxu0 0.0
    %2049 = vmatmul.mubr.f32.gmra.mrb[0].mxu0 %v220
    %v2050 = vpop.f32.mrb[0].mxu0
    %v2051 = vadd.f32 %v1847, %v2050
    %v2052 = vpop.f32.mrb[0].mxu0
    %2053 = vmatprep.mubr.f32.mxu0 0.0
    %2054 = vmatmul.mubr.f32.gmra.mrb[0].mxu0 %v223
    %v2055 = vpop.f32.mrb[0].mxu0
    %v2056 = vadd.f32 %v1847, %v2055
    %v2057 = vpop.f32.mrb[0].mxu0
    %2058 = vmatprep.mubr.f32.mxu0 0.0
    %2059 = vmatmul.mubr.f32.gmra.mrb[0].mxu0 %v226
    %v2060 = vpop.f32.mrb[0].mxu0
    %v2061 = vadd.f32 %v1847, %v2060
    %v2062 = vpop.f32.mrb[0].mxu0
    %2063 = vmatprep.mubr.f32.mxu0 0.0
    %2064 = vmatmul.mubr.f32.gmra.mrb[0].mxu0 %v229
    %v2065 = vpop.f32.mrb[0].mxu0
    %v2066 = vadd.f32 %v1847, %v2065
    %v2067 = vpop.f32.mrb[0].mxu0
    %2068 = vdwg.mxu0
    %v2069 = vld [vmem:[#allocation7] sm:$0xff]
    %v2070 = vld [vmem:[#allocation7 + $0x8] sm:$0xff]
    %v2071 = vld [vmem:[#allocation7 + $0x10] sm:$0xff]
    %v2072 = vld [vmem:[#allocation7 + $0x18] sm:$0xff]
    %v2073 = vld [vmem:[#allocation7 + $0x20] sm:$0xff]
    %v2074 = vld [vmem:[#allocation7 + $0x28] sm:$0xff]
    %v2075 = vld [vmem:[#allocation7 + $0x30] sm:$0xff]
    %v2076 = vld [vmem:[#allocation7 + $0x38] sm:$0xff]
    %v2077 = vld [vmem:[#allocation7 + $0x40] sm:$0xff]
    %v2078 = vld [vmem:[#allocation7 + $0x48] sm:$0xff]
    %v2079 = vld [vmem:[#allocation7 + $0x50] sm:$0xff]
    %v2080 = vld [vmem:[#allocation7 + $0x58] sm:$0xff]
    %v2081 = vld [vmem:[#allocation7 + $0x60] sm:$0xff]
    %v2082 = vld [vmem:[#allocation7 + $0x68] sm:$0xff]
    %v2083 = vld [vmem:[#allocation7 + $0x70] sm:$0xff]
    %v2084 = vld [vmem:[#allocation7 + $0x78] sm:$0xff]
    %v2085 = vld [vmem:[#allocation7 + $0x80] sm:$0xff]
    %v2086 = vld [vmem:[#allocation7 + $0x88] sm:$0xff]
    %v2087 = vld [vmem:[#allocation7 + $0x90] sm:$0xff]
    %v2088 = vld [vmem:[#allocation7 + $0x98] sm:$0xff]
    %v2089 = vld [vmem:[#allocation7 + $0xa0] sm:$0xff]
    %v2090 = vld [vmem:[#allocation7 + $0xa8] sm:$0xff]
    %v2091 = vld [vmem:[#allocation7 + $0xb0] sm:$0xff]
    %v2092 = vld [vmem:[#allocation7 + $0xb8] sm:$0xff]
    %v2093 = vld [vmem:[#allocation7 + $0xc0] sm:$0xff]
    %v2094 = vld [vmem:[#allocation7 + $0xc8] sm:$0xff]
    %v2095 = vld [vmem:[#allocation7 + $0xd0] sm:$0xff]
    %v2096 = vld [vmem:[#allocation7 + $0xd8] sm:$0xff]
    %v2097 = vld [vmem:[#allocation7 + $0xe0] sm:$0xff]
    %v2098 = vld [vmem:[#allocation7 + $0xe8] sm:$0xff]
    %v2099 = vld [vmem:[#allocation7 + $0xf0] sm:$0xff]
    %v2100 = vld [vmem:[#allocation7 + $0xf8] sm:$0xff]
    %v2101 = vld [vmem:[#allocation7 + $0x100] sm:$0xff]
    %v2102 = vld [vmem:[#allocation7 + $0x108] sm:$0xff]
    %v2103 = vld [vmem:[#allocation7 + $0x110] sm:$0xff]
    %v2104 = vld [vmem:[#allocation7 + $0x118] sm:$0xff]
    %v2105 = vld [vmem:[#allocation7 + $0x120] sm:$0xff]
    %v2106 = vld [vmem:[#allocation7 + $0x128] sm:$0xff]
    %v2107 = vld [vmem:[#allocation7 + $0x130] sm:$0xff]
    %v2108 = vld [vmem:[#allocation7 + $0x138] sm:$0xff]
    %v2109 = vld [vmem:[#allocation7 + $0x140] sm:$0xff]
    %v2110 = vld [vmem:[#allocation7 + $0x148] sm:$0xff]
    %v2111 = vld [vmem:[#allocation7 + $0x150] sm:$0xff]
    %v2112 = vld [vmem:[#allocation7 + $0x158] sm:$0xff]
    %v2113 = vld [vmem:[#allocation7 + $0x160] sm:$0xff]
    %v2114 = vld [vmem:[#allocation7 + $0x168] sm:$0xff]
    %v2115 = vld [vmem:[#allocation7 + $0x170] sm:$0xff]
    %v2116 = vld [vmem:[#allocation7 + $0x178] sm:$0xff]
    %v2117 = vld [vmem:[%s8] sm:$0x7]
    %v2119 = vlaneseq
    %v2120 = vshrl.u32 %v2119, 7
    %v2121 = vsub.s32 0, %v2120
    %v2122 = vrot.slane %v2117, %v2121
    %v2123 = vlaneseq
    %v2124 = vshrl.u32 %v2123, 7
    %v2125 = vsub.s32 1, %v2124
    %v2126 = vrot.slane %v2117, %v2125
    %v2127 = vlaneseq
    %v2128 = vshrl.u32 %v2127, 7
    %v2129 = vsub.s32 2, %v2128
    %v2130 = vrot.slane %v2117, %v2129
    %2134 = vmatprep.subr.mxu0 %v2070
    %2135 = vmatpush1.msra.mxu0 %v2069
    %2136 = vmatprep.subr.mxu0 %v2073
    %2137 = vmatpush1.msra.mxu0 %v2072
    %2138 = vmatprep.subr.mxu0 %v2076
    %2139 = vmatpush1.msra.mxu0 %v2075
    %2140 = vmatprep.subr.mxu0 %v2079
    %2141 = vmatpush1.msra.mxu0 %v2078
    %2142 = vmatprep.subr.mxu0 %v2082
    %2143 = vmatpush1.msra.mxu0 %v2081
    %2144 = vmatprep.subr.mxu0 %v2085
    %2145 = vmatpush1.msra.mxu0 %v2084
    %2146 = vmatprep.subr.mxu0 %v2088
    %2147 = vmatpush1.msra.mxu0 %v2087
    %2148 = vmatprep.subr.mxu0 %v2091
    %2149 = vmatpush1.msra.mxu0 %v2090
    %2150 = vmatprep.subr.mxu0 %v2094
    %2151 = vmatpush1.msra.mxu0 %v2093
    %2152 = vmatprep.subr.mxu0 %v2097
    %2153 = vmatpush1.msra.mxu0 %v2096
    %2154 = vmatprep.subr.mxu0 %v2100
    %2155 = vmatpush1.msra.mxu0 %v2099
    %2156 = vmatprep.subr.mxu0 %v2103
    %2157 = vmatpush1.msra.mxu0 %v2102
    %2158 = vmatprep.subr.mxu0 %v2106
    %2159 = vmatpush1.msra.mxu0 %v2105
    %2160 = vmatprep.subr.mxu0 %v2109
    %2161 = vmatpush1.msra.mxu0 %v2108
    %2162 = vmatprep.subr.mxu0 %v2112
    %2163 = vmatpush1.msra.mxu0 %v2111
    %2164 = vmatprep.subr.mxu0 %v2115
    %2165 = vmatpush1.msra.mxu0 %v2114
    %2166 = vmatprep.subr.mxu0 0.0
    %2167 = vmatpush1.msra.mxu0 0.0
    %2168 = vmatprep.subr.mxu0 0.0
    %2169 = vmatpush1.msra.mxu0 0.0
    %2170 = vmatprep.subr.mxu0 0.0
    %2171 = vmatpush1.msra.mxu0 0.0
    %2172 = vmatprep.subr.mxu0 0.0
    %2173 = vmatpush1.msra.mxu0 0.0
    %2174 = vmatprep.subr.mxu0 0.0
    %2175 = vmatpush1.msra.mxu0 0.0
    %2176 = vmatprep.subr.mxu0 0.0
    %2177 = vmatpush1.msra.mxu0 0.0
    %2178 = vmatprep.subr.mxu0 0.0
    %2179 = vmatpush1.msra.mxu0 0.0
    %2180 = vmatprep.subr.mxu0 0.0
    %2181 = vmatpush1.msra.mxu0 0.0
    %2182 = vmatprep.subr.mxu0 0.0
    %2183 = vmatpush1.msra.mxu0 0.0
    %2184 = vmatprep.subr.mxu0 0.0
    %2185 = vmatpush1.msra.mxu0 0.0
    %2186 = vmatprep.subr.mxu0 0.0
    %2187 = vmatpush1.msra.mxu0 0.0
    %2188 = vmatprep.subr.mxu0 0.0
    %2189 = vmatpush1.msra.mxu0 0.0
    %2190 = vmatprep.subr.mxu0 0.0
    %2191 = vmatpush1.msra.mxu0 0.0
    %2192 = vmatprep.subr.mxu0 0.0
    %2193 = vmatpush1.msra.mxu0 0.0
    %2194 = vmatprep.subr.mxu0 0.0
    %2195 = vmatpush1.msra.mxu0 0.0
    %2196 = vmatprep.subr.mxu0 0.0
    %2197 = vmatpush1.msra.mxu0 0.0
    %2198 = vmatprep.mubr.f32.mxu0 0.0
    %2199 = vmatmul.mubr.f32.gmra.mrb[0].mxu0 0.0
    %v2200 = vpop.f32.mrb[0].mxu0
    %v2201 = vadd.f32 %v2122, %v2200
    %v2202 = vpop.f32.mrb[0].mxu0
    %v2203 = vadd.f32 %v2126, %v2202
    %2204 = vdwg.mxu0
    %2205 = vmatprep.subr.mxu0 0.0
    %2206 = vmatpush1.msra.mxu0 %v2071
    %2207 = vmatprep.subr.mxu0 0.0
    %2208 = vmatpush1.msra.mxu0 %v2074
    %2209 = vmatprep.subr.mxu0 0.0
    %2210 = vmatpush1.msra.mxu0 %v2077
    %2211 = vmatprep.subr.mxu0 0.0
    %2212 = vmatpush1.msra.mxu0 %v2080
    %2213 = vmatprep.subr.mxu0 0.0
    %2214 = vmatpush1.msra.mxu0 %v2083
    %2215 = vmatprep.subr.mxu0 0.0
    %2216 = vmatpush1.msra.mxu0 %v2086
    %2217 = vmatprep.subr.mxu0 0.0
    %2218 = vmatpush1.msra.mxu0 %v2089
    %2219 = vmatprep.subr.mxu0 0.0
    %2220 = vmatpush1.msra.mxu0 %v2092
    %2221 = vmatprep.subr.mxu0 0.0
    %2222 = vmatpush1.msra.mxu0 %v2095
    %2223 = vmatprep.subr.mxu0 0.0
    %2224 = vmatpush1.msra.mxu0 %v2098
    %2225 = vmatprep.subr.mxu0 0.0
    %2226 = vmatpush1.msra.mxu0 %v2101
    %2227 = vmatprep.subr.mxu0 0.0
    %2228 = vmatpush1.msra.mxu0 %v2104
    %2229 = vmatprep.subr.mxu0 0.0
    %2230 = vmatpush1.msra.mxu0 %v2107
    %2231 = vmatprep.subr.mxu0 0.0
    %2232 = vmatpush1.msra.mxu0 %v2110
    %2233 = vmatprep.subr.mxu0 0.0
    %2234 = vmatpush1.msra.mxu0 %v2113
    %2235 = vmatprep.subr.mxu0 0.0
    %2236 = vmatpush1.msra.mxu0 %v2116
    %2237 = vmatprep.subr.mxu0 0.0
    %2238 = vmatpush1.msra.mxu0 0.0
    %2239 = vmatprep.subr.mxu0 0.0
    %2240 = vmatpush1.msra.mxu0 0.0
    %2241 = vmatprep.subr.mxu0 0.0
    %2242 = vmatpush1.msra.mxu0 0.0
    %2243 = vmatprep.subr.mxu0 0.0
    %2244 = vmatpush1.msra.mxu0 0.0
    %2245 = vmatprep.subr.mxu0 0.0
    %2246 = vmatpush1.msra.mxu0 0.0
    %2247 = vmatprep.subr.mxu0 0.0
    %2248 = vmatpush1.msra.mxu0 0.0
    %2249 = vmatprep.subr.mxu0 0.0
    %2250 = vmatpush1.msra.mxu0 0.0
    %2251 = vmatprep.subr.mxu0 0.0
    %2252 = vmatpush1.msra.mxu0 0.0
    %2253 = vmatprep.subr.mxu0 0.0
    %2254 = vmatpush1.msra.mxu0 0.0
    %2255 = vmatprep.subr.mxu0 0.0
    %2256 = vmatpush1.msra.mxu0 0.0
    %2257 = vmatprep.subr.mxu0 0.0
    %2258 = vmatpush1.msra.mxu0 0.0
    %2259 = vmatprep.subr.mxu0 0.0
    %2260 = vmatpush1.msra.mxu0 0.0
    %2261 = vmatprep.subr.mxu0 0.0
    %2262 = vmatpush1.msra.mxu0 0.0
    %2263 = vmatprep.subr.mxu0 0.0
    %2264 = vmatpush1.msra.mxu0 0.0
    %2265 = vmatprep.subr.mxu0 0.0
    %2266 = vmatpush1.msra.mxu0 0.0
    %2267 = vmatprep.subr.mxu0 0.0
    %2268 = vmatpush1.msra.mxu0 0.0
    %2269 = vmatprep.mubr.f32.mxu0 0.0
    %2270 = vmatmul.mubr.f32.gmra.mrb[0].mxu0 0.0
    %v2271 = vpop.f32.mrb[0].mxu0
    %v2272 = vadd.f32 %v2130, %v2271
    %v2273 = vpop.f32.mrb[0].mxu0
    %2274 = vdwg.mxu0
    %v2275 = vadd.f32 %v1960, %v2201
    %v2276 = vxor.u32 %v2275, 2147483648
    %v2277 = vmul.f32 %v2276, 1.442695
    %v2278 = vpow.pop %v2277
    %v2279 = vadd.f32 %v2278, 1.0
    %v2280 = vrcp.pop %v2279
    %v2281 = vmul.f32 1.0, %v2280
    %v2282 = vadd.f32 %v1962, %v2203
    %v2283 = vxor.u32 %v2282, 2147483648
    %v2284 = vmul.f32 %v2283, 1.442695
    %v2285 = vpow.pop %v2284
    %v2286 = vadd.f32 %v2285, 1.0
    %v2287 = vrcp.pop %v2286
    %v2288 = vmul.f32 1.0, %v2287
    %v2289 = vmul.f32 %v2281, %v2272
    %v2290 = vadd.f32 %v2066, %v2289
    %v2291 = vtanh.pop %v2290
    %v2292 = vsub.f32 1.0, %v2288
    %v2293 = vmul.f32 %v2292, %v2291
    %v2294 = vmul.f32 %v2288, 0.0
    %v2295 = vadd.f32 %v2293, %v2294
    %2296 = vmatprep.subr.mxu0 %v2070
    %2297 = vmatpush1.msra.mxu0 %v2069
    %2298 = vmatprep.subr.mxu0 %v2073
    %2299 = vmatpush1.msra.mxu0 %v2072
    %2300 = vmatprep.subr.mxu0 %v2076
    %2301 = vmatpush1.msra.mxu0 %v2075
    %2302 = vmatprep.subr.mxu0 %v2079
    %2303 = vmatpush1.msra.mxu0 %v2078
    %2304 = vmatprep.subr.mxu0 %v2082
    %2305 = vmatpush1.msra.mxu0 %v2081
    %2306 = vmatprep.subr.mxu0 %v2085
    %2307 = vmatpush1.msra.mxu0 %v2084
    %2308 = vmatprep.subr.mxu0 %v2088
    %2309 = vmatpush1.msra.mxu0 %v2087
    %2310 = vmatprep.subr.mxu0 %v2091
    %2311 = vmatpush1.msra.mxu0 %v2090
    %2312 = vmatprep.subr.mxu0 %v2094
    %2313 = vmatpush1.msra.mxu0 %v2093
    %2314 = vmatprep.subr.mxu0 %v2097
    %2315 = vmatpush1.msra.mxu0 %v2096
    %2316 = vmatprep.subr.mxu0 %v2100
    %2317 = vmatpush1.msra.mxu0 %v2099
    %2318 = vmatprep.subr.mxu0 %v2103
    %2319 = vmatpush1.msra.mxu0 %v2102
    %2320 = vmatprep.subr.mxu0 %v2106
    %2321 = vmatpush1.msra.mxu0 %v2105
    %2322 = vmatprep.subr.mxu0 %v2109
    %2323 = vmatpush1.msra.mxu0 %v2108
    %2324 = vmatprep.subr.mxu0 %v2112
    %2325 = vmatpush1.msra.mxu0 %v2111
    %2326 = vmatprep.subr.mxu0 %v2115
    %2327 = vmatpush1.msra.mxu0 %v2114
    %2328 = vmatprep.subr.mxu0 0.0
    %2329 = vmatpush1.msra.mxu0 0.0
    %2330 = vmatprep.subr.mxu0 0.0
    %2331 = vmatpush1.msra.mxu0 0.0
    %2332 = vmatprep.subr.mxu0 0.0
    %2333 = vmatpush1.msra.mxu0 0.0
    %2334 = vmatprep.subr.mxu0 0.0
    %2335 = vmatpush1.msra.mxu0 0.0
    %2336 = vmatprep.subr.mxu0 0.0
    %2337 = vmatpush1.msra.mxu0 0.0
    %2338 = vmatprep.subr.mxu0 0.0
    %2339 = vmatpush1.msra.mxu0 0.0
    %2340 = vmatprep.subr.mxu0 0.0
    %2341 = vmatpush1.msra.mxu0 0.0
    %2342 = vmatprep.subr.mxu0 0.0
    %2343 = vmatpush1.msra.mxu0 0.0
    %2344 = vmatprep.subr.mxu0 0.0
    %2345 = vmatpush1.msra.mxu0 0.0
    %2346 = vmatprep.subr.mxu0 0.0
    %2347 = vmatpush1.msra.mxu0 0.0
    %2348 = vmatprep.subr.mxu0 0.0
    %2349 = vmatpush1.msra.mxu0 0.0
    %2350 = vmatprep.subr.mxu0 0.0
    %2351 = vmatpush1.msra.mxu0 0.0
    %2352 = vmatprep.subr.mxu0 0.0
    %2353 = vmatpush1.msra.mxu0 0.0
    %2354 = vmatprep.subr.mxu0 0.0
    %2355 = vmatpush1.msra.mxu0 0.0
    %2356 = vmatprep.subr.mxu0 0.0
    %2357 = vmatpush1.msra.mxu0 0.0
    %2358 = vmatprep.subr.mxu0 0.0
    %2359 = vmatpush1.msra.mxu0 0.0
    %2360 = vmatprep.mubr.f32.mxu0 0.0
    %2361 = vmatmul.mubr.f32.gmra.mrb[0].mxu0 %v2295
    %v2362 = vpop.f32.mrb[0].mxu0
    %v2363 = vadd.f32 %v2122, %v2362
    %v2364 = vpop.f32.mrb[0].mxu0
    %v2365 = vadd.f32 %v2126, %v2364
    %2366 = vdwg.mxu0
    %2367 = vmatprep.subr.mxu0 0.0
    %2368 = vmatpush1.msra.mxu0 %v2071
    %2369 = vmatprep.subr.mxu0 0.0
    %2370 = vmatpush1.msra.mxu0 %v2074
    %2371 = vmatprep.subr.mxu0 0.0
    %2372 = vmatpush1.msra.mxu0 %v2077
    %2373 = vmatprep.subr.mxu0 0.0
    %2374 = vmatpush1.msra.mxu0 %v2080
    %2375 = vmatprep.subr.mxu0 0.0
    %2376 = vmatpush1.msra.mxu0 %v2083
    %2377 = vmatprep.subr.mxu0 0.0
    %2378 = vmatpush1.msra.mxu0 %v2086
    %2379 = vmatprep.subr.mxu0 0.0
    %2380 = vmatpush1.msra.mxu0 %v2089
    %2381 = vmatprep.subr.mxu0 0.0
    %2382 = vmatpush1.msra.mxu0 %v2092
    %2383 = vmatprep.subr.mxu0 0.0
    %2384 = vmatpush1.msra.mxu0 %v2095
    %2385 = vmatprep.subr.mxu0 0.0
    %2386 = vmatpush1.msra.mxu0 %v2098
    %2387 = vmatprep.subr.mxu0 0.0
    %2388 = vmatpush1.msra.mxu0 %v2101
    %2389 = vmatprep.subr.mxu0 0.0
    %2390 = vmatpush1.msra.mxu0 %v2104
    %2391 = vmatprep.subr.mxu0 0.0
    %2392 = vmatpush1.msra.mxu0 %v2107
    %2393 = vmatprep.subr.mxu0 0.0
    %2394 = vmatpush1.msra.mxu0 %v2110
    %2395 = vmatprep.subr.mxu0 0.0
    %2396 = vmatpush1.msra.mxu0 %v2113
    %2397 = vmatprep.subr.mxu0 0.0
    %2398 = vmatpush1.msra.mxu0 %v2116
    %2399 = vmatprep.subr.mxu0 0.0
    %2400 = vmatpush1.msra.mxu0 0.0
    %2401 = vmatprep.subr.mxu0 0.0
    %2402 = vmatpush1.msra.mxu0 0.0
    %2403 = vmatprep.subr.mxu0 0.0
    %2404 = vmatpush1.msra.mxu0 0.0
    %2405 = vmatprep.subr.mxu0 0.0
    %2406 = vmatpush1.msra.mxu0 0.0
    %2407 = vmatprep.subr.mxu0 0.0
    %2408 = vmatpush1.msra.mxu0 0.0
    %2409 = vmatprep.subr.mxu0 0.0
    %2410 = vmatpush1.msra.mxu0 0.0
    %2411 = vmatprep.subr.mxu0 0.0
    %2412 = vmatpush1.msra.mxu0 0.0
    %2413 = vmatprep.subr.mxu0 0.0
    %2414 = vmatpush1.msra.mxu0 0.0
    %2415 = vmatprep.subr.mxu0 0.0
    %2416 = vmatpush1.msra.mxu0 0.0
    %2417 = vmatprep.subr.mxu0 0.0
    %2418 = vmatpush1.msra.mxu0 0.0
    %2419 = vmatprep.subr.mxu0 0.0
    %2420 = vmatpush1.msra.mxu0 0.0
    %2421 = vmatprep.subr.mxu0 0.0
    %2422 = vmatpush1.msra.mxu0 0.0
    %2423 = vmatprep.subr.mxu0 0.0
    %2424 = vmatpush1.msra.mxu0 0.0
    %2425 = vmatprep.subr.mxu0 0.0
    %2426 = vmatpush1.msra.mxu0 0.0
    %2427 = vmatprep.subr.mxu0 0.0
    %2428 = vmatpush1.msra.mxu0 0.0
    %2429 = vmatprep.subr.mxu0 0.0
    %2430 = vmatpush1.msra.mxu0 0.0
    %2431 = vmatprep.mubr.f32.mxu0 0.0
    %2432 = vmatmul.mubr.f32.gmra.mrb[0].mxu0 %v2295
    %v2433 = vpop.f32.mrb[0].mxu0
    %v2434 = vadd.f32 %v2130, %v2433
    %v2435 = vpop.f32.mrb[0].mxu0
    %2436 = vdwg.mxu0
    %v2437 = vadd.f32 %v1954, %v2363
    %v2438 = vxor.u32 %v2437, 2147483648
    %v2439 = vmul.f32 %v2438, 1.442695
    %v2440 = vpow.pop %v2439
    %v2441 = vadd.f32 %v2440, 1.0
    %v2442 = vrcp.pop %v2441
    %v2443 = vmul.f32 1.0, %v2442
    %v2444 = vadd.f32 %v1956, %v2365
    %v2445 = vxor.u32 %v2444, 2147483648
    %v2446 = vmul.f32 %v2445, 1.442695
    %v2447 = vpow.pop %v2446
    %v2448 = vadd.f32 %v2447, 1.0
    %v2449 = vrcp.pop %v2448
    %v2450 = vmul.f32 1.0, %v2449
    %v2451 = vmul.f32 %v2443, %v2434
    %v2452 = vadd.f32 %v2061, %v2451
    %v2453 = vtanh.pop %v2452
    %v2454 = vsub.f32 1.0, %v2450
    %v2455 = vmul.f32 %v2454, %v2453
    %v2456 = vmul.f32 %v2450, %v2295
    %v2457 = vadd.f32 %v2455, %v2456
    %2458 = vmatprep.subr.mxu0 %v2070
    %2459 = vmatpush1.msra.mxu0 %v2069
    %2460 = vmatprep.subr.mxu0 %v2073
    %2461 = vmatpush1.msra.mxu0 %v2072
    %2462 = vmatprep.subr.mxu0 %v2076
    %2463 = vmatpush1.msra.mxu0 %v2075
    %2464 = vmatprep.subr.mxu0 %v2079
    %2465 = vmatpush1.msra.mxu0 %v2078
    %2466 = vmatprep.subr.mxu0 %v2082
    %2467 = vmatpush1.msra.mxu0 %v2081
    %2468 = vmatprep.subr.mxu0 %v2085
    %2469 = vmatpush1.msra.mxu0 %v2084
    %2470 = vmatprep.subr.mxu0 %v2088
    %2471 = vmatpush1.msra.mxu0 %v2087
    %2472 = vmatprep.subr.mxu0 %v2091
    %2473 = vmatpush1.msra.mxu0 %v2090
    %2474 = vmatprep.subr.mxu0 %v2094
    %2475 = vmatpush1.msra.mxu0 %v2093
    %2476 = vmatprep.subr.mxu0 %v2097
    %2477 = vmatpush1.msra.mxu0 %v2096
    %2478 = vmatprep.subr.mxu0 %v2100
    %2479 = vmatpush1.msra.mxu0 %v2099
    %2480 = vmatprep.subr.mxu0 %v2103
    %2481 = vmatpush1.msra.mxu0 %v2102
    %2482 = vmatprep.subr.mxu0 %v2106
    %2483 = vmatpush1.msra.mxu0 %v2105
    %2484 = vmatprep.subr.mxu0 %v2109
    %2485 = vmatpush1.msra.mxu0 %v2108
    %2486 = vmatprep.subr.mxu0 %v2112
    %2487 = vmatpush1.msra.mxu0 %v2111
    %2488 = vmatprep.subr.mxu0 %v2115
    %2489 = vmatpush1.msra.mxu0 %v2114
    %2490 = vmatprep.subr.mxu0 0.0
    %2491 = vmatpush1.msra.mxu0 0.0
    %2492 = vmatprep.subr.mxu0 0.0
    %2493 = vmatpush1.msra.mxu0 0.0
    %2494 = vmatprep.subr.mxu0 0.0
    %2495 = vmatpush1.msra.mxu0 0.0
    %2496 = vmatprep.subr.mxu0 0.0
    %2497 = vmatpush1.msra.mxu0 0.0
    %2498 = vmatprep.subr.mxu0 0.0
    %2499 = vmatpush1.msra.mxu0 0.0
    %2500 = vmatprep.subr.mxu0 0.0
    %2501 = vmatpush1.msra.mxu0 0.0
    %2502 = vmatprep.subr.mxu0 0.0
    %2503 = vmatpush1.msra.mxu0 0.0
    %2504 = vmatprep.subr.mxu0 0.0
    %2505 = vmatpush1.msra.mxu0 0.0
    %2506 = vmatprep.subr.mxu0 0.0
    %2507 = vmatpush1.msra.mxu0 0.0
    %2508 = vmatprep.subr.mxu0 0.0
    %2509 = vmatpush1.msra.mxu0 0.0
    %2510 = vmatprep.subr.mxu0 0.0
    %2511 = vmatpush1.msra.mxu0 0.0
    %2512 = vmatprep.subr.mxu0 0.0
    %2513 = vmatpush1.msra.mxu0 0.0
    %2514 = vmatprep.subr.mxu0 0.0
    %2515 = vmatpush1.msra.mxu0 0.0
    %2516 = vmatprep.subr.mxu0 0.0
    %2517 = vmatpush1.msra.mxu0 0.0
    %2518 = vmatprep.subr.mxu0 0.0
    %2519 = vmatpush1.msra.mxu0 0.0
    %2520 = vmatprep.subr.mxu0 0.0
    %2521 = vmatpush1.msra.mxu0 0.0
    %2522 = vmatprep.mubr.f32.mxu0 0.0
    %2523 = vmatmul.mubr.f32.gmra.mrb[0].mxu0 %v2457
    %v2524 = vpop.f32.mrb[0].mxu0
    %v2525 = vadd.f32 %v2122, %v2524
    %v2526 = vpop.f32.mrb[0].mxu0
    %v2527 = vadd.f32 %v2126, %v2526
    %2528 = vdwg.mxu0
    %2529 = vmatprep.subr.mxu0 0.0
    %2530 = vmatpush1.msra.mxu0 %v2071
    %2531 = vmatprep.subr.mxu0 0.0
    %2532 = vmatpush1.msra.mxu0 %v2074
    %2533 = vmatprep.subr.mxu0 0.0
    %2534 = vmatpush1.msra.mxu0 %v2077
    %2535 = vmatprep.subr.mxu0 0.0
    %2536 = vmatpush1.msra.mxu0 %v2080
    %2537 = vmatprep.subr.mxu0 0.0
    %2538 = vmatpush1.msra.mxu0 %v2083
    %2539 = vmatprep.subr.mxu0 0.0
    %2540 = vmatpush1.msra.mxu0 %v2086
    %2541 = vmatprep.subr.mxu0 0.0
    %2542 = vmatpush1.msra.mxu0 %v2089
    %2543 = vmatprep.subr.mxu0 0.0
    %2544 = vmatpush1.msra.mxu0 %v2092
    %2545 = vmatprep.subr.mxu0 0.0
    %2546 = vmatpush1.msra.mxu0 %v2095
    %2547 = vmatprep.subr.mxu0 0.0
    %2548 = vmatpush1.msra.mxu0 %v2098
    %2549 = vmatprep.subr.mxu0 0.0
    %2550 = vmatpush1.msra.mxu0 %v2101
    %2551 = vmatprep.subr.mxu0 0.0
    %2552 = vmatpush1.msra.mxu0 %v2104
    %2553 = vmatprep.subr.mxu0 0.0
    %2554 = vmatpush1.msra.mxu0 %v2107
    %2555 = vmatprep.subr.mxu0 0.0
    %2556 = vmatpush1.msra.mxu0 %v2110
    %2557 = vmatprep.subr.mxu0 0.0
    %2558 = vmatpush1.msra.mxu0 %v2113
    %2559 = vmatprep.subr.mxu0 0.0
    %2560 = vmatpush1.msra.mxu0 %v2116
    %2561 = vmatprep.subr.mxu0 0.0
    %2562 = vmatpush1.msra.mxu0 0.0
    %2563 = vmatprep.subr.mxu0 0.0
    %2564 = vmatpush1.msra.mxu0 0.0
    %2565 = vmatprep.subr.mxu0 0.0
    %2566 = vmatpush1.msra.mxu0 0.0
    %2567 = vmatprep.subr.mxu0 0.0
    %2568 = vmatpush1.msra.mxu0 0.0
    %2569 = vmatprep.subr.mxu0 0.0
    %2570 = vmatpush1.msra.mxu0 0.0
    %2571 = vmatprep.subr.mxu0 0.0
    %2572 = vmatpush1.msra.mxu0 0.0
    %2573 = vmatprep.subr.mxu0 0.0
    %2574 = vmatpush1.msra.mxu0 0.0
    %2575 = vmatprep.subr.mxu0 0.0
    %2576 = vmatpush1.msra.mxu0 0.0
    %2577 = vmatprep.subr.mxu0 0.0
    %2578 = vmatpush1.msra.mxu0 0.0
    %2579 = vmatprep.subr.mxu0 0.0
    %2580 = vmatpush1.msra.mxu0 0.0
    %2581 = vmatprep.subr.mxu0 0.0
    %2582 = vmatpush1.msra.mxu0 0.0
    %2583 = vmatprep.subr.mxu0 0.0
    %2584 = vmatpush1.msra.mxu0 0.0
    %2585 = vmatprep.subr.mxu0 0.0
    %2586 = vmatpush1.msra.mxu0 0.0
    %2587 = vmatprep.subr.mxu0 0.0
    %2588 = vmatpush1.msra.mxu0 0.0
    %2589 = vmatprep.subr.mxu0 0.0
    %2590 = vmatpush1.msra.mxu0 0.0
    %2591 = vmatprep.subr.mxu0 0.0
    %2592 = vmatpush1.msra.mxu0 0.0
    %2593 = vmatprep.mubr.f32.mxu0 0.0
    %2594 = vmatmul.mubr.f32.gmra.mrb[0].mxu0 %v2457
    %v2595 = vpop.f32.mrb[0].mxu0
    %v2596 = vadd.f32 %v2130, %v2595
    %v2597 = vpop.f32.mrb[0].mxu0
    %2598 = vdwg.mxu0
    %v2599 = vadd.f32 %v1948, %v2525
    %v2600 = vxor.u32 %v2599, 2147483648
    %v2601 = vmul.f32 %v2600, 1.442695
    %v2602 = vpow.pop %v2601
    %v2603 = vadd.f32 %v2602, 1.0
    %v2604 = vrcp.pop %v2603
    %v2605 = vmul.f32 1.0, %v2604
    %v2606 = vadd.f32 %v1950, %v2527
    %v2607 = vxor.u32 %v2606, 2147483648
    %v2608 = vmul.f32 %v2607, 1.442695
    %v2609 = vpow.pop %v2608
    %v2610 = vadd.f32 %v2609, 1.0
    %v2611 = vrcp.pop %v2610
    %v2612 = vmul.f32 1.0, %v2611
    %v2613 = vmul.f32 %v2605, %v2596
    %v2614 = vadd.f32 %v2056, %v2613
    %v2615 = vtanh.pop %v2614
    %v2616 = vsub.f32 1.0, %v2612
    %v2617 = vmul.f32 %v2616, %v2615
    %v2618 = vmul.f32 %v2612, %v2457
    %v2619 = vadd.f32 %v2617, %v2618
    %2620 = vmatprep.subr.mxu0 %v2070
    %2621 = vmatpush1.msra.mxu0 %v2069
    %2622 = vmatprep.subr.mxu0 %v2073
    %2623 = vmatpush1.msra.mxu0 %v2072
    %2624 = vmatprep.subr.mxu0 %v2076
    %2625 = vmatpush1.msra.mxu0 %v2075
    %2626 = vmatprep.subr.mxu0 %v2079
    %2627 = vmatpush1.msra.mxu0 %v2078
    %2628 = vmatprep.subr.mxu0 %v2082
    %2629 = vmatpush1.msra.mxu0 %v2081
    %2630 = vmatprep.subr.mxu0 %v2085
    %2631 = vmatpush1.msra.mxu0 %v2084
    %2632 = vmatprep.subr.mxu0 %v2088
    %2633 = vmatpush1.msra.mxu0 %v2087
    %2634 = vmatprep.subr.mxu0 %v2091
    %2635 = vmatpush1.msra.mxu0 %v2090
    %2636 = vmatprep.subr.mxu0 %v2094
    %2637 = vmatpush1.msra.mxu0 %v2093
    %2638 = vmatprep.subr.mxu0 %v2097
    %2639 = vmatpush1.msra.mxu0 %v2096
    %2640 = vmatprep.subr.mxu0 %v2100
    %2641 = vmatpush1.msra.mxu0 %v2099
    %2642 = vmatprep.subr.mxu0 %v2103
    %2643 = vmatpush1.msra.mxu0 %v2102
    %2644 = vmatprep.subr.mxu0 %v2106
    %2645 = vmatpush1.msra.mxu0 %v2105
    %2646 = vmatprep.subr.mxu0 %v2109
    %2647 = vmatpush1.msra.mxu0 %v2108
    %2648 = vmatprep.subr.mxu0 %v2112
    %2649 = vmatpush1.msra.mxu0 %v2111
    %2650 = vmatprep.subr.mxu0 %v2115
    %2651 = vmatpush1.msra.mxu0 %v2114
    %2652 = vmatprep.subr.mxu0 0.0
    %2653 = vmatpush1.msra.mxu0 0.0
    %2654 = vmatprep.subr.mxu0 0.0
    %2655 = vmatpush1.msra.mxu0 0.0
    %2656 = vmatprep.subr.mxu0 0.0
    %2657 = vmatpush1.msra.mxu0 0.0
    %2658 = vmatprep.subr.mxu0 0.0
    %2659 = vmatpush1.msra.mxu0 0.0
    %2660 = vmatprep.subr.mxu0 0.0
    %2661 = vmatpush1.msra.mxu0 0.0
    %2662 = vmatprep.subr.mxu0 0.0
    %2663 = vmatpush1.msra.mxu0 0.0
    %2664 = vmatprep.subr.mxu0 0.0
    %2665 = vmatpush1.msra.mxu0 0.0
    %2666 = vmatprep.subr.mxu0 0.0
    %2667 = vmatpush1.msra.mxu0 0.0
    %2668 = vmatprep.subr.mxu0 0.0
    %2669 = vmatpush1.msra.mxu0 0.0
    %2670 = vmatprep.subr.mxu0 0.0
    %2671 = vmatpush1.msra.mxu0 0.0
    %2672 = vmatprep.subr.mxu0 0.0
    %2673 = vmatpush1.msra.mxu0 0.0
    %2674 = vmatprep.subr.mxu0 0.0
    %2675 = vmatpush1.msra.mxu0 0.0
    %2676 = vmatprep.subr.mxu0 0.0
    %2677 = vmatpush1.msra.mxu0 0.0
    %2678 = vmatprep.subr.mxu0 0.0
    %2679 = vmatpush1.msra.mxu0 0.0
    %2680 = vmatprep.subr.mxu0 0.0
    %2681 = vmatpush1.msra.mxu0 0.0
    %2682 = vmatprep.subr.mxu0 0.0
    %2683 = vmatpush1.msra.mxu0 0.0
    %2684 = vmatprep.mubr.f32.mxu0 0.0
    %2685 = vmatmul.mubr.f32.gmra.mrb[0].mxu0 %v2619
    %v2686 = vpop.f32.mrb[0].mxu0
    %v2687 = vadd.f32 %v2122, %v2686
    %v2688 = vpop.f32.mrb[0].mxu0
    %v2689 = vadd.f32 %v2126, %v2688
    %2690 = vdwg.mxu0
    %2691 = vmatprep.subr.mxu0 0.0
    %2692 = vmatpush1.msra.mxu0 %v2071
    %2693 = vmatprep.subr.mxu0 0.0
    %2694 = vmatpush1.msra.mxu0 %v2074
    %2695 = vmatprep.subr.mxu0 0.0
    %2696 = vmatpush1.msra.mxu0 %v2077
    %2697 = vmatprep.subr.mxu0 0.0
    %2698 = vmatpush1.msra.mxu0 %v2080
    %2699 = vmatprep.subr.mxu0 0.0
    %2700 = vmatpush1.msra.mxu0 %v2083
    %2701 = vmatprep.subr.mxu0 0.0
    %2702 = vmatpush1.msra.mxu0 %v2086
    %2703 = vmatprep.subr.mxu0 0.0
    %2704 = vmatpush1.msra.mxu0 %v2089
    %2705 = vmatprep.subr.mxu0 0.0
    %2706 = vmatpush1.msra.mxu0 %v2092
    %2707 = vmatprep.subr.mxu0 0.0
    %2708 = vmatpush1.msra.mxu0 %v2095
    %2709 = vmatprep.subr.mxu0 0.0
    %2710 = vmatpush1.msra.mxu0 %v2098
    %2711 = vmatprep.subr.mxu0 0.0
    %2712 = vmatpush1.msra.mxu0 %v2101
    %2713 = vmatprep.subr.mxu0 0.0
    %2714 = vmatpush1.msra.mxu0 %v2104
    %2715 = vmatprep.subr.mxu0 0.0
    %2716 = vmatpush1.msra.mxu0 %v2107
    %2717 = vmatprep.subr.mxu0 0.0
    %2718 = vmatpush1.msra.mxu0 %v2110
    %2719 = vmatprep.subr.mxu0 0.0
    %2720 = vmatpush1.msra.mxu0 %v2113
    %2721 = vmatprep.subr.mxu0 0.0
    %2722 = vmatpush1.msra.mxu0 %v2116
    %2723 = vmatprep.subr.mxu0 0.0
    %2724 = vmatpush1.msra.mxu0 0.0
    %2725 = vmatprep.subr.mxu0 0.0
    %2726 = vmatpush1.msra.mxu0 0.0
    %2727 = vmatprep.subr.mxu0 0.0
    %2728 = vmatpush1.msra.mxu0 0.0
    %2729 = vmatprep.subr.mxu0 0.0
    %2730 = vmatpush1.msra.mxu0 0.0
    %2731 = vmatprep.subr.mxu0 0.0
    %2732 = vmatpush1.msra.mxu0 0.0
    %2733 = vmatprep.subr.mxu0 0.0
    %2734 = vmatpush1.msra.mxu0 0.0
    %2735 = vmatprep.subr.mxu0 0.0
    %2736 = vmatpush1.msra.mxu0 0.0
    %2737 = vmatprep.subr.mxu0 0.0
    %2738 = vmatpush1.msra.mxu0 0.0
    %2739 = vmatprep.subr.mxu0 0.0
    %2740 = vmatpush1.msra.mxu0 0.0
    %2741 = vmatprep.subr.mxu0 0.0
    %2742 = vmatpush1.msra.mxu0 0.0
    %2743 = vmatprep.subr.mxu0 0.0
    %2744 = vmatpush1.msra.mxu0 0.0
    %2745 = vmatprep.subr.mxu0 0.0
    %2746 = vmatpush1.msra.mxu0 0.0
    %2747 = vmatprep.subr.mxu0 0.0
    %2748 = vmatpush1.msra.mxu0 0.0
    %2749 = vmatprep.subr.mxu0 0.0
    %2750 = vmatpush1.msra.mxu0 0.0
    %2751 = vmatprep.subr.mxu0 0.0
    %2752 = vmatpush1.msra.mxu0 0.0
    %2753 = vmatprep.subr.mxu0 0.0
    %2754 = vmatpush1.msra.mxu0 0.0
    %2755 = vmatprep.mubr.f32.mxu0 0.0
    %2756 = vmatmul.mubr.f32.gmra.mrb[0].mxu0 %v2619
    %v2757 = vpop.f32.mrb[0].mxu0
    %v2758 = vadd.f32 %v2130, %v2757
    %v2759 = vpop.f32.mrb[0].mxu0
    %2760 = vdwg.mxu0
    %v2761 = vadd.f32 %v1942, %v2687
    %v2762 = vxor.u32 %v2761, 2147483648
    %v2763 = vmul.f32 %v2762, 1.442695
    %v2764 = vpow.pop %v2763
    %v2765 = vadd.f32 %v2764, 1.0
    %v2766 = vrcp.pop %v2765
    %v2767 = vmul.f32 1.0, %v2766
    %v2768 = vadd.f32 %v1944, %v2689
    %v2769 = vxor.u32 %v2768, 2147483648
    %v2770 = vmul.f32 %v2769, 1.442695
    %v2771 = vpow.pop %v2770
    %v2772 = vadd.f32 %v2771, 1.0
    %v2773 = vrcp.pop %v2772
    %v2774 = vmul.f32 1.0, %v2773
    %v2775 = vmul.f32 %v2767, %v2758
    %v2776 = vadd.f32 %v2051, %v2775
    %v2777 = vtanh.pop %v2776
    %v2778 = vsub.f32 1.0, %v2774
    %v2779 = vmul.f32 %v2778, %v2777
    %v2780 = vmul.f32 %v2774, %v2619
    %v2781 = vadd.f32 %v2779, %v2780
    %2782 = vmatprep.subr.mxu0 %v2070
    %2783 = vmatpush1.msra.mxu0 %v2069
    %2784 = vmatprep.subr.mxu0 %v2073
    %2785 = vmatpush1.msra.mxu0 %v2072
    %2786 = vmatprep.subr.mxu0 %v2076
    %2787 = vmatpush1.msra.mxu0 %v2075
    %2788 = vmatprep.subr.mxu0 %v2079
    %2789 = vmatpush1.msra.mxu0 %v2078
    %2790 = vmatprep.subr.mxu0 %v2082
    %2791 = vmatpush1.msra.mxu0 %v2081
    %2792 = vmatprep.subr.mxu0 %v2085
    %2793 = vmatpush1.msra.mxu0 %v2084
    %2794 = vmatprep.subr.mxu0 %v2088
    %2795 = vmatpush1.msra.mxu0 %v2087
    %2796 = vmatprep.subr.mxu0 %v2091
    %2797 = vmatpush1.msra.mxu0 %v2090
    %2798 = vmatprep.subr.mxu0 %v2094
    %2799 = vmatpush1.msra.mxu0 %v2093
    %2800 = vmatprep.subr.mxu0 %v2097
    %2801 = vmatpush1.msra.mxu0 %v2096
    %2802 = vmatprep.subr.mxu0 %v2100
    %2803 = vmatpush1.msra.mxu0 %v2099
    %2804 = vmatprep.subr.mxu0 %v2103
    %2805 = vmatpush1.msra.mxu0 %v2102
    %2806 = vmatprep.subr.mxu0 %v2106
    %2807 = vmatpush1.msra.mxu0 %v2105
    %2808 = vmatprep.subr.mxu0 %v2109
    %2809 = vmatpush1.msra.mxu0 %v2108
    %2810 = vmatprep.subr.mxu0 %v2112
    %2811 = vmatpush1.msra.mxu0 %v2111
    %2812 = vmatprep.subr.mxu0 %v2115
    %2813 = vmatpush1.msra.mxu0 %v2114
    %2814 = vmatprep.subr.mxu0 0.0
    %2815 = vmatpush1.msra.mxu0 0.0
    %2816 = vmatprep.subr.mxu0 0.0
    %2817 = vmatpush1.msra.mxu0 0.0
    %2818 = vmatprep.subr.mxu0 0.0
    %2819 = vmatpush1.msra.mxu0 0.0
    %2820 = vmatprep.subr.mxu0 0.0
    %2821 = vmatpush1.msra.mxu0 0.0
    %2822 = vmatprep.subr.mxu0 0.0
    %2823 = vmatpush1.msra.mxu0 0.0
    %2824 = vmatprep.subr.mxu0 0.0
    %2825 = vmatpush1.msra.mxu0 0.0
    %2826 = vmatprep.subr.mxu0 0.0
    %2827 = vmatpush1.msra.mxu0 0.0
    %2828 = vmatprep.subr.mxu0 0.0
    %2829 = vmatpush1.msra.mxu0 0.0
    %2830 = vmatprep.subr.mxu0 0.0
    %2831 = vmatpush1.msra.mxu0 0.0
    %2832 = vmatprep.subr.mxu0 0.0
    %2833 = vmatpush1.msra.mxu0 0.0
    %2834 = vmatprep.subr.mxu0 0.0
    %2835 = vmatpush1.msra.mxu0 0.0
    %2836 = vmatprep.subr.mxu0 0.0
    %2837 = vmatpush1.msra.mxu0 0.0
    %2838 = vmatprep.subr.mxu0 0.0
    %2839 = vmatpush1.msra.mxu0 0.0
    %2840 = vmatprep.subr.mxu0 0.0
    %2841 = vmatpush1.msra.mxu0 0.0
    %2842 = vmatprep.subr.mxu0 0.0
    %2843 = vmatpush1.msra.mxu0 0.0
    %2844 = vmatprep.subr.mxu0 0.0
    %2845 = vmatpush1.msra.mxu0 0.0
    %2846 = vmatprep.mubr.f32.mxu0 0.0
    %2847 = vmatmul.mubr.f32.gmra.mrb[0].mxu0 %v2781
    %v2848 = vpop.f32.mrb[0].mxu0
    %v2849 = vadd.f32 %v2122, %v2848
    %v2850 = vpop.f32.mrb[0].mxu0
    %v2851 = vadd.f32 %v2126, %v2850
    %2852 = vdwg.mxu0
    %2853 = vmatprep.subr.mxu0 0.0
    %2854 = vmatpush1.msra.mxu0 %v2071
    %2855 = vmatprep.subr.mxu0 0.0
    %2856 = vmatpush1.msra.mxu0 %v2074
    %2857 = vmatprep.subr.mxu0 0.0
    %2858 = vmatpush1.msra.mxu0 %v2077
    %2859 = vmatprep.subr.mxu0 0.0
    %2860 = vmatpush1.msra.mxu0 %v2080
    %2861 = vmatprep.subr.mxu0 0.0
    %2862 = vmatpush1.msra.mxu0 %v2083
    %2863 = vmatprep.subr.mxu0 0.0
    %2864 = vmatpush1.msra.mxu0 %v2086
    %2865 = vmatprep.subr.mxu0 0.0
    %2866 = vmatpush1.msra.mxu0 %v2089
    %2867 = vmatprep.subr.mxu0 0.0
    %2868 = vmatpush1.msra.mxu0 %v2092
    %2869 = vmatprep.subr.mxu0 0.0
    %2870 = vmatpush1.msra.mxu0 %v2095
    %2871 = vmatprep.subr.mxu0 0.0
    %2872 = vmatpush1.msra.mxu0 %v2098
    %2873 = vmatprep.subr.mxu0 0.0
    %2874 = vmatpush1.msra.mxu0 %v2101
    %2875 = vmatprep.subr.mxu0 0.0
    %2876 = vmatpush1.msra.mxu0 %v2104
    %2877 = vmatprep.subr.mxu0 0.0
    %2878 = vmatpush1.msra.mxu0 %v2107
    %2879 = vmatprep.subr.mxu0 0.0
    %2880 = vmatpush1.msra.mxu0 %v2110
    %2881 = vmatprep.subr.mxu0 0.0
    %2882 = vmatpush1.msra.mxu0 %v2113
    %2883 = vmatprep.subr.mxu0 0.0
    %2884 = vmatpush1.msra.mxu0 %v2116
    %2885 = vmatprep.subr.mxu0 0.0
    %2886 = vmatpush1.msra.mxu0 0.0
    %2887 = vmatprep.subr.mxu0 0.0
    %2888 = vmatpush1.msra.mxu0 0.0
    %2889 = vmatprep.subr.mxu0 0.0
    %2890 = vmatpush1.msra.mxu0 0.0
    %2891 = vmatprep.subr.mxu0 0.0
    %2892 = vmatpush1.msra.mxu0 0.0
    %2893 = vmatprep.subr.mxu0 0.0
    %2894 = vmatpush1.msra.mxu0 0.0
    %2895 = vmatprep.subr.mxu0 0.0
    %2896 = vmatpush1.msra.mxu0 0.0
    %2897 = vmatprep.subr.mxu0 0.0
    %2898 = vmatpush1.msra.mxu0 0.0
    %2899 = vmatprep.subr.mxu0 0.0
    %2900 = vmatpush1.msra.mxu0 0.0
    %2901 = vmatprep.subr.mxu0 0.0
    %2902 = vmatpush1.msra.mxu0 0.0
    %2903 = vmatprep.subr.mxu0 0.0
    %2904 = vmatpush1.msra.mxu0 0.0
    %2905 = vmatprep.subr.mxu0 0.0
    %2906 = vmatpush1.msra.mxu0 0.0
    %2907 = vmatprep.subr.mxu0 0.0
    %2908 = vmatpush1.msra.mxu0 0.0
    %2909 = vmatprep.subr.mxu0 0.0
    %2910 = vmatpush1.msra.mxu0 0.0
    %2911 = vmatprep.subr.mxu0 0.0
    %2912 = vmatpush1.msra.mxu0 0.0
    %2913 = vmatprep.subr.mxu0 0.0
    %2914 = vmatpush1.msra.mxu0 0.0
    %2915 = vmatprep.subr.mxu0 0.0
    %2916 = vmatpush1.msra.mxu0 0.0
    %2917 = vmatprep.mubr.f32.mxu0 0.0
    %2918 = vmatmul.mubr.f32.gmra.mrb[0].mxu0 %v2781
    %v2919 = vpop.f32.mrb[0].mxu0
    %v2920 = vadd.f32 %v2130, %v2919
    %v2921 = vpop.f32.mrb[0].mxu0
    %2922 = vdwg.mxu0
    %v2923 = vadd.f32 %v1936, %v2849
    %v2924 = vxor.u32 %v2923, 2147483648
    %v2925 = vmul.f32 %v2924, 1.442695
    %v2926 = vpow.pop %v2925
    %v2927 = vadd.f32 %v2926, 1.0
    %v2928 = vrcp.pop %v2927
    %v2929 = vmul.f32 1.0, %v2928
    %v2930 = vadd.f32 %v1938, %v2851
    %v2931 = vxor.u32 %v2930, 2147483648
    %v2932 = vmul.f32 %v2931, 1.442695
    %v2933 = vpow.pop %v2932
    %v2934 = vadd.f32 %v2933, 1.0
    %v2935 = vrcp.pop %v2934
    %v2936 = vmul.f32 1.0, %v2935
    %v2937 = vmul.f32 %v2929, %v2920
    %v2938 = vadd.f32 %v2046, %v2937
    %v2939 = vtanh.pop %v2938
    %v2940 = vsub.f32 1.0, %v2936
    %v2941 = vmul.f32 %v2940, %v2939
    %v2942 = vmul.f32 %v2936, %v2781
    %v2943 = vadd.f32 %v2941, %v2942
    %2944 = vmatprep.subr.mxu0 %v2070
    %2945 = vmatpush1.msra.mxu0 %v2069
    %2946 = vmatprep.subr.mxu0 %v2073
    %2947 = vmatpush1.msra.mxu0 %v2072
    %2948 = vmatprep.subr.mxu0 %v2076
    %2949 = vmatpush1.msra.mxu0 %v2075
    %2950 = vmatprep.subr.mxu0 %v2079
    %2951 = vmatpush1.msra.mxu0 %v2078
    %2952 = vmatprep.subr.mxu0 %v2082
    %2953 = vmatpush1.msra.mxu0 %v2081
    %2954 = vmatprep.subr.mxu0 %v2085
    %2955 = vmatpush1.msra.mxu0 %v2084
    %2956 = vmatprep.subr.mxu0 %v2088
    %2957 = vmatpush1.msra.mxu0 %v2087
    %2958 = vmatprep.subr.mxu0 %v2091
    %2959 = vmatpush1.msra.mxu0 %v2090
    %2960 = vmatprep.subr.mxu0 %v2094
    %2961 = vmatpush1.msra.mxu0 %v2093
    %2962 = vmatprep.subr.mxu0 %v2097
    %2963 = vmatpush1.msra.mxu0 %v2096
    %2964 = vmatprep.subr.mxu0 %v2100
    %2965 = vmatpush1.msra.mxu0 %v2099
    %2966 = vmatprep.subr.mxu0 %v2103
    %2967 = vmatpush1.msra.mxu0 %v2102
    %2968 = vmatprep.subr.mxu0 %v2106
    %2969 = vmatpush1.msra.mxu0 %v2105
    %2970 = vmatprep.subr.mxu0 %v2109
    %2971 = vmatpush1.msra.mxu0 %v2108
    %2972 = vmatprep.subr.mxu0 %v2112
    %2973 = vmatpush1.msra.mxu0 %v2111
    %2974 = vmatprep.subr.mxu0 %v2115
    %2975 = vmatpush1.msra.mxu0 %v2114
    %2976 = vmatprep.subr.mxu0 0.0
    %2977 = vmatpush1.msra.mxu0 0.0
    %2978 = vmatprep.subr.mxu0 0.0
    %2979 = vmatpush1.msra.mxu0 0.0
    %2980 = vmatprep.subr.mxu0 0.0
    %2981 = vmatpush1.msra.mxu0 0.0
    %2982 = vmatprep.subr.mxu0 0.0
    %2983 = vmatpush1.msra.mxu0 0.0
    %2984 = vmatprep.subr.mxu0 0.0
    %2985 = vmatpush1.msra.mxu0 0.0
    %2986 = vmatprep.subr.mxu0 0.0
    %2987 = vmatpush1.msra.mxu0 0.0
    %2988 = vmatprep.subr.mxu0 0.0
    %2989 = vmatpush1.msra.mxu0 0.0
    %2990 = vmatprep.subr.mxu0 0.0
    %2991 = vmatpush1.msra.mxu0 0.0
    %2992 = vmatprep.subr.mxu0 0.0
    %2993 = vmatpush1.msra.mxu0 0.0
    %2994 = vmatprep.subr.mxu0 0.0
    %2995 = vmatpush1.msra.mxu0 0.0
    %2996 = vmatprep.subr.mxu0 0.0
    %2997 = vmatpush1.msra.mxu0 0.0
    %2998 = vmatprep.subr.mxu0 0.0
    %2999 = vmatpush1.msra.mxu0 0.0
    %3000 = vmatprep.subr.mxu0 0.0
    %3001 = vmatpush1.msra.mxu0 0.0
    %3002 = vmatprep.subr.mxu0 0.0
    %3003 = vmatpush1.msra.mxu0 0.0
    %3004 = vmatprep.subr.mxu0 0.0
    %3005 = vmatpush1.msra.mxu0 0.0
    %3006 = vmatprep.subr.mxu0 0.0
    %3007 = vmatpush1.msra.mxu0 0.0
    %3008 = vmatprep.mubr.f32.mxu0 0.0
    %3009 = vmatmul.mubr.f32.gmra.mrb[0].mxu0 %v2943
    %v3010 = vpop.f32.mrb[0].mxu0
    %v3011 = vadd.f32 %v2122, %v3010
    %v3012 = vpop.f32.mrb[0].mxu0
    %v3013 = vadd.f32 %v2126, %v3012
    %3014 = vdwg.mxu0
    %3015 = vmatprep.subr.mxu0 0.0
    %3016 = vmatpush1.msra.mxu0 %v2071
    %3017 = vmatprep.subr.mxu0 0.0
    %3018 = vmatpush1.msra.mxu0 %v2074
    %3019 = vmatprep.subr.mxu0 0.0
    %3020 = vmatpush1.msra.mxu0 %v2077
    %3021 = vmatprep.subr.mxu0 0.0
    %3022 = vmatpush1.msra.mxu0 %v2080
    %3023 = vmatprep.subr.mxu0 0.0
    %3024 = vmatpush1.msra.mxu0 %v2083
    %3025 = vmatprep.subr.mxu0 0.0
    %3026 = vmatpush1.msra.mxu0 %v2086
    %3027 = vmatprep.subr.mxu0 0.0
    %3028 = vmatpush1.msra.mxu0 %v2089
    %3029 = vmatprep.subr.mxu0 0.0
    %3030 = vmatpush1.msra.mxu0 %v2092
    %3031 = vmatprep.subr.mxu0 0.0
    %3032 = vmatpush1.msra.mxu0 %v2095
    %3033 = vmatprep.subr.mxu0 0.0
    %3034 = vmatpush1.msra.mxu0 %v2098
    %3035 = vmatprep.subr.mxu0 0.0
    %3036 = vmatpush1.msra.mxu0 %v2101
    %3037 = vmatprep.subr.mxu0 0.0
    %3038 = vmatpush1.msra.mxu0 %v2104
    %3039 = vmatprep.subr.mxu0 0.0
    %3040 = vmatpush1.msra.mxu0 %v2107
    %3041 = vmatprep.subr.mxu0 0.0
    %3042 = vmatpush1.msra.mxu0 %v2110
    %3043 = vmatprep.subr.mxu0 0.0
    %3044 = vmatpush1.msra.mxu0 %v2113
    %3045 = vmatprep.subr.mxu0 0.0
    %3046 = vmatpush1.msra.mxu0 %v2116
    %3047 = vmatprep.subr.mxu0 0.0
    %3048 = vmatpush1.msra.mxu0 0.0
    %3049 = vmatprep.subr.mxu0 0.0
    %3050 = vmatpush1.msra.mxu0 0.0
    %3051 = vmatprep.subr.mxu0 0.0
    %3052 = vmatpush1.msra.mxu0 0.0
    %3053 = vmatprep.subr.mxu0 0.0
    %3054 = vmatpush1.msra.mxu0 0.0
    %3055 = vmatprep.subr.mxu0 0.0
    %3056 = vmatpush1.msra.mxu0 0.0
    %3057 = vmatprep.subr.mxu0 0.0
    %3058 = vmatpush1.msra.mxu0 0.0
    %3059 = vmatprep.subr.mxu0 0.0
    %3060 = vmatpush1.msra.mxu0 0.0
    %3061 = vmatprep.subr.mxu0 0.0
    %3062 = vmatpush1.msra.mxu0 0.0
    %3063 = vmatprep.subr.mxu0 0.0
    %3064 = vmatpush1.msra.mxu0 0.0
    %3065 = vmatprep.subr.mxu0 0.0
    %3066 = vmatpush1.msra.mxu0 0.0
    %3067 = vmatprep.subr.mxu0 0.0
    %3068 = vmatpush1.msra.mxu0 0.0
    %3069 = vmatprep.subr.mxu0 0.0
    %3070 = vmatpush1.msra.mxu0 0.0
    %3071 = vmatprep.subr.mxu0 0.0
    %3072 = vmatpush1.msra.mxu0 0.0
    %3073 = vmatprep.subr.mxu0 0.0
    %3074 = vmatpush1.msra.mxu0 0.0
    %3075 = vmatprep.subr.mxu0 0.0
    %3076 = vmatpush1.msra.mxu0 0.0
    %3077 = vmatprep.subr.mxu0 0.0
    %3078 = vmatpush1.msra.mxu0 0.0
    %3079 = vmatprep.mubr.f32.mxu0 0.0
    %3080 = vmatmul.mubr.f32.gmra.mrb[0].mxu0 %v2943
    %v3081 = vpop.f32.mrb[0].mxu0
    %v3082 = vadd.f32 %v2130, %v3081
    %v3083 = vpop.f32.mrb[0].mxu0
    %3084 = vdwg.mxu0
    %v3085 = vadd.f32 %v1930, %v3011
    %v3086 = vxor.u32 %v3085, 2147483648
    %v3087 = vmul.f32 %v3086, 1.442695
    %v3088 = vpow.pop %v3087
    %v3089 = vadd.f32 %v3088, 1.0
    %v3090 = vrcp.pop %v3089
    %v3091 = vmul.f32 1.0, %v3090
    %v3092 = vadd.f32 %v1932, %v3013
    %v3093 = vxor.u32 %v3092, 2147483648
    %v3094 = vmul.f32 %v3093, 1.442695
    %v3095 = vpow.pop %v3094
    %v3096 = vadd.f32 %v3095, 1.0
    %v3097 = vrcp.pop %v3096
    %v3098 = vmul.f32 1.0, %v3097
    %v3099 = vmul.f32 %v3091, %v3082
    %v3100 = vadd.f32 %v2041, %v3099
    %v3101 = vtanh.pop %v3100
    %v3102 = vsub.f32 1.0, %v3098
    %v3103 = vmul.f32 %v3102, %v3101
    %v3104 = vmul.f32 %v3098, %v2943
    %v3105 = vadd.f32 %v3103, %v3104
    %3106 = vmatprep.subr.mxu0 %v2070
    %3107 = vmatpush1.msra.mxu0 %v2069
    %3108 = vmatprep.subr.mxu0 %v2073
    %3109 = vmatpush1.msra.mxu0 %v2072
    %3110 = vmatprep.subr.mxu0 %v2076
    %3111 = vmatpush1.msra.mxu0 %v2075
    %3112 = vmatprep.subr.mxu0 %v2079
    %3113 = vmatpush1.msra.mxu0 %v2078
    %3114 = vmatprep.subr.mxu0 %v2082
    %3115 = vmatpush1.msra.mxu0 %v2081
    %3116 = vmatprep.subr.mxu0 %v2085
    %3117 = vmatpush1.msra.mxu0 %v2084
    %3118 = vmatprep.subr.mxu0 %v2088
    %3119 = vmatpush1.msra.mxu0 %v2087
    %3120 = vmatprep.subr.mxu0 %v2091
    %3121 = vmatpush1.msra.mxu0 %v2090
    %3122 = vmatprep.subr.mxu0 %v2094
    %3123 = vmatpush1.msra.mxu0 %v2093
    %3124 = vmatprep.subr.mxu0 %v2097
    %3125 = vmatpush1.msra.mxu0 %v2096
    %3126 = vmatprep.subr.mxu0 %v2100
    %3127 = vmatpush1.msra.mxu0 %v2099
    %3128 = vmatprep.subr.mxu0 %v2103
    %3129 = vmatpush1.msra.mxu0 %v2102
    %3130 = vmatprep.subr.mxu0 %v2106
    %3131 = vmatpush1.msra.mxu0 %v2105
    %3132 = vmatprep.subr.mxu0 %v2109
    %3133 = vmatpush1.msra.mxu0 %v2108
    %3134 = vmatprep.subr.mxu0 %v2112
    %3135 = vmatpush1.msra.mxu0 %v2111
    %3136 = vmatprep.subr.mxu0 %v2115
    %3137 = vmatpush1.msra.mxu0 %v2114
    %3138 = vmatprep.subr.mxu0 0.0
    %3139 = vmatpush1.msra.mxu0 0.0
    %3140 = vmatprep.subr.mxu0 0.0
    %3141 = vmatpush1.msra.mxu0 0.0
    %3142 = vmatprep.subr.mxu0 0.0
    %3143 = vmatpush1.msra.mxu0 0.0
    %3144 = vmatprep.subr.mxu0 0.0
    %3145 = vmatpush1.msra.mxu0 0.0
    %3146 = vmatprep.subr.mxu0 0.0
    %3147 = vmatpush1.msra.mxu0 0.0
    %3148 = vmatprep.subr.mxu0 0.0
    %3149 = vmatpush1.msra.mxu0 0.0
    %3150 = vmatprep.subr.mxu0 0.0
    %3151 = vmatpush1.msra.mxu0 0.0
    %3152 = vmatprep.subr.mxu0 0.0
    %3153 = vmatpush1.msra.mxu0 0.0
    %3154 = vmatprep.subr.mxu0 0.0
    %3155 = vmatpush1.msra.mxu0 0.0
    %3156 = vmatprep.subr.mxu0 0.0
    %3157 = vmatpush1.msra.mxu0 0.0
    %3158 = vmatprep.subr.mxu0 0.0
    %3159 = vmatpush1.msra.mxu0 0.0
    %3160 = vmatprep.subr.mxu0 0.0
    %3161 = vmatpush1.msra.mxu0 0.0
    %3162 = vmatprep.subr.mxu0 0.0
    %3163 = vmatpush1.msra.mxu0 0.0
    %3164 = vmatprep.subr.mxu0 0.0
    %3165 = vmatpush1.msra.mxu0 0.0
    %3166 = vmatprep.subr.mxu0 0.0
    %3167 = vmatpush1.msra.mxu0 0.0
    %3168 = vmatprep.subr.mxu0 0.0
    %3169 = vmatpush1.msra.mxu0 0.0
    %3170 = vmatprep.mubr.f32.mxu0 0.0
    %3171 = vmatmul.mubr.f32.gmra.mrb[0].mxu0 %v3105
    %v3172 = vpop.f32.mrb[0].mxu0
    %v3173 = vadd.f32 %v2122, %v3172
    %v3174 = vpop.f32.mrb[0].mxu0
    %v3175 = vadd.f32 %v2126, %v3174
    %3176 = vdwg.mxu0
    %3177 = vmatprep.subr.mxu0 0.0
    %3178 = vmatpush1.msra.mxu0 %v2071
    %3179 = vmatprep.subr.mxu0 0.0
    %3180 = vmatpush1.msra.mxu0 %v2074
    %3181 = vmatprep.subr.mxu0 0.0
    %3182 = vmatpush1.msra.mxu0 %v2077
    %3183 = vmatprep.subr.mxu0 0.0
    %3184 = vmatpush1.msra.mxu0 %v2080
    %3185 = vmatprep.subr.mxu0 0.0
    %3186 = vmatpush1.msra.mxu0 %v2083
    %3187 = vmatprep.subr.mxu0 0.0
    %3188 = vmatpush1.msra.mxu0 %v2086
    %3189 = vmatprep.subr.mxu0 0.0
    %3190 = vmatpush1.msra.mxu0 %v2089
    %3191 = vmatprep.subr.mxu0 0.0
    %3192 = vmatpush1.msra.mxu0 %v2092
    %3193 = vmatprep.subr.mxu0 0.0
    %3194 = vmatpush1.msra.mxu0 %v2095
    %3195 = vmatprep.subr.mxu0 0.0
    %3196 = vmatpush1.msra.mxu0 %v2098
    %3197 = vmatprep.subr.mxu0 0.0
    %3198 = vmatpush1.msra.mxu0 %v2101
    %3199 = vmatprep.subr.mxu0 0.0
    %3200 = vmatpush1.msra.mxu0 %v2104
    %3201 = vmatprep.subr.mxu0 0.0
    %3202 = vmatpush1.msra.mxu0 %v2107
    %3203 = vmatprep.subr.mxu0 0.0
    %3204 = vmatpush1.msra.mxu0 %v2110
    %3205 = vmatprep.subr.mxu0 0.0
    %3206 = vmatpush1.msra.mxu0 %v2113
    %3207 = vmatprep.subr.mxu0 0.0
    %3208 = vmatpush1.msra.mxu0 %v2116
    %3209 = vmatprep.subr.mxu0 0.0
    %3210 = vmatpush1.msra.mxu0 0.0
    %3211 = vmatprep.subr.mxu0 0.0
    %3212 = vmatpush1.msra.mxu0 0.0
    %3213 = vmatprep.subr.mxu0 0.0
    %3214 = vmatpush1.msra.mxu0 0.0
    %3215 = vmatprep.subr.mxu0 0.0
    %3216 = vmatpush1.msra.mxu0 0.0
    %3217 = vmatprep.subr.mxu0 0.0
    %3218 = vmatpush1.msra.mxu0 0.0
    %3219 = vmatprep.subr.mxu0 0.0
    %3220 = vmatpush1.msra.mxu0 0.0
    %3221 = vmatprep.subr.mxu0 0.0
    %3222 = vmatpush1.msra.mxu0 0.0
    %3223 = vmatprep.subr.mxu0 0.0
    %3224 = vmatpush1.msra.mxu0 0.0
    %3225 = vmatprep.subr.mxu0 0.0
    %3226 = vmatpush1.msra.mxu0 0.0
    %3227 = vmatprep.subr.mxu0 0.0
    %3228 = vmatpush1.msra.mxu0 0.0
    %3229 = vmatprep.subr.mxu0 0.0
    %3230 = vmatpush1.msra.mxu0 0.0
    %3231 = vmatprep.subr.mxu0 0.0
    %3232 = vmatpush1.msra.mxu0 0.0
    %3233 = vmatprep.subr.mxu0 0.0
    %3234 = vmatpush1.msra.mxu0 0.0
    %3235 = vmatprep.subr.mxu0 0.0
    %3236 = vmatpush1.msra.mxu0 0.0
    %3237 = vmatprep.subr.mxu0 0.0
    %3238 = vmatpush1.msra.mxu0 0.0
    %3239 = vmatprep.subr.mxu0 0.0
    %3240 = vmatpush1.msra.mxu0 0.0
    %3241 = vmatprep.mubr.f32.mxu0 0.0
    %3242 = vmatmul.mubr.f32.gmra.mrb[0].mxu0 %v3105
    %v3243 = vpop.f32.mrb[0].mxu0
    %v3244 = vadd.f32 %v2130, %v3243
    %v3245 = vpop.f32.mrb[0].mxu0
    %3246 = vdwg.mxu0
    %v3247 = vadd.f32 %v1924, %v3173
    %v3248 = vxor.u32 %v3247, 2147483648
    %v3249 = vmul.f32 %v3248, 1.442695
    %v3250 = vpow.pop %v3249
    %v3251 = vadd.f32 %v3250, 1.0
    %v3252 = vrcp.pop %v3251
    %v3253 = vmul.f32 1.0, %v3252
    %v3254 = vadd.f32 %v1926, %v3175
    %v3255 = vxor.u32 %v3254, 2147483648
    %v3256 = vmul.f32 %v3255, 1.442695
    %v3257 = vpow.pop %v3256
    %v3258 = vadd.f32 %v3257, 1.0
    %v3259 = vrcp.pop %v3258
    %v3260 = vmul.f32 1.0, %v3259
    %v3261 = vmul.f32 %v3253, %v3244
    %v3262 = vadd.f32 %v2036, %v3261
    %v3263 = vtanh.pop %v3262
    %v3264 = vsub.f32 1.0, %v3260
    %v3265 = vmul.f32 %v3264, %v3263
    %v3266 = vmul.f32 %v3260, %v3105
    %v3267 = vadd.f32 %v3265, %v3266
    %3268 = vmatprep.subr.mxu0 %v2070
    %3269 = vmatpush1.msra.mxu0 %v2069
    %3270 = vmatprep.subr.mxu0 %v2073
    %3271 = vmatpush1.msra.mxu0 %v2072
    %3272 = vmatprep.subr.mxu0 %v2076
    %3273 = vmatpush1.msra.mxu0 %v2075
    %3274 = vmatprep.subr.mxu0 %v2079
    %3275 = vmatpush1.msra.mxu0 %v2078
    %3276 = vmatprep.subr.mxu0 %v2082
    %3277 = vmatpush1.msra.mxu0 %v2081
    %3278 = vmatprep.subr.mxu0 %v2085
    %3279 = vmatpush1.msra.mxu0 %v2084
    %3280 = vmatprep.subr.mxu0 %v2088
    %3281 = vmatpush1.msra.mxu0 %v2087
    %3282 = vmatprep.subr.mxu0 %v2091
    %3283 = vmatpush1.msra.mxu0 %v2090
    %3284 = vmatprep.subr.mxu0 %v2094
    %3285 = vmatpush1.msra.mxu0 %v2093
    %3286 = vmatprep.subr.mxu0 %v2097
    %3287 = vmatpush1.msra.mxu0 %v2096
    %3288 = vmatprep.subr.mxu0 %v2100
    %3289 = vmatpush1.msra.mxu0 %v2099
    %3290 = vmatprep.subr.mxu0 %v2103
    %3291 = vmatpush1.msra.mxu0 %v2102
    %3292 = vmatprep.subr.mxu0 %v2106
    %3293 = vmatpush1.msra.mxu0 %v2105
    %3294 = vmatprep.subr.mxu0 %v2109
    %3295 = vmatpush1.msra.mxu0 %v2108
    %3296 = vmatprep.subr.mxu0 %v2112
    %3297 = vmatpush1.msra.mxu0 %v2111
    %3298 = vmatprep.subr.mxu0 %v2115
    %3299 = vmatpush1.msra.mxu0 %v2114
    %3300 = vmatprep.subr.mxu0 0.0
    %3301 = vmatpush1.msra.mxu0 0.0
    %3302 = vmatprep.subr.mxu0 0.0
    %3303 = vmatpush1.msra.mxu0 0.0
    %3304 = vmatprep.subr.mxu0 0.0
    %3305 = vmatpush1.msra.mxu0 0.0
    %3306 = vmatprep.subr.mxu0 0.0
    %3307 = vmatpush1.msra.mxu0 0.0
    %3308 = vmatprep.subr.mxu0 0.0
    %3309 = vmatpush1.msra.mxu0 0.0
    %3310 = vmatprep.subr.mxu0 0.0
    %3311 = vmatpush1.msra.mxu0 0.0
    %3312 = vmatprep.subr.mxu0 0.0
    %3313 = vmatpush1.msra.mxu0 0.0
    %3314 = vmatprep.subr.mxu0 0.0
    %3315 = vmatpush1.msra.mxu0 0.0
    %3316 = vmatprep.subr.mxu0 0.0
    %3317 = vmatpush1.msra.mxu0 0.0
    %3318 = vmatprep.subr.mxu0 0.0
    %3319 = vmatpush1.msra.mxu0 0.0
    %3320 = vmatprep.subr.mxu0 0.0
    %3321 = vmatpush1.msra.mxu0 0.0
    %3322 = vmatprep.subr.mxu0 0.0
    %3323 = vmatpush1.msra.mxu0 0.0
    %3324 = vmatprep.subr.mxu0 0.0
    %3325 = vmatpush1.msra.mxu0 0.0
    %3326 = vmatprep.subr.mxu0 0.0
    %3327 = vmatpush1.msra.mxu0 0.0
    %3328 = vmatprep.subr.mxu0 0.0
    %3329 = vmatpush1.msra.mxu0 0.0
    %3330 = vmatprep.subr.mxu0 0.0
    %3331 = vmatpush1.msra.mxu0 0.0
    %3332 = vmatprep.mubr.f32.mxu0 0.0
    %3333 = vmatmul.mubr.f32.gmra.mrb[0].mxu0 %v3267
    %v3334 = vpop.f32.mrb[0].mxu0
    %v3335 = vadd.f32 %v2122, %v3334
    %v3336 = vpop.f32.mrb[0].mxu0
    %v3337 = vadd.f32 %v2126, %v3336
    %3338 = vdwg.mxu0
    %3339 = vmatprep.subr.mxu0 0.0
    %3340 = vmatpush1.msra.mxu0 %v2071
    %3341 = vmatprep.subr.mxu0 0.0
    %3342 = vmatpush1.msra.mxu0 %v2074
    %3343 = vmatprep.subr.mxu0 0.0
    %3344 = vmatpush1.msra.mxu0 %v2077
    %3345 = vmatprep.subr.mxu0 0.0
    %3346 = vmatpush1.msra.mxu0 %v2080
    %3347 = vmatprep.subr.mxu0 0.0
    %3348 = vmatpush1.msra.mxu0 %v2083
    %3349 = vmatprep.subr.mxu0 0.0
    %3350 = vmatpush1.msra.mxu0 %v2086
    %3351 = vmatprep.subr.mxu0 0.0
    %3352 = vmatpush1.msra.mxu0 %v2089
    %3353 = vmatprep.subr.mxu0 0.0
    %3354 = vmatpush1.msra.mxu0 %v2092
    %3355 = vmatprep.subr.mxu0 0.0
    %3356 = vmatpush1.msra.mxu0 %v2095
    %3357 = vmatprep.subr.mxu0 0.0
    %3358 = vmatpush1.msra.mxu0 %v2098
    %3359 = vmatprep.subr.mxu0 0.0
    %3360 = vmatpush1.msra.mxu0 %v2101
    %3361 = vmatprep.subr.mxu0 0.0
    %3362 = vmatpush1.msra.mxu0 %v2104
    %3363 = vmatprep.subr.mxu0 0.0
    %3364 = vmatpush1.msra.mxu0 %v2107
    %3365 = vmatprep.subr.mxu0 0.0
    %3366 = vmatpush1.msra.mxu0 %v2110
    %3367 = vmatprep.subr.mxu0 0.0
    %3368 = vmatpush1.msra.mxu0 %v2113
    %3369 = vmatprep.subr.mxu0 0.0
    %3370 = vmatpush1.msra.mxu0 %v2116
    %3371 = vmatprep.subr.mxu0 0.0
    %3372 = vmatpush1.msra.mxu0 0.0
    %3373 = vmatprep.subr.mxu0 0.0
    %3374 = vmatpush1.msra.mxu0 0.0
    %3375 = vmatprep.subr.mxu0 0.0
    %3376 = vmatpush1.msra.mxu0 0.0
    %3377 = vmatprep.subr.mxu0 0.0
    %3378 = vmatpush1.msra.mxu0 0.0
    %3379 = vmatprep.subr.mxu0 0.0
    %3380 = vmatpush1.msra.mxu0 0.0
    %3381 = vmatprep.subr.mxu0 0.0
    %3382 = vmatpush1.msra.mxu0 0.0
    %3383 = vmatprep.subr.mxu0 0.0
    %3384 = vmatpush1.msra.mxu0 0.0
    %3385 = vmatprep.subr.mxu0 0.0
    %3386 = vmatpush1.msra.mxu0 0.0
    %3387 = vmatprep.subr.mxu0 0.0
    %3388 = vmatpush1.msra.mxu0 0.0
    %3389 = vmatprep.subr.mxu0 0.0
    %3390 = vmatpush1.msra.mxu0 0.0
    %3391 = vmatprep.subr.mxu0 0.0
    %3392 = vmatpush1.msra.mxu0 0.0
    %3393 = vmatprep.subr.mxu0 0.0
    %3394 = vmatpush1.msra.mxu0 0.0
    %3395 = vmatprep.subr.mxu0 0.0
    %3396 = vmatpush1.msra.mxu0 0.0
    %3397 = vmatprep.subr.mxu0 0.0
    %3398 = vmatpush1.msra.mxu0 0.0
    %3399 = vmatprep.subr.mxu0 0.0
    %3400 = vmatpush1.msra.mxu0 0.0
    %3401 = vmatprep.subr.mxu0 0.0
    %3402 = vmatpush1.msra.mxu0 0.0
    %3403 = vmatprep.mubr.f32.mxu0 0.0
    %3404 = vmatmul.mubr.f32.gmra.mrb[0].mxu0 %v3267
    %v3405 = vpop.f32.mrb[0].mxu0
    %v3406 = vadd.f32 %v2130, %v3405
    %v3407 = vpop.f32.mrb[0].mxu0
    %3408 = vdwg.mxu0
    %v3409 = vadd.f32 %v1918, %v3335
    %v3410 = vxor.u32 %v3409, 2147483648
    %v3411 = vmul.f32 %v3410, 1.442695
    %v3412 = vpow.pop %v3411
    %v3413 = vadd.f32 %v3412, 1.0
    %v3414 = vrcp.pop %v3413
    %v3415 = vmul.f32 1.0, %v3414
    %v3416 = vadd.f32 %v1920, %v3337
    %v3417 = vxor.u32 %v3416, 2147483648
    %v3418 = vmul.f32 %v3417, 1.442695
    %v3419 = vpow.pop %v3418
    %v3420 = vadd.f32 %v3419, 1.0
    %v3421 = vrcp.pop %v3420
    %v3422 = vmul.f32 1.0, %v3421
    %v3423 = vmul.f32 %v3415, %v3406
    %v3424 = vadd.f32 %v2031, %v3423
    %v3425 = vtanh.pop %v3424
    %v3426 = vsub.f32 1.0, %v3422
    %v3427 = vmul.f32 %v3426, %v3425
    %v3428 = vmul.f32 %v3422, %v3267
    %v3429 = vadd.f32 %v3427, %v3428
    %v3430 = vld [vmem:[%s9] sm:$0xff]
    %v3431 = vld [vmem:[%s9 + $0x8] sm:$0xff]
    %v3432 = vld [vmem:[%s9 + $0x10] sm:$0xff]
    %v3433 = vld [vmem:[%s9 + $0x18] sm:$0xff]
    %v3434 = vld [vmem:[%s9 + $0x20] sm:$0xff]
    %v3435 = vld [vmem:[%s9 + $0x28] sm:$0xff]
    %v3436 = vld [vmem:[%s9 + $0x30] sm:$0xff]
    %v3437 = vld [vmem:[%s9 + $0x38] sm:$0xff]
    %v3438 = vld [vmem:[%s9 + $0x40] sm:$0xff]
    %v3439 = vld [vmem:[%s9 + $0x48] sm:$0xff]
    %v3440 = vld [vmem:[%s9 + $0x50] sm:$0xff]
    %v3441 = vld [vmem:[%s9 + $0x58] sm:$0xff]
    %v3442 = vld [vmem:[%s9 + $0x60] sm:$0xff]
    %v3443 = vld [vmem:[%s9 + $0x68] sm:$0xff]
    %v3444 = vld [vmem:[%s9 + $0x70] sm:$0xff]
    %v3445 = vld [vmem:[%s9 + $0x78] sm:$0xff]
    %v3446 = vld [vmem:[%s9 + $0x80] sm:$0xff]
    %v3447 = vld [vmem:[%s9 + $0x88] sm:$0xff]
    %v3448 = vld [vmem:[%s9 + $0x90] sm:$0xff]
    %v3449 = vld [vmem:[%s9 + $0x98] sm:$0xff]
    %v3450 = vld [vmem:[%s9 + $0xa0] sm:$0xff]
    %v3451 = vld [vmem:[%s9 + $0xa8] sm:$0xff]
    %v3452 = vld [vmem:[%s9 + $0xb0] sm:$0xff]
    %v3453 = vld [vmem:[%s9 + $0xb8] sm:$0xff]
    %v3454 = vld [vmem:[%s9 + $0xc0] sm:$0xff]
    %v3455 = vld [vmem:[%s9 + $0xc8] sm:$0xff]
    %v3456 = vld [vmem:[%s9 + $0xd0] sm:$0xff]
    %v3457 = vld [vmem:[%s9 + $0xd8] sm:$0xff]
    %v3458 = vld [vmem:[%s9 + $0xe0] sm:$0xff]
    %v3459 = vld [vmem:[%s9 + $0xe8] sm:$0xff]
    %v3460 = vld [vmem:[%s9 + $0xf0] sm:$0xff]
    %v3461 = vld [vmem:[%s9 + $0xf8] sm:$0xff]
    %v3462 = vld [vmem:[%s9 + $0x100] sm:$0xff]
    %v3463 = vld [vmem:[%s9 + $0x108] sm:$0xff]
    %v3464 = vld [vmem:[%s9 + $0x110] sm:$0xff]
    %v3465 = vld [vmem:[%s9 + $0x118] sm:$0xff]
    %v3466 = vld [vmem:[%s9 + $0x120] sm:$0xff]
    %v3467 = vld [vmem:[%s9 + $0x128] sm:$0xff]
    %v3468 = vld [vmem:[%s9 + $0x130] sm:$0xff]
    %v3469 = vld [vmem:[%s9 + $0x138] sm:$0xff]
    %v3470 = vld [vmem:[%s9 + $0x140] sm:$0xff]
    %v3471 = vld [vmem:[%s9 + $0x148] sm:$0xff]
    %v3472 = vld [vmem:[%s9 + $0x150] sm:$0xff]
    %v3473 = vld [vmem:[%s9 + $0x158] sm:$0xff]
    %v3474 = vld [vmem:[%s9 + $0x160] sm:$0xff]
    %v3475 = vld [vmem:[%s9 + $0x168] sm:$0xff]
    %v3476 = vld [vmem:[%s9 + $0x170] sm:$0xff]
    %v3477 = vld [vmem:[%s9 + $0x178] sm:$0xff]
    %v3478 = vld [vmem:[%s9 + $0x180] sm:$0xff]
    %v3479 = vld [vmem:[%s9 + $0x188] sm:$0xff]
    %v3480 = vld [vmem:[%s9 + $0x190] sm:$0xff]
    %v3481 = vld [vmem:[%s9 + $0x198] sm:$0xff]
    %v3482 = vld [vmem:[%s9 + $0x1a0] sm:$0xff]
    %v3483 = vld [vmem:[%s9 + $0x1a8] sm:$0xff]
    %v3484 = vld [vmem:[%s9 + $0x1b0] sm:$0xff]
    %v3485 = vld [vmem:[%s9 + $0x1b8] sm:$0xff]
    %v3486 = vld [vmem:[%s9 + $0x1c0] sm:$0xff]
    %v3487 = vld [vmem:[%s9 + $0x1c8] sm:$0xff]
    %v3488 = vld [vmem:[%s9 + $0x1d0] sm:$0xff]
    %v3489 = vld [vmem:[%s9 + $0x1d8] sm:$0xff]
    %v3490 = vld [vmem:[%s9 + $0x1e0] sm:$0xff]
    %v3491 = vld [vmem:[%s9 + $0x1e8] sm:$0xff]
    %v3492 = vld [vmem:[%s9 + $0x1f0] sm:$0xff]
    %v3493 = vld [vmem:[%s9 + $0x1f8] sm:$0xff]
    %v3494 = vld [vmem:[%s9 + $0x200] sm:$0xff]
    %v3495 = vld [vmem:[%s9 + $0x208] sm:$0xff]
    %v3496 = vld [vmem:[%s9 + $0x210] sm:$0xff]
    %v3497 = vld [vmem:[%s9 + $0x218] sm:$0xff]
    %v3498 = vld [vmem:[%s9 + $0x220] sm:$0xff]
    %v3499 = vld [vmem:[%s9 + $0x228] sm:$0xff]
    %v3500 = vld [vmem:[%s9 + $0x230] sm:$0xff]
    %v3501 = vld [vmem:[%s9 + $0x238] sm:$0xff]
    %v3502 = vld [vmem:[%s9 + $0x240] sm:$0xff]
    %v3503 = vld [vmem:[%s9 + $0x248] sm:$0xff]
    %v3504 = vld [vmem:[%s9 + $0x250] sm:$0xff]
    %v3505 = vld [vmem:[%s9 + $0x258] sm:$0xff]
    %v3506 = vld [vmem:[%s9 + $0x260] sm:$0xff]
    %v3507 = vld [vmem:[%s9 + $0x268] sm:$0xff]
    %v3508 = vld [vmem:[%s9 + $0x270] sm:$0xff]
    %v3509 = vld [vmem:[%s9 + $0x278] sm:$0xff]
    %v3510 = vld [vmem:[%s9 + $0x280] sm:$0xff]
    %v3511 = vld [vmem:[%s9 + $0x288] sm:$0xff]
    %v3512 = vld [vmem:[%s9 + $0x290] sm:$0xff]
    %v3513 = vld [vmem:[%s9 + $0x298] sm:$0xff]
    %v3514 = vld [vmem:[%s9 + $0x2a0] sm:$0xff]
    %v3515 = vld [vmem:[%s9 + $0x2a8] sm:$0xff]
    %v3516 = vld [vmem:[%s9 + $0x2b0] sm:$0xff]
    %v3517 = vld [vmem:[%s9 + $0x2b8] sm:$0xff]
    %v3518 = vld [vmem:[%s9 + $0x2c0] sm:$0xff]
    %v3519 = vld [vmem:[%s9 + $0x2c8] sm:$0xff]
    %v3520 = vld [vmem:[%s9 + $0x2d0] sm:$0xff]
    %v3521 = vld [vmem:[%s9 + $0x2d8] sm:$0xff]
    %v3522 = vld [vmem:[%s9 + $0x2e0] sm:$0xff]
    %v3523 = vld [vmem:[%s9 + $0x2e8] sm:$0xff]
    %v3524 = vld [vmem:[%s9 + $0x2f0] sm:$0xff]
    %v3525 = vld [vmem:[%s9 + $0x2f8] sm:$0xff]
    %v3526 = vld [vmem:[%s11] sm:$0x7]
    %v3528 = vlaneseq
    %v3529 = vshrl.u32 %v3528, 7
    %v3530 = vsub.s32 0, %v3529
    %v3531 = vrot.slane %v3526, %v3530
    %v3532 = vlaneseq
    %v3533 = vshrl.u32 %v3532, 7
    %v3534 = vsub.s32 1, %v3533
    %v3535 = vrot.slane %v3526, %v3534
    %v3536 = vlaneseq
    %v3537 = vshrl.u32 %v3536, 7
    %v3538 = vsub.s32 2, %v3537
    %v3539 = vrot.slane %v3526, %v3538
    %3543 = vmatprep.subr.mxu0 %v3431
    %3544 = vmatpush1.msra.mxu0 %v3430
    %3545 = vmatprep.subr.mxu0 %v3434
    %3546 = vmatpush1.msra.mxu0 %v3433
    %3547 = vmatprep.subr.mxu0 %v3437
    %3548 = vmatpush1.msra.mxu0 %v3436
    %3549 = vmatprep.subr.mxu0 %v3440
    %3550 = vmatpush1.msra.mxu0 %v3439
    %3551 = vmatprep.subr.mxu0 %v3443
    %3552 = vmatpush1.msra.mxu0 %v3442
    %3553 = vmatprep.subr.mxu0 %v3446
    %3554 = vmatpush1.msra.mxu0 %v3445
    %3555 = vmatprep.subr.mxu0 %v3449
    %3556 = vmatpush1.msra.mxu0 %v3448
    %3557 = vmatprep.subr.mxu0 %v3452
    %3558 = vmatpush1.msra.mxu0 %v3451
    %3559 = vmatprep.subr.mxu0 %v3455
    %3560 = vmatpush1.msra.mxu0 %v3454
    %3561 = vmatprep.subr.mxu0 %v3458
    %3562 = vmatpush1.msra.mxu0 %v3457
    %3563 = vmatprep.subr.mxu0 %v3461
    %3564 = vmatpush1.msra.mxu0 %v3460
    %3565 = vmatprep.subr.mxu0 %v3464
    %3566 = vmatpush1.msra.mxu0 %v3463
    %3567 = vmatprep.subr.mxu0 %v3467
    %3568 = vmatpush1.msra.mxu0 %v3466
    %3569 = vmatprep.subr.mxu0 %v3470
    %3570 = vmatpush1.msra.mxu0 %v3469
    %3571 = vmatprep.subr.mxu0 %v3473
    %3572 = vmatpush1.msra.mxu0 %v3472
    %3573 = vmatprep.subr.mxu0 %v3476
    %3574 = vmatpush1.msra.mxu0 %v3475
    %3575 = vmatprep.subr.mxu0 %v3479
    %3576 = vmatpush1.msra.mxu0 %v3478
    %3577 = vmatprep.subr.mxu0 %v3482
    %3578 = vmatpush1.msra.mxu0 %v3481
    %3579 = vmatprep.subr.mxu0 %v3485
    %3580 = vmatpush1.msra.mxu0 %v3484
    %3581 = vmatprep.subr.mxu0 %v3488
    %3582 = vmatpush1.msra.mxu0 %v3487
    %3583 = vmatprep.subr.mxu0 %v3491
    %3584 = vmatpush1.msra.mxu0 %v3490
    %3585 = vmatprep.subr.mxu0 %v3494
    %3586 = vmatpush1.msra.mxu0 %v3493
    %3587 = vmatprep.subr.mxu0 %v3497
    %3588 = vmatpush1.msra.mxu0 %v3496
    %3589 = vmatprep.subr.mxu0 %v3500
    %3590 = vmatpush1.msra.mxu0 %v3499
    %3591 = vmatprep.subr.mxu0 %v3503
    %3592 = vmatpush1.msra.mxu0 %v3502
    %3593 = vmatprep.subr.mxu0 %v3506
    %3594 = vmatpush1.msra.mxu0 %v3505
    %3595 = vmatprep.subr.mxu0 %v3509
    %3596 = vmatpush1.msra.mxu0 %v3508
    %3597 = vmatprep.subr.mxu0 %v3512
    %3598 = vmatpush1.msra.mxu0 %v3511
    %3599 = vmatprep.subr.mxu0 %v3515
    %3600 = vmatpush1.msra.mxu0 %v3514
    %3601 = vmatprep.subr.mxu0 %v3518
    %3602 = vmatpush1.msra.mxu0 %v3517
    %3603 = vmatprep.subr.mxu0 %v3521
    %3604 = vmatpush1.msra.mxu0 %v3520
    %3605 = vmatprep.subr.mxu0 %v3524
    %3606 = vmatpush1.msra.mxu0 %v3523
    %3607 = vmatprep.mubr.f32.mxu0 %v3429
    %3608 = vmatmul.mubr.f32.gmra.mrb[0].mxu0 %v675
    %v3609 = vpop.f32.mrb[0].mxu0
    %v3610 = vadd.f32 %v3531, %v3609
    %v3611 = vpop.f32.mrb[0].mxu0
    %v3612 = vadd.f32 %v3535, %v3611
    %3613 = vmatprep.mubr.f32.mxu0 %v3267
    %3614 = vmatmul.mubr.f32.gmra.mrb[0].mxu0 %v837
    %v3615 = vpop.f32.mrb[0].mxu0
    %v3616 = vadd.f32 %v3531, %v3615
    %v3617 = vpop.f32.mrb[0].mxu0
    %v3618 = vadd.f32 %v3535, %v3617
    %3619 = vmatprep.mubr.f32.mxu0 %v3105
    %3620 = vmatmul.mubr.f32.gmra.mrb[0].mxu0 %v999
    %v3621 = vpop.f32.mrb[0].mxu0
    %v3622 = vadd.f32 %v3531, %v3621
    %v3623 = vpop.f32.mrb[0].mxu0
    %v3624 = vadd.f32 %v3535, %v3623
    %3625 = vmatprep.mubr.f32.mxu0 %v2943
    %3626 = vmatmul.mubr.f32.gmra.mrb[0].mxu0 %v1161
    %v3627 = vpop.f32.mrb[0].mxu0
    %v3628 = vadd.f32 %v3531, %v3627
    %v3629 = vpop.f32.mrb[0].mxu0
    %v3630 = vadd.f32 %v3535, %v3629
    %3631 = vmatprep.mubr.f32.mxu0 %v2781
    %3632 = vmatmul.mubr.f32.gmra.mrb[0].mxu0 %v1323
    %v3633 = vpop.f32.mrb[0].mxu0
    %v3634 = vadd.f32 %v3531, %v3633
    %v3635 = vpop.f32.mrb[0].mxu0
    %v3636 = vadd.f32 %v3535, %v3635
    %3637 = vmatprep.mubr.f32.mxu0 %v2619
    %3638 = vmatmul.mubr.f32.gmra.mrb[0].mxu0 %v1485
    %v3639 = vpop.f32.mrb[0].mxu0
    %v3640 = vadd.f32 %v3531, %v3639
    %v3641 = vpop.f32.mrb[0].mxu0
    %v3642 = vadd.f32 %v3535, %v3641
    %3643 = vmatprep.mubr.f32.mxu0 %v2457
    %3644 = vmatmul.mubr.f32.gmra.mrb[0].mxu0 %v1647
    %v3645 = vpop.f32.mrb[0].mxu0
    %v3646 = vadd.f32 %v3531, %v3645
    %v3647 = vpop.f32.mrb[0].mxu0
    %v3648 = vadd.f32 %v3535, %v3647
    %3649 = vmatprep.mubr.f32.mxu0 %v2295
    %3650 = vmatmul.mubr.f32.gmra.mrb[0].mxu0 %v1809
    %v3651 = vpop.f32.mrb[0].mxu0
    %v3652 = vadd.f32 %v3531, %v3651
    %v3653 = vpop.f32.mrb[0].mxu0
    %v3654 = vadd.f32 %v3535, %v3653
    %3655 = vdwg.mxu0
    %3656 = vmatprep.subr.mxu0 0.0
    %3657 = vmatpush1.msra.mxu0 %v3432
    %3658 = vmatprep.subr.mxu0 0.0
    %3659 = vmatpush1.msra.mxu0 %v3435
    %3660 = vmatprep.subr.mxu0 0.0
    %3661 = vmatpush1.msra.mxu0 %v3438
    %3662 = vmatprep.subr.mxu0 0.0
    %3663 = vmatpush1.msra.mxu0 %v3441
    %3664 = vmatprep.subr.mxu0 0.0
    %3665 = vmatpush1.msra.mxu0 %v3444
    %3666 = vmatprep.subr.mxu0 0.0
    %3667 = vmatpush1.msra.mxu0 %v3447
    %3668 = vmatprep.subr.mxu0 0.0
    %3669 = vmatpush1.msra.mxu0 %v3450
    %3670 = vmatprep.subr.mxu0 0.0
    %3671 = vmatpush1.msra.mxu0 %v3453
    %3672 = vmatprep.subr.mxu0 0.0
    %3673 = vmatpush1.msra.mxu0 %v3456
    %3674 = vmatprep.subr.mxu0 0.0
    %3675 = vmatpush1.msra.mxu0 %v3459
    %3676 = vmatprep.subr.mxu0 0.0
    %3677 = vmatpush1.msra.mxu0 %v3462
    %3678 = vmatprep.subr.mxu0 0.0
    %3679 = vmatpush1.msra.mxu0 %v3465
    %3680 = vmatprep.subr.mxu0 0.0
    %3681 = vmatpush1.msra.mxu0 %v3468
    %3682 = vmatprep.subr.mxu0 0.0
    %3683 = vmatpush1.msra.mxu0 %v3471
    %3684 = vmatprep.subr.mxu0 0.0
    %3685 = vmatpush1.msra.mxu0 %v3474
    %3686 = vmatprep.subr.mxu0 0.0
    %3687 = vmatpush1.msra.mxu0 %v3477
    %3688 = vmatprep.subr.mxu0 0.0
    %3689 = vmatpush1.msra.mxu0 %v3480
    %3690 = vmatprep.subr.mxu0 0.0
    %3691 = vmatpush1.msra.mxu0 %v3483
    %3692 = vmatprep.subr.mxu0 0.0
    %3693 = vmatpush1.msra.mxu0 %v3486
    %3694 = vmatprep.subr.mxu0 0.0
    %3695 = vmatpush1.msra.mxu0 %v3489
    %3696 = vmatprep.subr.mxu0 0.0
    %3697 = vmatpush1.msra.mxu0 %v3492
    %3698 = vmatprep.subr.mxu0 0.0
    %3699 = vmatpush1.msra.mxu0 %v3495
    %3700 = vmatprep.subr.mxu0 0.0
    %3701 = vmatpush1.msra.mxu0 %v3498
    %3702 = vmatprep.subr.mxu0 0.0
    %3703 = vmatpush1.msra.mxu0 %v3501
    %3704 = vmatprep.subr.mxu0 0.0
    %3705 = vmatpush1.msra.mxu0 %v3504
    %3706 = vmatprep.subr.mxu0 0.0
    %3707 = vmatpush1.msra.mxu0 %v3507
    %3708 = vmatprep.subr.mxu0 0.0
    %3709 = vmatpush1.msra.mxu0 %v3510
    %3710 = vmatprep.subr.mxu0 0.0
    %3711 = vmatpush1.msra.mxu0 %v3513
    %3712 = vmatprep.subr.mxu0 0.0
    %3713 = vmatpush1.msra.mxu0 %v3516
    %3714 = vmatprep.subr.mxu0 0.0
    %3715 = vmatpush1.msra.mxu0 %v3519
    %3716 = vmatprep.subr.mxu0 0.0
    %3717 = vmatpush1.msra.mxu0 %v3522
    %3718 = vmatprep.subr.mxu0 0.0
    %3719 = vmatpush1.msra.mxu0 %v3525
    %3720 = vmatprep.mubr.f32.mxu0 %v3429
    %3721 = vmatmul.mubr.f32.gmra.mrb[0].mxu0 %v675
    %v3722 = vpop.f32.mrb[0].mxu0
    %v3723 = vadd.f32 %v3539, %v3722
    %v3724 = vpop.f32.mrb[0].mxu0
    %3725 = vmatprep.mubr.f32.mxu0 %v3267
    %3726 = vmatmul.mubr.f32.gmra.mrb[0].mxu0 %v837
    %v3727 = vpop.f32.mrb[0].mxu0
    %v3728 = vadd.f32 %v3539, %v3727
    %v3729 = vpop.f32.mrb[0].mxu0
    %3730 = vmatprep.mubr.f32.mxu0 %v3105
    %3731 = vmatmul.mubr.f32.gmra.mrb[0].mxu0 %v999
    %v3732 = vpop.f32.mrb[0].mxu0
    %v3733 = vadd.f32 %v3539, %v3732
    %v3734 = vpop.f32.mrb[0].mxu0
    %3735 = vmatprep.mubr.f32.mxu0 %v2943
    %3736 = vmatmul.mubr.f32.gmra.mrb[0].mxu0 %v1161
    %v3737 = vpop.f32.mrb[0].mxu0
    %v3738 = vadd.f32 %v3539, %v3737
    %v3739 = vpop.f32.mrb[0].mxu0
    %3740 = vmatprep.mubr.f32.mxu0 %v2781
    %3741 = vmatmul.mubr.f32.gmra.mrb[0].mxu0 %v1323
    %v3742 = vpop.f32.mrb[0].mxu0
    %v3743 = vadd.f32 %v3539, %v3742
    %v3744 = vpop.f32.mrb[0].mxu0
    %3745 = vmatprep.mubr.f32.mxu0 %v2619
    %3746 = vmatmul.mubr.f32.gmra.mrb[0].mxu0 %v1485
    %v3747 = vpop.f32.mrb[0].mxu0
    %v3748 = vadd.f32 %v3539, %v3747
    %v3749 = vpop.f32.mrb[0].mxu0
    %3750 = vmatprep.mubr.f32.mxu0 %v2457
    %3751 = vmatmul.mubr.f32.gmra.mrb[0].mxu0 %v1647
    %v3752 = vpop.f32.mrb[0].mxu0
    %v3753 = vadd.f32 %v3539, %v3752
    %v3754 = vpop.f32.mrb[0].mxu0
    %3755 = vmatprep.mubr.f32.mxu0 %v2295
    %3756 = vmatmul.mubr.f32.gmra.mrb[0].mxu0 %v1809
    %v3757 = vpop.f32.mrb[0].mxu0
    %v3758 = vadd.f32 %v3539, %v3757
    %v3759 = vpop.f32.mrb[0].mxu0
    %3760 = vdwg.mxu0
    %v3761 = vld [vmem:[#allocation9] sm:$0xff]
    %v3762 = vld [vmem:[#allocation9 + $0x8] sm:$0xff]
    %v3763 = vld [vmem:[#allocation9 + $0x10] sm:$0xff]
    %v3764 = vld [vmem:[#allocation9 + $0x18] sm:$0xff]
    %v3765 = vld [vmem:[#allocation9 + $0x20] sm:$0xff]
    %v3766 = vld [vmem:[#allocation9 + $0x28] sm:$0xff]
    %v3767 = vld [vmem:[#allocation9 + $0x30] sm:$0xff]
    %v3768 = vld [vmem:[#allocation9 + $0x38] sm:$0xff]
    %v3769 = vld [vmem:[#allocation9 + $0x40] sm:$0xff]
    %v3770 = vld [vmem:[#allocation9 + $0x48] sm:$0xff]
    %v3771 = vld [vmem:[#allocation9 + $0x50] sm:$0xff]
    %v3772 = vld [vmem:[#allocation9 + $0x58] sm:$0xff]
    %v3773 = vld [vmem:[#allocation9 + $0x60] sm:$0xff]
    %v3774 = vld [vmem:[#allocation9 + $0x68] sm:$0xff]
    %v3775 = vld [vmem:[#allocation9 + $0x70] sm:$0xff]
    %v3776 = vld [vmem:[#allocation9 + $0x78] sm:$0xff]
    %v3777 = vld [vmem:[#allocation9 + $0x80] sm:$0xff]
    %v3778 = vld [vmem:[#allocation9 + $0x88] sm:$0xff]
    %v3779 = vld [vmem:[#allocation9 + $0x90] sm:$0xff]
    %v3780 = vld [vmem:[#allocation9 + $0x98] sm:$0xff]
    %v3781 = vld [vmem:[#allocation9 + $0xa0] sm:$0xff]
    %v3782 = vld [vmem:[#allocation9 + $0xa8] sm:$0xff]
    %v3783 = vld [vmem:[#allocation9 + $0xb0] sm:$0xff]
    %v3784 = vld [vmem:[#allocation9 + $0xb8] sm:$0xff]
    %v3785 = vld [vmem:[#allocation9 + $0xc0] sm:$0xff]
    %v3786 = vld [vmem:[#allocation9 + $0xc8] sm:$0xff]
    %v3787 = vld [vmem:[#allocation9 + $0xd0] sm:$0xff]
    %v3788 = vld [vmem:[#allocation9 + $0xd8] sm:$0xff]
    %v3789 = vld [vmem:[#allocation9 + $0xe0] sm:$0xff]
    %v3790 = vld [vmem:[#allocation9 + $0xe8] sm:$0xff]
    %v3791 = vld [vmem:[#allocation9 + $0xf0] sm:$0xff]
    %v3792 = vld [vmem:[#allocation9 + $0xf8] sm:$0xff]
    %v3793 = vld [vmem:[#allocation9 + $0x100] sm:$0xff]
    %v3794 = vld [vmem:[#allocation9 + $0x108] sm:$0xff]
    %v3795 = vld [vmem:[#allocation9 + $0x110] sm:$0xff]
    %v3796 = vld [vmem:[#allocation9 + $0x118] sm:$0xff]
    %v3797 = vld [vmem:[#allocation9 + $0x120] sm:$0xff]
    %v3798 = vld [vmem:[#allocation9 + $0x128] sm:$0xff]
    %v3799 = vld [vmem:[#allocation9 + $0x130] sm:$0xff]
    %v3800 = vld [vmem:[#allocation9 + $0x138] sm:$0xff]
    %v3801 = vld [vmem:[#allocation9 + $0x140] sm:$0xff]
    %v3802 = vld [vmem:[#allocation9 + $0x148] sm:$0xff]
    %v3803 = vld [vmem:[#allocation9 + $0x150] sm:$0xff]
    %v3804 = vld [vmem:[#allocation9 + $0x158] sm:$0xff]
    %v3805 = vld [vmem:[#allocation9 + $0x160] sm:$0xff]
    %v3806 = vld [vmem:[#allocation9 + $0x168] sm:$0xff]
    %v3807 = vld [vmem:[#allocation9 + $0x170] sm:$0xff]
    %v3808 = vld [vmem:[#allocation9 + $0x178] sm:$0xff]
    %v3809 = vld [vmem:[%s12] sm:$0x7]
    %v3811 = vlaneseq
    %v3812 = vshrl.u32 %v3811, 7
    %v3813 = vsub.s32 0, %v3812
    %v3814 = vrot.slane %v3809, %v3813
    %v3815 = vlaneseq
    %v3816 = vshrl.u32 %v3815, 7
    %v3817 = vsub.s32 1, %v3816
    %v3818 = vrot.slane %v3809, %v3817
    %v3819 = vlaneseq
    %v3820 = vshrl.u32 %v3819, 7
    %v3821 = vsub.s32 2, %v3820
    %v3822 = vrot.slane %v3809, %v3821
    %3826 = vmatprep.subr.mxu0 %v3762
    %3827 = vmatpush1.msra.mxu0 %v3761
    %3828 = vmatprep.subr.mxu0 %v3765
    %3829 = vmatpush1.msra.mxu0 %v3764
    %3830 = vmatprep.subr.mxu0 %v3768
    %3831 = vmatpush1.msra.mxu0 %v3767
    %3832 = vmatprep.subr.mxu0 %v3771
    %3833 = vmatpush1.msra.mxu0 %v3770
    %3834 = vmatprep.subr.mxu0 %v3774
    %3835 = vmatpush1.msra.mxu0 %v3773
    %3836 = vmatprep.subr.mxu0 %v3777
    %3837 = vmatpush1.msra.mxu0 %v3776
    %3838 = vmatprep.subr.mxu0 %v3780
    %3839 = vmatpush1.msra.mxu0 %v3779
    %3840 = vmatprep.subr.mxu0 %v3783
    %3841 = vmatpush1.msra.mxu0 %v3782
    %3842 = vmatprep.subr.mxu0 %v3786
    %3843 = vmatpush1.msra.mxu0 %v3785
    %3844 = vmatprep.subr.mxu0 %v3789
    %3845 = vmatpush1.msra.mxu0 %v3788
    %3846 = vmatprep.subr.mxu0 %v3792
    %3847 = vmatpush1.msra.mxu0 %v3791
    %3848 = vmatprep.subr.mxu0 %v3795
    %3849 = vmatpush1.msra.mxu0 %v3794
    %3850 = vmatprep.subr.mxu0 %v3798
    %3851 = vmatpush1.msra.mxu0 %v3797
    %3852 = vmatprep.subr.mxu0 %v3801
    %3853 = vmatpush1.msra.mxu0 %v3800
    %3854 = vmatprep.subr.mxu0 %v3804
    %3855 = vmatpush1.msra.mxu0 %v3803
    %3856 = vmatprep.subr.mxu0 %v3807
    %3857 = vmatpush1.msra.mxu0 %v3806
    %3858 = vmatprep.subr.mxu0 0.0
    %3859 = vmatpush1.msra.mxu0 0.0
    %3860 = vmatprep.subr.mxu0 0.0
    %3861 = vmatpush1.msra.mxu0 0.0
    %3862 = vmatprep.subr.mxu0 0.0
    %3863 = vmatpush1.msra.mxu0 0.0
    %3864 = vmatprep.subr.mxu0 0.0
    %3865 = vmatpush1.msra.mxu0 0.0
    %3866 = vmatprep.subr.mxu0 0.0
    %3867 = vmatpush1.msra.mxu0 0.0
    %3868 = vmatprep.subr.mxu0 0.0
    %3869 = vmatpush1.msra.mxu0 0.0
    %3870 = vmatprep.subr.mxu0 0.0
    %3871 = vmatpush1.msra.mxu0 0.0
    %3872 = vmatprep.subr.mxu0 0.0
    %3873 = vmatpush1.msra.mxu0 0.0
    %3874 = vmatprep.subr.mxu0 0.0
    %3875 = vmatpush1.msra.mxu0 0.0
    %3876 = vmatprep.subr.mxu0 0.0
    %3877 = vmatpush1.msra.mxu0 0.0
    %3878 = vmatprep.subr.mxu0 0.0
    %3879 = vmatpush1.msra.mxu0 0.0
    %3880 = vmatprep.subr.mxu0 0.0
    %3881 = vmatpush1.msra.mxu0 0.0
    %3882 = vmatprep.subr.mxu0 0.0
    %3883 = vmatpush1.msra.mxu0 0.0
    %3884 = vmatprep.subr.mxu0 0.0
    %3885 = vmatpush1.msra.mxu0 0.0
    %3886 = vmatprep.subr.mxu0 0.0
    %3887 = vmatpush1.msra.mxu0 0.0
    %3888 = vmatprep.subr.mxu0 0.0
    %3889 = vmatpush1.msra.mxu0 0.0
    %3890 = vmatprep.mubr.f32.mxu0 0.0
    %3891 = vmatmul.mubr.f32.gmra.mrb[0].mxu0 0.0
    %v3892 = vpop.f32.mrb[0].mxu0
    %v3893 = vadd.f32 %v3814, %v3892
    %v3894 = vpop.f32.mrb[0].mxu0
    %v3895 = vadd.f32 %v3818, %v3894
    %3896 = vdwg.mxu0
    %3897 = vmatprep.subr.mxu0 0.0
    %3898 = vmatpush1.msra.mxu0 %v3763
    %3899 = vmatprep.subr.mxu0 0.0
    %3900 = vmatpush1.msra.mxu0 %v3766
    %3901 = vmatprep.subr.mxu0 0.0
    %3902 = vmatpush1.msra.mxu0 %v3769
    %3903 = vmatprep.subr.mxu0 0.0
    %3904 = vmatpush1.msra.mxu0 %v3772
    %3905 = vmatprep.subr.mxu0 0.0
    %3906 = vmatpush1.msra.mxu0 %v3775
    %3907 = vmatprep.subr.mxu0 0.0
    %3908 = vmatpush1.msra.mxu0 %v3778
    %3909 = vmatprep.subr.mxu0 0.0
    %3910 = vmatpush1.msra.mxu0 %v3781
    %3911 = vmatprep.subr.mxu0 0.0
    %3912 = vmatpush1.msra.mxu0 %v3784
    %3913 = vmatprep.subr.mxu0 0.0
    %3914 = vmatpush1.msra.mxu0 %v3787
    %3915 = vmatprep.subr.mxu0 0.0
    %3916 = vmatpush1.msra.mxu0 %v3790
    %3917 = vmatprep.subr.mxu0 0.0
    %3918 = vmatpush1.msra.mxu0 %v3793
    %3919 = vmatprep.subr.mxu0 0.0
    %3920 = vmatpush1.msra.mxu0 %v3796
    %3921 = vmatprep.subr.mxu0 0.0
    %3922 = vmatpush1.msra.mxu0 %v3799
    %3923 = vmatprep.subr.mxu0 0.0
    %3924 = vmatpush1.msra.mxu0 %v3802
    %3925 = vmatprep.subr.mxu0 0.0
    %3926 = vmatpush1.msra.mxu0 %v3805
    %3927 = vmatprep.subr.mxu0 0.0
    %3928 = vmatpush1.msra.mxu0 %v3808
    %3929 = vmatprep.subr.mxu0 0.0
    %3930 = vmatpush1.msra.mxu0 0.0
    %3931 = vmatprep.subr.mxu0 0.0
    %3932 = vmatpush1.msra.mxu0 0.0
    %3933 = vmatprep.subr.mxu0 0.0
    %3934 = vmatpush1.msra.mxu0 0.0
    %3935 = vmatprep.subr.mxu0 0.0
    %3936 = vmatpush1.msra.mxu0 0.0
    %3937 = vmatprep.subr.mxu0 0.0
    %3938 = vmatpush1.msra.mxu0 0.0
    %3939 = vmatprep.subr.mxu0 0.0
    %3940 = vmatpush1.msra.mxu0 0.0
    %3941 = vmatprep.subr.mxu0 0.0
    %3942 = vmatpush1.msra.mxu0 0.0
    %3943 = vmatprep.subr.mxu0 0.0
    %3944 = vmatpush1.msra.mxu0 0.0
    %3945 = vmatprep.subr.mxu0 0.0
    %3946 = vmatpush1.msra.mxu0 0.0
    %3947 = vmatprep.subr.mxu0 0.0
    %3948 = vmatpush1.msra.mxu0 0.0
    %3949 = vmatprep.subr.mxu0 0.0
    %3950 = vmatpush1.msra.mxu0 0.0
    %3951 = vmatprep.subr.mxu0 0.0
    %3952 = vmatpush1.msra.mxu0 0.0
    %3953 = vmatprep.subr.mxu0 0.0
    %3954 = vmatpush1.msra.mxu0 0.0
    %3955 = vmatprep.subr.mxu0 0.0
    %3956 = vmatpush1.msra.mxu0 0.0
    %3957 = vmatprep.subr.mxu0 0.0
    %3958 = vmatpush1.msra.mxu0 0.0
    %3959 = vmatprep.subr.mxu0 0.0
    %3960 = vmatpush1.msra.mxu0 0.0
    %3961 = vmatprep.mubr.f32.mxu0 0.0
    %3962 = vmatmul.mubr.f32.gmra.mrb[0].mxu0 0.0
    %v3963 = vpop.f32.mrb[0].mxu0
    %v3964 = vadd.f32 %v3822, %v3963
    %v3965 = vpop.f32.mrb[0].mxu0
    %3966 = vdwg.mxu0
    %v3967 = vadd.f32 %v3610, %v3893
    %v3968 = vxor.u32 %v3967, 2147483648
    %v3969 = vmul.f32 %v3968, 1.442695
    %v3970 = vpow.pop %v3969
    %v3971 = vadd.f32 %v3970, 1.0
    %v3972 = vrcp.pop %v3971
    %v3973 = vmul.f32 1.0, %v3972
    %v3974 = vadd.f32 %v3612, %v3895
    %v3975 = vxor.u32 %v3974, 2147483648
    %v3976 = vmul.f32 %v3975, 1.442695
    %v3977 = vpow.pop %v3976
    %v3978 = vadd.f32 %v3977, 1.0
    %v3979 = vrcp.pop %v3978
    %v3980 = vmul.f32 1.0, %v3979
    %v3981 = vmul.f32 %v3973, %v3964
    %v3982 = vadd.f32 %v3723, %v3981
    %v3983 = vtanh.pop %v3982
    %v3984 = vsub.f32 1.0, %v3980
    %v3985 = vmul.f32 %v3984, %v3983
    %v3986 = vmul.f32 %v3980, 0.0
    %v3987 = vadd.f32 %v3985, %v3986
    %3988 = vmatprep.subr.mxu0 %v3762
    %3989 = vmatpush1.msra.mxu0 %v3761
    %3990 = vmatprep.subr.mxu0 %v3765
    %3991 = vmatpush1.msra.mxu0 %v3764
    %3992 = vmatprep.subr.mxu0 %v3768
    %3993 = vmatpush1.msra.mxu0 %v3767
    %3994 = vmatprep.subr.mxu0 %v3771
    %3995 = vmatpush1.msra.mxu0 %v3770
    %3996 = vmatprep.subr.mxu0 %v3774
    %3997 = vmatpush1.msra.mxu0 %v3773
    %3998 = vmatprep.subr.mxu0 %v3777
    %3999 = vmatpush1.msra.mxu0 %v3776
    %4000 = vmatprep.subr.mxu0 %v3780
    %4001 = vmatpush1.msra.mxu0 %v3779
    %4002 = vmatprep.subr.mxu0 %v3783
    %4003 = vmatpush1.msra.mxu0 %v3782
    %4004 = vmatprep.subr.mxu0 %v3786
    %4005 = vmatpush1.msra.mxu0 %v3785
    %4006 = vmatprep.subr.mxu0 %v3789
    %4007 = vmatpush1.msra.mxu0 %v3788
    %4008 = vmatprep.subr.mxu0 %v3792
    %4009 = vmatpush1.msra.mxu0 %v3791
    %4010 = vmatprep.subr.mxu0 %v3795
    %4011 = vmatpush1.msra.mxu0 %v3794
    %4012 = vmatprep.subr.mxu0 %v3798
    %4013 = vmatpush1.msra.mxu0 %v3797
    %4014 = vmatprep.subr.mxu0 %v3801
    %4015 = vmatpush1.msra.mxu0 %v3800
    %4016 = vmatprep.subr.mxu0 %v3804
    %4017 = vmatpush1.msra.mxu0 %v3803
    %4018 = vmatprep.subr.mxu0 %v3807
    %4019 = vmatpush1.msra.mxu0 %v3806
    %4020 = vmatprep.subr.mxu0 0.0
    %4021 = vmatpush1.msra.mxu0 0.0
    %4022 = vmatprep.subr.mxu0 0.0
    %4023 = vmatpush1.msra.mxu0 0.0
    %4024 = vmatprep.subr.mxu0 0.0
    %4025 = vmatpush1.msra.mxu0 0.0
    %4026 = vmatprep.subr.mxu0 0.0
    %4027 = vmatpush1.msra.mxu0 0.0
    %4028 = vmatprep.subr.mxu0 0.0
    %4029 = vmatpush1.msra.mxu0 0.0
    %4030 = vmatprep.subr.mxu0 0.0
    %4031 = vmatpush1.msra.mxu0 0.0
    %4032 = vmatprep.subr.mxu0 0.0
    %4033 = vmatpush1.msra.mxu0 0.0
    %4034 = vmatprep.subr.mxu0 0.0
    %4035 = vmatpush1.msra.mxu0 0.0
    %4036 = vmatprep.subr.mxu0 0.0
    %4037 = vmatpush1.msra.mxu0 0.0
    %4038 = vmatprep.subr.mxu0 0.0
    %4039 = vmatpush1.msra.mxu0 0.0
    %4040 = vmatprep.subr.mxu0 0.0
    %4041 = vmatpush1.msra.mxu0 0.0
    %4042 = vmatprep.subr.mxu0 0.0
    %4043 = vmatpush1.msra.mxu0 0.0
    %4044 = vmatprep.subr.mxu0 0.0
    %4045 = vmatpush1.msra.mxu0 0.0
    %4046 = vmatprep.subr.mxu0 0.0
    %4047 = vmatpush1.msra.mxu0 0.0
    %4048 = vmatprep.subr.mxu0 0.0
    %4049 = vmatpush1.msra.mxu0 0.0
    %4050 = vmatprep.subr.mxu0 0.0
    %4051 = vmatpush1.msra.mxu0 0.0
    %4052 = vmatprep.mubr.f32.mxu0 0.0
    %4053 = vmatmul.mubr.f32.gmra.mrb[0].mxu0 %v3987
    %v4054 = vpop.f32.mrb[0].mxu0
    %v4055 = vadd.f32 %v3814, %v4054
    %v4056 = vpop.f32.mrb[0].mxu0
    %v4057 = vadd.f32 %v3818, %v4056
    %4058 = vdwg.mxu0
    %4059 = vmatprep.subr.mxu0 0.0
    %4060 = vmatpush1.msra.mxu0 %v3763
    %4061 = vmatprep.subr.mxu0 0.0
    %4062 = vmatpush1.msra.mxu0 %v3766
    %4063 = vmatprep.subr.mxu0 0.0
    %4064 = vmatpush1.msra.mxu0 %v3769
    %4065 = vmatprep.subr.mxu0 0.0
    %4066 = vmatpush1.msra.mxu0 %v3772
    %4067 = vmatprep.subr.mxu0 0.0
    %4068 = vmatpush1.msra.mxu0 %v3775
    %4069 = vmatprep.subr.mxu0 0.0
    %4070 = vmatpush1.msra.mxu0 %v3778
    %4071 = vmatprep.subr.mxu0 0.0
    %4072 = vmatpush1.msra.mxu0 %v3781
    %4073 = vmatprep.subr.mxu0 0.0
    %4074 = vmatpush1.msra.mxu0 %v3784
    %4075 = vmatprep.subr.mxu0 0.0
    %4076 = vmatpush1.msra.mxu0 %v3787
    %4077 = vmatprep.subr.mxu0 0.0
    %4078 = vmatpush1.msra.mxu0 %v3790
    %4079 = vmatprep.subr.mxu0 0.0
    %4080 = vmatpush1.msra.mxu0 %v3793
    %4081 = vmatprep.subr.mxu0 0.0
    %4082 = vmatpush1.msra.mxu0 %v3796
    %4083 = vmatprep.subr.mxu0 0.0
    %4084 = vmatpush1.msra.mxu0 %v3799
    %4085 = vmatprep.subr.mxu0 0.0
    %4086 = vmatpush1.msra.mxu0 %v3802
    %4087 = vmatprep.subr.mxu0 0.0
    %4088 = vmatpush1.msra.mxu0 %v3805
    %4089 = vmatprep.subr.mxu0 0.0
    %4090 = vmatpush1.msra.mxu0 %v3808
    %4091 = vmatprep.subr.mxu0 0.0
    %4092 = vmatpush1.msra.mxu0 0.0
    %4093 = vmatprep.subr.mxu0 0.0
    %4094 = vmatpush1.msra.mxu0 0.0
    %4095 = vmatprep.subr.mxu0 0.0
    %4096 = vmatpush1.msra.mxu0 0.0
    %4097 = vmatprep.subr.mxu0 0.0
    %4098 = vmatpush1.msra.mxu0 0.0
    %4099 = vmatprep.subr.mxu0 0.0
    %4100 = vmatpush1.msra.mxu0 0.0
    %4101 = vmatprep.subr.mxu0 0.0
    %4102 = vmatpush1.msra.mxu0 0.0
    %4103 = vmatprep.subr.mxu0 0.0
    %4104 = vmatpush1.msra.mxu0 0.0
    %4105 = vmatprep.subr.mxu0 0.0
    %4106 = vmatpush1.msra.mxu0 0.0
    %4107 = vmatprep.subr.mxu0 0.0
    %4108 = vmatpush1.msra.mxu0 0.0
    %4109 = vmatprep.subr.mxu0 0.0
    %4110 = vmatpush1.msra.mxu0 0.0
    %4111 = vmatprep.subr.mxu0 0.0
    %4112 = vmatpush1.msra.mxu0 0.0
    %4113 = vmatprep.subr.mxu0 0.0
    %4114 = vmatpush1.msra.mxu0 0.0
    %4115 = vmatprep.subr.mxu0 0.0
    %4116 = vmatpush1.msra.mxu0 0.0
    %4117 = vmatprep.subr.mxu0 0.0
    %4118 = vmatpush1.msra.mxu0 0.0
    %4119 = vmatprep.subr.mxu0 0.0
    %4120 = vmatpush1.msra.mxu0 0.0
    %4121 = vmatprep.subr.mxu0 0.0
    %4122 = vmatpush1.msra.mxu0 0.0
    %4123 = vmatprep.mubr.f32.mxu0 0.0
    %4124 = vmatmul.mubr.f32.gmra.mrb[0].mxu0 %v3987
    %v4125 = vpop.f32.mrb[0].mxu0
    %v4126 = vadd.f32 %v3822, %v4125
    %v4127 = vpop.f32.mrb[0].mxu0
    %4128 = vdwg.mxu0
    %v4129 = vadd.f32 %v3616, %v4055
    %v4130 = vxor.u32 %v4129, 2147483648
    %v4131 = vmul.f32 %v4130, 1.442695
    %v4132 = vpow.pop %v4131
    %v4133 = vadd.f32 %v4132, 1.0
    %v4134 = vrcp.pop %v4133
    %v4135 = vmul.f32 1.0, %v4134
    %v4136 = vadd.f32 %v3618, %v4057
    %v4137 = vxor.u32 %v4136, 2147483648
    %v4138 = vmul.f32 %v4137, 1.442695
    %v4139 = vpow.pop %v4138
    %v4140 = vadd.f32 %v4139, 1.0
    %v4141 = vrcp.pop %v4140
    %v4142 = vmul.f32 1.0, %v4141
    %v4143 = vmul.f32 %v4135, %v4126
    %v4144 = vadd.f32 %v3728, %v4143
    %v4145 = vtanh.pop %v4144
    %v4146 = vsub.f32 1.0, %v4142
    %v4147 = vmul.f32 %v4146, %v4145
    %v4148 = vmul.f32 %v4142, %v3987
    %v4149 = vadd.f32 %v4147, %v4148
    %4150 = vmatprep.subr.mxu0 %v3762
    %4151 = vmatpush1.msra.mxu0 %v3761
    %4152 = vmatprep.subr.mxu0 %v3765
    %4153 = vmatpush1.msra.mxu0 %v3764
    %4154 = vmatprep.subr.mxu0 %v3768
    %4155 = vmatpush1.msra.mxu0 %v3767
    %4156 = vmatprep.subr.mxu0 %v3771
    %4157 = vmatpush1.msra.mxu0 %v3770
    %4158 = vmatprep.subr.mxu0 %v3774
    %4159 = vmatpush1.msra.mxu0 %v3773
    %4160 = vmatprep.subr.mxu0 %v3777
    %4161 = vmatpush1.msra.mxu0 %v3776
    %4162 = vmatprep.subr.mxu0 %v3780
    %4163 = vmatpush1.msra.mxu0 %v3779
    %4164 = vmatprep.subr.mxu0 %v3783
    %4165 = vmatpush1.msra.mxu0 %v3782
    %4166 = vmatprep.subr.mxu0 %v3786
    %4167 = vmatpush1.msra.mxu0 %v3785
    %4168 = vmatprep.subr.mxu0 %v3789
    %4169 = vmatpush1.msra.mxu0 %v3788
    %4170 = vmatprep.subr.mxu0 %v3792
    %4171 = vmatpush1.msra.mxu0 %v3791
    %4172 = vmatprep.subr.mxu0 %v3795
    %4173 = vmatpush1.msra.mxu0 %v3794
    %4174 = vmatprep.subr.mxu0 %v3798
    %4175 = vmatpush1.msra.mxu0 %v3797
    %4176 = vmatprep.subr.mxu0 %v3801
    %4177 = vmatpush1.msra.mxu0 %v3800
    %4178 = vmatprep.subr.mxu0 %v3804
    %4179 = vmatpush1.msra.mxu0 %v3803
    %4180 = vmatprep.subr.mxu0 %v3807
    %4181 = vmatpush1.msra.mxu0 %v3806
    %4182 = vmatprep.subr.mxu0 0.0
    %4183 = vmatpush1.msra.mxu0 0.0
    %4184 = vmatprep.subr.mxu0 0.0
    %4185 = vmatpush1.msra.mxu0 0.0
    %4186 = vmatprep.subr.mxu0 0.0
    %4187 = vmatpush1.msra.mxu0 0.0
    %4188 = vmatprep.subr.mxu0 0.0
    %4189 = vmatpush1.msra.mxu0 0.0
    %4190 = vmatprep.subr.mxu0 0.0
    %4191 = vmatpush1.msra.mxu0 0.0
    %4192 = vmatprep.subr.mxu0 0.0
    %4193 = vmatpush1.msra.mxu0 0.0
    %4194 = vmatprep.subr.mxu0 0.0
    %4195 = vmatpush1.msra.mxu0 0.0
    %4196 = vmatprep.subr.mxu0 0.0
    %4197 = vmatpush1.msra.mxu0 0.0
    %4198 = vmatprep.subr.mxu0 0.0
    %4199 = vmatpush1.msra.mxu0 0.0
    %4200 = vmatprep.subr.mxu0 0.0
    %4201 = vmatpush1.msra.mxu0 0.0
    %4202 = vmatprep.subr.mxu0 0.0
    %4203 = vmatpush1.msra.mxu0 0.0
    %4204 = vmatprep.subr.mxu0 0.0
    %4205 = vmatpush1.msra.mxu0 0.0
    %4206 = vmatprep.subr.mxu0 0.0
    %4207 = vmatpush1.msra.mxu0 0.0
    %4208 = vmatprep.subr.mxu0 0.0
    %4209 = vmatpush1.msra.mxu0 0.0
    %4210 = vmatprep.subr.mxu0 0.0
    %4211 = vmatpush1.msra.mxu0 0.0
    %4212 = vmatprep.subr.mxu0 0.0
    %4213 = vmatpush1.msra.mxu0 0.0
    %4214 = vmatprep.mubr.f32.mxu0 0.0
    %4215 = vmatmul.mubr.f32.gmra.mrb[0].mxu0 %v4149
    %v4216 = vpop.f32.mrb[0].mxu0
    %v4217 = vadd.f32 %v3814, %v4216
    %v4218 = vpop.f32.mrb[0].mxu0
    %v4219 = vadd.f32 %v3818, %v4218
    %4220 = vdwg.mxu0
    %4221 = vmatprep.subr.mxu0 0.0
    %4222 = vmatpush1.msra.mxu0 %v3763
    %4223 = vmatprep.subr.mxu0 0.0
    %4224 = vmatpush1.msra.mxu0 %v3766
    %4225 = vmatprep.subr.mxu0 0.0
    %4226 = vmatpush1.msra.mxu0 %v3769
    %4227 = vmatprep.subr.mxu0 0.0
    %4228 = vmatpush1.msra.mxu0 %v3772
    %4229 = vmatprep.subr.mxu0 0.0
    %4230 = vmatpush1.msra.mxu0 %v3775
    %4231 = vmatprep.subr.mxu0 0.0
    %4232 = vmatpush1.msra.mxu0 %v3778
    %4233 = vmatprep.subr.mxu0 0.0
    %4234 = vmatpush1.msra.mxu0 %v3781
    %4235 = vmatprep.subr.mxu0 0.0
    %4236 = vmatpush1.msra.mxu0 %v3784
    %4237 = vmatprep.subr.mxu0 0.0
    %4238 = vmatpush1.msra.mxu0 %v3787
    %4239 = vmatprep.subr.mxu0 0.0
    %4240 = vmatpush1.msra.mxu0 %v3790
    %4241 = vmatprep.subr.mxu0 0.0
    %4242 = vmatpush1.msra.mxu0 %v3793
    %4243 = vmatprep.subr.mxu0 0.0
    %4244 = vmatpush1.msra.mxu0 %v3796
    %4245 = vmatprep.subr.mxu0 0.0
    %4246 = vmatpush1.msra.mxu0 %v3799
    %4247 = vmatprep.subr.mxu0 0.0
    %4248 = vmatpush1.msra.mxu0 %v3802
    %4249 = vmatprep.subr.mxu0 0.0
    %4250 = vmatpush1.msra.mxu0 %v3805
    %4251 = vmatprep.subr.mxu0 0.0
    %4252 = vmatpush1.msra.mxu0 %v3808
    %4253 = vmatprep.subr.mxu0 0.0
    %4254 = vmatpush1.msra.mxu0 0.0
    %4255 = vmatprep.subr.mxu0 0.0
    %4256 = vmatpush1.msra.mxu0 0.0
    %4257 = vmatprep.subr.mxu0 0.0
    %4258 = vmatpush1.msra.mxu0 0.0
    %4259 = vmatprep.subr.mxu0 0.0
    %4260 = vmatpush1.msra.mxu0 0.0
    %4261 = vmatprep.subr.mxu0 0.0
    %4262 = vmatpush1.msra.mxu0 0.0
    %4263 = vmatprep.subr.mxu0 0.0
    %4264 = vmatpush1.msra.mxu0 0.0
    %4265 = vmatprep.subr.mxu0 0.0
    %4266 = vmatpush1.msra.mxu0 0.0
    %4267 = vmatprep.subr.mxu0 0.0
    %4268 = vmatpush1.msra.mxu0 0.0
    %4269 = vmatprep.subr.mxu0 0.0
    %4270 = vmatpush1.msra.mxu0 0.0
    %4271 = vmatprep.subr.mxu0 0.0
    %4272 = vmatpush1.msra.mxu0 0.0
    %4273 = vmatprep.subr.mxu0 0.0
    %4274 = vmatpush1.msra.mxu0 0.0
    %4275 = vmatprep.subr.mxu0 0.0
    %4276 = vmatpush1.msra.mxu0 0.0
    %4277 = vmatprep.subr.mxu0 0.0
    %4278 = vmatpush1.msra.mxu0 0.0
    %4279 = vmatprep.subr.mxu0 0.0
    %4280 = vmatpush1.msra.mxu0 0.0
    %4281 = vmatprep.subr.mxu0 0.0
    %4282 = vmatpush1.msra.mxu0 0.0
    %4283 = vmatprep.subr.mxu0 0.0
    %4284 = vmatpush1.msra.mxu0 0.0
    %4285 = vmatprep.mubr.f32.mxu0 0.0
    %4286 = vmatmul.mubr.f32.gmra.mrb[0].mxu0 %v4149
    %v4287 = vpop.f32.mrb[0].mxu0
    %v4288 = vadd.f32 %v3822, %v4287
    %v4289 = vpop.f32.mrb[0].mxu0
    %4290 = vdwg.mxu0
    %v4291 = vadd.f32 %v3622, %v4217
    %v4292 = vxor.u32 %v4291, 2147483648
    %v4293 = vmul.f32 %v4292, 1.442695
    %v4294 = vpow.pop %v4293
    %v4295 = vadd.f32 %v4294, 1.0
    %v4296 = vrcp.pop %v4295
    %v4297 = vmul.f32 1.0, %v4296
    %v4298 = vadd.f32 %v3624, %v4219
    %v4299 = vxor.u32 %v4298, 2147483648
    %v4300 = vmul.f32 %v4299, 1.442695
    %v4301 = vpow.pop %v4300
    %v4302 = vadd.f32 %v4301, 1.0
    %v4303 = vrcp.pop %v4302
    %v4304 = vmul.f32 1.0, %v4303
    %v4305 = vmul.f32 %v4297, %v4288
    %v4306 = vadd.f32 %v3733, %v4305
    %v4307 = vtanh.pop %v4306
    %v4308 = vsub.f32 1.0, %v4304
    %v4309 = vmul.f32 %v4308, %v4307
    %v4310 = vmul.f32 %v4304, %v4149
    %v4311 = vadd.f32 %v4309, %v4310
    %4312 = vmatprep.subr.mxu0 %v3762
    %4313 = vmatpush1.msra.mxu0 %v3761
    %4314 = vmatprep.subr.mxu0 %v3765
    %4315 = vmatpush1.msra.mxu0 %v3764
    %4316 = vmatprep.subr.mxu0 %v3768
    %4317 = vmatpush1.msra.mxu0 %v3767
    %4318 = vmatprep.subr.mxu0 %v3771
    %4319 = vmatpush1.msra.mxu0 %v3770
    %4320 = vmatprep.subr.mxu0 %v3774
    %4321 = vmatpush1.msra.mxu0 %v3773
    %4322 = vmatprep.subr.mxu0 %v3777
    %4323 = vmatpush1.msra.mxu0 %v3776
    %4324 = vmatprep.subr.mxu0 %v3780
    %4325 = vmatpush1.msra.mxu0 %v3779
    %4326 = vmatprep.subr.mxu0 %v3783
    %4327 = vmatpush1.msra.mxu0 %v3782
    %4328 = vmatprep.subr.mxu0 %v3786
    %4329 = vmatpush1.msra.mxu0 %v3785
    %4330 = vmatprep.subr.mxu0 %v3789
    %4331 = vmatpush1.msra.mxu0 %v3788
    %4332 = vmatprep.subr.mxu0 %v3792
    %4333 = vmatpush1.msra.mxu0 %v3791
    %4334 = vmatprep.subr.mxu0 %v3795
    %4335 = vmatpush1.msra.mxu0 %v3794
    %4336 = vmatprep.subr.mxu0 %v3798
    %4337 = vmatpush1.msra.mxu0 %v3797
    %4338 = vmatprep.subr.mxu0 %v3801
    %4339 = vmatpush1.msra.mxu0 %v3800
    %4340 = vmatprep.subr.mxu0 %v3804
    %4341 = vmatpush1.msra.mxu0 %v3803
    %4342 = vmatprep.subr.mxu0 %v3807
    %4343 = vmatpush1.msra.mxu0 %v3806
    %4344 = vmatprep.subr.mxu0 0.0
    %4345 = vmatpush1.msra.mxu0 0.0
    %4346 = vmatprep.subr.mxu0 0.0
    %4347 = vmatpush1.msra.mxu0 0.0
    %4348 = vmatprep.subr.mxu0 0.0
    %4349 = vmatpush1.msra.mxu0 0.0
    %4350 = vmatprep.subr.mxu0 0.0
    %4351 = vmatpush1.msra.mxu0 0.0
    %4352 = vmatprep.subr.mxu0 0.0
    %4353 = vmatpush1.msra.mxu0 0.0
    %4354 = vmatprep.subr.mxu0 0.0
    %4355 = vmatpush1.msra.mxu0 0.0
    %4356 = vmatprep.subr.mxu0 0.0
    %4357 = vmatpush1.msra.mxu0 0.0
    %4358 = vmatprep.subr.mxu0 0.0
    %4359 = vmatpush1.msra.mxu0 0.0
    %4360 = vmatprep.subr.mxu0 0.0
    %4361 = vmatpush1.msra.mxu0 0.0
    %4362 = vmatprep.subr.mxu0 0.0
    %4363 = vmatpush1.msra.mxu0 0.0
    %4364 = vmatprep.subr.mxu0 0.0
    %4365 = vmatpush1.msra.mxu0 0.0
    %4366 = vmatprep.subr.mxu0 0.0
    %4367 = vmatpush1.msra.mxu0 0.0
    %4368 = vmatprep.subr.mxu0 0.0
    %4369 = vmatpush1.msra.mxu0 0.0
    %4370 = vmatprep.subr.mxu0 0.0
    %4371 = vmatpush1.msra.mxu0 0.0
    %4372 = vmatprep.subr.mxu0 0.0
    %4373 = vmatpush1.msra.mxu0 0.0
    %4374 = vmatprep.subr.mxu0 0.0
    %4375 = vmatpush1.msra.mxu0 0.0
    %4376 = vmatprep.mubr.f32.mxu0 0.0
    %4377 = vmatmul.mubr.f32.gmra.mrb[0].mxu0 %v4311
    %v4378 = vpop.f32.mrb[0].mxu0
    %v4379 = vadd.f32 %v3814, %v4378
    %v4380 = vpop.f32.mrb[0].mxu0
    %v4381 = vadd.f32 %v3818, %v4380
    %4382 = vdwg.mxu0
    %4383 = vmatprep.subr.mxu0 0.0
    %4384 = vmatpush1.msra.mxu0 %v3763
    %4385 = vmatprep.subr.mxu0 0.0
    %4386 = vmatpush1.msra.mxu0 %v3766
    %4387 = vmatprep.subr.mxu0 0.0
    %4388 = vmatpush1.msra.mxu0 %v3769
    %4389 = vmatprep.subr.mxu0 0.0
    %4390 = vmatpush1.msra.mxu0 %v3772
    %4391 = vmatprep.subr.mxu0 0.0
    %4392 = vmatpush1.msra.mxu0 %v3775
    %4393 = vmatprep.subr.mxu0 0.0
    %4394 = vmatpush1.msra.mxu0 %v3778
    %4395 = vmatprep.subr.mxu0 0.0
    %4396 = vmatpush1.msra.mxu0 %v3781
    %4397 = vmatprep.subr.mxu0 0.0
    %4398 = vmatpush1.msra.mxu0 %v3784
    %4399 = vmatprep.subr.mxu0 0.0
    %4400 = vmatpush1.msra.mxu0 %v3787
    %4401 = vmatprep.subr.mxu0 0.0
    %4402 = vmatpush1.msra.mxu0 %v3790
    %4403 = vmatprep.subr.mxu0 0.0
    %4404 = vmatpush1.msra.mxu0 %v3793
    %4405 = vmatprep.subr.mxu0 0.0
    %4406 = vmatpush1.msra.mxu0 %v3796
    %4407 = vmatprep.subr.mxu0 0.0
    %4408 = vmatpush1.msra.mxu0 %v3799
    %4409 = vmatprep.subr.mxu0 0.0
    %4410 = vmatpush1.msra.mxu0 %v3802
    %4411 = vmatprep.subr.mxu0 0.0
    %4412 = vmatpush1.msra.mxu0 %v3805
    %4413 = vmatprep.subr.mxu0 0.0
    %4414 = vmatpush1.msra.mxu0 %v3808
    %4415 = vmatprep.subr.mxu0 0.0
    %4416 = vmatpush1.msra.mxu0 0.0
    %4417 = vmatprep.subr.mxu0 0.0
    %4418 = vmatpush1.msra.mxu0 0.0
    %4419 = vmatprep.subr.mxu0 0.0
    %4420 = vmatpush1.msra.mxu0 0.0
    %4421 = vmatprep.subr.mxu0 0.0
    %4422 = vmatpush1.msra.mxu0 0.0
    %4423 = vmatprep.subr.mxu0 0.0
    %4424 = vmatpush1.msra.mxu0 0.0
    %4425 = vmatprep.subr.mxu0 0.0
    %4426 = vmatpush1.msra.mxu0 0.0
    %4427 = vmatprep.subr.mxu0 0.0
    %4428 = vmatpush1.msra.mxu0 0.0
    %4429 = vmatprep.subr.mxu0 0.0
    %4430 = vmatpush1.msra.mxu0 0.0
    %4431 = vmatprep.subr.mxu0 0.0
    %4432 = vmatpush1.msra.mxu0 0.0
    %4433 = vmatprep.subr.mxu0 0.0
    %4434 = vmatpush1.msra.mxu0 0.0
    %4435 = vmatprep.subr.mxu0 0.0
    %4436 = vmatpush1.msra.mxu0 0.0
    %4437 = vmatprep.subr.mxu0 0.0
    %4438 = vmatpush1.msra.mxu0 0.0
    %4439 = vmatprep.subr.mxu0 0.0
    %4440 = vmatpush1.msra.mxu0 0.0
    %4441 = vmatprep.subr.mxu0 0.0
    %4442 = vmatpush1.msra.mxu0 0.0
    %4443 = vmatprep.subr.mxu0 0.0
    %4444 = vmatpush1.msra.mxu0 0.0
    %4445 = vmatprep.subr.mxu0 0.0
    %4446 = vmatpush1.msra.mxu0 0.0
    %4447 = vmatprep.mubr.f32.mxu0 0.0
    %4448 = vmatmul.mubr.f32.gmra.mrb[0].mxu0 %v4311
    %v4449 = vpop.f32.mrb[0].mxu0
    %v4450 = vadd.f32 %v3822, %v4449
    %v4451 = vpop.f32.mrb[0].mxu0
    %4452 = vdwg.mxu0
    %v4453 = vadd.f32 %v3628, %v4379
    %v4454 = vxor.u32 %v4453, 2147483648
    %v4455 = vmul.f32 %v4454, 1.442695
    %v4456 = vpow.pop %v4455
    %v4457 = vadd.f32 %v4456, 1.0
    %v4458 = vrcp.pop %v4457
    %v4459 = vmul.f32 1.0, %v4458
    %v4460 = vadd.f32 %v3630, %v4381
    %v4461 = vxor.u32 %v4460, 2147483648
    %v4462 = vmul.f32 %v4461, 1.442695
    %v4463 = vpow.pop %v4462
    %v4464 = vadd.f32 %v4463, 1.0
    %v4465 = vrcp.pop %v4464
    %v4466 = vmul.f32 1.0, %v4465
    %v4467 = vmul.f32 %v4459, %v4450
    %v4468 = vadd.f32 %v3738, %v4467
    %v4469 = vtanh.pop %v4468
    %v4470 = vsub.f32 1.0, %v4466
    %v4471 = vmul.f32 %v4470, %v4469
    %v4472 = vmul.f32 %v4466, %v4311
    %v4473 = vadd.f32 %v4471, %v4472
    %4474 = vmatprep.subr.mxu0 %v3762
    %4475 = vmatpush1.msra.mxu0 %v3761
    %4476 = vmatprep.subr.mxu0 %v3765
    %4477 = vmatpush1.msra.mxu0 %v3764
    %4478 = vmatprep.subr.mxu0 %v3768
    %4479 = vmatpush1.msra.mxu0 %v3767
    %4480 = vmatprep.subr.mxu0 %v3771
    %4481 = vmatpush1.msra.mxu0 %v3770
    %4482 = vmatprep.subr.mxu0 %v3774
    %4483 = vmatpush1.msra.mxu0 %v3773
    %4484 = vmatprep.subr.mxu0 %v3777
    %4485 = vmatpush1.msra.mxu0 %v3776
    %4486 = vmatprep.subr.mxu0 %v3780
    %4487 = vmatpush1.msra.mxu0 %v3779
    %4488 = vmatprep.subr.mxu0 %v3783
    %4489 = vmatpush1.msra.mxu0 %v3782
    %4490 = vmatprep.subr.mxu0 %v3786
    %4491 = vmatpush1.msra.mxu0 %v3785
    %4492 = vmatprep.subr.mxu0 %v3789
    %4493 = vmatpush1.msra.mxu0 %v3788
    %4494 = vmatprep.subr.mxu0 %v3792
    %4495 = vmatpush1.msra.mxu0 %v3791
    %4496 = vmatprep.subr.mxu0 %v3795
    %4497 = vmatpush1.msra.mxu0 %v3794
    %4498 = vmatprep.subr.mxu0 %v3798
    %4499 = vmatpush1.msra.mxu0 %v3797
    %4500 = vmatprep.subr.mxu0 %v3801
    %4501 = vmatpush1.msra.mxu0 %v3800
    %4502 = vmatprep.subr.mxu0 %v3804
    %4503 = vmatpush1.msra.mxu0 %v3803
    %4504 = vmatprep.subr.mxu0 %v3807
    %4505 = vmatpush1.msra.mxu0 %v3806
    %4506 = vmatprep.subr.mxu0 0.0
    %4507 = vmatpush1.msra.mxu0 0.0
    %4508 = vmatprep.subr.mxu0 0.0
    %4509 = vmatpush1.msra.mxu0 0.0
    %4510 = vmatprep.subr.mxu0 0.0
    %4511 = vmatpush1.msra.mxu0 0.0
    %4512 = vmatprep.subr.mxu0 0.0
    %4513 = vmatpush1.msra.mxu0 0.0
    %4514 = vmatprep.subr.mxu0 0.0
    %4515 = vmatpush1.msra.mxu0 0.0
    %4516 = vmatprep.subr.mxu0 0.0
    %4517 = vmatpush1.msra.mxu0 0.0
    %4518 = vmatprep.subr.mxu0 0.0
    %4519 = vmatpush1.msra.mxu0 0.0
    %4520 = vmatprep.subr.mxu0 0.0
    %4521 = vmatpush1.msra.mxu0 0.0
    %4522 = vmatprep.subr.mxu0 0.0
    %4523 = vmatpush1.msra.mxu0 0.0
    %4524 = vmatprep.subr.mxu0 0.0
    %4525 = vmatpush1.msra.mxu0 0.0
    %4526 = vmatprep.subr.mxu0 0.0
    %4527 = vmatpush1.msra.mxu0 0.0
    %4528 = vmatprep.subr.mxu0 0.0
    %4529 = vmatpush1.msra.mxu0 0.0
    %4530 = vmatprep.subr.mxu0 0.0
    %4531 = vmatpush1.msra.mxu0 0.0
    %4532 = vmatprep.subr.mxu0 0.0
    %4533 = vmatpush1.msra.mxu0 0.0
    %4534 = vmatprep.subr.mxu0 0.0
    %4535 = vmatpush1.msra.mxu0 0.0
    %4536 = vmatprep.subr.mxu0 0.0
    %4537 = vmatpush1.msra.mxu0 0.0
    %4538 = vmatprep.mubr.f32.mxu0 0.0
    %4539 = vmatmul.mubr.f32.gmra.mrb[0].mxu0 %v4473
    %v4540 = vpop.f32.mrb[0].mxu0
    %v4541 = vadd.f32 %v3814, %v4540
    %v4542 = vpop.f32.mrb[0].mxu0
    %v4543 = vadd.f32 %v3818, %v4542
    %4544 = vdwg.mxu0
    %4545 = vmatprep.subr.mxu0 0.0
    %4546 = vmatpush1.msra.mxu0 %v3763
    %4547 = vmatprep.subr.mxu0 0.0
    %4548 = vmatpush1.msra.mxu0 %v3766
    %4549 = vmatprep.subr.mxu0 0.0
    %4550 = vmatpush1.msra.mxu0 %v3769
    %4551 = vmatprep.subr.mxu0 0.0
    %4552 = vmatpush1.msra.mxu0 %v3772
    %4553 = vmatprep.subr.mxu0 0.0
    %4554 = vmatpush1.msra.mxu0 %v3775
    %4555 = vmatprep.subr.mxu0 0.0
    %4556 = vmatpush1.msra.mxu0 %v3778
    %4557 = vmatprep.subr.mxu0 0.0
    %4558 = vmatpush1.msra.mxu0 %v3781
    %4559 = vmatprep.subr.mxu0 0.0
    %4560 = vmatpush1.msra.mxu0 %v3784
    %4561 = vmatprep.subr.mxu0 0.0
    %4562 = vmatpush1.msra.mxu0 %v3787
    %4563 = vmatprep.subr.mxu0 0.0
    %4564 = vmatpush1.msra.mxu0 %v3790
    %4565 = vmatprep.subr.mxu0 0.0
    %4566 = vmatpush1.msra.mxu0 %v3793
    %4567 = vmatprep.subr.mxu0 0.0
    %4568 = vmatpush1.msra.mxu0 %v3796
    %4569 = vmatprep.subr.mxu0 0.0
    %4570 = vmatpush1.msra.mxu0 %v3799
    %4571 = vmatprep.subr.mxu0 0.0
    %4572 = vmatpush1.msra.mxu0 %v3802
    %4573 = vmatprep.subr.mxu0 0.0
    %4574 = vmatpush1.msra.mxu0 %v3805
    %4575 = vmatprep.subr.mxu0 0.0
    %4576 = vmatpush1.msra.mxu0 %v3808
    %4577 = vmatprep.subr.mxu0 0.0
    %4578 = vmatpush1.msra.mxu0 0.0
    %4579 = vmatprep.subr.mxu0 0.0
    %4580 = vmatpush1.msra.mxu0 0.0
    %4581 = vmatprep.subr.mxu0 0.0
    %4582 = vmatpush1.msra.mxu0 0.0
    %4583 = vmatprep.subr.mxu0 0.0
    %4584 = vmatpush1.msra.mxu0 0.0
    %4585 = vmatprep.subr.mxu0 0.0
    %4586 = vmatpush1.msra.mxu0 0.0
    %4587 = vmatprep.subr.mxu0 0.0
    %4588 = vmatpush1.msra.mxu0 0.0
    %4589 = vmatprep.subr.mxu0 0.0
    %4590 = vmatpush1.msra.mxu0 0.0
    %4591 = vmatprep.subr.mxu0 0.0
    %4592 = vmatpush1.msra.mxu0 0.0
    %4593 = vmatprep.subr.mxu0 0.0
    %4594 = vmatpush1.msra.mxu0 0.0
    %4595 = vmatprep.subr.mxu0 0.0
    %4596 = vmatpush1.msra.mxu0 0.0
    %4597 = vmatprep.subr.mxu0 0.0
    %4598 = vmatpush1.msra.mxu0 0.0
    %4599 = vmatprep.subr.mxu0 0.0
    %4600 = vmatpush1.msra.mxu0 0.0
    %4601 = vmatprep.subr.mxu0 0.0
    %4602 = vmatpush1.msra.mxu0 0.0
    %4603 = vmatprep.subr.mxu0 0.0
    %4604 = vmatpush1.msra.mxu0 0.0
    %4605 = vmatprep.subr.mxu0 0.0
    %4606 = vmatpush1.msra.mxu0 0.0
    %4607 = vmatprep.subr.mxu0 0.0
    %4608 = vmatpush1.msra.mxu0 0.0
    %4609 = vmatprep.mubr.f32.mxu0 0.0
    %4610 = vmatmul.mubr.f32.gmra.mrb[0].mxu0 %v4473
    %v4611 = vpop.f32.mrb[0].mxu0
    %v4612 = vadd.f32 %v3822, %v4611
    %v4613 = vpop.f32.mrb[0].mxu0
    %4614 = vdwg.mxu0
    %v4615 = vadd.f32 %v3634, %v4541
    %v4616 = vxor.u32 %v4615, 2147483648
    %v4617 = vmul.f32 %v4616, 1.442695
    %v4618 = vpow.pop %v4617
    %v4619 = vadd.f32 %v4618, 1.0
    %v4620 = vrcp.pop %v4619
    %v4621 = vmul.f32 1.0, %v4620
    %v4622 = vadd.f32 %v3636, %v4543
    %v4623 = vxor.u32 %v4622, 2147483648
    %v4624 = vmul.f32 %v4623, 1.442695
    %v4625 = vpow.pop %v4624
    %v4626 = vadd.f32 %v4625, 1.0
    %v4627 = vrcp.pop %v4626
    %v4628 = vmul.f32 1.0, %v4627
    %v4629 = vmul.f32 %v4621, %v4612
    %v4630 = vadd.f32 %v3743, %v4629
    %v4631 = vtanh.pop %v4630
    %v4632 = vsub.f32 1.0, %v4628
    %v4633 = vmul.f32 %v4632, %v4631
    %v4634 = vmul.f32 %v4628, %v4473
    %v4635 = vadd.f32 %v4633, %v4634
    %4636 = vmatprep.subr.mxu0 %v3762
    %4637 = vmatpush1.msra.mxu0 %v3761
    %4638 = vmatprep.subr.mxu0 %v3765
    %4639 = vmatpush1.msra.mxu0 %v3764
    %4640 = vmatprep.subr.mxu0 %v3768
    %4641 = vmatpush1.msra.mxu0 %v3767
    %4642 = vmatprep.subr.mxu0 %v3771
    %4643 = vmatpush1.msra.mxu0 %v3770
    %4644 = vmatprep.subr.mxu0 %v3774
    %4645 = vmatpush1.msra.mxu0 %v3773
    %4646 = vmatprep.subr.mxu0 %v3777
    %4647 = vmatpush1.msra.mxu0 %v3776
    %4648 = vmatprep.subr.mxu0 %v3780
    %4649 = vmatpush1.msra.mxu0 %v3779
    %4650 = vmatprep.subr.mxu0 %v3783
    %4651 = vmatpush1.msra.mxu0 %v3782
    %4652 = vmatprep.subr.mxu0 %v3786
    %4653 = vmatpush1.msra.mxu0 %v3785
    %4654 = vmatprep.subr.mxu0 %v3789
    %4655 = vmatpush1.msra.mxu0 %v3788
    %4656 = vmatprep.subr.mxu0 %v3792
    %4657 = vmatpush1.msra.mxu0 %v3791
    %4658 = vmatprep.subr.mxu0 %v3795
    %4659 = vmatpush1.msra.mxu0 %v3794
    %4660 = vmatprep.subr.mxu0 %v3798
    %4661 = vmatpush1.msra.mxu0 %v3797
    %4662 = vmatprep.subr.mxu0 %v3801
    %4663 = vmatpush1.msra.mxu0 %v3800
    %4664 = vmatprep.subr.mxu0 %v3804
    %4665 = vmatpush1.msra.mxu0 %v3803
    %4666 = vmatprep.subr.mxu0 %v3807
    %4667 = vmatpush1.msra.mxu0 %v3806
    %4668 = vmatprep.subr.mxu0 0.0
    %4669 = vmatpush1.msra.mxu0 0.0
    %4670 = vmatprep.subr.mxu0 0.0
    %4671 = vmatpush1.msra.mxu0 0.0
    %4672 = vmatprep.subr.mxu0 0.0
    %4673 = vmatpush1.msra.mxu0 0.0
    %4674 = vmatprep.subr.mxu0 0.0
    %4675 = vmatpush1.msra.mxu0 0.0
    %4676 = vmatprep.subr.mxu0 0.0
    %4677 = vmatpush1.msra.mxu0 0.0
    %4678 = vmatprep.subr.mxu0 0.0
    %4679 = vmatpush1.msra.mxu0 0.0
    %4680 = vmatprep.subr.mxu0 0.0
    %4681 = vmatpush1.msra.mxu0 0.0
    %4682 = vmatprep.subr.mxu0 0.0
    %4683 = vmatpush1.msra.mxu0 0.0
    %4684 = vmatprep.subr.mxu0 0.0
    %4685 = vmatpush1.msra.mxu0 0.0
    %4686 = vmatprep.subr.mxu0 0.0
    %4687 = vmatpush1.msra.mxu0 0.0
    %4688 = vmatprep.subr.mxu0 0.0
    %4689 = vmatpush1.msra.mxu0 0.0
    %4690 = vmatprep.subr.mxu0 0.0
    %4691 = vmatpush1.msra.mxu0 0.0
    %4692 = vmatprep.subr.mxu0 0.0
    %4693 = vmatpush1.msra.mxu0 0.0
    %4694 = vmatprep.subr.mxu0 0.0
    %4695 = vmatpush1.msra.mxu0 0.0
    %4696 = vmatprep.subr.mxu0 0.0
    %4697 = vmatpush1.msra.mxu0 0.0
    %4698 = vmatprep.subr.mxu0 0.0
    %4699 = vmatpush1.msra.mxu0 0.0
    %4700 = vmatprep.mubr.f32.mxu0 0.0
    %4701 = vmatmul.mubr.f32.gmra.mrb[0].mxu0 %v4635
    %v4702 = vpop.f32.mrb[0].mxu0
    %v4703 = vadd.f32 %v3814, %v4702
    %v4704 = vpop.f32.mrb[0].mxu0
    %v4705 = vadd.f32 %v3818, %v4704
    %4706 = vdwg.mxu0
    %4707 = vmatprep.subr.mxu0 0.0
    %4708 = vmatpush1.msra.mxu0 %v3763
    %4709 = vmatprep.subr.mxu0 0.0
    %4710 = vmatpush1.msra.mxu0 %v3766
    %4711 = vmatprep.subr.mxu0 0.0
    %4712 = vmatpush1.msra.mxu0 %v3769
    %4713 = vmatprep.subr.mxu0 0.0
    %4714 = vmatpush1.msra.mxu0 %v3772
    %4715 = vmatprep.subr.mxu0 0.0
    %4716 = vmatpush1.msra.mxu0 %v3775
    %4717 = vmatprep.subr.mxu0 0.0
    %4718 = vmatpush1.msra.mxu0 %v3778
    %4719 = vmatprep.subr.mxu0 0.0
    %4720 = vmatpush1.msra.mxu0 %v3781
    %4721 = vmatprep.subr.mxu0 0.0
    %4722 = vmatpush1.msra.mxu0 %v3784
    %4723 = vmatprep.subr.mxu0 0.0
    %4724 = vmatpush1.msra.mxu0 %v3787
    %4725 = vmatprep.subr.mxu0 0.0
    %4726 = vmatpush1.msra.mxu0 %v3790
    %4727 = vmatprep.subr.mxu0 0.0
    %4728 = vmatpush1.msra.mxu0 %v3793
    %4729 = vmatprep.subr.mxu0 0.0
    %4730 = vmatpush1.msra.mxu0 %v3796
    %4731 = vmatprep.subr.mxu0 0.0
    %4732 = vmatpush1.msra.mxu0 %v3799
    %4733 = vmatprep.subr.mxu0 0.0
    %4734 = vmatpush1.msra.mxu0 %v3802
    %4735 = vmatprep.subr.mxu0 0.0
    %4736 = vmatpush1.msra.mxu0 %v3805
    %4737 = vmatprep.subr.mxu0 0.0
    %4738 = vmatpush1.msra.mxu0 %v3808
    %4739 = vmatprep.subr.mxu0 0.0
    %4740 = vmatpush1.msra.mxu0 0.0
    %4741 = vmatprep.subr.mxu0 0.0
    %4742 = vmatpush1.msra.mxu0 0.0
    %4743 = vmatprep.subr.mxu0 0.0
    %4744 = vmatpush1.msra.mxu0 0.0
    %4745 = vmatprep.subr.mxu0 0.0
    %4746 = vmatpush1.msra.mxu0 0.0
    %4747 = vmatprep.subr.mxu0 0.0
    %4748 = vmatpush1.msra.mxu0 0.0
    %4749 = vmatprep.subr.mxu0 0.0
    %4750 = vmatpush1.msra.mxu0 0.0
    %4751 = vmatprep.subr.mxu0 0.0
    %4752 = vmatpush1.msra.mxu0 0.0
    %4753 = vmatprep.subr.mxu0 0.0
    %4754 = vmatpush1.msra.mxu0 0.0
    %4755 = vmatprep.subr.mxu0 0.0
    %4756 = vmatpush1.msra.mxu0 0.0
    %4757 = vmatprep.subr.mxu0 0.0
    %4758 = vmatpush1.msra.mxu0 0.0
    %4759 = vmatprep.subr.mxu0 0.0
    %4760 = vmatpush1.msra.mxu0 0.0
    %4761 = vmatprep.subr.mxu0 0.0
    %4762 = vmatpush1.msra.mxu0 0.0
    %4763 = vmatprep.subr.mxu0 0.0
    %4764 = vmatpush1.msra.mxu0 0.0
    %4765 = vmatprep.subr.mxu0 0.0
    %4766 = vmatpush1.msra.mxu0 0.0
    %4767 = vmatprep.subr.mxu0 0.0
    %4768 = vmatpush1.msra.mxu0 0.0
    %4769 = vmatprep.subr.mxu0 0.0
    %4770 = vmatpush1.msra.mxu0 0.0
    %4771 = vmatprep.mubr.f32.mxu0 0.0
    %4772 = vmatmul.mubr.f32.gmra.mrb[0].mxu0 %v4635
    %v4773 = vpop.f32.mrb[0].mxu0
    %v4774 = vadd.f32 %v3822, %v4773
    %v4775 = vpop.f32.mrb[0].mxu0
    %4776 = vdwg.mxu0
    %v4777 = vadd.f32 %v3640, %v4703
    %v4778 = vxor.u32 %v4777, 2147483648
    %v4779 = vmul.f32 %v4778, 1.442695
    %v4780 = vpow.pop %v4779
    %v4781 = vadd.f32 %v4780, 1.0
    %v4782 = vrcp.pop %v4781
    %v4783 = vmul.f32 1.0, %v4782
    %v4784 = vadd.f32 %v3642, %v4705
    %v4785 = vxor.u32 %v4784, 2147483648
    %v4786 = vmul.f32 %v4785, 1.442695
    %v4787 = vpow.pop %v4786
    %v4788 = vadd.f32 %v4787, 1.0
    %v4789 = vrcp.pop %v4788
    %v4790 = vmul.f32 1.0, %v4789
    %v4791 = vmul.f32 %v4783, %v4774
    %v4792 = vadd.f32 %v3748, %v4791
    %v4793 = vtanh.pop %v4792
    %v4794 = vsub.f32 1.0, %v4790
    %v4795 = vmul.f32 %v4794, %v4793
    %v4796 = vmul.f32 %v4790, %v4635
    %v4797 = vadd.f32 %v4795, %v4796
    %4798 = vmatprep.subr.mxu0 %v3762
    %4799 = vmatpush1.msra.mxu0 %v3761
    %4800 = vmatprep.subr.mxu0 %v3765
    %4801 = vmatpush1.msra.mxu0 %v3764
    %4802 = vmatprep.subr.mxu0 %v3768
    %4803 = vmatpush1.msra.mxu0 %v3767
    %4804 = vmatprep.subr.mxu0 %v3771
    %4805 = vmatpush1.msra.mxu0 %v3770
    %4806 = vmatprep.subr.mxu0 %v3774
    %4807 = vmatpush1.msra.mxu0 %v3773
    %4808 = vmatprep.subr.mxu0 %v3777
    %4809 = vmatpush1.msra.mxu0 %v3776
    %4810 = vmatprep.subr.mxu0 %v3780
    %4811 = vmatpush1.msra.mxu0 %v3779
    %4812 = vmatprep.subr.mxu0 %v3783
    %4813 = vmatpush1.msra.mxu0 %v3782
    %4814 = vmatprep.subr.mxu0 %v3786
    %4815 = vmatpush1.msra.mxu0 %v3785
    %4816 = vmatprep.subr.mxu0 %v3789
    %4817 = vmatpush1.msra.mxu0 %v3788
    %4818 = vmatprep.subr.mxu0 %v3792
    %4819 = vmatpush1.msra.mxu0 %v3791
    %4820 = vmatprep.subr.mxu0 %v3795
    %4821 = vmatpush1.msra.mxu0 %v3794
    %4822 = vmatprep.subr.mxu0 %v3798
    %4823 = vmatpush1.msra.mxu0 %v3797
    %4824 = vmatprep.subr.mxu0 %v3801
    %4825 = vmatpush1.msra.mxu0 %v3800
    %4826 = vmatprep.subr.mxu0 %v3804
    %4827 = vmatpush1.msra.mxu0 %v3803
    %4828 = vmatprep.subr.mxu0 %v3807
    %4829 = vmatpush1.msra.mxu0 %v3806
    %4830 = vmatprep.subr.mxu0 0.0
    %4831 = vmatpush1.msra.mxu0 0.0
    %4832 = vmatprep.subr.mxu0 0.0
    %4833 = vmatpush1.msra.mxu0 0.0
    %4834 = vmatprep.subr.mxu0 0.0
    %4835 = vmatpush1.msra.mxu0 0.0
    %4836 = vmatprep.subr.mxu0 0.0
    %4837 = vmatpush1.msra.mxu0 0.0
    %4838 = vmatprep.subr.mxu0 0.0
    %4839 = vmatpush1.msra.mxu0 0.0
    %4840 = vmatprep.subr.mxu0 0.0
    %4841 = vmatpush1.msra.mxu0 0.0
    %4842 = vmatprep.subr.mxu0 0.0
    %4843 = vmatpush1.msra.mxu0 0.0
    %4844 = vmatprep.subr.mxu0 0.0
    %4845 = vmatpush1.msra.mxu0 0.0
    %4846 = vmatprep.subr.mxu0 0.0
    %4847 = vmatpush1.msra.mxu0 0.0
    %4848 = vmatprep.subr.mxu0 0.0
    %4849 = vmatpush1.msra.mxu0 0.0
    %4850 = vmatprep.subr.mxu0 0.0
    %4851 = vmatpush1.msra.mxu0 0.0
    %4852 = vmatprep.subr.mxu0 0.0
    %4853 = vmatpush1.msra.mxu0 0.0
    %4854 = vmatprep.subr.mxu0 0.0
    %4855 = vmatpush1.msra.mxu0 0.0
    %4856 = vmatprep.subr.mxu0 0.0
    %4857 = vmatpush1.msra.mxu0 0.0
    %4858 = vmatprep.subr.mxu0 0.0
    %4859 = vmatpush1.msra.mxu0 0.0
    %4860 = vmatprep.subr.mxu0 0.0
    %4861 = vmatpush1.msra.mxu0 0.0
    %4862 = vmatprep.mubr.f32.mxu0 0.0
    %4863 = vmatmul.mubr.f32.gmra.mrb[0].mxu0 %v4797
    %v4864 = vpop.f32.mrb[0].mxu0
    %v4865 = vadd.f32 %v3814, %v4864
    %v4866 = vpop.f32.mrb[0].mxu0
    %v4867 = vadd.f32 %v3818, %v4866
    %4868 = vdwg.mxu0
    %4869 = vmatprep.subr.mxu0 0.0
    %4870 = vmatpush1.msra.mxu0 %v3763
    %4871 = vmatprep.subr.mxu0 0.0
    %4872 = vmatpush1.msra.mxu0 %v3766
    %4873 = vmatprep.subr.mxu0 0.0
    %4874 = vmatpush1.msra.mxu0 %v3769
    %4875 = vmatprep.subr.mxu0 0.0
    %4876 = vmatpush1.msra.mxu0 %v3772
    %4877 = vmatprep.subr.mxu0 0.0
    %4878 = vmatpush1.msra.mxu0 %v3775
    %4879 = vmatprep.subr.mxu0 0.0
    %4880 = vmatpush1.msra.mxu0 %v3778
    %4881 = vmatprep.subr.mxu0 0.0
    %4882 = vmatpush1.msra.mxu0 %v3781
    %4883 = vmatprep.subr.mxu0 0.0
    %4884 = vmatpush1.msra.mxu0 %v3784
    %4885 = vmatprep.subr.mxu0 0.0
    %4886 = vmatpush1.msra.mxu0 %v3787
    %4887 = vmatprep.subr.mxu0 0.0
    %4888 = vmatpush1.msra.mxu0 %v3790
    %4889 = vmatprep.subr.mxu0 0.0
    %4890 = vmatpush1.msra.mxu0 %v3793
    %4891 = vmatprep.subr.mxu0 0.0
    %4892 = vmatpush1.msra.mxu0 %v3796
    %4893 = vmatprep.subr.mxu0 0.0
    %4894 = vmatpush1.msra.mxu0 %v3799
    %4895 = vmatprep.subr.mxu0 0.0
    %4896 = vmatpush1.msra.mxu0 %v3802
    %4897 = vmatprep.subr.mxu0 0.0
    %4898 = vmatpush1.msra.mxu0 %v3805
    %4899 = vmatprep.subr.mxu0 0.0
    %4900 = vmatpush1.msra.mxu0 %v3808
    %4901 = vmatprep.subr.mxu0 0.0
    %4902 = vmatpush1.msra.mxu0 0.0
    %4903 = vmatprep.subr.mxu0 0.0
    %4904 = vmatpush1.msra.mxu0 0.0
    %4905 = vmatprep.subr.mxu0 0.0
    %4906 = vmatpush1.msra.mxu0 0.0
    %4907 = vmatprep.subr.mxu0 0.0
    %4908 = vmatpush1.msra.mxu0 0.0
    %4909 = vmatprep.subr.mxu0 0.0
    %4910 = vmatpush1.msra.mxu0 0.0
    %4911 = vmatprep.subr.mxu0 0.0
    %4912 = vmatpush1.msra.mxu0 0.0
    %4913 = vmatprep.subr.mxu0 0.0
    %4914 = vmatpush1.msra.mxu0 0.0
    %4915 = vmatprep.subr.mxu0 0.0
    %4916 = vmatpush1.msra.mxu0 0.0
    %4917 = vmatprep.subr.mxu0 0.0
    %4918 = vmatpush1.msra.mxu0 0.0
    %4919 = vmatprep.subr.mxu0 0.0
    %4920 = vmatpush1.msra.mxu0 0.0
    %4921 = vmatprep.subr.mxu0 0.0
    %4922 = vmatpush1.msra.mxu0 0.0
    %4923 = vmatprep.subr.mxu0 0.0
    %4924 = vmatpush1.msra.mxu0 0.0
    %4925 = vmatprep.subr.mxu0 0.0
    %4926 = vmatpush1.msra.mxu0 0.0
    %4927 = vmatprep.subr.mxu0 0.0
    %4928 = vmatpush1.msra.mxu0 0.0
    %4929 = vmatprep.subr.mxu0 0.0
    %4930 = vmatpush1.msra.mxu0 0.0
    %4931 = vmatprep.subr.mxu0 0.0
    %4932 = vmatpush1.msra.mxu0 0.0
    %4933 = vmatprep.mubr.f32.mxu0 0.0
    %4934 = vmatmul.mubr.f32.gmra.mrb[0].mxu0 %v4797
    %v4935 = vpop.f32.mrb[0].mxu0
    %v4936 = vadd.f32 %v3822, %v4935
    %v4937 = vpop.f32.mrb[0].mxu0
    %4938 = vdwg.mxu0
    %v4939 = vadd.f32 %v3646, %v4865
    %v4940 = vxor.u32 %v4939, 2147483648
    %v4941 = vmul.f32 %v4940, 1.442695
    %v4942 = vpow.pop %v4941
    %v4943 = vadd.f32 %v4942, 1.0
    %v4944 = vrcp.pop %v4943
    %v4945 = vmul.f32 1.0, %v4944
    %v4946 = vadd.f32 %v3648, %v4867
    %v4947 = vxor.u32 %v4946, 2147483648
    %v4948 = vmul.f32 %v4947, 1.442695
    %v4949 = vpow.pop %v4948
    %v4950 = vadd.f32 %v4949, 1.0
    %v4951 = vrcp.pop %v4950
    %v4952 = vmul.f32 1.0, %v4951
    %v4953 = vmul.f32 %v4945, %v4936
    %v4954 = vadd.f32 %v3753, %v4953
    %v4955 = vtanh.pop %v4954
    %v4956 = vsub.f32 1.0, %v4952
    %v4957 = vmul.f32 %v4956, %v4955
    %v4958 = vmul.f32 %v4952, %v4797
    %v4959 = vadd.f32 %v4957, %v4958
    %4960 = vmatprep.subr.mxu0 %v3762
    %4961 = vmatpush1.msra.mxu0 %v3761
    %4962 = vmatprep.subr.mxu0 %v3765
    %4963 = vmatpush1.msra.mxu0 %v3764
    %4964 = vmatprep.subr.mxu0 %v3768
    %4965 = vmatpush1.msra.mxu0 %v3767
    %4966 = vmatprep.subr.mxu0 %v3771
    %4967 = vmatpush1.msra.mxu0 %v3770
    %4968 = vmatprep.subr.mxu0 %v3774
    %4969 = vmatpush1.msra.mxu0 %v3773
    %4970 = vmatprep.subr.mxu0 %v3777
    %4971 = vmatpush1.msra.mxu0 %v3776
    %4972 = vmatprep.subr.mxu0 %v3780
    %4973 = vmatpush1.msra.mxu0 %v3779
    %4974 = vmatprep.subr.mxu0 %v3783
    %4975 = vmatpush1.msra.mxu0 %v3782
    %4976 = vmatprep.subr.mxu0 %v3786
    %4977 = vmatpush1.msra.mxu0 %v3785
    %4978 = vmatprep.subr.mxu0 %v3789
    %4979 = vmatpush1.msra.mxu0 %v3788
    %4980 = vmatprep.subr.mxu0 %v3792
    %4981 = vmatpush1.msra.mxu0 %v3791
    %4982 = vmatprep.subr.mxu0 %v3795
    %4983 = vmatpush1.msra.mxu0 %v3794
    %4984 = vmatprep.subr.mxu0 %v3798
    %4985 = vmatpush1.msra.mxu0 %v3797
    %4986 = vmatprep.subr.mxu0 %v3801
    %4987 = vmatpush1.msra.mxu0 %v3800
    %4988 = vmatprep.subr.mxu0 %v3804
    %4989 = vmatpush1.msra.mxu0 %v3803
    %4990 = vmatprep.subr.mxu0 %v3807
    %4991 = vmatpush1.msra.mxu0 %v3806
    %4992 = vmatprep.subr.mxu0 0.0
    %4993 = vmatpush1.msra.mxu0 0.0
    %4994 = vmatprep.subr.mxu0 0.0
    %4995 = vmatpush1.msra.mxu0 0.0
    %4996 = vmatprep.subr.mxu0 0.0
    %4997 = vmatpush1.msra.mxu0 0.0
    %4998 = vmatprep.subr.mxu0 0.0
    %4999 = vmatpush1.msra.mxu0 0.0
    %5000 = vmatprep.subr.mxu0 0.0
    %5001 = vmatpush1.msra.mxu0 0.0
    %5002 = vmatprep.subr.mxu0 0.0
    %5003 = vmatpush1.msra.mxu0 0.0
    %5004 = vmatprep.subr.mxu0 0.0
    %5005 = vmatpush1.msra.mxu0 0.0
    %5006 = vmatprep.subr.mxu0 0.0
    %5007 = vmatpush1.msra.mxu0 0.0
    %5008 = vmatprep.subr.mxu0 0.0
    %5009 = vmatpush1.msra.mxu0 0.0
    %5010 = vmatprep.subr.mxu0 0.0
    %5011 = vmatpush1.msra.mxu0 0.0
    %5012 = vmatprep.subr.mxu0 0.0
    %5013 = vmatpush1.msra.mxu0 0.0
    %5014 = vmatprep.subr.mxu0 0.0
    %5015 = vmatpush1.msra.mxu0 0.0
    %5016 = vmatprep.subr.mxu0 0.0
    %5017 = vmatpush1.msra.mxu0 0.0
    %5018 = vmatprep.subr.mxu0 0.0
    %5019 = vmatpush1.msra.mxu0 0.0
    %5020 = vmatprep.subr.mxu0 0.0
    %5021 = vmatpush1.msra.mxu0 0.0
    %5022 = vmatprep.subr.mxu0 0.0
    %5023 = vmatpush1.msra.mxu0 0.0
    %5024 = vmatprep.mubr.f32.mxu0 0.0
    %5025 = vmatmul.mubr.f32.gmra.mrb[0].mxu0 %v4959
    %v5026 = vpop.f32.mrb[0].mxu0
    %v5027 = vadd.f32 %v3814, %v5026
    %v5028 = vpop.f32.mrb[0].mxu0
    %v5029 = vadd.f32 %v3818, %v5028
    %5030 = vdwg.mxu0
    %5031 = vmatprep.subr.mxu0 0.0
    %5032 = vmatpush1.msra.mxu0 %v3763
    %5033 = vmatprep.subr.mxu0 0.0
    %5034 = vmatpush1.msra.mxu0 %v3766
    %5035 = vmatprep.subr.mxu0 0.0
    %5036 = vmatpush1.msra.mxu0 %v3769
    %5037 = vmatprep.subr.mxu0 0.0
    %5038 = vmatpush1.msra.mxu0 %v3772
    %5039 = vmatprep.subr.mxu0 0.0
    %5040 = vmatpush1.msra.mxu0 %v3775
    %5041 = vmatprep.subr.mxu0 0.0
    %5042 = vmatpush1.msra.mxu0 %v3778
    %5043 = vmatprep.subr.mxu0 0.0
    %5044 = vmatpush1.msra.mxu0 %v3781
    %5045 = vmatprep.subr.mxu0 0.0
    %5046 = vmatpush1.msra.mxu0 %v3784
    %5047 = vmatprep.subr.mxu0 0.0
    %5048 = vmatpush1.msra.mxu0 %v3787
    %5049 = vmatprep.subr.mxu0 0.0
    %5050 = vmatpush1.msra.mxu0 %v3790
    %5051 = vmatprep.subr.mxu0 0.0
    %5052 = vmatpush1.msra.mxu0 %v3793
    %5053 = vmatprep.subr.mxu0 0.0
    %5054 = vmatpush1.msra.mxu0 %v3796
    %5055 = vmatprep.subr.mxu0 0.0
    %5056 = vmatpush1.msra.mxu0 %v3799
    %5057 = vmatprep.subr.mxu0 0.0
    %5058 = vmatpush1.msra.mxu0 %v3802
    %5059 = vmatprep.subr.mxu0 0.0
    %5060 = vmatpush1.msra.mxu0 %v3805
    %5061 = vmatprep.subr.mxu0 0.0
    %5062 = vmatpush1.msra.mxu0 %v3808
    %5063 = vmatprep.subr.mxu0 0.0
    %5064 = vmatpush1.msra.mxu0 0.0
    %5065 = vmatprep.subr.mxu0 0.0
    %5066 = vmatpush1.msra.mxu0 0.0
    %5067 = vmatprep.subr.mxu0 0.0
    %5068 = vmatpush1.msra.mxu0 0.0
    %5069 = vmatprep.subr.mxu0 0.0
    %5070 = vmatpush1.msra.mxu0 0.0
    %5071 = vmatprep.subr.mxu0 0.0
    %5072 = vmatpush1.msra.mxu0 0.0
    %5073 = vmatprep.subr.mxu0 0.0
    %5074 = vmatpush1.msra.mxu0 0.0
    %5075 = vmatprep.subr.mxu0 0.0
    %5076 = vmatpush1.msra.mxu0 0.0
    %5077 = vmatprep.subr.mxu0 0.0
    %5078 = vmatpush1.msra.mxu0 0.0
    %5079 = vmatprep.subr.mxu0 0.0
    %5080 = vmatpush1.msra.mxu0 0.0
    %5081 = vmatprep.subr.mxu0 0.0
    %5082 = vmatpush1.msra.mxu0 0.0
    %5083 = vmatprep.subr.mxu0 0.0
    %5084 = vmatpush1.msra.mxu0 0.0
    %5085 = vmatprep.subr.mxu0 0.0
    %5086 = vmatpush1.msra.mxu0 0.0
    %5087 = vmatprep.subr.mxu0 0.0
    %5088 = vmatpush1.msra.mxu0 0.0
    %5089 = vmatprep.subr.mxu0 0.0
    %5090 = vmatpush1.msra.mxu0 0.0
    %5091 = vmatprep.subr.mxu0 0.0
    %5092 = vmatpush1.msra.mxu0 0.0
    %5093 = vmatprep.subr.mxu0 0.0
    %5094 = vmatpush1.msra.mxu0 0.0
    %5095 = vmatprep.mubr.f32.mxu0 0.0
    %5096 = vmatmul.mubr.f32.gmra.mrb[0].mxu0 %v4959
    %v5097 = vpop.f32.mrb[0].mxu0
    %v5098 = vadd.f32 %v3822, %v5097
    %v5099 = vpop.f32.mrb[0].mxu0
    %5100 = vdwg.mxu0
    %v5101 = vadd.f32 %v3652, %v5027
    %v5102 = vxor.u32 %v5101, 2147483648
    %v5103 = vmul.f32 %v5102, 1.442695
    %v5104 = vpow.pop %v5103
    %v5105 = vadd.f32 %v5104, 1.0
    %v5106 = vrcp.pop %v5105
    %v5107 = vmul.f32 1.0, %v5106
    %v5108 = vadd.f32 %v3654, %v5029
    %v5109 = vxor.u32 %v5108, 2147483648
    %v5110 = vmul.f32 %v5109, 1.442695
    %v5111 = vpow.pop %v5110
    %v5112 = vadd.f32 %v5111, 1.0
    %v5113 = vrcp.pop %v5112
    %v5114 = vmul.f32 1.0, %v5113
    %v5115 = vmul.f32 %v5107, %v5098
    %v5116 = vadd.f32 %v3758, %v5115
    %v5117 = vtanh.pop %v5116
    %v5118 = vsub.f32 1.0, %v5114
    %v5119 = vmul.f32 %v5118, %v5117
    %v5120 = vmul.f32 %v5114, %v4959
    %v5121 = vadd.f32 %v5119, %v5120
    %v5122 = vld [vmem:[#allocation10] sm:$0xff]
    %v5123 = vld [vmem:[#allocation10 + $0x8] sm:$0xff]
    %v5124 = vld [vmem:[#allocation10 + $0x10] sm:$0xff]
    %v5125 = vld [vmem:[#allocation10 + $0x18] sm:$0xff]
    %v5126 = vld [vmem:[#allocation10 + $0x20] sm:$0xff]
    %v5127 = vld [vmem:[#allocation10 + $0x28] sm:$0xff]
    %v5128 = vld [vmem:[#allocation10 + $0x30] sm:$0xff]
    %v5129 = vld [vmem:[#allocation10 + $0x38] sm:$0xff]
    %v5130 = vld [vmem:[#allocation10 + $0x40] sm:$0xff]
    %v5131 = vld [vmem:[#allocation10 + $0x48] sm:$0xff]
    %v5132 = vld [vmem:[#allocation10 + $0x50] sm:$0xff]
    %v5133 = vld [vmem:[#allocation10 + $0x58] sm:$0xff]
    %v5134 = vld [vmem:[#allocation10 + $0x60] sm:$0xff]
    %v5135 = vld [vmem:[#allocation10 + $0x68] sm:$0xff]
    %v5136 = vld [vmem:[#allocation10 + $0x70] sm:$0xff]
    %v5137 = vld [vmem:[#allocation10 + $0x78] sm:$0xff]
    %v5138 = vld [vmem:[#allocation10 + $0x80] sm:$0xff]
    %v5139 = vld [vmem:[#allocation10 + $0x88] sm:$0xff]
    %v5140 = vld [vmem:[#allocation10 + $0x90] sm:$0xff]
    %v5141 = vld [vmem:[#allocation10 + $0x98] sm:$0xff]
    %v5142 = vld [vmem:[#allocation10 + $0xa0] sm:$0xff]
    %v5143 = vld [vmem:[#allocation10 + $0xa8] sm:$0xff]
    %v5144 = vld [vmem:[#allocation10 + $0xb0] sm:$0xff]
    %v5145 = vld [vmem:[#allocation10 + $0xb8] sm:$0xff]
    %v5146 = vld [vmem:[#allocation10 + $0xc0] sm:$0xff]
    %v5147 = vld [vmem:[#allocation10 + $0xc8] sm:$0xff]
    %v5148 = vld [vmem:[#allocation10 + $0xd0] sm:$0xff]
    %v5149 = vld [vmem:[#allocation10 + $0xd8] sm:$0xff]
    %v5150 = vld [vmem:[#allocation10 + $0xe0] sm:$0xff]
    %v5151 = vld [vmem:[#allocation10 + $0xe8] sm:$0xff]
    %v5152 = vld [vmem:[#allocation10 + $0xf0] sm:$0xff]
    %v5153 = vld [vmem:[#allocation10 + $0xf8] sm:$0xff]
    %v5154 = vld [vmem:[#allocation10 + $0x100] sm:$0xff]
    %v5155 = vld [vmem:[#allocation10 + $0x108] sm:$0xff]
    %v5156 = vld [vmem:[#allocation10 + $0x110] sm:$0xff]
    %v5157 = vld [vmem:[#allocation10 + $0x118] sm:$0xff]
    %v5158 = vld [vmem:[#allocation10 + $0x120] sm:$0xff]
    %v5159 = vld [vmem:[#allocation10 + $0x128] sm:$0xff]
    %v5160 = vld [vmem:[#allocation10 + $0x130] sm:$0xff]
    %v5161 = vld [vmem:[#allocation10 + $0x138] sm:$0xff]
    %v5162 = vld [vmem:[#allocation10 + $0x140] sm:$0xff]
    %v5163 = vld [vmem:[#allocation10 + $0x148] sm:$0xff]
    %v5164 = vld [vmem:[#allocation10 + $0x150] sm:$0xff]
    %v5165 = vld [vmem:[#allocation10 + $0x158] sm:$0xff]
    %v5166 = vld [vmem:[#allocation10 + $0x160] sm:$0xff]
    %v5167 = vld [vmem:[#allocation10 + $0x168] sm:$0xff]
    %v5168 = vld [vmem:[#allocation10 + $0x170] sm:$0xff]
    %v5169 = vld [vmem:[#allocation10 + $0x178] sm:$0xff]
    %v5170 = vld [vmem:[#allocation10 + $0x180] sm:$0xff]
    %v5171 = vld [vmem:[#allocation10 + $0x188] sm:$0xff]
    %v5172 = vld [vmem:[#allocation10 + $0x190] sm:$0xff]
    %v5173 = vld [vmem:[#allocation10 + $0x198] sm:$0xff]
    %v5174 = vld [vmem:[#allocation10 + $0x1a0] sm:$0xff]
    %v5175 = vld [vmem:[#allocation10 + $0x1a8] sm:$0xff]
    %v5176 = vld [vmem:[#allocation10 + $0x1b0] sm:$0xff]
    %v5177 = vld [vmem:[#allocation10 + $0x1b8] sm:$0xff]
    %v5178 = vld [vmem:[#allocation10 + $0x1c0] sm:$0xff]
    %v5179 = vld [vmem:[#allocation10 + $0x1c8] sm:$0xff]
    %v5180 = vld [vmem:[#allocation10 + $0x1d0] sm:$0xff]
    %v5181 = vld [vmem:[#allocation10 + $0x1d8] sm:$0xff]
    %v5182 = vld [vmem:[#allocation10 + $0x1e0] sm:$0xff]
    %v5183 = vld [vmem:[#allocation10 + $0x1e8] sm:$0xff]
    %v5184 = vld [vmem:[#allocation10 + $0x1f0] sm:$0xff]
    %v5185 = vld [vmem:[#allocation10 + $0x1f8] sm:$0xff]
    %v5186 = vld [vmem:[#allocation10 + $0x200] sm:$0xff]
    %v5187 = vld [vmem:[#allocation10 + $0x208] sm:$0xff]
    %v5188 = vld [vmem:[#allocation10 + $0x210] sm:$0xff]
    %v5189 = vld [vmem:[#allocation10 + $0x218] sm:$0xff]
    %v5190 = vld [vmem:[#allocation10 + $0x220] sm:$0xff]
    %v5191 = vld [vmem:[#allocation10 + $0x228] sm:$0xff]
    %v5192 = vld [vmem:[#allocation10 + $0x230] sm:$0xff]
    %v5193 = vld [vmem:[#allocation10 + $0x238] sm:$0xff]
    %v5194 = vld [vmem:[#allocation10 + $0x240] sm:$0xff]
    %v5195 = vld [vmem:[#allocation10 + $0x248] sm:$0xff]
    %v5196 = vld [vmem:[#allocation10 + $0x250] sm:$0xff]
    %v5197 = vld [vmem:[#allocation10 + $0x258] sm:$0xff]
    %v5198 = vld [vmem:[#allocation10 + $0x260] sm:$0xff]
    %v5199 = vld [vmem:[#allocation10 + $0x268] sm:$0xff]
    %v5200 = vld [vmem:[#allocation10 + $0x270] sm:$0xff]
    %v5201 = vld [vmem:[#allocation10 + $0x278] sm:$0xff]
    %v5202 = vld [vmem:[#allocation10 + $0x280] sm:$0xff]
    %v5203 = vld [vmem:[#allocation10 + $0x288] sm:$0xff]
    %v5204 = vld [vmem:[#allocation10 + $0x290] sm:$0xff]
    %v5205 = vld [vmem:[#allocation10 + $0x298] sm:$0xff]
    %v5206 = vld [vmem:[#allocation10 + $0x2a0] sm:$0xff]
    %v5207 = vld [vmem:[#allocation10 + $0x2a8] sm:$0xff]
    %v5208 = vld [vmem:[#allocation10 + $0x2b0] sm:$0xff]
    %v5209 = vld [vmem:[#allocation10 + $0x2b8] sm:$0xff]
    %v5210 = vld [vmem:[#allocation10 + $0x2c0] sm:$0xff]
    %v5211 = vld [vmem:[#allocation10 + $0x2c8] sm:$0xff]
    %v5212 = vld [vmem:[#allocation10 + $0x2d0] sm:$0xff]
    %v5213 = vld [vmem:[#allocation10 + $0x2d8] sm:$0xff]
    %v5214 = vld [vmem:[#allocation10 + $0x2e0] sm:$0xff]
    %v5215 = vld [vmem:[#allocation10 + $0x2e8] sm:$0xff]
    %v5216 = vld [vmem:[#allocation10 + $0x2f0] sm:$0xff]
    %v5217 = vld [vmem:[#allocation10 + $0x2f8] sm:$0xff]
    %v5218 = vld [vmem:[%s15] sm:$0x7]
    %v5220 = vlaneseq
    %v5221 = vshrl.u32 %v5220, 7
    %v5222 = vsub.s32 0, %v5221
    %v5223 = vrot.slane %v5218, %v5222
    %v5224 = vlaneseq
    %v5225 = vshrl.u32 %v5224, 7
    %v5226 = vsub.s32 1, %v5225
    %v5227 = vrot.slane %v5218, %v5226
    %v5228 = vlaneseq
    %v5229 = vshrl.u32 %v5228, 7
    %v5230 = vsub.s32 2, %v5229
    %v5231 = vrot.slane %v5218, %v5230
    %5235 = vmatprep.subr.mxu0 %v5123
    %5236 = vmatpush1.msra.mxu0 %v5122
    %5237 = vmatprep.subr.mxu0 %v5126
    %5238 = vmatpush1.msra.mxu0 %v5125
    %5239 = vmatprep.subr.mxu0 %v5129
    %5240 = vmatpush1.msra.mxu0 %v5128
    %5241 = vmatprep.subr.mxu0 %v5132
    %5242 = vmatpush1.msra.mxu0 %v5131
    %5243 = vmatprep.subr.mxu0 %v5135
    %5244 = vmatpush1.msra.mxu0 %v5134
    %5245 = vmatprep.subr.mxu0 %v5138
    %5246 = vmatpush1.msra.mxu0 %v5137
    %5247 = vmatprep.subr.mxu0 %v5141
    %5248 = vmatpush1.msra.mxu0 %v5140
    %5249 = vmatprep.subr.mxu0 %v5144
    %5250 = vmatpush1.msra.mxu0 %v5143
    %5251 = vmatprep.subr.mxu0 %v5147
    %5252 = vmatpush1.msra.mxu0 %v5146
    %5253 = vmatprep.subr.mxu0 %v5150
    %5254 = vmatpush1.msra.mxu0 %v5149
    %5255 = vmatprep.subr.mxu0 %v5153
    %5256 = vmatpush1.msra.mxu0 %v5152
    %5257 = vmatprep.subr.mxu0 %v5156
    %5258 = vmatpush1.msra.mxu0 %v5155
    %5259 = vmatprep.subr.mxu0 %v5159
    %5260 = vmatpush1.msra.mxu0 %v5158
    %5261 = vmatprep.subr.mxu0 %v5162
    %5262 = vmatpush1.msra.mxu0 %v5161
    %5263 = vmatprep.subr.mxu0 %v5165
    %5264 = vmatpush1.msra.mxu0 %v5164
    %5265 = vmatprep.subr.mxu0 %v5168
    %5266 = vmatpush1.msra.mxu0 %v5167
    %5267 = vmatprep.subr.mxu0 %v5171
    %5268 = vmatpush1.msra.mxu0 %v5170
    %5269 = vmatprep.subr.mxu0 %v5174
    %5270 = vmatpush1.msra.mxu0 %v5173
    %5271 = vmatprep.subr.mxu0 %v5177
    %5272 = vmatpush1.msra.mxu0 %v5176
    %5273 = vmatprep.subr.mxu0 %v5180
    %5274 = vmatpush1.msra.mxu0 %v5179
    %5275 = vmatprep.subr.mxu0 %v5183
    %5276 = vmatpush1.msra.mxu0 %v5182
    %5277 = vmatprep.subr.mxu0 %v5186
    %5278 = vmatpush1.msra.mxu0 %v5185
    %5279 = vmatprep.subr.mxu0 %v5189
    %5280 = vmatpush1.msra.mxu0 %v5188
    %5281 = vmatprep.subr.mxu0 %v5192
    %5282 = vmatpush1.msra.mxu0 %v5191
    %5283 = vmatprep.subr.mxu0 %v5195
    %5284 = vmatpush1.msra.mxu0 %v5194
    %5285 = vmatprep.subr.mxu0 %v5198
    %5286 = vmatpush1.msra.mxu0 %v5197
    %5287 = vmatprep.subr.mxu0 %v5201
    %5288 = vmatpush1.msra.mxu0 %v5200
    %5289 = vmatprep.subr.mxu0 %v5204
    %5290 = vmatpush1.msra.mxu0 %v5203
    %5291 = vmatprep.subr.mxu0 %v5207
    %5292 = vmatpush1.msra.mxu0 %v5206
    %5293 = vmatprep.subr.mxu0 %v5210
    %5294 = vmatpush1.msra.mxu0 %v5209
    %5295 = vmatprep.subr.mxu0 %v5213
    %5296 = vmatpush1.msra.mxu0 %v5212
    %5297 = vmatprep.subr.mxu0 %v5216
    %5298 = vmatpush1.msra.mxu0 %v5215
    %5299 = vmatprep.mubr.f32.mxu0 %v3429
    %5300 = vmatmul.mubr.f32.gmra.mrb[0].mxu0 %v675
    %v5301 = vpop.f32.mrb[0].mxu0
    %v5302 = vadd.f32 %v5223, %v5301
    %v5303 = vpop.f32.mrb[0].mxu0
    %v5304 = vadd.f32 %v5227, %v5303
    %5305 = vmatprep.mubr.f32.mxu0 %v3267
    %5306 = vmatmul.mubr.f32.gmra.mrb[0].mxu0 %v837
    %v5307 = vpop.f32.mrb[0].mxu0
    %v5308 = vadd.f32 %v5223, %v5307
    %v5309 = vpop.f32.mrb[0].mxu0
    %v5310 = vadd.f32 %v5227, %v5309
    %5311 = vmatprep.mubr.f32.mxu0 %v3105
    %5312 = vmatmul.mubr.f32.gmra.mrb[0].mxu0 %v999
    %v5313 = vpop.f32.mrb[0].mxu0
    %v5314 = vadd.f32 %v5223, %v5313
    %v5315 = vpop.f32.mrb[0].mxu0
    %v5316 = vadd.f32 %v5227, %v5315
    %5317 = vmatprep.mubr.f32.mxu0 %v2943
    %5318 = vmatmul.mubr.f32.gmra.mrb[0].mxu0 %v1161
    %v5319 = vpop.f32.mrb[0].mxu0
    %v5320 = vadd.f32 %v5223, %v5319
    %v5321 = vpop.f32.mrb[0].mxu0
    %v5322 = vadd.f32 %v5227, %v5321
    %5323 = vmatprep.mubr.f32.mxu0 %v2781
    %5324 = vmatmul.mubr.f32.gmra.mrb[0].mxu0 %v1323
    %v5325 = vpop.f32.mrb[0].mxu0
    %v5326 = vadd.f32 %v5223, %v5325
    %v5327 = vpop.f32.mrb[0].mxu0
    %v5328 = vadd.f32 %v5227, %v5327
    %5329 = vmatprep.mubr.f32.mxu0 %v2619
    %5330 = vmatmul.mubr.f32.gmra.mrb[0].mxu0 %v1485
    %v5331 = vpop.f32.mrb[0].mxu0
    %v5332 = vadd.f32 %v5223, %v5331
    %v5333 = vpop.f32.mrb[0].mxu0
    %v5334 = vadd.f32 %v5227, %v5333
    %5335 = vmatprep.mubr.f32.mxu0 %v2457
    %5336 = vmatmul.mubr.f32.gmra.mrb[0].mxu0 %v1647
    %v5337 = vpop.f32.mrb[0].mxu0
    %v5338 = vadd.f32 %v5223, %v5337
    %v5339 = vpop.f32.mrb[0].mxu0
    %v5340 = vadd.f32 %v5227, %v5339
    %5341 = vmatprep.mubr.f32.mxu0 %v2295
    %5342 = vmatmul.mubr.f32.gmra.mrb[0].mxu0 %v1809
    %v5343 = vpop.f32.mrb[0].mxu0
    %v5344 = vadd.f32 %v5223, %v5343
    %v5345 = vpop.f32.mrb[0].mxu0
    %v5346 = vadd.f32 %v5227, %v5345
    %5347 = vdwg.mxu0
    %5348 = vmatprep.subr.mxu0 0.0
    %5349 = vmatpush1.msra.mxu0 %v5124
    %5350 = vmatprep.subr.mxu0 0.0
    %5351 = vmatpush1.msra.mxu0 %v5127
    %5352 = vmatprep.subr.mxu0 0.0
    %5353 = vmatpush1.msra.mxu0 %v5130
    %5354 = vmatprep.subr.mxu0 0.0
    %5355 = vmatpush1.msra.mxu0 %v5133
    %5356 = vmatprep.subr.mxu0 0.0
    %5357 = vmatpush1.msra.mxu0 %v5136
    %5358 = vmatprep.subr.mxu0 0.0
    %5359 = vmatpush1.msra.mxu0 %v5139
    %5360 = vmatprep.subr.mxu0 0.0
    %5361 = vmatpush1.msra.mxu0 %v5142
    %5362 = vmatprep.subr.mxu0 0.0
    %5363 = vmatpush1.msra.mxu0 %v5145
    %5364 = vmatprep.subr.mxu0 0.0
    %5365 = vmatpush1.msra.mxu0 %v5148
    %5366 = vmatprep.subr.mxu0 0.0
    %5367 = vmatpush1.msra.mxu0 %v5151
    %5368 = vmatprep.subr.mxu0 0.0
    %5369 = vmatpush1.msra.mxu0 %v5154
    %5370 = vmatprep.subr.mxu0 0.0
    %5371 = vmatpush1.msra.mxu0 %v5157
    %5372 = vmatprep.subr.mxu0 0.0
    %5373 = vmatpush1.msra.mxu0 %v5160
    %5374 = vmatprep.subr.mxu0 0.0
    %5375 = vmatpush1.msra.mxu0 %v5163
    %5376 = vmatprep.subr.mxu0 0.0
    %5377 = vmatpush1.msra.mxu0 %v5166
    %5378 = vmatprep.subr.mxu0 0.0
    %5379 = vmatpush1.msra.mxu0 %v5169
    %5380 = vmatprep.subr.mxu0 0.0
    %5381 = vmatpush1.msra.mxu0 %v5172
    %5382 = vmatprep.subr.mxu0 0.0
    %5383 = vmatpush1.msra.mxu0 %v5175
    %5384 = vmatprep.subr.mxu0 0.0
    %5385 = vmatpush1.msra.mxu0 %v5178
    %5386 = vmatprep.subr.mxu0 0.0
    %5387 = vmatpush1.msra.mxu0 %v5181
    %5388 = vmatprep.subr.mxu0 0.0
    %5389 = vmatpush1.msra.mxu0 %v5184
    %5390 = vmatprep.subr.mxu0 0.0
    %5391 = vmatpush1.msra.mxu0 %v5187
    %5392 = vmatprep.subr.mxu0 0.0
    %5393 = vmatpush1.msra.mxu0 %v5190
    %5394 = vmatprep.subr.mxu0 0.0
    %5395 = vmatpush1.msra.mxu0 %v5193
    %5396 = vmatprep.subr.mxu0 0.0
    %5397 = vmatpush1.msra.mxu0 %v5196
    %5398 = vmatprep.subr.mxu0 0.0
    %5399 = vmatpush1.msra.mxu0 %v5199
    %5400 = vmatprep.subr.mxu0 0.0
    %5401 = vmatpush1.msra.mxu0 %v5202
    %5402 = vmatprep.subr.mxu0 0.0
    %5403 = vmatpush1.msra.mxu0 %v5205
    %5404 = vmatprep.subr.mxu0 0.0
    %5405 = vmatpush1.msra.mxu0 %v5208
    %5406 = vmatprep.subr.mxu0 0.0
    %5407 = vmatpush1.msra.mxu0 %v5211
    %5408 = vmatprep.subr.mxu0 0.0
    %5409 = vmatpush1.msra.mxu0 %v5214
    %5410 = vmatprep.subr.mxu0 0.0
    %5411 = vmatpush1.msra.mxu0 %v5217
    %5412 = vmatprep.mubr.f32.mxu0 %v3429
    %5413 = vmatmul.mubr.f32.gmra.mrb[0].mxu0 %v675
    %v5414 = vpop.f32.mrb[0].mxu0
    %v5415 = vadd.f32 %v5231, %v5414
    %v5416 = vpop.f32.mrb[0].mxu0
    %5417 = vmatprep.mubr.f32.mxu0 %v3267
    %5418 = vmatmul.mubr.f32.gmra.mrb[0].mxu0 %v837
    %v5419 = vpop.f32.mrb[0].mxu0
    %v5420 = vadd.f32 %v5231, %v5419
    %v5421 = vpop.f32.mrb[0].mxu0
    %5422 = vmatprep.mubr.f32.mxu0 %v3105
    %5423 = vmatmul.mubr.f32.gmra.mrb[0].mxu0 %v999
    %v5424 = vpop.f32.mrb[0].mxu0
    %v5425 = vadd.f32 %v5231, %v5424
    %v5426 = vpop.f32.mrb[0].mxu0
    %5427 = vmatprep.mubr.f32.mxu0 %v2943
    %5428 = vmatmul.mubr.f32.gmra.mrb[0].mxu0 %v1161
    %v5429 = vpop.f32.mrb[0].mxu0
    %v5430 = vadd.f32 %v5231, %v5429
    %v5431 = vpop.f32.mrb[0].mxu0
    %5432 = vmatprep.mubr.f32.mxu0 %v2781
    %5433 = vmatmul.mubr.f32.gmra.mrb[0].mxu0 %v1323
    %v5434 = vpop.f32.mrb[0].mxu0
    %v5435 = vadd.f32 %v5231, %v5434
    %v5436 = vpop.f32.mrb[0].mxu0
    %5437 = vmatprep.mubr.f32.mxu0 %v2619
    %5438 = vmatmul.mubr.f32.gmra.mrb[0].mxu0 %v1485
    %v5439 = vpop.f32.mrb[0].mxu0
    %v5440 = vadd.f32 %v5231, %v5439
    %v5441 = vpop.f32.mrb[0].mxu0
    %5442 = vmatprep.mubr.f32.mxu0 %v2457
    %5443 = vmatmul.mubr.f32.gmra.mrb[0].mxu0 %v1647
    %v5444 = vpop.f32.mrb[0].mxu0
    %v5445 = vadd.f32 %v5231, %v5444
    %v5446 = vpop.f32.mrb[0].mxu0
    %5447 = vmatprep.mubr.f32.mxu0 %v2295
    %5448 = vmatmul.mubr.f32.gmra.mrb[0].mxu0 %v1809
    %v5449 = vpop.f32.mrb[0].mxu0
    %v5450 = vadd.f32 %v5231, %v5449
    %v5451 = vpop.f32.mrb[0].mxu0
    %5452 = vdwg.mxu0
    %v5453 = vld [vmem:[#allocation12] sm:$0xff]
    %v5454 = vld [vmem:[#allocation12 + $0x8] sm:$0xff]
    %v5455 = vld [vmem:[#allocation12 + $0x10] sm:$0xff]
    %v5456 = vld [vmem:[#allocation12 + $0x18] sm:$0xff]
    %v5457 = vld [vmem:[#allocation12 + $0x20] sm:$0xff]
    %v5458 = vld [vmem:[#allocation12 + $0x28] sm:$0xff]
    %v5459 = vld [vmem:[#allocation12 + $0x30] sm:$0xff]
    %v5460 = vld [vmem:[#allocation12 + $0x38] sm:$0xff]
    %v5461 = vld [vmem:[#allocation12 + $0x40] sm:$0xff]
    %v5462 = vld [vmem:[#allocation12 + $0x48] sm:$0xff]
    %v5463 = vld [vmem:[#allocation12 + $0x50] sm:$0xff]
    %v5464 = vld [vmem:[#allocation12 + $0x58] sm:$0xff]
    %v5465 = vld [vmem:[#allocation12 + $0x60] sm:$0xff]
    %v5466 = vld [vmem:[#allocation12 + $0x68] sm:$0xff]
    %v5467 = vld [vmem:[#allocation12 + $0x70] sm:$0xff]
    %v5468 = vld [vmem:[#allocation12 + $0x78] sm:$0xff]
    %v5469 = vld [vmem:[#allocation12 + $0x80] sm:$0xff]
    %v5470 = vld [vmem:[#allocation12 + $0x88] sm:$0xff]
    %v5471 = vld [vmem:[#allocation12 + $0x90] sm:$0xff]
    %v5472 = vld [vmem:[#allocation12 + $0x98] sm:$0xff]
    %v5473 = vld [vmem:[#allocation12 + $0xa0] sm:$0xff]
    %v5474 = vld [vmem:[#allocation12 + $0xa8] sm:$0xff]
    %v5475 = vld [vmem:[#allocation12 + $0xb0] sm:$0xff]
    %v5476 = vld [vmem:[#allocation12 + $0xb8] sm:$0xff]
    %v5477 = vld [vmem:[#allocation12 + $0xc0] sm:$0xff]
    %v5478 = vld [vmem:[#allocation12 + $0xc8] sm:$0xff]
    %v5479 = vld [vmem:[#allocation12 + $0xd0] sm:$0xff]
    %v5480 = vld [vmem:[#allocation12 + $0xd8] sm:$0xff]
    %v5481 = vld [vmem:[#allocation12 + $0xe0] sm:$0xff]
    %v5482 = vld [vmem:[#allocation12 + $0xe8] sm:$0xff]
    %v5483 = vld [vmem:[#allocation12 + $0xf0] sm:$0xff]
    %v5484 = vld [vmem:[#allocation12 + $0xf8] sm:$0xff]
    %v5485 = vld [vmem:[#allocation12 + $0x100] sm:$0xff]
    %v5486 = vld [vmem:[#allocation12 + $0x108] sm:$0xff]
    %v5487 = vld [vmem:[#allocation12 + $0x110] sm:$0xff]
    %v5488 = vld [vmem:[#allocation12 + $0x118] sm:$0xff]
    %v5489 = vld [vmem:[#allocation12 + $0x120] sm:$0xff]
    %v5490 = vld [vmem:[#allocation12 + $0x128] sm:$0xff]
    %v5491 = vld [vmem:[#allocation12 + $0x130] sm:$0xff]
    %v5492 = vld [vmem:[#allocation12 + $0x138] sm:$0xff]
    %v5493 = vld [vmem:[#allocation12 + $0x140] sm:$0xff]
    %v5494 = vld [vmem:[#allocation12 + $0x148] sm:$0xff]
    %v5495 = vld [vmem:[#allocation12 + $0x150] sm:$0xff]
    %v5496 = vld [vmem:[#allocation12 + $0x158] sm:$0xff]
    %v5497 = vld [vmem:[#allocation12 + $0x160] sm:$0xff]
    %v5498 = vld [vmem:[#allocation12 + $0x168] sm:$0xff]
    %v5499 = vld [vmem:[#allocation12 + $0x170] sm:$0xff]
    %v5500 = vld [vmem:[#allocation12 + $0x178] sm:$0xff]
    %v5501 = vld [vmem:[%s16] sm:$0x7]
    %v5503 = vlaneseq
    %v5504 = vshrl.u32 %v5503, 7
    %v5505 = vsub.s32 0, %v5504
    %v5506 = vrot.slane %v5501, %v5505
    %v5507 = vlaneseq
    %v5508 = vshrl.u32 %v5507, 7
    %v5509 = vsub.s32 1, %v5508
    %v5510 = vrot.slane %v5501, %v5509
    %v5511 = vlaneseq
    %v5512 = vshrl.u32 %v5511, 7
    %v5513 = vsub.s32 2, %v5512
    %v5514 = vrot.slane %v5501, %v5513
    %5518 = vmatprep.subr.mxu0 %v5454
    %5519 = vmatpush1.msra.mxu0 %v5453
    %5520 = vmatprep.subr.mxu0 %v5457
    %5521 = vmatpush1.msra.mxu0 %v5456
    %5522 = vmatprep.subr.mxu0 %v5460
    %5523 = vmatpush1.msra.mxu0 %v5459
    %5524 = vmatprep.subr.mxu0 %v5463
    %5525 = vmatpush1.msra.mxu0 %v5462
    %5526 = vmatprep.subr.mxu0 %v5466
    %5527 = vmatpush1.msra.mxu0 %v5465
    %5528 = vmatprep.subr.mxu0 %v5469
    %5529 = vmatpush1.msra.mxu0 %v5468
    %5530 = vmatprep.subr.mxu0 %v5472
    %5531 = vmatpush1.msra.mxu0 %v5471
    %5532 = vmatprep.subr.mxu0 %v5475
    %5533 = vmatpush1.msra.mxu0 %v5474
    %5534 = vmatprep.subr.mxu0 %v5478
    %5535 = vmatpush1.msra.mxu0 %v5477
    %5536 = vmatprep.subr.mxu0 %v5481
    %5537 = vmatpush1.msra.mxu0 %v5480
    %5538 = vmatprep.subr.mxu0 %v5484
    %5539 = vmatpush1.msra.mxu0 %v5483
    %5540 = vmatprep.subr.mxu0 %v5487
    %5541 = vmatpush1.msra.mxu0 %v5486
    %5542 = vmatprep.subr.mxu0 %v5490
    %5543 = vmatpush1.msra.mxu0 %v5489
    %5544 = vmatprep.subr.mxu0 %v5493
    %5545 = vmatpush1.msra.mxu0 %v5492
    %5546 = vmatprep.subr.mxu0 %v5496
    %5547 = vmatpush1.msra.mxu0 %v5495
    %5548 = vmatprep.subr.mxu0 %v5499
    %5549 = vmatpush1.msra.mxu0 %v5498
    %5550 = vmatprep.subr.mxu0 0.0
    %5551 = vmatpush1.msra.mxu0 0.0
    %5552 = vmatprep.subr.mxu0 0.0
    %5553 = vmatpush1.msra.mxu0 0.0
    %5554 = vmatprep.subr.mxu0 0.0
    %5555 = vmatpush1.msra.mxu0 0.0
    %5556 = vmatprep.subr.mxu0 0.0
    %5557 = vmatpush1.msra.mxu0 0.0
    %5558 = vmatprep.subr.mxu0 0.0
    %5559 = vmatpush1.msra.mxu0 0.0
    %5560 = vmatprep.subr.mxu0 0.0
    %5561 = vmatpush1.msra.mxu0 0.0
    %5562 = vmatprep.subr.mxu0 0.0
    %5563 = vmatpush1.msra.mxu0 0.0
    %5564 = vmatprep.subr.mxu0 0.0
    %5565 = vmatpush1.msra.mxu0 0.0
    %5566 = vmatprep.subr.mxu0 0.0
    %5567 = vmatpush1.msra.mxu0 0.0
    %5568 = vmatprep.subr.mxu0 0.0
    %5569 = vmatpush1.msra.mxu0 0.0
    %5570 = vmatprep.subr.mxu0 0.0
    %5571 = vmatpush1.msra.mxu0 0.0
    %5572 = vmatprep.subr.mxu0 0.0
    %5573 = vmatpush1.msra.mxu0 0.0
    %5574 = vmatprep.subr.mxu0 0.0
    %5575 = vmatpush1.msra.mxu0 0.0
    %5576 = vmatprep.subr.mxu0 0.0
    %5577 = vmatpush1.msra.mxu0 0.0
    %5578 = vmatprep.subr.mxu0 0.0
    %5579 = vmatpush1.msra.mxu0 0.0
    %5580 = vmatprep.subr.mxu0 0.0
    %5581 = vmatpush1.msra.mxu0 0.0
    %5582 = vmatprep.mubr.f32.mxu0 0.0
    %5583 = vmatmul.mubr.f32.gmra.mrb[0].mxu0 0.0
    %v5584 = vpop.f32.mrb[0].mxu0
    %v5585 = vadd.f32 %v5506, %v5584
    %v5586 = vpop.f32.mrb[0].mxu0
    %v5587 = vadd.f32 %v5510, %v5586
    %5588 = vdwg.mxu0
    %5589 = vmatprep.subr.mxu0 0.0
    %5590 = vmatpush1.msra.mxu0 %v5455
    %5591 = vmatprep.subr.mxu0 0.0
    %5592 = vmatpush1.msra.mxu0 %v5458
    %5593 = vmatprep.subr.mxu0 0.0
    %5594 = vmatpush1.msra.mxu0 %v5461
    %5595 = vmatprep.subr.mxu0 0.0
    %5596 = vmatpush1.msra.mxu0 %v5464
    %5597 = vmatprep.subr.mxu0 0.0
    %5598 = vmatpush1.msra.mxu0 %v5467
    %5599 = vmatprep.subr.mxu0 0.0
    %5600 = vmatpush1.msra.mxu0 %v5470
    %5601 = vmatprep.subr.mxu0 0.0
    %5602 = vmatpush1.msra.mxu0 %v5473
    %5603 = vmatprep.subr.mxu0 0.0
    %5604 = vmatpush1.msra.mxu0 %v5476
    %5605 = vmatprep.subr.mxu0 0.0
    %5606 = vmatpush1.msra.mxu0 %v5479
    %5607 = vmatprep.subr.mxu0 0.0
    %5608 = vmatpush1.msra.mxu0 %v5482
    %5609 = vmatprep.subr.mxu0 0.0
    %5610 = vmatpush1.msra.mxu0 %v5485
    %5611 = vmatprep.subr.mxu0 0.0
    %5612 = vmatpush1.msra.mxu0 %v5488
    %5613 = vmatprep.subr.mxu0 0.0
    %5614 = vmatpush1.msra.mxu0 %v5491
    %5615 = vmatprep.subr.mxu0 0.0
    %5616 = vmatpush1.msra.mxu0 %v5494
    %5617 = vmatprep.subr.mxu0 0.0
    %5618 = vmatpush1.msra.mxu0 %v5497
    %5619 = vmatprep.subr.mxu0 0.0
    %5620 = vmatpush1.msra.mxu0 %v5500
    %5621 = vmatprep.subr.mxu0 0.0
    %5622 = vmatpush1.msra.mxu0 0.0
    %5623 = vmatprep.subr.mxu0 0.0
    %5624 = vmatpush1.msra.mxu0 0.0
    %5625 = vmatprep.subr.mxu0 0.0
    %5626 = vmatpush1.msra.mxu0 0.0
    %5627 = vmatprep.subr.mxu0 0.0
    %5628 = vmatpush1.msra.mxu0 0.0
    %5629 = vmatprep.subr.mxu0 0.0
    %5630 = vmatpush1.msra.mxu0 0.0
    %5631 = vmatprep.subr.mxu0 0.0
    %5632 = vmatpush1.msra.mxu0 0.0
    %5633 = vmatprep.subr.mxu0 0.0
    %5634 = vmatpush1.msra.mxu0 0.0
    %5635 = vmatprep.subr.mxu0 0.0
    %5636 = vmatpush1.msra.mxu0 0.0
    %5637 = vmatprep.subr.mxu0 0.0
    %5638 = vmatpush1.msra.mxu0 0.0
    %5639 = vmatprep.subr.mxu0 0.0
    %5640 = vmatpush1.msra.mxu0 0.0
    %5641 = vmatprep.subr.mxu0 0.0
    %5642 = vmatpush1.msra.mxu0 0.0
    %5643 = vmatprep.subr.mxu0 0.0
    %5644 = vmatpush1.msra.mxu0 0.0
    %5645 = vmatprep.subr.mxu0 0.0
    %5646 = vmatpush1.msra.mxu0 0.0
    %5647 = vmatprep.subr.mxu0 0.0
    %5648 = vmatpush1.msra.mxu0 0.0
    %5649 = vmatprep.subr.mxu0 0.0
    %5650 = vmatpush1.msra.mxu0 0.0
    %5651 = vmatprep.subr.mxu0 0.0
    %5652 = vmatpush1.msra.mxu0 0.0
    %5653 = vmatprep.mubr.f32.mxu0 0.0
    %5654 = vmatmul.mubr.f32.gmra.mrb[0].mxu0 0.0
    %v5655 = vpop.f32.mrb[0].mxu0
    %v5656 = vadd.f32 %v5514, %v5655
    %v5657 = vpop.f32.mrb[0].mxu0
    %5658 = vdwg.mxu0
    %v5659 = vadd.f32 %v5344, %v5585
    %v5660 = vxor.u32 %v5659, 2147483648
    %v5661 = vmul.f32 %v5660, 1.442695
    %v5662 = vpow.pop %v5661
    %v5663 = vadd.f32 %v5662, 1.0
    %v5664 = vrcp.pop %v5663
    %v5665 = vmul.f32 1.0, %v5664
    %v5666 = vadd.f32 %v5346, %v5587
    %v5667 = vxor.u32 %v5666, 2147483648
    %v5668 = vmul.f32 %v5667, 1.442695
    %v5669 = vpow.pop %v5668
    %v5670 = vadd.f32 %v5669, 1.0
    %v5671 = vrcp.pop %v5670
    %v5672 = vmul.f32 1.0, %v5671
    %v5673 = vmul.f32 %v5665, %v5656
    %v5674 = vadd.f32 %v5450, %v5673
    %v5675 = vtanh.pop %v5674
    %v5676 = vsub.f32 1.0, %v5672
    %v5677 = vmul.f32 %v5676, %v5675
    %v5678 = vmul.f32 %v5672, 0.0
    %v5679 = vadd.f32 %v5677, %v5678
    %5680 = vmatprep.subr.mxu0 %v5454
    %5681 = vmatpush1.msra.mxu0 %v5453
    %5682 = vmatprep.subr.mxu0 %v5457
    %5683 = vmatpush1.msra.mxu0 %v5456
    %5684 = vmatprep.subr.mxu0 %v5460
    %5685 = vmatpush1.msra.mxu0 %v5459
    %5686 = vmatprep.subr.mxu0 %v5463
    %5687 = vmatpush1.msra.mxu0 %v5462
    %5688 = vmatprep.subr.mxu0 %v5466
    %5689 = vmatpush1.msra.mxu0 %v5465
    %5690 = vmatprep.subr.mxu0 %v5469
    %5691 = vmatpush1.msra.mxu0 %v5468
    %5692 = vmatprep.subr.mxu0 %v5472
    %5693 = vmatpush1.msra.mxu0 %v5471
    %5694 = vmatprep.subr.mxu0 %v5475
    %5695 = vmatpush1.msra.mxu0 %v5474
    %5696 = vmatprep.subr.mxu0 %v5478
    %5697 = vmatpush1.msra.mxu0 %v5477
    %5698 = vmatprep.subr.mxu0 %v5481
    %5699 = vmatpush1.msra.mxu0 %v5480
    %5700 = vmatprep.subr.mxu0 %v5484
    %5701 = vmatpush1.msra.mxu0 %v5483
    %5702 = vmatprep.subr.mxu0 %v5487
    %5703 = vmatpush1.msra.mxu0 %v5486
    %5704 = vmatprep.subr.mxu0 %v5490
    %5705 = vmatpush1.msra.mxu0 %v5489
    %5706 = vmatprep.subr.mxu0 %v5493
    %5707 = vmatpush1.msra.mxu0 %v5492
    %5708 = vmatprep.subr.mxu0 %v5496
    %5709 = vmatpush1.msra.mxu0 %v5495
    %5710 = vmatprep.subr.mxu0 %v5499
    %5711 = vmatpush1.msra.mxu0 %v5498
    %5712 = vmatprep.subr.mxu0 0.0
    %5713 = vmatpush1.msra.mxu0 0.0
    %5714 = vmatprep.subr.mxu0 0.0
    %5715 = vmatpush1.msra.mxu0 0.0
    %5716 = vmatprep.subr.mxu0 0.0
    %5717 = vmatpush1.msra.mxu0 0.0
    %5718 = vmatprep.subr.mxu0 0.0
    %5719 = vmatpush1.msra.mxu0 0.0
    %5720 = vmatprep.subr.mxu0 0.0
    %5721 = vmatpush1.msra.mxu0 0.0
    %5722 = vmatprep.subr.mxu0 0.0
    %5723 = vmatpush1.msra.mxu0 0.0
    %5724 = vmatprep.subr.mxu0 0.0
    %5725 = vmatpush1.msra.mxu0 0.0
    %5726 = vmatprep.subr.mxu0 0.0
    %5727 = vmatpush1.msra.mxu0 0.0
    %5728 = vmatprep.subr.mxu0 0.0
    %5729 = vmatpush1.msra.mxu0 0.0
    %5730 = vmatprep.subr.mxu0 0.0
    %5731 = vmatpush1.msra.mxu0 0.0
    %5732 = vmatprep.subr.mxu0 0.0
    %5733 = vmatpush1.msra.mxu0 0.0
    %5734 = vmatprep.subr.mxu0 0.0
    %5735 = vmatpush1.msra.mxu0 0.0
    %5736 = vmatprep.subr.mxu0 0.0
    %5737 = vmatpush1.msra.mxu0 0.0
    %5738 = vmatprep.subr.mxu0 0.0
    %5739 = vmatpush1.msra.mxu0 0.0
    %5740 = vmatprep.subr.mxu0 0.0
    %5741 = vmatpush1.msra.mxu0 0.0
    %5742 = vmatprep.subr.mxu0 0.0
    %5743 = vmatpush1.msra.mxu0 0.0
    %5744 = vmatprep.mubr.f32.mxu0 0.0
    %5745 = vmatmul.mubr.f32.gmra.mrb[0].mxu0 %v5679
    %v5746 = vpop.f32.mrb[0].mxu0
    %v5747 = vadd.f32 %v5506, %v5746
    %v5748 = vpop.f32.mrb[0].mxu0
    %v5749 = vadd.f32 %v5510, %v5748
    %5750 = vdwg.mxu0
    %5751 = vmatprep.subr.mxu0 0.0
    %5752 = vmatpush1.msra.mxu0 %v5455
    %5753 = vmatprep.subr.mxu0 0.0
    %5754 = vmatpush1.msra.mxu0 %v5458
    %5755 = vmatprep.subr.mxu0 0.0
    %5756 = vmatpush1.msra.mxu0 %v5461
    %5757 = vmatprep.subr.mxu0 0.0
    %5758 = vmatpush1.msra.mxu0 %v5464
    %5759 = vmatprep.subr.mxu0 0.0
    %5760 = vmatpush1.msra.mxu0 %v5467
    %5761 = vmatprep.subr.mxu0 0.0
    %5762 = vmatpush1.msra.mxu0 %v5470
    %5763 = vmatprep.subr.mxu0 0.0
    %5764 = vmatpush1.msra.mxu0 %v5473
    %5765 = vmatprep.subr.mxu0 0.0
    %5766 = vmatpush1.msra.mxu0 %v5476
    %5767 = vmatprep.subr.mxu0 0.0
    %5768 = vmatpush1.msra.mxu0 %v5479
    %5769 = vmatprep.subr.mxu0 0.0
    %5770 = vmatpush1.msra.mxu0 %v5482
    %5771 = vmatprep.subr.mxu0 0.0
    %5772 = vmatpush1.msra.mxu0 %v5485
    %5773 = vmatprep.subr.mxu0 0.0
    %5774 = vmatpush1.msra.mxu0 %v5488
    %5775 = vmatprep.subr.mxu0 0.0
    %5776 = vmatpush1.msra.mxu0 %v5491
    %5777 = vmatprep.subr.mxu0 0.0
    %5778 = vmatpush1.msra.mxu0 %v5494
    %5779 = vmatprep.subr.mxu0 0.0
    %5780 = vmatpush1.msra.mxu0 %v5497
    %5781 = vmatprep.subr.mxu0 0.0
    %5782 = vmatpush1.msra.mxu0 %v5500
    %5783 = vmatprep.subr.mxu0 0.0
    %5784 = vmatpush1.msra.mxu0 0.0
    %5785 = vmatprep.subr.mxu0 0.0
    %5786 = vmatpush1.msra.mxu0 0.0
    %5787 = vmatprep.subr.mxu0 0.0
    %5788 = vmatpush1.msra.mxu0 0.0
    %5789 = vmatprep.subr.mxu0 0.0
    %5790 = vmatpush1.msra.mxu0 0.0
    %5791 = vmatprep.subr.mxu0 0.0
    %5792 = vmatpush1.msra.mxu0 0.0
    %5793 = vmatprep.subr.mxu0 0.0
    %5794 = vmatpush1.msra.mxu0 0.0
    %5795 = vmatprep.subr.mxu0 0.0
    %5796 = vmatpush1.msra.mxu0 0.0
    %5797 = vmatprep.subr.mxu0 0.0
    %5798 = vmatpush1.msra.mxu0 0.0
    %5799 = vmatprep.subr.mxu0 0.0
    %5800 = vmatpush1.msra.mxu0 0.0
    %5801 = vmatprep.subr.mxu0 0.0
    %5802 = vmatpush1.msra.mxu0 0.0
    %5803 = vmatprep.subr.mxu0 0.0
    %5804 = vmatpush1.msra.mxu0 0.0
    %5805 = vmatprep.subr.mxu0 0.0
    %5806 = vmatpush1.msra.mxu0 0.0
    %5807 = vmatprep.subr.mxu0 0.0
    %5808 = vmatpush1.msra.mxu0 0.0
    %5809 = vmatprep.subr.mxu0 0.0
    %5810 = vmatpush1.msra.mxu0 0.0
    %5811 = vmatprep.subr.mxu0 0.0
    %5812 = vmatpush1.msra.mxu0 0.0
    %5813 = vmatprep.subr.mxu0 0.0
    %5814 = vmatpush1.msra.mxu0 0.0
    %5815 = vmatprep.mubr.f32.mxu0 0.0
    %5816 = vmatmul.mubr.f32.gmra.mrb[0].mxu0 %v5679
    %v5817 = vpop.f32.mrb[0].mxu0
    %v5818 = vadd.f32 %v5514, %v5817
    %v5819 = vpop.f32.mrb[0].mxu0
    %5820 = vdwg.mxu0
    %v5821 = vadd.f32 %v5338, %v5747
    %v5822 = vxor.u32 %v5821, 2147483648
    %v5823 = vmul.f32 %v5822, 1.442695
    %v5824 = vpow.pop %v5823
    %v5825 = vadd.f32 %v5824, 1.0
    %v5826 = vrcp.pop %v5825
    %v5827 = vmul.f32 1.0, %v5826
    %v5828 = vadd.f32 %v5340, %v5749
    %v5829 = vxor.u32 %v5828, 2147483648
    %v5830 = vmul.f32 %v5829, 1.442695
    %v5831 = vpow.pop %v5830
    %v5832 = vadd.f32 %v5831, 1.0
    %v5833 = vrcp.pop %v5832
    %v5834 = vmul.f32 1.0, %v5833
    %v5835 = vmul.f32 %v5827, %v5818
    %v5836 = vadd.f32 %v5445, %v5835
    %v5837 = vtanh.pop %v5836
    %v5838 = vsub.f32 1.0, %v5834
    %v5839 = vmul.f32 %v5838, %v5837
    %v5840 = vmul.f32 %v5834, %v5679
    %v5841 = vadd.f32 %v5839, %v5840
    %5842 = vmatprep.subr.mxu0 %v5454
    %5843 = vmatpush1.msra.mxu0 %v5453
    %5844 = vmatprep.subr.mxu0 %v5457
    %5845 = vmatpush1.msra.mxu0 %v5456
    %5846 = vmatprep.subr.mxu0 %v5460
    %5847 = vmatpush1.msra.mxu0 %v5459
    %5848 = vmatprep.subr.mxu0 %v5463
    %5849 = vmatpush1.msra.mxu0 %v5462
    %5850 = vmatprep.subr.mxu0 %v5466
    %5851 = vmatpush1.msra.mxu0 %v5465
    %5852 = vmatprep.subr.mxu0 %v5469
    %5853 = vmatpush1.msra.mxu0 %v5468
    %5854 = vmatprep.subr.mxu0 %v5472
    %5855 = vmatpush1.msra.mxu0 %v5471
    %5856 = vmatprep.subr.mxu0 %v5475
    %5857 = vmatpush1.msra.mxu0 %v5474
    %5858 = vmatprep.subr.mxu0 %v5478
    %5859 = vmatpush1.msra.mxu0 %v5477
    %5860 = vmatprep.subr.mxu0 %v5481
    %5861 = vmatpush1.msra.mxu0 %v5480
    %5862 = vmatprep.subr.mxu0 %v5484
    %5863 = vmatpush1.msra.mxu0 %v5483
    %5864 = vmatprep.subr.mxu0 %v5487
    %5865 = vmatpush1.msra.mxu0 %v5486
    %5866 = vmatprep.subr.mxu0 %v5490
    %5867 = vmatpush1.msra.mxu0 %v5489
    %5868 = vmatprep.subr.mxu0 %v5493
    %5869 = vmatpush1.msra.mxu0 %v5492
    %5870 = vmatprep.subr.mxu0 %v5496
    %5871 = vmatpush1.msra.mxu0 %v5495
    %5872 = vmatprep.subr.mxu0 %v5499
    %5873 = vmatpush1.msra.mxu0 %v5498
    %5874 = vmatprep.subr.mxu0 0.0
    %5875 = vmatpush1.msra.mxu0 0.0
    %5876 = vmatprep.subr.mxu0 0.0
    %5877 = vmatpush1.msra.mxu0 0.0
    %5878 = vmatprep.subr.mxu0 0.0
    %5879 = vmatpush1.msra.mxu0 0.0
    %5880 = vmatprep.subr.mxu0 0.0
    %5881 = vmatpush1.msra.mxu0 0.0
    %5882 = vmatprep.subr.mxu0 0.0
    %5883 = vmatpush1.msra.mxu0 0.0
    %5884 = vmatprep.subr.mxu0 0.0
    %5885 = vmatpush1.msra.mxu0 0.0
    %5886 = vmatprep.subr.mxu0 0.0
    %5887 = vmatpush1.msra.mxu0 0.0
    %5888 = vmatprep.subr.mxu0 0.0
    %5889 = vmatpush1.msra.mxu0 0.0
    %5890 = vmatprep.subr.mxu0 0.0
    %5891 = vmatpush1.msra.mxu0 0.0
    %5892 = vmatprep.subr.mxu0 0.0
    %5893 = vmatpush1.msra.mxu0 0.0
    %5894 = vmatprep.subr.mxu0 0.0
    %5895 = vmatpush1.msra.mxu0 0.0
    %5896 = vmatprep.subr.mxu0 0.0
    %5897 = vmatpush1.msra.mxu0 0.0
    %5898 = vmatprep.subr.mxu0 0.0
    %5899 = vmatpush1.msra.mxu0 0.0
    %5900 = vmatprep.subr.mxu0 0.0
    %5901 = vmatpush1.msra.mxu0 0.0
    %5902 = vmatprep.subr.mxu0 0.0
    %5903 = vmatpush1.msra.mxu0 0.0
    %5904 = vmatprep.subr.mxu0 0.0
    %5905 = vmatpush1.msra.mxu0 0.0
    %5906 = vmatprep.mubr.f32.mxu0 0.0
    %5907 = vmatmul.mubr.f32.gmra.mrb[0].mxu0 %v5841
    %v5908 = vpop.f32.mrb[0].mxu0
    %v5909 = vadd.f32 %v5506, %v5908
    %v5910 = vpop.f32.mrb[0].mxu0
    %v5911 = vadd.f32 %v5510, %v5910
    %5912 = vdwg.mxu0
    %5913 = vmatprep.subr.mxu0 0.0
    %5914 = vmatpush1.msra.mxu0 %v5455
    %5915 = vmatprep.subr.mxu0 0.0
    %5916 = vmatpush1.msra.mxu0 %v5458
    %5917 = vmatprep.subr.mxu0 0.0
    %5918 = vmatpush1.msra.mxu0 %v5461
    %5919 = vmatprep.subr.mxu0 0.0
    %5920 = vmatpush1.msra.mxu0 %v5464
    %5921 = vmatprep.subr.mxu0 0.0
    %5922 = vmatpush1.msra.mxu0 %v5467
    %5923 = vmatprep.subr.mxu0 0.0
    %5924 = vmatpush1.msra.mxu0 %v5470
    %5925 = vmatprep.subr.mxu0 0.0
    %5926 = vmatpush1.msra.mxu0 %v5473
    %5927 = vmatprep.subr.mxu0 0.0
    %5928 = vmatpush1.msra.mxu0 %v5476
    %5929 = vmatprep.subr.mxu0 0.0
    %5930 = vmatpush1.msra.mxu0 %v5479
    %5931 = vmatprep.subr.mxu0 0.0
    %5932 = vmatpush1.msra.mxu0 %v5482
    %5933 = vmatprep.subr.mxu0 0.0
    %5934 = vmatpush1.msra.mxu0 %v5485
    %5935 = vmatprep.subr.mxu0 0.0
    %5936 = vmatpush1.msra.mxu0 %v5488
    %5937 = vmatprep.subr.mxu0 0.0
    %5938 = vmatpush1.msra.mxu0 %v5491
    %5939 = vmatprep.subr.mxu0 0.0
    %5940 = vmatpush1.msra.mxu0 %v5494
    %5941 = vmatprep.subr.mxu0 0.0
    %5942 = vmatpush1.msra.mxu0 %v5497
    %5943 = vmatprep.subr.mxu0 0.0
    %5944 = vmatpush1.msra.mxu0 %v5500
    %5945 = vmatprep.subr.mxu0 0.0
    %5946 = vmatpush1.msra.mxu0 0.0
    %5947 = vmatprep.subr.mxu0 0.0
    %5948 = vmatpush1.msra.mxu0 0.0
    %5949 = vmatprep.subr.mxu0 0.0
    %5950 = vmatpush1.msra.mxu0 0.0
    %5951 = vmatprep.subr.mxu0 0.0
    %5952 = vmatpush1.msra.mxu0 0.0
    %5953 = vmatprep.subr.mxu0 0.0
    %5954 = vmatpush1.msra.mxu0 0.0
    %5955 = vmatprep.subr.mxu0 0.0
    %5956 = vmatpush1.msra.mxu0 0.0
    %5957 = vmatprep.subr.mxu0 0.0
    %5958 = vmatpush1.msra.mxu0 0.0
    %5959 = vmatprep.subr.mxu0 0.0
    %5960 = vmatpush1.msra.mxu0 0.0
    %5961 = vmatprep.subr.mxu0 0.0
    %5962 = vmatpush1.msra.mxu0 0.0
    %5963 = vmatprep.subr.mxu0 0.0
    %5964 = vmatpush1.msra.mxu0 0.0
    %5965 = vmatprep.subr.mxu0 0.0
    %5966 = vmatpush1.msra.mxu0 0.0
    %5967 = vmatprep.subr.mxu0 0.0
    %5968 = vmatpush1.msra.mxu0 0.0
    %5969 = vmatprep.subr.mxu0 0.0
    %5970 = vmatpush1.msra.mxu0 0.0
    %5971 = vmatprep.subr.mxu0 0.0
    %5972 = vmatpush1.msra.mxu0 0.0
    %5973 = vmatprep.subr.mxu0 0.0
    %5974 = vmatpush1.msra.mxu0 0.0
    %5975 = vmatprep.subr.mxu0 0.0
    %5976 = vmatpush1.msra.mxu0 0.0
    %5977 = vmatprep.mubr.f32.mxu0 0.0
    %5978 = vmatmul.mubr.f32.gmra.mrb[0].mxu0 %v5841
    %v5979 = vpop.f32.mrb[0].mxu0
    %v5980 = vadd.f32 %v5514, %v5979
    %v5981 = vpop.f32.mrb[0].mxu0
    %5982 = vdwg.mxu0
    %v5983 = vadd.f32 %v5332, %v5909
    %v5984 = vxor.u32 %v5983, 2147483648
    %v5985 = vmul.f32 %v5984, 1.442695
    %v5986 = vpow.pop %v5985
    %v5987 = vadd.f32 %v5986, 1.0
    %v5988 = vrcp.pop %v5987
    %v5989 = vmul.f32 1.0, %v5988
    %v5990 = vadd.f32 %v5334, %v5911
    %v5991 = vxor.u32 %v5990, 2147483648
    %v5992 = vmul.f32 %v5991, 1.442695
    %v5993 = vpow.pop %v5992
    %v5994 = vadd.f32 %v5993, 1.0
    %v5995 = vrcp.pop %v5994
    %v5996 = vmul.f32 1.0, %v5995
    %v5997 = vmul.f32 %v5989, %v5980
    %v5998 = vadd.f32 %v5440, %v5997
    %v5999 = vtanh.pop %v5998
    %v6000 = vsub.f32 1.0, %v5996
    %v6001 = vmul.f32 %v6000, %v5999
    %v6002 = vmul.f32 %v5996, %v5841
    %v6003 = vadd.f32 %v6001, %v6002
    %6004 = vmatprep.subr.mxu0 %v5454
    %6005 = vmatpush1.msra.mxu0 %v5453
    %6006 = vmatprep.subr.mxu0 %v5457
    %6007 = vmatpush1.msra.mxu0 %v5456
    %6008 = vmatprep.subr.mxu0 %v5460
    %6009 = vmatpush1.msra.mxu0 %v5459
    %6010 = vmatprep.subr.mxu0 %v5463
    %6011 = vmatpush1.msra.mxu0 %v5462
    %6012 = vmatprep.subr.mxu0 %v5466
    %6013 = vmatpush1.msra.mxu0 %v5465
    %6014 = vmatprep.subr.mxu0 %v5469
    %6015 = vmatpush1.msra.mxu0 %v5468
    %6016 = vmatprep.subr.mxu0 %v5472
    %6017 = vmatpush1.msra.mxu0 %v5471
    %6018 = vmatprep.subr.mxu0 %v5475
    %6019 = vmatpush1.msra.mxu0 %v5474
    %6020 = vmatprep.subr.mxu0 %v5478
    %6021 = vmatpush1.msra.mxu0 %v5477
    %6022 = vmatprep.subr.mxu0 %v5481
    %6023 = vmatpush1.msra.mxu0 %v5480
    %6024 = vmatprep.subr.mxu0 %v5484
    %6025 = vmatpush1.msra.mxu0 %v5483
    %6026 = vmatprep.subr.mxu0 %v5487
    %6027 = vmatpush1.msra.mxu0 %v5486
    %6028 = vmatprep.subr.mxu0 %v5490
    %6029 = vmatpush1.msra.mxu0 %v5489
    %6030 = vmatprep.subr.mxu0 %v5493
    %6031 = vmatpush1.msra.mxu0 %v5492
    %6032 = vmatprep.subr.mxu0 %v5496
    %6033 = vmatpush1.msra.mxu0 %v5495
    %6034 = vmatprep.subr.mxu0 %v5499
    %6035 = vmatpush1.msra.mxu0 %v5498
    %6036 = vmatprep.subr.mxu0 0.0
    %6037 = vmatpush1.msra.mxu0 0.0
    %6038 = vmatprep.subr.mxu0 0.0
    %6039 = vmatpush1.msra.mxu0 0.0
    %6040 = vmatprep.subr.mxu0 0.0
    %6041 = vmatpush1.msra.mxu0 0.0
    %6042 = vmatprep.subr.mxu0 0.0
    %6043 = vmatpush1.msra.mxu0 0.0
    %6044 = vmatprep.subr.mxu0 0.0
    %6045 = vmatpush1.msra.mxu0 0.0
    %6046 = vmatprep.subr.mxu0 0.0
    %6047 = vmatpush1.msra.mxu0 0.0
    %6048 = vmatprep.subr.mxu0 0.0
    %6049 = vmatpush1.msra.mxu0 0.0
    %6050 = vmatprep.subr.mxu0 0.0
    %6051 = vmatpush1.msra.mxu0 0.0
    %6052 = vmatprep.subr.mxu0 0.0
    %6053 = vmatpush1.msra.mxu0 0.0
    %6054 = vmatprep.subr.mxu0 0.0
    %6055 = vmatpush1.msra.mxu0 0.0
    %6056 = vmatprep.subr.mxu0 0.0
    %6057 = vmatpush1.msra.mxu0 0.0
    %6058 = vmatprep.subr.mxu0 0.0
    %6059 = vmatpush1.msra.mxu0 0.0
    %6060 = vmatprep.subr.mxu0 0.0
    %6061 = vmatpush1.msra.mxu0 0.0
    %6062 = vmatprep.subr.mxu0 0.0
    %6063 = vmatpush1.msra.mxu0 0.0
    %6064 = vmatprep.subr.mxu0 0.0
    %6065 = vmatpush1.msra.mxu0 0.0
    %6066 = vmatprep.subr.mxu0 0.0
    %6067 = vmatpush1.msra.mxu0 0.0
    %6068 = vmatprep.mubr.f32.mxu0 0.0
    %6069 = vmatmul.mubr.f32.gmra.mrb[0].mxu0 %v6003
    %v6070 = vpop.f32.mrb[0].mxu0
    %v6071 = vadd.f32 %v5506, %v6070
    %v6072 = vpop.f32.mrb[0].mxu0
    %v6073 = vadd.f32 %v5510, %v6072
    %6074 = vdwg.mxu0
    %6075 = vmatprep.subr.mxu0 0.0
    %6076 = vmatpush1.msra.mxu0 %v5455
    %6077 = vmatprep.subr.mxu0 0.0
    %6078 = vmatpush1.msra.mxu0 %v5458
    %6079 = vmatprep.subr.mxu0 0.0
    %6080 = vmatpush1.msra.mxu0 %v5461
    %6081 = vmatprep.subr.mxu0 0.0
    %6082 = vmatpush1.msra.mxu0 %v5464
    %6083 = vmatprep.subr.mxu0 0.0
    %6084 = vmatpush1.msra.mxu0 %v5467
    %6085 = vmatprep.subr.mxu0 0.0
    %6086 = vmatpush1.msra.mxu0 %v5470
    %6087 = vmatprep.subr.mxu0 0.0
    %6088 = vmatpush1.msra.mxu0 %v5473
    %6089 = vmatprep.subr.mxu0 0.0
    %6090 = vmatpush1.msra.mxu0 %v5476
    %6091 = vmatprep.subr.mxu0 0.0
    %6092 = vmatpush1.msra.mxu0 %v5479
    %6093 = vmatprep.subr.mxu0 0.0
    %6094 = vmatpush1.msra.mxu0 %v5482
    %6095 = vmatprep.subr.mxu0 0.0
    %6096 = vmatpush1.msra.mxu0 %v5485
    %6097 = vmatprep.subr.mxu0 0.0
    %6098 = vmatpush1.msra.mxu0 %v5488
    %6099 = vmatprep.subr.mxu0 0.0
    %6100 = vmatpush1.msra.mxu0 %v5491
    %6101 = vmatprep.subr.mxu0 0.0
    %6102 = vmatpush1.msra.mxu0 %v5494
    %6103 = vmatprep.subr.mxu0 0.0
    %6104 = vmatpush1.msra.mxu0 %v5497
    %6105 = vmatprep.subr.mxu0 0.0
    %6106 = vmatpush1.msra.mxu0 %v5500
    %6107 = vmatprep.subr.mxu0 0.0
    %6108 = vmatpush1.msra.mxu0 0.0
    %6109 = vmatprep.subr.mxu0 0.0
    %6110 = vmatpush1.msra.mxu0 0.0
    %6111 = vmatprep.subr.mxu0 0.0
    %6112 = vmatpush1.msra.mxu0 0.0
    %6113 = vmatprep.subr.mxu0 0.0
    %6114 = vmatpush1.msra.mxu0 0.0
    %6115 = vmatprep.subr.mxu0 0.0
    %6116 = vmatpush1.msra.mxu0 0.0
    %6117 = vmatprep.subr.mxu0 0.0
    %6118 = vmatpush1.msra.mxu0 0.0
    %6119 = vmatprep.subr.mxu0 0.0
    %6120 = vmatpush1.msra.mxu0 0.0
    %6121 = vmatprep.subr.mxu0 0.0
    %6122 = vmatpush1.msra.mxu0 0.0
    %6123 = vmatprep.subr.mxu0 0.0
    %6124 = vmatpush1.msra.mxu0 0.0
    %6125 = vmatprep.subr.mxu0 0.0
    %6126 = vmatpush1.msra.mxu0 0.0
    %6127 = vmatprep.subr.mxu0 0.0
    %6128 = vmatpush1.msra.mxu0 0.0
    %6129 = vmatprep.subr.mxu0 0.0
    %6130 = vmatpush1.msra.mxu0 0.0
    %6131 = vmatprep.subr.mxu0 0.0
    %6132 = vmatpush1.msra.mxu0 0.0
    %6133 = vmatprep.subr.mxu0 0.0
    %6134 = vmatpush1.msra.mxu0 0.0
    %6135 = vmatprep.subr.mxu0 0.0
    %6136 = vmatpush1.msra.mxu0 0.0
    %6137 = vmatprep.subr.mxu0 0.0
    %6138 = vmatpush1.msra.mxu0 0.0
    %6139 = vmatprep.mubr.f32.mxu0 0.0
    %6140 = vmatmul.mubr.f32.gmra.mrb[0].mxu0 %v6003
    %v6141 = vpop.f32.mrb[0].mxu0
    %v6142 = vadd.f32 %v5514, %v6141
    %v6143 = vpop.f32.mrb[0].mxu0
    %6144 = vdwg.mxu0
    %v6145 = vadd.f32 %v5326, %v6071
    %v6146 = vxor.u32 %v6145, 2147483648
    %v6147 = vmul.f32 %v6146, 1.442695
    %v6148 = vpow.pop %v6147
    %v6149 = vadd.f32 %v6148, 1.0
    %v6150 = vrcp.pop %v6149
    %v6151 = vmul.f32 1.0, %v6150
    %v6152 = vadd.f32 %v5328, %v6073
    %v6153 = vxor.u32 %v6152, 2147483648
    %v6154 = vmul.f32 %v6153, 1.442695
    %v6155 = vpow.pop %v6154
    %v6156 = vadd.f32 %v6155, 1.0
    %v6157 = vrcp.pop %v6156
    %v6158 = vmul.f32 1.0, %v6157
    %v6159 = vmul.f32 %v6151, %v6142
    %v6160 = vadd.f32 %v5435, %v6159
    %v6161 = vtanh.pop %v6160
    %v6162 = vsub.f32 1.0, %v6158
    %v6163 = vmul.f32 %v6162, %v6161
    %v6164 = vmul.f32 %v6158, %v6003
    %v6165 = vadd.f32 %v6163, %v6164
    %6166 = vmatprep.subr.mxu0 %v5454
    %6167 = vmatpush1.msra.mxu0 %v5453
    %6168 = vmatprep.subr.mxu0 %v5457
    %6169 = vmatpush1.msra.mxu0 %v5456
    %6170 = vmatprep.subr.mxu0 %v5460
    %6171 = vmatpush1.msra.mxu0 %v5459
    %6172 = vmatprep.subr.mxu0 %v5463
    %6173 = vmatpush1.msra.mxu0 %v5462
    %6174 = vmatprep.subr.mxu0 %v5466
    %6175 = vmatpush1.msra.mxu0 %v5465
    %6176 = vmatprep.subr.mxu0 %v5469
    %6177 = vmatpush1.msra.mxu0 %v5468
    %6178 = vmatprep.subr.mxu0 %v5472
    %6179 = vmatpush1.msra.mxu0 %v5471
    %6180 = vmatprep.subr.mxu0 %v5475
    %6181 = vmatpush1.msra.mxu0 %v5474
    %6182 = vmatprep.subr.mxu0 %v5478
    %6183 = vmatpush1.msra.mxu0 %v5477
    %6184 = vmatprep.subr.mxu0 %v5481
    %6185 = vmatpush1.msra.mxu0 %v5480
    %6186 = vmatprep.subr.mxu0 %v5484
    %6187 = vmatpush1.msra.mxu0 %v5483
    %6188 = vmatprep.subr.mxu0 %v5487
    %6189 = vmatpush1.msra.mxu0 %v5486
    %6190 = vmatprep.subr.mxu0 %v5490
    %6191 = vmatpush1.msra.mxu0 %v5489
    %6192 = vmatprep.subr.mxu0 %v5493
    %6193 = vmatpush1.msra.mxu0 %v5492
    %6194 = vmatprep.subr.mxu0 %v5496
    %6195 = vmatpush1.msra.mxu0 %v5495
    %6196 = vmatprep.subr.mxu0 %v5499
    %6197 = vmatpush1.msra.mxu0 %v5498
    %6198 = vmatprep.subr.mxu0 0.0
    %6199 = vmatpush1.msra.mxu0 0.0
    %6200 = vmatprep.subr.mxu0 0.0
    %6201 = vmatpush1.msra.mxu0 0.0
    %6202 = vmatprep.subr.mxu0 0.0
    %6203 = vmatpush1.msra.mxu0 0.0
    %6204 = vmatprep.subr.mxu0 0.0
    %6205 = vmatpush1.msra.mxu0 0.0
    %6206 = vmatprep.subr.mxu0 0.0
    %6207 = vmatpush1.msra.mxu0 0.0
    %6208 = vmatprep.subr.mxu0 0.0
    %6209 = vmatpush1.msra.mxu0 0.0
    %6210 = vmatprep.subr.mxu0 0.0
    %6211 = vmatpush1.msra.mxu0 0.0
    %6212 = vmatprep.subr.mxu0 0.0
    %6213 = vmatpush1.msra.mxu0 0.0
    %6214 = vmatprep.subr.mxu0 0.0
    %6215 = vmatpush1.msra.mxu0 0.0
    %6216 = vmatprep.subr.mxu0 0.0
    %6217 = vmatpush1.msra.mxu0 0.0
    %6218 = vmatprep.subr.mxu0 0.0
    %6219 = vmatpush1.msra.mxu0 0.0
    %6220 = vmatprep.subr.mxu0 0.0
    %6221 = vmatpush1.msra.mxu0 0.0
    %6222 = vmatprep.subr.mxu0 0.0
    %6223 = vmatpush1.msra.mxu0 0.0
    %6224 = vmatprep.subr.mxu0 0.0
    %6225 = vmatpush1.msra.mxu0 0.0
    %6226 = vmatprep.subr.mxu0 0.0
    %6227 = vmatpush1.msra.mxu0 0.0
    %6228 = vmatprep.subr.mxu0 0.0
    %6229 = vmatpush1.msra.mxu0 0.0
    %6230 = vmatprep.mubr.f32.mxu0 0.0
    %6231 = vmatmul.mubr.f32.gmra.mrb[0].mxu0 %v6165
    %v6232 = vpop.f32.mrb[0].mxu0
    %v6233 = vadd.f32 %v5506, %v6232
    %v6234 = vpop.f32.mrb[0].mxu0
    %v6235 = vadd.f32 %v5510, %v6234
    %6236 = vdwg.mxu0
    %6237 = vmatprep.subr.mxu0 0.0
    %6238 = vmatpush1.msra.mxu0 %v5455
    %6239 = vmatprep.subr.mxu0 0.0
    %6240 = vmatpush1.msra.mxu0 %v5458
    %6241 = vmatprep.subr.mxu0 0.0
    %6242 = vmatpush1.msra.mxu0 %v5461
    %6243 = vmatprep.subr.mxu0 0.0
    %6244 = vmatpush1.msra.mxu0 %v5464
    %6245 = vmatprep.subr.mxu0 0.0
    %6246 = vmatpush1.msra.mxu0 %v5467
    %6247 = vmatprep.subr.mxu0 0.0
    %6248 = vmatpush1.msra.mxu0 %v5470
    %6249 = vmatprep.subr.mxu0 0.0
    %6250 = vmatpush1.msra.mxu0 %v5473
    %6251 = vmatprep.subr.mxu0 0.0
    %6252 = vmatpush1.msra.mxu0 %v5476
    %6253 = vmatprep.subr.mxu0 0.0
    %6254 = vmatpush1.msra.mxu0 %v5479
    %6255 = vmatprep.subr.mxu0 0.0
    %6256 = vmatpush1.msra.mxu0 %v5482
    %6257 = vmatprep.subr.mxu0 0.0
    %6258 = vmatpush1.msra.mxu0 %v5485
    %6259 = vmatprep.subr.mxu0 0.0
    %6260 = vmatpush1.msra.mxu0 %v5488
    %6261 = vmatprep.subr.mxu0 0.0
    %6262 = vmatpush1.msra.mxu0 %v5491
    %6263 = vmatprep.subr.mxu0 0.0
    %6264 = vmatpush1.msra.mxu0 %v5494
    %6265 = vmatprep.subr.mxu0 0.0
    %6266 = vmatpush1.msra.mxu0 %v5497
    %6267 = vmatprep.subr.mxu0 0.0
    %6268 = vmatpush1.msra.mxu0 %v5500
    %6269 = vmatprep.subr.mxu0 0.0
    %6270 = vmatpush1.msra.mxu0 0.0
    %6271 = vmatprep.subr.mxu0 0.0
    %6272 = vmatpush1.msra.mxu0 0.0
    %6273 = vmatprep.subr.mxu0 0.0
    %6274 = vmatpush1.msra.mxu0 0.0
    %6275 = vmatprep.subr.mxu0 0.0
    %6276 = vmatpush1.msra.mxu0 0.0
    %6277 = vmatprep.subr.mxu0 0.0
    %6278 = vmatpush1.msra.mxu0 0.0
    %6279 = vmatprep.subr.mxu0 0.0
    %6280 = vmatpush1.msra.mxu0 0.0
    %6281 = vmatprep.subr.mxu0 0.0
    %6282 = vmatpush1.msra.mxu0 0.0
    %6283 = vmatprep.subr.mxu0 0.0
    %6284 = vmatpush1.msra.mxu0 0.0
    %6285 = vmatprep.subr.mxu0 0.0
    %6286 = vmatpush1.msra.mxu0 0.0
    %6287 = vmatprep.subr.mxu0 0.0
    %6288 = vmatpush1.msra.mxu0 0.0
    %6289 = vmatprep.subr.mxu0 0.0
    %6290 = vmatpush1.msra.mxu0 0.0
    %6291 = vmatprep.subr.mxu0 0.0
    %6292 = vmatpush1.msra.mxu0 0.0
    %6293 = vmatprep.subr.mxu0 0.0
    %6294 = vmatpush1.msra.mxu0 0.0
    %6295 = vmatprep.subr.mxu0 0.0
    %6296 = vmatpush1.msra.mxu0 0.0
    %6297 = vmatprep.subr.mxu0 0.0
    %6298 = vmatpush1.msra.mxu0 0.0
    %6299 = vmatprep.subr.mxu0 0.0
    %6300 = vmatpush1.msra.mxu0 0.0
    %6301 = vmatprep.mubr.f32.mxu0 0.0
    %6302 = vmatmul.mubr.f32.gmra.mrb[0].mxu0 %v6165
    %v6303 = vpop.f32.mrb[0].mxu0
    %v6304 = vadd.f32 %v5514, %v6303
    %v6305 = vpop.f32.mrb[0].mxu0
    %6306 = vdwg.mxu0
    %v6307 = vadd.f32 %v5320, %v6233
    %v6308 = vxor.u32 %v6307, 2147483648
    %v6309 = vmul.f32 %v6308, 1.442695
    %v6310 = vpow.pop %v6309
    %v6311 = vadd.f32 %v6310, 1.0
    %v6312 = vrcp.pop %v6311
    %v6313 = vmul.f32 1.0, %v6312
    %v6314 = vadd.f32 %v5322, %v6235
    %v6315 = vxor.u32 %v6314, 2147483648
    %v6316 = vmul.f32 %v6315, 1.442695
    %v6317 = vpow.pop %v6316
    %v6318 = vadd.f32 %v6317, 1.0
    %v6319 = vrcp.pop %v6318
    %v6320 = vmul.f32 1.0, %v6319
    %v6321 = vmul.f32 %v6313, %v6304
    %v6322 = vadd.f32 %v5430, %v6321
    %v6323 = vtanh.pop %v6322
    %v6324 = vsub.f32 1.0, %v6320
    %v6325 = vmul.f32 %v6324, %v6323
    %v6326 = vmul.f32 %v6320, %v6165
    %v6327 = vadd.f32 %v6325, %v6326
    %6328 = vmatprep.subr.mxu0 %v5454
    %6329 = vmatpush1.msra.mxu0 %v5453
    %6330 = vmatprep.subr.mxu0 %v5457
    %6331 = vmatpush1.msra.mxu0 %v5456
    %6332 = vmatprep.subr.mxu0 %v5460
    %6333 = vmatpush1.msra.mxu0 %v5459
    %6334 = vmatprep.subr.mxu0 %v5463
    %6335 = vmatpush1.msra.mxu0 %v5462
    %6336 = vmatprep.subr.mxu0 %v5466
    %6337 = vmatpush1.msra.mxu0 %v5465
    %6338 = vmatprep.subr.mxu0 %v5469
    %6339 = vmatpush1.msra.mxu0 %v5468
    %6340 = vmatprep.subr.mxu0 %v5472
    %6341 = vmatpush1.msra.mxu0 %v5471
    %6342 = vmatprep.subr.mxu0 %v5475
    %6343 = vmatpush1.msra.mxu0 %v5474
    %6344 = vmatprep.subr.mxu0 %v5478
    %6345 = vmatpush1.msra.mxu0 %v5477
    %6346 = vmatprep.subr.mxu0 %v5481
    %6347 = vmatpush1.msra.mxu0 %v5480
    %6348 = vmatprep.subr.mxu0 %v5484
    %6349 = vmatpush1.msra.mxu0 %v5483
    %6350 = vmatprep.subr.mxu0 %v5487
    %6351 = vmatpush1.msra.mxu0 %v5486
    %6352 = vmatprep.subr.mxu0 %v5490
    %6353 = vmatpush1.msra.mxu0 %v5489
    %6354 = vmatprep.subr.mxu0 %v5493
    %6355 = vmatpush1.msra.mxu0 %v5492
    %6356 = vmatprep.subr.mxu0 %v5496
    %6357 = vmatpush1.msra.mxu0 %v5495
    %6358 = vmatprep.subr.mxu0 %v5499
    %6359 = vmatpush1.msra.mxu0 %v5498
    %6360 = vmatprep.subr.mxu0 0.0
    %6361 = vmatpush1.msra.mxu0 0.0
    %6362 = vmatprep.subr.mxu0 0.0
    %6363 = vmatpush1.msra.mxu0 0.0
    %6364 = vmatprep.subr.mxu0 0.0
    %6365 = vmatpush1.msra.mxu0 0.0
    %6366 = vmatprep.subr.mxu0 0.0
    %6367 = vmatpush1.msra.mxu0 0.0
    %6368 = vmatprep.subr.mxu0 0.0
    %6369 = vmatpush1.msra.mxu0 0.0
    %6370 = vmatprep.subr.mxu0 0.0
    %6371 = vmatpush1.msra.mxu0 0.0
    %6372 = vmatprep.subr.mxu0 0.0
    %6373 = vmatpush1.msra.mxu0 0.0
    %6374 = vmatprep.subr.mxu0 0.0
    %6375 = vmatpush1.msra.mxu0 0.0
    %6376 = vmatprep.subr.mxu0 0.0
    %6377 = vmatpush1.msra.mxu0 0.0
    %6378 = vmatprep.subr.mxu0 0.0
    %6379 = vmatpush1.msra.mxu0 0.0
    %6380 = vmatprep.subr.mxu0 0.0
    %6381 = vmatpush1.msra.mxu0 0.0
    %6382 = vmatprep.subr.mxu0 0.0
    %6383 = vmatpush1.msra.mxu0 0.0
    %6384 = vmatprep.subr.mxu0 0.0
    %6385 = vmatpush1.msra.mxu0 0.0
    %6386 = vmatprep.subr.mxu0 0.0
    %6387 = vmatpush1.msra.mxu0 0.0
    %6388 = vmatprep.subr.mxu0 0.0
    %6389 = vmatpush1.msra.mxu0 0.0
    %6390 = vmatprep.subr.mxu0 0.0
    %6391 = vmatpush1.msra.mxu0 0.0
    %6392 = vmatprep.mubr.f32.mxu0 0.0
    %6393 = vmatmul.mubr.f32.gmra.mrb[0].mxu0 %v6327
    %v6394 = vpop.f32.mrb[0].mxu0
    %v6395 = vadd.f32 %v5506, %v6394
    %v6396 = vpop.f32.mrb[0].mxu0
    %v6397 = vadd.f32 %v5510, %v6396
    %6398 = vdwg.mxu0
    %6399 = vmatprep.subr.mxu0 0.0
    %6400 = vmatpush1.msra.mxu0 %v5455
    %6401 = vmatprep.subr.mxu0 0.0
    %6402 = vmatpush1.msra.mxu0 %v5458
    %6403 = vmatprep.subr.mxu0 0.0
    %6404 = vmatpush1.msra.mxu0 %v5461
    %6405 = vmatprep.subr.mxu0 0.0
    %6406 = vmatpush1.msra.mxu0 %v5464
    %6407 = vmatprep.subr.mxu0 0.0
    %6408 = vmatpush1.msra.mxu0 %v5467
    %6409 = vmatprep.subr.mxu0 0.0
    %6410 = vmatpush1.msra.mxu0 %v5470
    %6411 = vmatprep.subr.mxu0 0.0
    %6412 = vmatpush1.msra.mxu0 %v5473
    %6413 = vmatprep.subr.mxu0 0.0
    %6414 = vmatpush1.msra.mxu0 %v5476
    %6415 = vmatprep.subr.mxu0 0.0
    %6416 = vmatpush1.msra.mxu0 %v5479
    %6417 = vmatprep.subr.mxu0 0.0
    %6418 = vmatpush1.msra.mxu0 %v5482
    %6419 = vmatprep.subr.mxu0 0.0
    %6420 = vmatpush1.msra.mxu0 %v5485
    %6421 = vmatprep.subr.mxu0 0.0
    %6422 = vmatpush1.msra.mxu0 %v5488
    %6423 = vmatprep.subr.mxu0 0.0
    %6424 = vmatpush1.msra.mxu0 %v5491
    %6425 = vmatprep.subr.mxu0 0.0
    %6426 = vmatpush1.msra.mxu0 %v5494
    %6427 = vmatprep.subr.mxu0 0.0
    %6428 = vmatpush1.msra.mxu0 %v5497
    %6429 = vmatprep.subr.mxu0 0.0
    %6430 = vmatpush1.msra.mxu0 %v5500
    %6431 = vmatprep.subr.mxu0 0.0
    %6432 = vmatpush1.msra.mxu0 0.0
    %6433 = vmatprep.subr.mxu0 0.0
    %6434 = vmatpush1.msra.mxu0 0.0
    %6435 = vmatprep.subr.mxu0 0.0
    %6436 = vmatpush1.msra.mxu0 0.0
    %6437 = vmatprep.subr.mxu0 0.0
    %6438 = vmatpush1.msra.mxu0 0.0
    %6439 = vmatprep.subr.mxu0 0.0
    %6440 = vmatpush1.msra.mxu0 0.0
    %6441 = vmatprep.subr.mxu0 0.0
    %6442 = vmatpush1.msra.mxu0 0.0
    %6443 = vmatprep.subr.mxu0 0.0
    %6444 = vmatpush1.msra.mxu0 0.0
    %6445 = vmatprep.subr.mxu0 0.0
    %6446 = vmatpush1.msra.mxu0 0.0
    %6447 = vmatprep.subr.mxu0 0.0
    %6448 = vmatpush1.msra.mxu0 0.0
    %6449 = vmatprep.subr.mxu0 0.0
    %6450 = vmatpush1.msra.mxu0 0.0
    %6451 = vmatprep.subr.mxu0 0.0
    %6452 = vmatpush1.msra.mxu0 0.0
    %6453 = vmatprep.subr.mxu0 0.0
    %6454 = vmatpush1.msra.mxu0 0.0
    %6455 = vmatprep.subr.mxu0 0.0
    %6456 = vmatpush1.msra.mxu0 0.0
    %6457 = vmatprep.subr.mxu0 0.0
    %6458 = vmatpush1.msra.mxu0 0.0
    %6459 = vmatprep.subr.mxu0 0.0
    %6460 = vmatpush1.msra.mxu0 0.0
    %6461 = vmatprep.subr.mxu0 0.0
    %6462 = vmatpush1.msra.mxu0 0.0
    %6463 = vmatprep.mubr.f32.mxu0 0.0
    %6464 = vmatmul.mubr.f32.gmra.mrb[0].mxu0 %v6327
    %v6465 = vpop.f32.mrb[0].mxu0
    %v6466 = vadd.f32 %v5514, %v6465
    %v6467 = vpop.f32.mrb[0].mxu0
    %6468 = vdwg.mxu0
    %v6469 = vadd.f32 %v5314, %v6395
    %v6470 = vxor.u32 %v6469, 2147483648
    %v6471 = vmul.f32 %v6470, 1.442695
    %v6472 = vpow.pop %v6471
    %v6473 = vadd.f32 %v6472, 1.0
    %v6474 = vrcp.pop %v6473
    %v6475 = vmul.f32 1.0, %v6474
    %v6476 = vadd.f32 %v5316, %v6397
    %v6477 = vxor.u32 %v6476, 2147483648
    %v6478 = vmul.f32 %v6477, 1.442695
    %v6479 = vpow.pop %v6478
    %v6480 = vadd.f32 %v6479, 1.0
    %v6481 = vrcp.pop %v6480
    %v6482 = vmul.f32 1.0, %v6481
    %v6483 = vmul.f32 %v6475, %v6466
    %v6484 = vadd.f32 %v5425, %v6483
    %v6485 = vtanh.pop %v6484
    %v6486 = vsub.f32 1.0, %v6482
    %v6487 = vmul.f32 %v6486, %v6485
    %v6488 = vmul.f32 %v6482, %v6327
    %v6489 = vadd.f32 %v6487, %v6488
    %6490 = vmatprep.subr.mxu0 %v5454
    %6491 = vmatpush1.msra.mxu0 %v5453
    %6492 = vmatprep.subr.mxu0 %v5457
    %6493 = vmatpush1.msra.mxu0 %v5456
    %6494 = vmatprep.subr.mxu0 %v5460
    %6495 = vmatpush1.msra.mxu0 %v5459
    %6496 = vmatprep.subr.mxu0 %v5463
    %6497 = vmatpush1.msra.mxu0 %v5462
    %6498 = vmatprep.subr.mxu0 %v5466
    %6499 = vmatpush1.msra.mxu0 %v5465
    %6500 = vmatprep.subr.mxu0 %v5469
    %6501 = vmatpush1.msra.mxu0 %v5468
    %6502 = vmatprep.subr.mxu0 %v5472
    %6503 = vmatpush1.msra.mxu0 %v5471
    %6504 = vmatprep.subr.mxu0 %v5475
    %6505 = vmatpush1.msra.mxu0 %v5474
    %6506 = vmatprep.subr.mxu0 %v5478
    %6507 = vmatpush1.msra.mxu0 %v5477
    %6508 = vmatprep.subr.mxu0 %v5481
    %6509 = vmatpush1.msra.mxu0 %v5480
    %6510 = vmatprep.subr.mxu0 %v5484
    %6511 = vmatpush1.msra.mxu0 %v5483
    %6512 = vmatprep.subr.mxu0 %v5487
    %6513 = vmatpush1.msra.mxu0 %v5486
    %6514 = vmatprep.subr.mxu0 %v5490
    %6515 = vmatpush1.msra.mxu0 %v5489
    %6516 = vmatprep.subr.mxu0 %v5493
    %6517 = vmatpush1.msra.mxu0 %v5492
    %6518 = vmatprep.subr.mxu0 %v5496
    %6519 = vmatpush1.msra.mxu0 %v5495
    %6520 = vmatprep.subr.mxu0 %v5499
    %6521 = vmatpush1.msra.mxu0 %v5498
    %6522 = vmatprep.subr.mxu0 0.0
    %6523 = vmatpush1.msra.mxu0 0.0
    %6524 = vmatprep.subr.mxu0 0.0
    %6525 = vmatpush1.msra.mxu0 0.0
    %6526 = vmatprep.subr.mxu0 0.0
    %6527 = vmatpush1.msra.mxu0 0.0
    %6528 = vmatprep.subr.mxu0 0.0
    %6529 = vmatpush1.msra.mxu0 0.0
    %6530 = vmatprep.subr.mxu0 0.0
    %6531 = vmatpush1.msra.mxu0 0.0
    %6532 = vmatprep.subr.mxu0 0.0
    %6533 = vmatpush1.msra.mxu0 0.0
    %6534 = vmatprep.subr.mxu0 0.0
    %6535 = vmatpush1.msra.mxu0 0.0
    %6536 = vmatprep.subr.mxu0 0.0
    %6537 = vmatpush1.msra.mxu0 0.0
    %6538 = vmatprep.subr.mxu0 0.0
    %6539 = vmatpush1.msra.mxu0 0.0
    %6540 = vmatprep.subr.mxu0 0.0
    %6541 = vmatpush1.msra.mxu0 0.0
    %6542 = vmatprep.subr.mxu0 0.0
    %6543 = vmatpush1.msra.mxu0 0.0
    %6544 = vmatprep.subr.mxu0 0.0
    %6545 = vmatpush1.msra.mxu0 0.0
    %6546 = vmatprep.subr.mxu0 0.0
    %6547 = vmatpush1.msra.mxu0 0.0
    %6548 = vmatprep.subr.mxu0 0.0
    %6549 = vmatpush1.msra.mxu0 0.0
    %6550 = vmatprep.subr.mxu0 0.0
    %6551 = vmatpush1.msra.mxu0 0.0
    %6552 = vmatprep.subr.mxu0 0.0
    %6553 = vmatpush1.msra.mxu0 0.0
    %6554 = vmatprep.mubr.f32.mxu0 0.0
    %6555 = vmatmul.mubr.f32.gmra.mrb[0].mxu0 %v6489
    %v6556 = vpop.f32.mrb[0].mxu0
    %v6557 = vadd.f32 %v5506, %v6556
    %v6558 = vpop.f32.mrb[0].mxu0
    %v6559 = vadd.f32 %v5510, %v6558
    %6560 = vdwg.mxu0
    %6561 = vmatprep.subr.mxu0 0.0
    %6562 = vmatpush1.msra.mxu0 %v5455
    %6563 = vmatprep.subr.mxu0 0.0
    %6564 = vmatpush1.msra.mxu0 %v5458
    %6565 = vmatprep.subr.mxu0 0.0
    %6566 = vmatpush1.msra.mxu0 %v5461
    %6567 = vmatprep.subr.mxu0 0.0
    %6568 = vmatpush1.msra.mxu0 %v5464
    %6569 = vmatprep.subr.mxu0 0.0
    %6570 = vmatpush1.msra.mxu0 %v5467
    %6571 = vmatprep.subr.mxu0 0.0
    %6572 = vmatpush1.msra.mxu0 %v5470
    %6573 = vmatprep.subr.mxu0 0.0
    %6574 = vmatpush1.msra.mxu0 %v5473
    %6575 = vmatprep.subr.mxu0 0.0
    %6576 = vmatpush1.msra.mxu0 %v5476
    %6577 = vmatprep.subr.mxu0 0.0
    %6578 = vmatpush1.msra.mxu0 %v5479
    %6579 = vmatprep.subr.mxu0 0.0
    %6580 = vmatpush1.msra.mxu0 %v5482
    %6581 = vmatprep.subr.mxu0 0.0
    %6582 = vmatpush1.msra.mxu0 %v5485
    %6583 = vmatprep.subr.mxu0 0.0
    %6584 = vmatpush1.msra.mxu0 %v5488
    %6585 = vmatprep.subr.mxu0 0.0
    %6586 = vmatpush1.msra.mxu0 %v5491
    %6587 = vmatprep.subr.mxu0 0.0
    %6588 = vmatpush1.msra.mxu0 %v5494
    %6589 = vmatprep.subr.mxu0 0.0
    %6590 = vmatpush1.msra.mxu0 %v5497
    %6591 = vmatprep.subr.mxu0 0.0
    %6592 = vmatpush1.msra.mxu0 %v5500
    %6593 = vmatprep.subr.mxu0 0.0
    %6594 = vmatpush1.msra.mxu0 0.0
    %6595 = vmatprep.subr.mxu0 0.0
    %6596 = vmatpush1.msra.mxu0 0.0
    %6597 = vmatprep.subr.mxu0 0.0
    %6598 = vmatpush1.msra.mxu0 0.0
    %6599 = vmatprep.subr.mxu0 0.0
    %6600 = vmatpush1.msra.mxu0 0.0
    %6601 = vmatprep.subr.mxu0 0.0
    %6602 = vmatpush1.msra.mxu0 0.0
    %6603 = vmatprep.subr.mxu0 0.0
    %6604 = vmatpush1.msra.mxu0 0.0
    %6605 = vmatprep.subr.mxu0 0.0
    %6606 = vmatpush1.msra.mxu0 0.0
    %6607 = vmatprep.subr.mxu0 0.0
    %6608 = vmatpush1.msra.mxu0 0.0
    %6609 = vmatprep.subr.mxu0 0.0
    %6610 = vmatpush1.msra.mxu0 0.0
    %6611 = vmatprep.subr.mxu0 0.0
    %6612 = vmatpush1.msra.mxu0 0.0
    %6613 = vmatprep.subr.mxu0 0.0
    %6614 = vmatpush1.msra.mxu0 0.0
    %6615 = vmatprep.subr.mxu0 0.0
    %6616 = vmatpush1.msra.mxu0 0.0
    %6617 = vmatprep.subr.mxu0 0.0
    %6618 = vmatpush1.msra.mxu0 0.0
    %6619 = vmatprep.subr.mxu0 0.0
    %6620 = vmatpush1.msra.mxu0 0.0
    %6621 = vmatprep.subr.mxu0 0.0
    %6622 = vmatpush1.msra.mxu0 0.0
    %6623 = vmatprep.subr.mxu0 0.0
    %6624 = vmatpush1.msra.mxu0 0.0
    %6625 = vmatprep.mubr.f32.mxu0 0.0
    %6626 = vmatmul.mubr.f32.gmra.mrb[0].mxu0 %v6489
    %v6627 = vpop.f32.mrb[0].mxu0
    %v6628 = vadd.f32 %v5514, %v6627
    %v6629 = vpop.f32.mrb[0].mxu0
    %6630 = vdwg.mxu0
    %v6631 = vadd.f32 %v5308, %v6557
    %v6632 = vxor.u32 %v6631, 2147483648
    %v6633 = vmul.f32 %v6632, 1.442695
    %v6634 = vpow.pop %v6633
    %v6635 = vadd.f32 %v6634, 1.0
    %v6636 = vrcp.pop %v6635
    %v6637 = vmul.f32 1.0, %v6636
    %v6638 = vadd.f32 %v5310, %v6559
    %v6639 = vxor.u32 %v6638, 2147483648
    %v6640 = vmul.f32 %v6639, 1.442695
    %v6641 = vpow.pop %v6640
    %v6642 = vadd.f32 %v6641, 1.0
    %v6643 = vrcp.pop %v6642
    %v6644 = vmul.f32 1.0, %v6643
    %v6645 = vmul.f32 %v6637, %v6628
    %v6646 = vadd.f32 %v5420, %v6645
    %v6647 = vtanh.pop %v6646
    %v6648 = vsub.f32 1.0, %v6644
    %v6649 = vmul.f32 %v6648, %v6647
    %v6650 = vmul.f32 %v6644, %v6489
    %v6651 = vadd.f32 %v6649, %v6650
    %6652 = vmatprep.subr.mxu0 %v5454
    %6653 = vmatpush1.msra.mxu0 %v5453
    %6654 = vmatprep.subr.mxu0 %v5457
    %6655 = vmatpush1.msra.mxu0 %v5456
    %6656 = vmatprep.subr.mxu0 %v5460
    %6657 = vmatpush1.msra.mxu0 %v5459
    %6658 = vmatprep.subr.mxu0 %v5463
    %6659 = vmatpush1.msra.mxu0 %v5462
    %6660 = vmatprep.subr.mxu0 %v5466
    %6661 = vmatpush1.msra.mxu0 %v5465
    %6662 = vmatprep.subr.mxu0 %v5469
    %6663 = vmatpush1.msra.mxu0 %v5468
    %6664 = vmatprep.subr.mxu0 %v5472
    %6665 = vmatpush1.msra.mxu0 %v5471
    %6666 = vmatprep.subr.mxu0 %v5475
    %6667 = vmatpush1.msra.mxu0 %v5474
    %6668 = vmatprep.subr.mxu0 %v5478
    %6669 = vmatpush1.msra.mxu0 %v5477
    %6670 = vmatprep.subr.mxu0 %v5481
    %6671 = vmatpush1.msra.mxu0 %v5480
    %6672 = vmatprep.subr.mxu0 %v5484
    %6673 = vmatpush1.msra.mxu0 %v5483
    %6674 = vmatprep.subr.mxu0 %v5487
    %6675 = vmatpush1.msra.mxu0 %v5486
    %6676 = vmatprep.subr.mxu0 %v5490
    %6677 = vmatpush1.msra.mxu0 %v5489
    %6678 = vmatprep.subr.mxu0 %v5493
    %6679 = vmatpush1.msra.mxu0 %v5492
    %6680 = vmatprep.subr.mxu0 %v5496
    %6681 = vmatpush1.msra.mxu0 %v5495
    %6682 = vmatprep.subr.mxu0 %v5499
    %6683 = vmatpush1.msra.mxu0 %v5498
    %6684 = vmatprep.subr.mxu0 0.0
    %6685 = vmatpush1.msra.mxu0 0.0
    %6686 = vmatprep.subr.mxu0 0.0
    %6687 = vmatpush1.msra.mxu0 0.0
    %6688 = vmatprep.subr.mxu0 0.0
    %6689 = vmatpush1.msra.mxu0 0.0
    %6690 = vmatprep.subr.mxu0 0.0
    %6691 = vmatpush1.msra.mxu0 0.0
    %6692 = vmatprep.subr.mxu0 0.0
    %6693 = vmatpush1.msra.mxu0 0.0
    %6694 = vmatprep.subr.mxu0 0.0
    %6695 = vmatpush1.msra.mxu0 0.0
    %6696 = vmatprep.subr.mxu0 0.0
    %6697 = vmatpush1.msra.mxu0 0.0
    %6698 = vmatprep.subr.mxu0 0.0
    %6699 = vmatpush1.msra.mxu0 0.0
    %6700 = vmatprep.subr.mxu0 0.0
    %6701 = vmatpush1.msra.mxu0 0.0
    %6702 = vmatprep.subr.mxu0 0.0
    %6703 = vmatpush1.msra.mxu0 0.0
    %6704 = vmatprep.subr.mxu0 0.0
    %6705 = vmatpush1.msra.mxu0 0.0
    %6706 = vmatprep.subr.mxu0 0.0
    %6707 = vmatpush1.msra.mxu0 0.0
    %6708 = vmatprep.subr.mxu0 0.0
    %6709 = vmatpush1.msra.mxu0 0.0
    %6710 = vmatprep.subr.mxu0 0.0
    %6711 = vmatpush1.msra.mxu0 0.0
    %6712 = vmatprep.subr.mxu0 0.0
    %6713 = vmatpush1.msra.mxu0 0.0
    %6714 = vmatprep.subr.mxu0 0.0
    %6715 = vmatpush1.msra.mxu0 0.0
    %6716 = vmatprep.mubr.f32.mxu0 0.0
    %6717 = vmatmul.mubr.f32.gmra.mrb[0].mxu0 %v6651
    %v6718 = vpop.f32.mrb[0].mxu0
    %v6719 = vadd.f32 %v5506, %v6718
    %v6720 = vpop.f32.mrb[0].mxu0
    %v6721 = vadd.f32 %v5510, %v6720
    %6722 = vdwg.mxu0
    %6723 = vmatprep.subr.mxu0 0.0
    %6724 = vmatpush1.msra.mxu0 %v5455
    %6725 = vmatprep.subr.mxu0 0.0
    %6726 = vmatpush1.msra.mxu0 %v5458
    %6727 = vmatprep.subr.mxu0 0.0
    %6728 = vmatpush1.msra.mxu0 %v5461
    %6729 = vmatprep.subr.mxu0 0.0
    %6730 = vmatpush1.msra.mxu0 %v5464
    %6731 = vmatprep.subr.mxu0 0.0
    %6732 = vmatpush1.msra.mxu0 %v5467
    %6733 = vmatprep.subr.mxu0 0.0
    %6734 = vmatpush1.msra.mxu0 %v5470
    %6735 = vmatprep.subr.mxu0 0.0
    %6736 = vmatpush1.msra.mxu0 %v5473
    %6737 = vmatprep.subr.mxu0 0.0
    %6738 = vmatpush1.msra.mxu0 %v5476
    %6739 = vmatprep.subr.mxu0 0.0
    %6740 = vmatpush1.msra.mxu0 %v5479
    %6741 = vmatprep.subr.mxu0 0.0
    %6742 = vmatpush1.msra.mxu0 %v5482
    %6743 = vmatprep.subr.mxu0 0.0
    %6744 = vmatpush1.msra.mxu0 %v5485
    %6745 = vmatprep.subr.mxu0 0.0
    %6746 = vmatpush1.msra.mxu0 %v5488
    %6747 = vmatprep.subr.mxu0 0.0
    %6748 = vmatpush1.msra.mxu0 %v5491
    %6749 = vmatprep.subr.mxu0 0.0
    %6750 = vmatpush1.msra.mxu0 %v5494
    %6751 = vmatprep.subr.mxu0 0.0
    %6752 = vmatpush1.msra.mxu0 %v5497
    %6753 = vmatprep.subr.mxu0 0.0
    %6754 = vmatpush1.msra.mxu0 %v5500
    %6755 = vmatprep.subr.mxu0 0.0
    %6756 = vmatpush1.msra.mxu0 0.0
    %6757 = vmatprep.subr.mxu0 0.0
    %6758 = vmatpush1.msra.mxu0 0.0
    %6759 = vmatprep.subr.mxu0 0.0
    %6760 = vmatpush1.msra.mxu0 0.0
    %6761 = vmatprep.subr.mxu0 0.0
    %6762 = vmatpush1.msra.mxu0 0.0
    %6763 = vmatprep.subr.mxu0 0.0
    %6764 = vmatpush1.msra.mxu0 0.0
    %6765 = vmatprep.subr.mxu0 0.0
    %6766 = vmatpush1.msra.mxu0 0.0
    %6767 = vmatprep.subr.mxu0 0.0
    %6768 = vmatpush1.msra.mxu0 0.0
    %6769 = vmatprep.subr.mxu0 0.0
    %6770 = vmatpush1.msra.mxu0 0.0
    %6771 = vmatprep.subr.mxu0 0.0
    %6772 = vmatpush1.msra.mxu0 0.0
    %6773 = vmatprep.subr.mxu0 0.0
    %6774 = vmatpush1.msra.mxu0 0.0
    %6775 = vmatprep.subr.mxu0 0.0
    %6776 = vmatpush1.msra.mxu0 0.0
    %6777 = vmatprep.subr.mxu0 0.0
    %6778 = vmatpush1.msra.mxu0 0.0
    %6779 = vmatprep.subr.mxu0 0.0
    %6780 = vmatpush1.msra.mxu0 0.0
    %6781 = vmatprep.subr.mxu0 0.0
    %6782 = vmatpush1.msra.mxu0 0.0
    %6783 = vmatprep.subr.mxu0 0.0
    %6784 = vmatpush1.msra.mxu0 0.0
    %6785 = vmatprep.subr.mxu0 0.0
    %6786 = vmatpush1.msra.mxu0 0.0
    %6787 = vmatprep.mubr.f32.mxu0 0.0
    %6788 = vmatmul.mubr.f32.gmra.mrb[0].mxu0 %v6651
    %v6789 = vpop.f32.mrb[0].mxu0
    %v6790 = vadd.f32 %v5514, %v6789
    %v6791 = vpop.f32.mrb[0].mxu0
    %6792 = vdwg.mxu0
    %v6793 = vadd.f32 %v5302, %v6719
    %v6794 = vxor.u32 %v6793, 2147483648
    %v6795 = vmul.f32 %v6794, 1.442695
    %v6796 = vpow.pop %v6795
    %v6797 = vadd.f32 %v6796, 1.0
    %v6798 = vrcp.pop %v6797
    %v6799 = vmul.f32 1.0, %v6798
    %v6800 = vadd.f32 %v5304, %v6721
    %v6801 = vxor.u32 %v6800, 2147483648
    %v6802 = vmul.f32 %v6801, 1.442695
    %v6803 = vpow.pop %v6802
    %v6804 = vadd.f32 %v6803, 1.0
    %v6805 = vrcp.pop %v6804
    %v6806 = vmul.f32 1.0, %v6805
    %v6807 = vmul.f32 %v6799, %v6790
    %v6808 = vadd.f32 %v5415, %v6807
    %v6809 = vtanh.pop %v6808
    %v6810 = vsub.f32 1.0, %v6806
    %v6811 = vmul.f32 %v6810, %v6809
    %v6812 = vmul.f32 %v6806, %v6651
    %v6813 = vadd.f32 %v6811, %v6812
    %v6814 = vld [vmem:[%s17] sm:$0xff]
    %v6815 = vld [vmem:[%s17 + $0x8] sm:$0xff]
    %v6816 = vld [vmem:[%s17 + $0x10] sm:$0xff]
    %v6817 = vld [vmem:[%s17 + $0x18] sm:$0xff]
    %v6818 = vld [vmem:[%s17 + $0x20] sm:$0xff]
    %v6819 = vld [vmem:[%s17 + $0x28] sm:$0xff]
    %v6820 = vld [vmem:[%s17 + $0x30] sm:$0xff]
    %v6821 = vld [vmem:[%s17 + $0x38] sm:$0xff]
    %v6822 = vld [vmem:[%s17 + $0x40] sm:$0xff]
    %v6823 = vld [vmem:[%s17 + $0x48] sm:$0xff]
    %v6824 = vld [vmem:[%s17 + $0x50] sm:$0xff]
    %v6825 = vld [vmem:[%s17 + $0x58] sm:$0xff]
    %v6826 = vld [vmem:[%s17 + $0x60] sm:$0xff]
    %v6827 = vld [vmem:[%s17 + $0x68] sm:$0xff]
    %v6828 = vld [vmem:[%s17 + $0x70] sm:$0xff]
    %v6829 = vld [vmem:[%s17 + $0x78] sm:$0xff]
    %v6830 = vld [vmem:[%s17 + $0x80] sm:$0xff]
    %v6831 = vld [vmem:[%s17 + $0x88] sm:$0xff]
    %v6832 = vld [vmem:[%s17 + $0x90] sm:$0xff]
    %v6833 = vld [vmem:[%s17 + $0x98] sm:$0xff]
    %v6834 = vld [vmem:[%s17 + $0xa0] sm:$0xff]
    %v6835 = vld [vmem:[%s17 + $0xa8] sm:$0xff]
    %v6836 = vld [vmem:[%s17 + $0xb0] sm:$0xff]
    %v6837 = vld [vmem:[%s17 + $0xb8] sm:$0xff]
    %v6838 = vld [vmem:[%s17 + $0xc0] sm:$0xff]
    %v6839 = vld [vmem:[%s17 + $0xc8] sm:$0xff]
    %v6840 = vld [vmem:[%s17 + $0xd0] sm:$0xff]
    %v6841 = vld [vmem:[%s17 + $0xd8] sm:$0xff]
    %v6842 = vld [vmem:[%s17 + $0xe0] sm:$0xff]
    %v6843 = vld [vmem:[%s17 + $0xe8] sm:$0xff]
    %v6844 = vld [vmem:[%s17 + $0xf0] sm:$0xff]
    %v6845 = vld [vmem:[%s17 + $0xf8] sm:$0xff]
    %v6846 = vld [vmem:[%s18] sm:$0x1]
    %v6848 = vlaneseq
    %v6849 = vshrl.u32 %v6848, 7
    %v6850 = vsub.s32 0, %v6849
    %v6851 = vrot.slane %v6846, %v6850
    %6853 = vmatprep.subr.mxu0 0.0
    %6854 = vmatpush1.msra.mxu0 %v6814
    %6855 = vmatprep.subr.mxu0 0.0
    %6856 = vmatpush1.msra.mxu0 %v6815
    %6857 = vmatprep.subr.mxu0 0.0
    %6858 = vmatpush1.msra.mxu0 %v6816
    %6859 = vmatprep.subr.mxu0 0.0
    %6860 = vmatpush1.msra.mxu0 %v6817
    %6861 = vmatprep.subr.mxu0 0.0
    %6862 = vmatpush1.msra.mxu0 %v6818
    %6863 = vmatprep.subr.mxu0 0.0
    %6864 = vmatpush1.msra.mxu0 %v6819
    %6865 = vmatprep.subr.mxu0 0.0
    %6866 = vmatpush1.msra.mxu0 %v6820
    %6867 = vmatprep.subr.mxu0 0.0
    %6868 = vmatpush1.msra.mxu0 %v6821
    %6869 = vmatprep.subr.mxu0 0.0
    %6870 = vmatpush1.msra.mxu0 %v6822
    %6871 = vmatprep.subr.mxu0 0.0
    %6872 = vmatpush1.msra.mxu0 %v6823
    %6873 = vmatprep.subr.mxu0 0.0
    %6874 = vmatpush1.msra.mxu0 %v6824
    %6875 = vmatprep.subr.mxu0 0.0
    %6876 = vmatpush1.msra.mxu0 %v6825
    %6877 = vmatprep.subr.mxu0 0.0
    %6878 = vmatpush1.msra.mxu0 %v6826
    %6879 = vmatprep.subr.mxu0 0.0
    %6880 = vmatpush1.msra.mxu0 %v6827
    %6881 = vmatprep.subr.mxu0 0.0
    %6882 = vmatpush1.msra.mxu0 %v6828
    %6883 = vmatprep.subr.mxu0 0.0
    %6884 = vmatpush1.msra.mxu0 %v6829
    %6885 = vmatprep.subr.mxu0 0.0
    %6886 = vmatpush1.msra.mxu0 %v6830
    %6887 = vmatprep.subr.mxu0 0.0
    %6888 = vmatpush1.msra.mxu0 %v6831
    %6889 = vmatprep.subr.mxu0 0.0
    %6890 = vmatpush1.msra.mxu0 %v6832
    %6891 = vmatprep.subr.mxu0 0.0
    %6892 = vmatpush1.msra.mxu0 %v6833
    %6893 = vmatprep.subr.mxu0 0.0
    %6894 = vmatpush1.msra.mxu0 %v6834
    %6895 = vmatprep.subr.mxu0 0.0
    %6896 = vmatpush1.msra.mxu0 %v6835
    %6897 = vmatprep.subr.mxu0 0.0
    %6898 = vmatpush1.msra.mxu0 %v6836
    %6899 = vmatprep.subr.mxu0 0.0
    %6900 = vmatpush1.msra.mxu0 %v6837
    %6901 = vmatprep.subr.mxu0 0.0
    %6902 = vmatpush1.msra.mxu0 %v6838
    %6903 = vmatprep.subr.mxu0 0.0
    %6904 = vmatpush1.msra.mxu0 %v6839
    %6905 = vmatprep.subr.mxu0 0.0
    %6906 = vmatpush1.msra.mxu0 %v6840
    %6907 = vmatprep.subr.mxu0 0.0
    %6908 = vmatpush1.msra.mxu0 %v6841
    %6909 = vmatprep.subr.mxu0 0.0
    %6910 = vmatpush1.msra.mxu0 %v6842
    %6911 = vmatprep.subr.mxu0 0.0
    %6912 = vmatpush1.msra.mxu0 %v6843
    %6913 = vmatprep.subr.mxu0 0.0
    %6914 = vmatpush1.msra.mxu0 %v6844
    %6915 = vmatprep.subr.mxu0 0.0
    %6916 = vmatpush1.msra.mxu0 %v6845
    %6917 = vmatprep.mubr.f32.mxu0 %v6813
    %6918 = vmatmul.mubr.f32.gmra.mrb[0].mxu0 %v3987
    %v6919 = vpop.f32.mrb[0].mxu0
    %v6920 = vadd.f32 %v6851, %v6919
    %v6921 = vpop.f32.mrb[0].mxu0
    %6922 = vmatprep.mubr.f32.mxu0 %v6651
    %6923 = vmatmul.mubr.f32.gmra.mrb[0].mxu0 %v4149
    %v6924 = vpop.f32.mrb[0].mxu0
    %v6925 = vadd.f32 %v6851, %v6924
    %v6926 = vpop.f32.mrb[0].mxu0
    %6927 = vmatprep.mubr.f32.mxu0 %v6489
    %6928 = vmatmul.mubr.f32.gmra.mrb[0].mxu0 %v4311
    %v6929 = vpop.f32.mrb[0].mxu0
    %v6930 = vadd.f32 %v6851, %v6929
    %v6931 = vpop.f32.mrb[0].mxu0
    %6932 = vmatprep.mubr.f32.mxu0 %v6327
    %6933 = vmatmul.mubr.f32.gmra.mrb[0].mxu0 %v4473
    %v6934 = vpop.f32.mrb[0].mxu0
    %v6935 = vadd.f32 %v6851, %v6934
    %v6936 = vpop.f32.mrb[0].mxu0
    %6937 = vmatprep.mubr.f32.mxu0 %v6165
    %6938 = vmatmul.mubr.f32.gmra.mrb[0].mxu0 %v4635
    %v6939 = vpop.f32.mrb[0].mxu0
    %v6940 = vadd.f32 %v6851, %v6939
    %v6941 = vpop.f32.mrb[0].mxu0
    %6942 = vmatprep.mubr.f32.mxu0 %v6003
    %6943 = vmatmul.mubr.f32.gmra.mrb[0].mxu0 %v4797
    %v6944 = vpop.f32.mrb[0].mxu0
    %v6945 = vadd.f32 %v6851, %v6944
    %v6946 = vpop.f32.mrb[0].mxu0
    %6947 = vmatprep.mubr.f32.mxu0 %v5841
    %6948 = vmatmul.mubr.f32.gmra.mrb[0].mxu0 %v4959
    %v6949 = vpop.f32.mrb[0].mxu0
    %v6950 = vadd.f32 %v6851, %v6949
    %v6951 = vpop.f32.mrb[0].mxu0
    %6952 = vmatprep.mubr.f32.mxu0 %v5679
    %6953 = vmatmul.mubr.f32.gmra.mrb[0].mxu0 %v5121
    %v6954 = vpop.f32.mrb[0].mxu0
    %v6955 = vadd.f32 %v6851, %v6954
    %v6956 = vpop.f32.mrb[0].mxu0
    %6957 = vdwg.mxu0
    %6958 = vst [vmem:[%s19] sm:$0xff] %v6920
    %6959 = vst [vmem:[%s19 + $0x8] sm:$0xff] %v6925
    %6960 = vst [vmem:[%s19 + $0x10] sm:$0xff] %v6930
    %6961 = vst [vmem:[%s19 + $0x18] sm:$0xff] %v6935
    %6962 = vst [vmem:[%s19 + $0x20] sm:$0xff] %v6940
    %6963 = vst [vmem:[%s19 + $0x28] sm:$0xff] %v6945
    %6964 = vst [vmem:[%s19 + $0x30] sm:$0xff] %v6950
    %6965 = vst [vmem:[%s19 + $0x38] sm:$0xff] %v6955
    // Predicated region
    $region106: #{model_forward.1} parent=1 // pred_check
      _
    $region107: #{model_forward.1} parent=1 // pred_check_branch
      %6967 = sbr.rel (0) target = $region109
    $region108: #{model_forward.1} parent=1 // pred_region
      _
    $region109: #{model_forward.1} parent=1 // pred_fallthru
      _
    // Predicated region
    $region110: #{model_forward.1} parent=1 // pred_check
      _
    $region111: #{model_forward.1} parent=1 // pred_check_branch
      %6969 = sbr.rel (0) target = $region113
    $region112: #{model_forward.1} parent=1 // pred_region
      _
    $region113: #{model_forward.1} parent=1 // pred_fallthru
      _
    %6970 = vsyncpa [#allocation3], 1
    %6971 = vsyncpa [#allocation5], 1
    %6972 = vsyncpa [#allocation8], 1
    %6973 = vsyncpa [#allocation11], 1

</llo_original>
